<compile_context>
chip_gen: v7x
topology: tpu7x:2x2x1
jax: 0.10.0
libtpu: 0.0.40
codegen_flags: <defaults>
</compile_context>

<pallas_src>
import functools

import jax
import jax.numpy as jnp
from jax import lax
from jax.experimental import pallas as pl
from jax.experimental.pallas import tpu as pltpu

BN_EPS = 1e-5


def _round_up(x, m):
    return (x + m - 1) // m * m


# ----------------------------------------------------------------------- kernels
def _fold_groups(row, groups, cout):
    """row: (1, groups*cout) -> (1, cout) summed across the phase groups."""
    acc = row[:, 0:cout]
    for g in range(1, groups):
        acc = acc + row[:, g * cout:(g + 1) * cout]
    return acc


def _bn_relu(y, g_ref, b_ref, groups, cout, count):
    """Training-mode BatchNorm over rows x phase-groups, then ReLU.  y: (M, groups*cout)."""
    csum = jnp.sum(y, axis=0, keepdims=True)                        # (1, G*C)
    mean_c = _fold_groups(csum, groups, cout) / count               # (1, C)
    mean = jnp.tile(mean_c, (1, groups))                            # (1, G*C)
    d = y - mean
    vsum = jnp.sum(d * d, axis=0, keepdims=True)
    var = jnp.tile(_fold_groups(vsum, groups, cout) / count, (1, groups))
    yhat = d * lax.rsqrt(var + BN_EPS)
    return jnp.maximum(yhat * g_ref[...] + b_ref[...], 0.0)


def _gemm_bn_relu_kernel(p_ref, w_ref, g_ref, b_ref, o_ref, *, groups, cout, count):
    # bf16 x bf16 -> f32 accumulation on the MXU
    y = jnp.dot(p_ref[...], w_ref[...], preferred_element_type=jnp.float32)
    o_ref[...] = _bn_relu(y, g_ref, b_ref, groups, cout, count)


def _gemm_bn_relu_proj_tanh_kernel(p_ref, w_ref, g_ref, b_ref, w2_ref, o_ref, *,
                                   groups, cout, count):
    y = jnp.dot(p_ref[...], w_ref[...], preferred_element_type=jnp.float32)
    act = _bn_relu(y, g_ref, b_ref, groups, cout, count)
    # fused deconv5 (1x1 ConvTranspose applied per phase group) + Tanh
    z = jnp.dot(act.astype(jnp.bfloat16), w2_ref[...],
                preferred_element_type=jnp.float32)
    o_ref[...] = jnp.tanh(z)


# ---------------------------------------------------------------------- wrappers
def _full(shape):
    return pl.BlockSpec(shape, lambda i: (0,) * len(shape))


_COMPILER_PARAMS = pltpu.CompilerParams(
    dimension_semantics=("arbitrary",),
    vmem_limit_bytes=32 * 1024 * 1024)   # safe on v5e/v6e (128 MiB) and v7x (64 MiB)


def fused_gemm_bn_relu(patches, wmat, gamma_t, beta_t, *, groups, cout, count):
    M, K = patches.shape
    GN = wmat.shape[1]
    kern = functools.partial(_gemm_bn_relu_kernel, groups=groups, cout=cout,
                             count=float(count))
    return pl.pallas_call(
        kern,
        grid=(1,),
        in_specs=[_full((M, K)), _full((K, GN)), _full((1, GN)), _full((1, GN))],
        out_specs=_full((M, GN)),
        out_shape=jax.ShapeDtypeStruct((M, GN), jnp.float32),
        compiler_params=_COMPILER_PARAMS,
    )(patches, wmat, gamma_t, beta_t)


def fused_gemm_bn_relu_proj_tanh(patches, wmat, gamma_t, beta_t, w2, *, groups,
                                 cout, count):
    M, K = patches.shape
    GN = wmat.shape[1]
    P = w2.shape[1]
    kern = functools.partial(_gemm_bn_relu_proj_tanh_kernel, groups=groups,
                             cout=cout, count=float(count))
    return pl.pallas_call(
        kern,
        grid=(1,),
        in_specs=[_full((M, K)), _full((K, GN)), _full((1, GN)), _full((1, GN)),
                  _full((GN, P))],
        out_specs=_full((M, P)),
        out_shape=jax.ShapeDtypeStruct((M, P), jnp.float32),
        compiler_params=_COMPILER_PARAMS,
    )(patches, wmat, gamma_t, beta_t, w2)


# --------------------------------------------------- sub-pixel deconv lowering (XLA)
def _im2col_3x3(x_nhwc):
    """(N,H,W,C) f32 -> bf16 patches (N*H*W, 9*C); columns ordered ((u*3+v), c)."""
    N, H, W, C = x_nhwc.shape
    xp = jnp.pad(x_nhwc.astype(jnp.bfloat16), ((0, 0), (1, 1), (1, 1), (0, 0)))
    cols = [xp[:, u:u + H, v:v + W, :] for u in range(3) for v in range(3)]
    return jnp.stack(cols, axis=3).reshape(N * H * W, 9 * C)


def _interleave_phases(y, N, H, W, C):
    """y: (N*H*W, 4*C) with columns (phase=a*2+b, c) -> NHWC (N, 2H, 2W, C)."""
    y = y.reshape(N, H, W, 2, 2, C)
    y = jnp.transpose(y, (0, 1, 3, 2, 4, 5))
    return y.reshape(N, 2 * H, 2 * W, C)


# -------------------------------------------------------------------- parameters
def init_params(key, latent=100, init_channel=32, img_channel=1):
    """PyTorch-matching init (weights ~ N(0, 0.02), BN gamma=1 beta=0), pre-packed
    once into the GEMM layouts consumed by the Pallas kernels."""
    c1, c2, c3, c4 = init_channel * 8, init_channel * 4, init_channel * 2, init_channel
    k1, k2, k3, k4, k5 = jax.random.split(key, 5)
    std = 0.02
    w1 = std * jax.random.normal(k1, (latent, c1, 4, 4), jnp.float32)
    w2 = std * jax.random.normal(k2, (c1, c2, 4, 4), jnp.float32)
    w3 = std * jax.random.normal(k3, (c2, c3, 4, 4), jnp.float32)
    w4 = std * jax.random.normal(k4, (c3, c4, 4, 4), jnp.float32)
    w5 = std * jax.random.normal(k5, (c4, img_channel, 1, 1), jnp.float32)

    # deconv1: 1x1 spatial input, stride 1, pad 0 => plain GEMM
    #   out[n, co, kh, kw] = sum_ci z[n, ci] * W1[ci, co, kh, kw]
    # columns ordered (kh, kw, co); K padded to a multiple of 128.
    latent_pad = _round_up(latent, 128)
    w1mat = jnp.transpose(w1, (0, 2, 3, 1)).reshape(latent, 16 * c1)
    w1mat = jnp.pad(w1mat, ((0, latent_pad - latent), (0, 0))).astype(jnp.bfloat16)

    def s2_phase_pack(w):
        """ConvTranspose2d(k=4,s=2,p=1) weight (Cin,Cout,4,4) -> (9*Cin, 4*Cout)
        sub-pixel GEMM weight sharing one 3x3 im2col window; unused taps are zero.
        Output column = (a*2+b)*Cout + co, where (a,b) = output-pixel parity."""
        cin, cout = w.shape[0], w.shape[1]
        big = jnp.zeros((3, 3, cin, 4, cout), jnp.float32)
        for a in range(2):
            for b in range(2):
                for di in range(2):
                    for dj in range(2):
                        big = big.at[a + di, b + dj, :, a * 2 + b, :].set(
                            w[:, :, 3 - a - 2 * di, 3 - b - 2 * dj])
        return big.reshape(9 * cin, 4 * cout).astype(jnp.bfloat16)

    # deconv5 (1x1, stride 1): applied independently on each phase group of the
    # deconv4 kernel output; padded to a lane-dense (>=128) output width.
    out_cols = max(_round_up(4 * img_channel, 128), 128)
    w5big = jnp.zeros((4 * c4, out_cols), jnp.float32)
    for p in range(4):
        w5big = w5big.at[p * c4:(p + 1) * c4,
                         p * img_channel:(p + 1) * img_channel].set(w5[:, :, 0, 0])
    w5big = w5big.astype(jnp.bfloat16)

    def bn(c, groups):   # gamma/beta pre-tiled to the (1, groups*c) kernel layout
        return (jnp.tile(jnp.ones((c,), jnp.float32), groups)[None, :],
                jnp.tile(jnp.zeros((c,), jnp.float32), groups)[None, :])

    g1, b1 = bn(c1, 16)
    g2, b2 = bn(c2, 4)
    g3, b3 = bn(c3, 4)
    g4, b4 = bn(c4, 4)
    return dict(w1=w1mat, g1=g1, b1=b1,
                w2=s2_phase_pack(w2), g2=g2, b2=b2,
                w3=s2_phase_pack(w3), g3=g3, b3=b3,
                w4=s2_phase_pack(w4), g4=g4, b4=b4,
                w5=w5big)


# ----------------------------------------------------------------------- forward
def generator_forward(params, z_nchw, *, img_channel=1):
    """Generator.forward (gan_type=0).  z: (N, latent, 1, 1) -> (N, img_channel, 32, 32)."""
    N, latent = z_nchw.shape[0], z_nchw.shape[1]
    latent_pad = params["w1"].shape[0]
    c1 = params["w1"].shape[1] // 16
    c2 = params["w2"].shape[1] // 4
    c3 = params["w3"].shape[1] // 4
    c4 = params["w4"].shape[1] // 4

    # deconv1 + BN + ReLU : single GEMM, output columns (oh, ow, c1)
    x0 = z_nchw.reshape(N, latent)
    x0 = jnp.pad(x0, ((0, 0), (0, latent_pad - latent))).astype(jnp.bfloat16)
    y1 = fused_gemm_bn_relu(x0, params["w1"], params["g1"], params["b1"],
                            groups=16, cout=c1, count=N * 16)
    x = y1.reshape(N, 4, 4, c1)                                  # NHWC (N,4,4,256)

    # deconv2 + BN + ReLU : 4-phase sub-pixel GEMM over shared 3x3 patches
    y2 = fused_gemm_bn_relu(_im2col_3x3(x), params["w2"], params["g2"], params["b2"],
                            groups=4, cout=c2, count=N * 4 * 4 * 4)
    x = _interleave_phases(y2, N, 4, 4, c2)                      # (N,8,8,128)

    # deconv3 + BN + ReLU
    y3 = fused_gemm_bn_relu(_im2col_3x3(x), params["w3"], params["g3"], params["b3"],
                            groups=4, cout=c3, count=N * 8 * 8 * 4)
    x = _interleave_phases(y3, N, 8, 8, c3)                      # (N,16,16,64)

    # deconv4 + BN + ReLU fused with deconv5 (1x1 ConvTranspose) + Tanh
    z = fused_gemm_bn_relu_proj_tanh(_im2col_3x3(x), params["w4"], params["g4"],
                                     params["b4"], params["w5"],
                                     groups=4, cout=c4, count=N * 16 * 16 * 4)
    img = _interleave_phases(z[:, :4 * img_channel], N, 16, 16, img_channel)
    return jnp.transpose(img, (0, 3, 1, 2))                      # NHWC -> NCHW


# -------------------------------------------------------------------------- main
if __name__ == "__main__":
    batch = 2
    latent = 100
    init_channel = 32
    img_channel = 1

    root = jax.random.PRNGKey(0)
    kp, kz = jax.random.split(root)
    params = init_params(kp, latent=latent, init_channel=init_channel,
                         img_channel=img_channel)
    z = jax.random.normal(kz, (batch, latent, 1, 1), jnp.float32)

    fwd = jax.jit(functools.partial(generator_forward, img_channel=img_channel))
    out = fwd(params, z)
    jax.block_until_ready(out)

    assert out.shape == (batch, img_channel, 32, 32), out.shape
    assert bool(jnp.all(jnp.isfinite(out)))
    assert bool(jnp.all(jnp.abs(out) <= 1.0 + 1e-6))   # tanh output range
    print("KERNEL_OK")
</pallas_src>

<mosaic_0001>
module attributes {stable_mosaic.version = 11 : i64} {
  func.func @_gemm_bn_relu_kernel(%arg0: i32, %arg1: memref<2x128xbf16, #tpu.memory_space<vmem>>, %arg2: memref<128x4096xbf16, #tpu.memory_space<vmem>>, %arg3: memref<1x4096xf32, #tpu.memory_space<vmem>>, %arg4: memref<1x4096xf32, #tpu.memory_space<vmem>>, %arg5: memref<2x4096xf32, #tpu.memory_space<vmem>>) attributes {dimension_semantics = [#tpu.dimension_semantics<arbitrary>], iteration_bounds = array<i64: 1>, scalar_prefetch = 0 : i64, scratch_operands = 0 : i64, tpu.core_type = #tpu.core_type<tc>, window_params = [{pipeline_mode = #tpu.pipeline_mode<synchronous>, transform_indices = @transform_0, window_bounds = array<i64: 2, 128>}, {pipeline_mode = #tpu.pipeline_mode<synchronous>, transform_indices = @transform_1, window_bounds = array<i64: 128, 4096>}, {pipeline_mode = #tpu.pipeline_mode<synchronous>, transform_indices = @transform_2, window_bounds = array<i64: 1, 4096>}, {pipeline_mode = #tpu.pipeline_mode<synchronous>, transform_indices = @transform_3, window_bounds = array<i64: 1, 4096>}, {pipeline_mode = #tpu.pipeline_mode<synchronous>, transform_indices = @transform_4, window_bounds = array<i64: 2, 4096>}]} {
    %c0 = arith.constant 0 : index
    %c0_0 = arith.constant 0 : index
    %0 = vector.load %arg1[%c0, %c0_0] : memref<2x128xbf16, #tpu.memory_space<vmem>>, vector<2x128xbf16>
    %c0_1 = arith.constant 0 : index
    %c0_2 = arith.constant 0 : index
    %1 = vector.load %arg2[%c0_1, %c0_2] : memref<128x4096xbf16, #tpu.memory_space<vmem>>, vector<128x4096xbf16>
    %cst = arith.constant dense<0.000000e+00> : vector<2x4096xf32>
    %2 = tpu.matmul %0, %1, %cst {dimension_numbers = #tpu.dot_dimension_numbers<[1], [0], [0], [1], [0, 0, 1, 1], [], []>} : vector<2x128xbf16>, vector<128x4096xbf16>, vector<2x4096xf32> -> vector<2x4096xf32>
    %cst_3 = arith.constant dense<0.000000e+00> : vector<4096xf32>
    %3 = vector.multi_reduction <add>, %2, %cst_3 [0] : vector<2x4096xf32> to vector<4096xf32>
    %4 = vector.shape_cast %3 : vector<4096xf32> to vector<1x4096xf32>
    %5 = vector.extract_strided_slice %4 {offsets = [0, 0], sizes = [1, 256], strides = [1, 1]} : vector<1x4096xf32> to vector<1x256xf32>
    %6 = vector.extract_strided_slice %4 {offsets = [0, 256], sizes = [1, 256], strides = [1, 1]} : vector<1x4096xf32> to vector<1x256xf32>
    %7 = arith.addf %5, %6 : vector<1x256xf32>
    %8 = vector.extract_strided_slice %4 {offsets = [0, 512], sizes = [1, 256], strides = [1, 1]} : vector<1x4096xf32> to vector<1x256xf32>
    %9 = arith.addf %7, %8 : vector<1x256xf32>
    %10 = vector.extract_strided_slice %4 {offsets = [0, 768], sizes = [1, 256], strides = [1, 1]} : vector<1x4096xf32> to vector<1x256xf32>
    %11 = arith.addf %9, %10 : vector<1x256xf32>
    %12 = vector.extract_strided_slice %4 {offsets = [0, 1024], sizes = [1, 256], strides = [1, 1]} : vector<1x4096xf32> to vector<1x256xf32>
    %13 = arith.addf %11, %12 : vector<1x256xf32>
    %14 = vector.extract_strided_slice %4 {offsets = [0, 1280], sizes = [1, 256], strides = [1, 1]} : vector<1x4096xf32> to vector<1x256xf32>
    %15 = arith.addf %13, %14 : vector<1x256xf32>
    %16 = vector.extract_strided_slice %4 {offsets = [0, 1536], sizes = [1, 256], strides = [1, 1]} : vector<1x4096xf32> to vector<1x256xf32>
    %17 = arith.addf %15, %16 : vector<1x256xf32>
    %18 = vector.extract_strided_slice %4 {offsets = [0, 1792], sizes = [1, 256], strides = [1, 1]} : vector<1x4096xf32> to vector<1x256xf32>
    %19 = arith.addf %17, %18 : vector<1x256xf32>
    %20 = vector.extract_strided_slice %4 {offsets = [0, 2048], sizes = [1, 256], strides = [1, 1]} : vector<1x4096xf32> to vector<1x256xf32>
    %21 = arith.addf %19, %20 : vector<1x256xf32>
    %22 = vector.extract_strided_slice %4 {offsets = [0, 2304], sizes = [1, 256], strides = [1, 1]} : vector<1x4096xf32> to vector<1x256xf32>
    %23 = arith.addf %21, %22 : vector<1x256xf32>
    %24 = vector.extract_strided_slice %4 {offsets = [0, 2560], sizes = [1, 256], strides = [1, 1]} : vector<1x4096xf32> to vector<1x256xf32>
    %25 = arith.addf %23, %24 : vector<1x256xf32>
    %26 = vector.extract_strided_slice %4 {offsets = [0, 2816], sizes = [1, 256], strides = [1, 1]} : vector<1x4096xf32> to vector<1x256xf32>
    %27 = arith.addf %25, %26 : vector<1x256xf32>
    %28 = vector.extract_strided_slice %4 {offsets = [0, 3072], sizes = [1, 256], strides = [1, 1]} : vector<1x4096xf32> to vector<1x256xf32>
    %29 = arith.addf %27, %28 : vector<1x256xf32>
    %30 = vector.extract_strided_slice %4 {offsets = [0, 3328], sizes = [1, 256], strides = [1, 1]} : vector<1x4096xf32> to vector<1x256xf32>
    %31 = arith.addf %29, %30 : vector<1x256xf32>
    %32 = vector.extract_strided_slice %4 {offsets = [0, 3584], sizes = [1, 256], strides = [1, 1]} : vector<1x4096xf32> to vector<1x256xf32>
    %33 = arith.addf %31, %32 : vector<1x256xf32>
    %34 = vector.extract_strided_slice %4 {offsets = [0, 3840], sizes = [1, 256], strides = [1, 1]} : vector<1x4096xf32> to vector<1x256xf32>
    %35 = arith.addf %33, %34 : vector<1x256xf32>
    %cst_4 = arith.constant 3.200000e+01 : f32
    %36 = vector.broadcast %cst_4 : f32 to vector<1x256xf32>
    %37 = arith.divf %35, %36 : vector<1x256xf32>
    %38 = tpu.concatenate %37, %37, %37, %37, %37, %37, %37, %37, %37, %37, %37, %37, %37, %37, %37, %37 in 1 : vector<1x256xf32>, vector<1x256xf32>, vector<1x256xf32>, vector<1x256xf32>, vector<1x256xf32>, vector<1x256xf32>, vector<1x256xf32>, vector<1x256xf32>, vector<1x256xf32>, vector<1x256xf32>, vector<1x256xf32>, vector<1x256xf32>, vector<1x256xf32>, vector<1x256xf32>, vector<1x256xf32>, vector<1x256xf32> -> vector<1x4096xf32>
    %39 = vector.broadcast %38 : vector<1x4096xf32> to vector<2x4096xf32>
    %40 = arith.subf %2, %39 : vector<2x4096xf32>
    %41 = arith.mulf %40, %40 : vector<2x4096xf32>
    %cst_5 = arith.constant dense<0.000000e+00> : vector<4096xf32>
    %42 = vector.multi_reduction <add>, %41, %cst_5 [0] : vector<2x4096xf32> to vector<4096xf32>
    %43 = vector.shape_cast %42 : vector<4096xf32> to vector<1x4096xf32>
    %44 = vector.extract_strided_slice %43 {offsets = [0, 0], sizes = [1, 256], strides = [1, 1]} : vector<1x4096xf32> to vector<1x256xf32>
    %45 = vector.extract_strided_slice %43 {offsets = [0, 256], sizes = [1, 256], strides = [1, 1]} : vector<1x4096xf32> to vector<1x256xf32>
    %46 = arith.addf %44, %45 : vector<1x256xf32>
    %47 = vector.extract_strided_slice %43 {offsets = [0, 512], sizes = [1, 256], strides = [1, 1]} : vector<1x4096xf32> to vector<1x256xf32>
    %48 = arith.addf %46, %47 : vector<1x256xf32>
    %49 = vector.extract_strided_slice %43 {offsets = [0, 768], sizes = [1, 256], strides = [1, 1]} : vector<1x4096xf32> to vector<1x256xf32>
    %50 = arith.addf %48, %49 : vector<1x256xf32>
    %51 = vector.extract_strided_slice %43 {offsets = [0, 1024], sizes = [1, 256], strides = [1, 1]} : vector<1x4096xf32> to vector<1x256xf32>
    %52 = arith.addf %50, %51 : vector<1x256xf32>
    %53 = vector.extract_strided_slice %43 {offsets = [0, 1280], sizes = [1, 256], strides = [1, 1]} : vector<1x4096xf32> to vector<1x256xf32>
    %54 = arith.addf %52, %53 : vector<1x256xf32>
    %55 = vector.extract_strided_slice %43 {offsets = [0, 1536], sizes = [1, 256], strides = [1, 1]} : vector<1x4096xf32> to vector<1x256xf32>
    %56 = arith.addf %54, %55 : vector<1x256xf32>
    %57 = vector.extract_strided_slice %43 {offsets = [0, 1792], sizes = [1, 256], strides = [1, 1]} : vector<1x4096xf32> to vector<1x256xf32>
    %58 = arith.addf %56, %57 : vector<1x256xf32>
    %59 = vector.extract_strided_slice %43 {offsets = [0, 2048], sizes = [1, 256], strides = [1, 1]} : vector<1x4096xf32> to vector<1x256xf32>
    %60 = arith.addf %58, %59 : vector<1x256xf32>
    %61 = vector.extract_strided_slice %43 {offsets = [0, 2304], sizes = [1, 256], strides = [1, 1]} : vector<1x4096xf32> to vector<1x256xf32>
    %62 = arith.addf %60, %61 : vector<1x256xf32>
    %63 = vector.extract_strided_slice %43 {offsets = [0, 2560], sizes = [1, 256], strides = [1, 1]} : vector<1x4096xf32> to vector<1x256xf32>
    %64 = arith.addf %62, %63 : vector<1x256xf32>
    %65 = vector.extract_strided_slice %43 {offsets = [0, 2816], sizes = [1, 256], strides = [1, 1]} : vector<1x4096xf32> to vector<1x256xf32>
    %66 = arith.addf %64, %65 : vector<1x256xf32>
    %67 = vector.extract_strided_slice %43 {offsets = [0, 3072], sizes = [1, 256], strides = [1, 1]} : vector<1x4096xf32> to vector<1x256xf32>
    %68 = arith.addf %66, %67 : vector<1x256xf32>
    %69 = vector.extract_strided_slice %43 {offsets = [0, 3328], sizes = [1, 256], strides = [1, 1]} : vector<1x4096xf32> to vector<1x256xf32>
    %70 = arith.addf %68, %69 : vector<1x256xf32>
    %71 = vector.extract_strided_slice %43 {offsets = [0, 3584], sizes = [1, 256], strides = [1, 1]} : vector<1x4096xf32> to vector<1x256xf32>
    %72 = arith.addf %70, %71 : vector<1x256xf32>
    %73 = vector.extract_strided_slice %43 {offsets = [0, 3840], sizes = [1, 256], strides = [1, 1]} : vector<1x4096xf32> to vector<1x256xf32>
    %74 = arith.addf %72, %73 : vector<1x256xf32>
    %cst_6 = arith.constant 3.200000e+01 : f32
    %75 = vector.broadcast %cst_6 : f32 to vector<1x256xf32>
    %76 = arith.divf %74, %75 : vector<1x256xf32>
    %77 = tpu.concatenate %76, %76, %76, %76, %76, %76, %76, %76, %76, %76, %76, %76, %76, %76, %76, %76 in 1 : vector<1x256xf32>, vector<1x256xf32>, vector<1x256xf32>, vector<1x256xf32>, vector<1x256xf32>, vector<1x256xf32>, vector<1x256xf32>, vector<1x256xf32>, vector<1x256xf32>, vector<1x256xf32>, vector<1x256xf32>, vector<1x256xf32>, vector<1x256xf32>, vector<1x256xf32>, vector<1x256xf32>, vector<1x256xf32> -> vector<1x4096xf32>
    %cst_7 = arith.constant 9.99999974E-6 : f32
    %78 = vector.broadcast %cst_7 : f32 to vector<1x4096xf32>
    %79 = arith.addf %77, %78 : vector<1x4096xf32>
    %80 = math.rsqrt %79 : vector<1x4096xf32>
    %81 = vector.broadcast %80 : vector<1x4096xf32> to vector<2x4096xf32>
    %82 = arith.mulf %40, %81 : vector<2x4096xf32>
    %c0_8 = arith.constant 0 : index
    %c0_9 = arith.constant 0 : index
    %83 = vector.load %arg3[%c0_8, %c0_9] : memref<1x4096xf32, #tpu.memory_space<vmem>>, vector<1x4096xf32>
    %84 = vector.broadcast %83 : vector<1x4096xf32> to vector<2x4096xf32>
    %85 = arith.mulf %82, %84 : vector<2x4096xf32>
    %c0_10 = arith.constant 0 : index
    %c0_11 = arith.constant 0 : index
    %86 = vector.load %arg4[%c0_10, %c0_11] : memref<1x4096xf32, #tpu.memory_space<vmem>>, vector<1x4096xf32>
    %87 = vector.broadcast %86 : vector<1x4096xf32> to vector<2x4096xf32>
    %88 = arith.addf %85, %87 : vector<2x4096xf32>
    %cst_12 = arith.constant 0.000000e+00 : f32
    %89 = vector.broadcast %cst_12 : f32 to vector<2x4096xf32>
    %90 = arith.maximumf %88, %89 : vector<2x4096xf32>
    %c0_13 = arith.constant 0 : index
    %c0_14 = arith.constant 0 : index
    %91 = vector.load %arg5[%c0_13, %c0_14] : memref<2x4096xf32, #tpu.memory_space<vmem>>, vector<2x4096xf32>
    tpu.vector_store %arg5[%c0_13, %c0_14], %90 {strides = array<i32>} : memref<2x4096xf32, #tpu.memory_space<vmem>>, vector<2x4096xf32>,
    return
  }
  func.func @transform_0(%arg0: i32) -> (i32, i32) {
    %c0_i32 = arith.constant 0 : i32
    %c0_i32_0 = arith.constant 0 : i32
    %c0_i32_1 = arith.constant 0 : i32
    return %c0_i32, %c0_i32_0 : i32, i32
  }
  func.func @transform_1(%arg0: i32) -> (i32, i32) {
    %c0_i32 = arith.constant 0 : i32
    %c0_i32_0 = arith.constant 0 : i32
    %c0_i32_1 = arith.constant 0 : i32
    return %c0_i32, %c0_i32_0 : i32, i32
  }
  func.func @transform_2(%arg0: i32) -> (i32, i32) {
    %c0_i32 = arith.constant 0 : i32
    %c0_i32_0 = arith.constant 0 : i32
    %c0_i32_1 = arith.constant 0 : i32
    return %c0_i32, %c0_i32_0 : i32, i32
  }
  func.func @transform_3(%arg0: i32) -> (i32, i32) {
    %c0_i32 = arith.constant 0 : i32
    %c0_i32_0 = arith.constant 0 : i32
    %c0_i32_1 = arith.constant 0 : i32
    return %c0_i32, %c0_i32_0 : i32, i32
  }
  func.func @transform_4(%arg0: i32) -> (i32, i32) {
    %c0_i32 = arith.constant 0 : i32
    %c0_i32_0 = arith.constant 0 : i32
    %c0_i32_1 = arith.constant 0 : i32
    return %c0_i32, %c0_i32_0 : i32, i32
  }
}

module attributes {stable_mosaic.version = 11 : i64} {
  func.func @_gemm_bn_relu_kernel(%arg0: i32, %arg1: memref<32x2304xbf16, #tpu.memory_space<vmem>>, %arg2: memref<2304x512xbf16, #tpu.memory_space<vmem>>, %arg3: memref<1x512xf32, #tpu.memory_space<vmem>>, %arg4: memref<1x512xf32, #tpu.memory_space<vmem>>, %arg5: memref<32x512xf32, #tpu.memory_space<vmem>>) attributes {dimension_semantics = [#tpu.dimension_semantics<arbitrary>], iteration_bounds = array<i64: 1>, scalar_prefetch = 0 : i64, scratch_operands = 0 : i64, tpu.core_type = #tpu.core_type<tc>, window_params = [{pipeline_mode = #tpu.pipeline_mode<synchronous>, transform_indices = @transform_0, window_bounds = array<i64: 32, 2304>}, {pipeline_mode = #tpu.pipeline_mode<synchronous>, transform_indices = @transform_1, window_bounds = array<i64: 2304, 512>}, {pipeline_mode = #tpu.pipeline_mode<synchronous>, transform_indices = @transform_2, window_bounds = array<i64: 1, 512>}, {pipeline_mode = #tpu.pipeline_mode<synchronous>, transform_indices = @transform_3, window_bounds = array<i64: 1, 512>}, {pipeline_mode = #tpu.pipeline_mode<synchronous>, transform_indices = @transform_4, window_bounds = array<i64: 32, 512>}]} {
    %c0 = arith.constant 0 : index
    %c0_0 = arith.constant 0 : index
    %0 = vector.load %arg1[%c0, %c0_0] : memref<32x2304xbf16, #tpu.memory_space<vmem>>, vector<32x2304xbf16>
    %c0_1 = arith.constant 0 : index
    %c0_2 = arith.constant 0 : index
    %1 = vector.load %arg2[%c0_1, %c0_2] : memref<2304x512xbf16, #tpu.memory_space<vmem>>, vector<2304x512xbf16>
    %cst = arith.constant dense<0.000000e+00> : vector<32x512xf32>
    %2 = tpu.matmul %0, %1, %cst {dimension_numbers = #tpu.dot_dimension_numbers<[1], [0], [0], [1], [0, 0, 1, 1], [], []>} : vector<32x2304xbf16>, vector<2304x512xbf16>, vector<32x512xf32> -> vector<32x512xf32>
    %cst_3 = arith.constant dense<0.000000e+00> : vector<512xf32>
    %3 = vector.multi_reduction <add>, %2, %cst_3 [0] : vector<32x512xf32> to vector<512xf32>
    %4 = vector.shape_cast %3 : vector<512xf32> to vector<1x512xf32>
    %5 = vector.extract_strided_slice %4 {offsets = [0, 0], sizes = [1, 128], strides = [1, 1]} : vector<1x512xf32> to vector<1x128xf32>
    %6 = vector.extract_strided_slice %4 {offsets = [0, 128], sizes = [1, 128], strides = [1, 1]} : vector<1x512xf32> to vector<1x128xf32>
    %7 = arith.addf %5, %6 : vector<1x128xf32>
    %8 = vector.extract_strided_slice %4 {offsets = [0, 256], sizes = [1, 128], strides = [1, 1]} : vector<1x512xf32> to vector<1x128xf32>
    %9 = arith.addf %7, %8 : vector<1x128xf32>
    %10 = vector.extract_strided_slice %4 {offsets = [0, 384], sizes = [1, 128], strides = [1, 1]} : vector<1x512xf32> to vector<1x128xf32>
    %11 = arith.addf %9, %10 : vector<1x128xf32>
    %cst_4 = arith.constant 1.280000e+02 : f32
    %12 = vector.broadcast %cst_4 : f32 to vector<1x128xf32>
    %13 = arith.divf %11, %12 : vector<1x128xf32>
    %14 = tpu.concatenate %13, %13, %13, %13 in 1 : vector<1x128xf32>, vector<1x128xf32>, vector<1x128xf32>, vector<1x128xf32> -> vector<1x512xf32>
    %15 = vector.broadcast %14 : vector<1x512xf32> to vector<32x512xf32>
    %16 = arith.subf %2, %15 : vector<32x512xf32>
    %17 = arith.mulf %16, %16 : vector<32x512xf32>
    %cst_5 = arith.constant dense<0.000000e+00> : vector<512xf32>
    %18 = vector.multi_reduction <add>, %17, %cst_5 [0] : vector<32x512xf32> to vector<512xf32>
    %19 = vector.shape_cast %18 : vector<512xf32> to vector<1x512xf32>
    %20 = vector.extract_strided_slice %19 {offsets = [0, 0], sizes = [1, 128], strides = [1, 1]} : vector<1x512xf32> to vector<1x128xf32>
    %21 = vector.extract_strided_slice %19 {offsets = [0, 128], sizes = [1, 128], strides = [1, 1]} : vector<1x512xf32> to vector<1x128xf32>
    %22 = arith.addf %20, %21 : vector<1x128xf32>
    %23 = vector.extract_strided_slice %19 {offsets = [0, 256], sizes = [1, 128], strides = [1, 1]} : vector<1x512xf32> to vector<1x128xf32>
    %24 = arith.addf %22, %23 : vector<1x128xf32>
    %25 = vector.extract_strided_slice %19 {offsets = [0, 384], sizes = [1, 128], strides = [1, 1]} : vector<1x512xf32> to vector<1x128xf32>
    %26 = arith.addf %24, %25 : vector<1x128xf32>
    %cst_6 = arith.constant 1.280000e+02 : f32
    %27 = vector.broadcast %cst_6 : f32 to vector<1x128xf32>
    %28 = arith.divf %26, %27 : vector<1x128xf32>
    %29 = tpu.concatenate %28, %28, %28, %28 in 1 : vector<1x128xf32>, vector<1x128xf32>, vector<1x128xf32>, vector<1x128xf32> -> vector<1x512xf32>
    %cst_7 = arith.constant 9.99999974E-6 : f32
    %30 = vector.broadcast %cst_7 : f32 to vector<1x512xf32>
    %31 = arith.addf %29, %30 : vector<1x512xf32>
    %32 = math.rsqrt %31 : vector<1x512xf32>
    %33 = vector.broadcast %32 : vector<1x512xf32> to vector<32x512xf32>
    %34 = arith.mulf %16, %33 : vector<32x512xf32>
    %c0_8 = arith.constant 0 : index
    %c0_9 = arith.constant 0 : index
    %35 = vector.load %arg3[%c0_8, %c0_9] : memref<1x512xf32, #tpu.memory_space<vmem>>, vector<1x512xf32>
    %36 = vector.broadcast %35 : vector<1x512xf32> to vector<32x512xf32>
    %37 = arith.mulf %34, %36 : vector<32x512xf32>
    %c0_10 = arith.constant 0 : index
    %c0_11 = arith.constant 0 : index
    %38 = vector.load %arg4[%c0_10, %c0_11] : memref<1x512xf32, #tpu.memory_space<vmem>>, vector<1x512xf32>
    %39 = vector.broadcast %38 : vector<1x512xf32> to vector<32x512xf32>
    %40 = arith.addf %37, %39 : vector<32x512xf32>
    %cst_12 = arith.constant 0.000000e+00 : f32
    %41 = vector.broadcast %cst_12 : f32 to vector<32x512xf32>
    %42 = arith.maximumf %40, %41 : vector<32x512xf32>
    %c0_13 = arith.constant 0 : index
    %c0_14 = arith.constant 0 : index
    %43 = vector.load %arg5[%c0_13, %c0_14] : memref<32x512xf32, #tpu.memory_space<vmem>>, vector<32x512xf32>
    tpu.vector_store %arg5[%c0_13, %c0_14], %42 {strides = array<i32>} : memref<32x512xf32, #tpu.memory_space<vmem>>, vector<32x512xf32>,
    return
  }
  func.func @transform_0(%arg0: i32) -> (i32, i32) {
    %c0_i32 = arith.constant 0 : i32
    %c0_i32_0 = arith.constant 0 : i32
    %c0_i32_1 = arith.constant 0 : i32
    return %c0_i32, %c0_i32_0 : i32, i32
  }
  func.func @transform_1(%arg0: i32) -> (i32, i32) {
    %c0_i32 = arith.constant 0 : i32
    %c0_i32_0 = arith.constant 0 : i32
    %c0_i32_1 = arith.constant 0 : i32
    return %c0_i32, %c0_i32_0 : i32, i32
  }
  func.func @transform_2(%arg0: i32) -> (i32, i32) {
    %c0_i32 = arith.constant 0 : i32
    %c0_i32_0 = arith.constant 0 : i32
    %c0_i32_1 = arith.constant 0 : i32
    return %c0_i32, %c0_i32_0 : i32, i32
  }
  func.func @transform_3(%arg0: i32) -> (i32, i32) {
    %c0_i32 = arith.constant 0 : i32
    %c0_i32_0 = arith.constant 0 : i32
    %c0_i32_1 = arith.constant 0 : i32
    return %c0_i32, %c0_i32_0 : i32, i32
  }
  func.func @transform_4(%arg0: i32) -> (i32, i32) {
    %c0_i32 = arith.constant 0 : i32
    %c0_i32_0 = arith.constant 0 : i32
    %c0_i32_1 = arith.constant 0 : i32
    return %c0_i32, %c0_i32_0 : i32, i32
  }
}

module attributes {stable_mosaic.version = 11 : i64} {
  func.func @_gemm_bn_relu_kernel(%arg0: i32, %arg1: memref<128x1152xbf16, #tpu.memory_space<vmem>>, %arg2: memref<1152x256xbf16, #tpu.memory_space<vmem>>, %arg3: memref<1x256xf32, #tpu.memory_space<vmem>>, %arg4: memref<1x256xf32, #tpu.memory_space<vmem>>, %arg5: memref<128x256xf32, #tpu.memory_space<vmem>>) attributes {dimension_semantics = [#tpu.dimension_semantics<arbitrary>], iteration_bounds = array<i64: 1>, scalar_prefetch = 0 : i64, scratch_operands = 0 : i64, tpu.core_type = #tpu.core_type<tc>, window_params = [{pipeline_mode = #tpu.pipeline_mode<synchronous>, transform_indices = @transform_0, window_bounds = array<i64: 128, 1152>}, {pipeline_mode = #tpu.pipeline_mode<synchronous>, transform_indices = @transform_1, window_bounds = array<i64: 1152, 256>}, {pipeline_mode = #tpu.pipeline_mode<synchronous>, transform_indices = @transform_2, window_bounds = array<i64: 1, 256>}, {pipeline_mode = #tpu.pipeline_mode<synchronous>, transform_indices = @transform_3, window_bounds = array<i64: 1, 256>}, {pipeline_mode = #tpu.pipeline_mode<synchronous>, transform_indices = @transform_4, window_bounds = array<i64: 128, 256>}]} {
    %c0 = arith.constant 0 : index
    %c0_0 = arith.constant 0 : index
    %0 = vector.load %arg1[%c0, %c0_0] : memref<128x1152xbf16, #tpu.memory_space<vmem>>, vector<128x1152xbf16>
    %c0_1 = arith.constant 0 : index
    %c0_2 = arith.constant 0 : index
    %1 = vector.load %arg2[%c0_1, %c0_2] : memref<1152x256xbf16, #tpu.memory_space<vmem>>, vector<1152x256xbf16>
    %cst = arith.constant dense<0.000000e+00> : vector<128x256xf32>
    %2 = tpu.matmul %0, %1, %cst {dimension_numbers = #tpu.dot_dimension_numbers<[1], [0], [0], [1], [0, 0, 1, 1], [], []>} : vector<128x1152xbf16>, vector<1152x256xbf16>, vector<128x256xf32> -> vector<128x256xf32>
    %cst_3 = arith.constant dense<0.000000e+00> : vector<256xf32>
    %3 = vector.multi_reduction <add>, %2, %cst_3 [0] : vector<128x256xf32> to vector<256xf32>
    %4 = vector.shape_cast %3 : vector<256xf32> to vector<1x256xf32>
    %5 = vector.extract_strided_slice %4 {offsets = [0, 0], sizes = [1, 64], strides = [1, 1]} : vector<1x256xf32> to vector<1x64xf32>
    %6 = vector.extract_strided_slice %4 {offsets = [0, 64], sizes = [1, 64], strides = [1, 1]} : vector<1x256xf32> to vector<1x64xf32>
    %7 = arith.addf %5, %6 : vector<1x64xf32>
    %8 = vector.extract_strided_slice %4 {offsets = [0, 128], sizes = [1, 64], strides = [1, 1]} : vector<1x256xf32> to vector<1x64xf32>
    %9 = arith.addf %7, %8 : vector<1x64xf32>
    %10 = vector.extract_strided_slice %4 {offsets = [0, 192], sizes = [1, 64], strides = [1, 1]} : vector<1x256xf32> to vector<1x64xf32>
    %11 = arith.addf %9, %10 : vector<1x64xf32>
    %cst_4 = arith.constant 5.120000e+02 : f32
    %12 = vector.broadcast %cst_4 : f32 to vector<1x64xf32>
    %13 = arith.divf %11, %12 : vector<1x64xf32>
    %14 = tpu.concatenate %13, %13, %13, %13 in 1 : vector<1x64xf32>, vector<1x64xf32>, vector<1x64xf32>, vector<1x64xf32> -> vector<1x256xf32>
    %15 = vector.broadcast %14 : vector<1x256xf32> to vector<128x256xf32>
    %16 = arith.subf %2, %15 : vector<128x256xf32>
    %17 = arith.mulf %16, %16 : vector<128x256xf32>
    %cst_5 = arith.constant dense<0.000000e+00> : vector<256xf32>
    %18 = vector.multi_reduction <add>, %17, %cst_5 [0] : vector<128x256xf32> to vector<256xf32>
    %19 = vector.shape_cast %18 : vector<256xf32> to vector<1x256xf32>
    %20 = vector.extract_strided_slice %19 {offsets = [0, 0], sizes = [1, 64], strides = [1, 1]} : vector<1x256xf32> to vector<1x64xf32>
    %21 = vector.extract_strided_slice %19 {offsets = [0, 64], sizes = [1, 64], strides = [1, 1]} : vector<1x256xf32> to vector<1x64xf32>
    %22 = arith.addf %20, %21 : vector<1x64xf32>
    %23 = vector.extract_strided_slice %19 {offsets = [0, 128], sizes = [1, 64], strides = [1, 1]} : vector<1x256xf32> to vector<1x64xf32>
    %24 = arith.addf %22, %23 : vector<1x64xf32>
    %25 = vector.extract_strided_slice %19 {offsets = [0, 192], sizes = [1, 64], strides = [1, 1]} : vector<1x256xf32> to vector<1x64xf32>
    %26 = arith.addf %24, %25 : vector<1x64xf32>
    %cst_6 = arith.constant 5.120000e+02 : f32
    %27 = vector.broadcast %cst_6 : f32 to vector<1x64xf32>
    %28 = arith.divf %26, %27 : vector<1x64xf32>
    %29 = tpu.concatenate %28, %28, %28, %28 in 1 : vector<1x64xf32>, vector<1x64xf32>, vector<1x64xf32>, vector<1x64xf32> -> vector<1x256xf32>
    %cst_7 = arith.constant 9.99999974E-6 : f32
    %30 = vector.broadcast %cst_7 : f32 to vector<1x256xf32>
    %31 = arith.addf %29, %30 : vector<1x256xf32>
    %32 = math.rsqrt %31 : vector<1x256xf32>
    %33 = vector.broadcast %32 : vector<1x256xf32> to vector<128x256xf32>
    %34 = arith.mulf %16, %33 : vector<128x256xf32>
    %c0_8 = arith.constant 0 : index
    %c0_9 = arith.constant 0 : index
    %35 = vector.load %arg3[%c0_8, %c0_9] : memref<1x256xf32, #tpu.memory_space<vmem>>, vector<1x256xf32>
    %36 = vector.broadcast %35 : vector<1x256xf32> to vector<128x256xf32>
    %37 = arith.mulf %34, %36 : vector<128x256xf32>
    %c0_10 = arith.constant 0 : index
    %c0_11 = arith.constant 0 : index
    %38 = vector.load %arg4[%c0_10, %c0_11] : memref<1x256xf32, #tpu.memory_space<vmem>>, vector<1x256xf32>
    %39 = vector.broadcast %38 : vector<1x256xf32> to vector<128x256xf32>
    %40 = arith.addf %37, %39 : vector<128x256xf32>
    %cst_12 = arith.constant 0.000000e+00 : f32
    %41 = vector.broadcast %cst_12 : f32 to vector<128x256xf32>
    %42 = arith.maximumf %40, %41 : vector<128x256xf32>
    %c0_13 = arith.constant 0 : index
    %c0_14 = arith.constant 0 : index
    %43 = vector.load %arg5[%c0_13, %c0_14] : memref<128x256xf32, #tpu.memory_space<vmem>>, vector<128x256xf32>
    tpu.vector_store %arg5[%c0_13, %c0_14], %42 {strides = array<i32>} : memref<128x256xf32, #tpu.memory_space<vmem>>, vector<128x256xf32>,
    return
  }
  func.func @transform_0(%arg0: i32) -> (i32, i32) {
    %c0_i32 = arith.constant 0 : i32
    %c0_i32_0 = arith.constant 0 : i32
    %c0_i32_1 = arith.constant 0 : i32
    return %c0_i32, %c0_i32_0 : i32, i32
  }
  func.func @transform_1(%arg0: i32) -> (i32, i32) {
    %c0_i32 = arith.constant 0 : i32
    %c0_i32_0 = arith.constant 0 : i32
    %c0_i32_1 = arith.constant 0 : i32
    return %c0_i32, %c0_i32_0 : i32, i32
  }
  func.func @transform_2(%arg0: i32) -> (i32, i32) {
    %c0_i32 = arith.constant 0 : i32
    %c0_i32_0 = arith.constant 0 : i32
    %c0_i32_1 = arith.constant 0 : i32
    return %c0_i32, %c0_i32_0 : i32, i32
  }
  func.func @transform_3(%arg0: i32) -> (i32, i32) {
    %c0_i32 = arith.constant 0 : i32
    %c0_i32_0 = arith.constant 0 : i32
    %c0_i32_1 = arith.constant 0 : i32
    return %c0_i32, %c0_i32_0 : i32, i32
  }
  func.func @transform_4(%arg0: i32) -> (i32, i32) {
    %c0_i32 = arith.constant 0 : i32
    %c0_i32_0 = arith.constant 0 : i32
    %c0_i32_1 = arith.constant 0 : i32
    return %c0_i32, %c0_i32_0 : i32, i32
  }
}

module attributes {stable_mosaic.version = 11 : i64} {
  func.func @_gemm_bn_relu_proj_tanh_kernel(%arg0: i32, %arg1: memref<512x576xbf16, #tpu.memory_space<vmem>>, %arg2: memref<576x128xbf16, #tpu.memory_space<vmem>>, %arg3: memref<1x128xf32, #tpu.memory_space<vmem>>, %arg4: memref<1x128xf32, #tpu.memory_space<vmem>>, %arg5: memref<128x128xbf16, #tpu.memory_space<vmem>>, %arg6: memref<512x128xf32, #tpu.memory_space<vmem>>) attributes {dimension_semantics = [#tpu.dimension_semantics<arbitrary>], iteration_bounds = array<i64: 1>, scalar_prefetch = 0 : i64, scratch_operands = 0 : i64, tpu.core_type = #tpu.core_type<tc>, window_params = [{pipeline_mode = #tpu.pipeline_mode<synchronous>, transform_indices = @transform_0, window_bounds = array<i64: 512, 576>}, {pipeline_mode = #tpu.pipeline_mode<synchronous>, transform_indices = @transform_1, window_bounds = array<i64: 576, 128>}, {pipeline_mode = #tpu.pipeline_mode<synchronous>, transform_indices = @transform_2, window_bounds = array<i64: 1, 128>}, {pipeline_mode = #tpu.pipeline_mode<synchronous>, transform_indices = @transform_3, window_bounds = array<i64: 1, 128>}, {pipeline_mode = #tpu.pipeline_mode<synchronous>, transform_indices = @transform_4, window_bounds = array<i64: 128, 128>}, {pipeline_mode = #tpu.pipeline_mode<synchronous>, transform_indices = @transform_5, window_bounds = array<i64: 512, 128>}]} {
    %c0 = arith.constant 0 : index
    %c0_0 = arith.constant 0 : index
    %0 = vector.load %arg1[%c0, %c0_0] : memref<512x576xbf16, #tpu.memory_space<vmem>>, vector<512x576xbf16>
    %c0_1 = arith.constant 0 : index
    %c0_2 = arith.constant 0 : index
    %1 = vector.load %arg2[%c0_1, %c0_2] : memref<576x128xbf16, #tpu.memory_space<vmem>>, vector<576x128xbf16>
    %cst = arith.constant dense<0.000000e+00> : vector<512x128xf32>
    %2 = tpu.matmul %0, %1, %cst {dimension_numbers = #tpu.dot_dimension_numbers<[1], [0], [0], [1], [0, 0, 1, 1], [], []>} : vector<512x576xbf16>, vector<576x128xbf16>, vector<512x128xf32> -> vector<512x128xf32>
    %cst_3 = arith.constant dense<0.000000e+00> : vector<128xf32>
    %3 = vector.multi_reduction <add>, %2, %cst_3 [0] : vector<512x128xf32> to vector<128xf32>
    %4 = vector.shape_cast %3 : vector<128xf32> to vector<1x128xf32>
    %5 = vector.extract_strided_slice %4 {offsets = [0, 0], sizes = [1, 32], strides = [1, 1]} : vector<1x128xf32> to vector<1x32xf32>
    %6 = vector.extract_strided_slice %4 {offsets = [0, 32], sizes = [1, 32], strides = [1, 1]} : vector<1x128xf32> to vector<1x32xf32>
    %7 = arith.addf %5, %6 : vector<1x32xf32>
    %8 = vector.extract_strided_slice %4 {offsets = [0, 64], sizes = [1, 32], strides = [1, 1]} : vector<1x128xf32> to vector<1x32xf32>
    %9 = arith.addf %7, %8 : vector<1x32xf32>
    %10 = vector.extract_strided_slice %4 {offsets = [0, 96], sizes = [1, 32], strides = [1, 1]} : vector<1x128xf32> to vector<1x32xf32>
    %11 = arith.addf %9, %10 : vector<1x32xf32>
    %cst_4 = arith.constant 2.048000e+03 : f32
    %12 = vector.broadcast %cst_4 : f32 to vector<1x32xf32>
    %13 = arith.divf %11, %12 : vector<1x32xf32>
    %14 = tpu.concatenate %13, %13, %13, %13 in 1 : vector<1x32xf32>, vector<1x32xf32>, vector<1x32xf32>, vector<1x32xf32> -> vector<1x128xf32>
    %15 = vector.broadcast %14 : vector<1x128xf32> to vector<512x128xf32>
    %16 = arith.subf %2, %15 : vector<512x128xf32>
    %17 = arith.mulf %16, %16 : vector<512x128xf32>
    %cst_5 = arith.constant dense<0.000000e+00> : vector<128xf32>
    %18 = vector.multi_reduction <add>, %17, %cst_5 [0] : vector<512x128xf32> to vector<128xf32>
    %19 = vector.shape_cast %18 : vector<128xf32> to vector<1x128xf32>
    %20 = vector.extract_strided_slice %19 {offsets = [0, 0], sizes = [1, 32], strides = [1, 1]} : vector<1x128xf32> to vector<1x32xf32>
    %21 = vector.extract_strided_slice %19 {offsets = [0, 32], sizes = [1, 32], strides = [1, 1]} : vector<1x128xf32> to vector<1x32xf32>
    %22 = arith.addf %20, %21 : vector<1x32xf32>
    %23 = vector.extract_strided_slice %19 {offsets = [0, 64], sizes = [1, 32], strides = [1, 1]} : vector<1x128xf32> to vector<1x32xf32>
    %24 = arith.addf %22, %23 : vector<1x32xf32>
    %25 = vector.extract_strided_slice %19 {offsets = [0, 96], sizes = [1, 32], strides = [1, 1]} : vector<1x128xf32> to vector<1x32xf32>
    %26 = arith.addf %24, %25 : vector<1x32xf32>
    %cst_6 = arith.constant 2.048000e+03 : f32
    %27 = vector.broadcast %cst_6 : f32 to vector<1x32xf32>
    %28 = arith.divf %26, %27 : vector<1x32xf32>
    %29 = tpu.concatenate %28, %28, %28, %28 in 1 : vector<1x32xf32>, vector<1x32xf32>, vector<1x32xf32>, vector<1x32xf32> -> vector<1x128xf32>
    %cst_7 = arith.constant 9.99999974E-6 : f32
    %30 = vector.broadcast %cst_7 : f32 to vector<1x128xf32>
    %31 = arith.addf %29, %30 : vector<1x128xf32>
    %32 = math.rsqrt %31 : vector<1x128xf32>
    %33 = vector.broadcast %32 : vector<1x128xf32> to vector<512x128xf32>
    %34 = arith.mulf %16, %33 : vector<512x128xf32>
    %c0_8 = arith.constant 0 : index
    %c0_9 = arith.constant 0 : index
    %35 = vector.load %arg3[%c0_8, %c0_9] : memref<1x128xf32, #tpu.memory_space<vmem>>, vector<1x128xf32>
    %36 = vector.broadcast %35 : vector<1x128xf32> to vector<512x128xf32>
    %37 = arith.mulf %34, %36 : vector<512x128xf32>
    %c0_10 = arith.constant 0 : index
    %c0_11 = arith.constant 0 : index
    %38 = vector.load %arg4[%c0_10, %c0_11] : memref<1x128xf32, #tpu.memory_space<vmem>>, vector<1x128xf32>
    %39 = vector.broadcast %38 : vector<1x128xf32> to vector<512x128xf32>
    %40 = arith.addf %37, %39 : vector<512x128xf32>
    %cst_12 = arith.constant 0.000000e+00 : f32
    %41 = vector.broadcast %cst_12 : f32 to vector<512x128xf32>
    %42 = arith.maximumf %40, %41 : vector<512x128xf32>
    %43 = arith.truncf %42 : vector<512x128xf32> to vector<512x128xbf16>
    %c0_13 = arith.constant 0 : index
    %c0_14 = arith.constant 0 : index
    %44 = vector.load %arg5[%c0_13, %c0_14] : memref<128x128xbf16, #tpu.memory_space<vmem>>, vector<128x128xbf16>
    %cst_15 = arith.constant dense<0.000000e+00> : vector<512x128xf32>
    %45 = tpu.matmul %43, %44, %cst_15 {dimension_numbers = #tpu.dot_dimension_numbers<[1], [0], [0], [1], [0, 0, 1, 1], [], []>} : vector<512x128xbf16>, vector<128x128xbf16>, vector<512x128xf32> -> vector<512x128xf32>
    %46 = math.tanh %45 : vector<512x128xf32>
    %c0_16 = arith.constant 0 : index
    %c0_17 = arith.constant 0 : index
    %47 = vector.load %arg6[%c0_16, %c0_17] : memref<512x128xf32, #tpu.memory_space<vmem>>, vector<512x128xf32>
    tpu.vector_store %arg6[%c0_16, %c0_17], %46 {strides = array<i32>} : memref<512x128xf32, #tpu.memory_space<vmem>>, vector<512x128xf32>,
    return
  }
  func.func @transform_0(%arg0: i32) -> (i32, i32) {
    %c0_i32 = arith.constant 0 : i32
    %c0_i32_0 = arith.constant 0 : i32
    %c0_i32_1 = arith.constant 0 : i32
    return %c0_i32, %c0_i32_0 : i32, i32
  }
  func.func @transform_1(%arg0: i32) -> (i32, i32) {
    %c0_i32 = arith.constant 0 : i32
    %c0_i32_0 = arith.constant 0 : i32
    %c0_i32_1 = arith.constant 0 : i32
    return %c0_i32, %c0_i32_0 : i32, i32
  }
  func.func @transform_2(%arg0: i32) -> (i32, i32) {
    %c0_i32 = arith.constant 0 : i32
    %c0_i32_0 = arith.constant 0 : i32
    %c0_i32_1 = arith.constant 0 : i32
    return %c0_i32, %c0_i32_0 : i32, i32
  }
  func.func @transform_3(%arg0: i32) -> (i32, i32) {
    %c0_i32 = arith.constant 0 : i32
    %c0_i32_0 = arith.constant 0 : i32
    %c0_i32_1 = arith.constant 0 : i32
    return %c0_i32, %c0_i32_0 : i32, i32
  }
  func.func @transform_4(%arg0: i32) -> (i32, i32) {
    %c0_i32 = arith.constant 0 : i32
    %c0_i32_0 = arith.constant 0 : i32
    %c0_i32_1 = arith.constant 0 : i32
    return %c0_i32, %c0_i32_0 : i32, i32
  }
  func.func @transform_5(%arg0: i32) -> (i32, i32) {
    %c0_i32 = arith.constant 0 : i32
    %c0_i32_0 = arith.constant 0 : i32
    %c0_i32_1 = arith.constant 0 : i32
    return %c0_i32, %c0_i32_0 : i32, i32
  }
}

</mosaic_0001>

<llo_original>
// kernel: generator_forward.4
$region0: #{generator_forward.4}
  #allocation0 [shape = 'u32[]', space=smem, size = 0x4, offset = 0x4, fixed_abs, tag = 'smem constant byte address 0x4 - core index']
  #allocation1 [shape = 'u32[144,128]{1,0:T(1,128)}', space=vmem, size = 0x12000, scoped, tag = 'internal scratch']
  %s0 = inlined_call_operand.vmem [shape: bf16[2,128], index: 0, kind: input, shape index: {}]
  %s1 = inlined_call_operand.hbm [shape: bf16[128,4096], index: 1, kind: input, shape index: {}]
  %s2 = inlined_call_operand.hbm [shape: f32[1,4096], index: 2, kind: input, shape index: {}]
  %s3 = inlined_call_operand.hbm [shape: f32[1,4096], index: 3, kind: input, shape index: {}]
  %s4 = inlined_call_operand.vmem [shape: f32[2,4096], index: 4, kind: output, shape index: {}]
  %s5 = sld [smem:[#allocation0]]
  $region38: #{generator_forward.4} parent=0
    _
  %s7 = ssub.s32 1, %s5
  %s8 = scalar_select 0, %s7, %s5
  $region1: #{generator_forward.4} parent=0
    #allocation2 [shape = 'u8[1048576]{0}', space=vmem, size = 0x100000, scoped, tag = 'input window, operand 1, single buffered']
    #allocation3 [shape = 's32[1]{0}', space=sflag, size = 0x4, scoped, tag = 'scoped memory for generator_forward.4']
    #allocation4 [shape = 'u8[16384]{0}', space=vmem, size = 0x4000, scoped, tag = 'input window, operand 2, single buffered']
    #allocation5 [shape = 's32[1]{0}', space=sflag, size = 0x4, scoped, tag = 'scoped memory for generator_forward.4']
    #allocation6 [shape = 'u8[16384]{0}', space=vmem, size = 0x4000, scoped, tag = 'input window, operand 3, single buffered']
    %9 = vsyncpa [#allocation3], 0
    %10 = vsyncpa [#allocation5], 0
    // Predicated region
    $region2: #{generator_forward.4} parent=1 // pred_check
      _
    $region3: #{generator_forward.4} parent=1 // pred_check_branch
      %12 = sbr.rel (0) target = $region5
    $region4: #{generator_forward.4} parent=1 // pred_region
      _
    $region5: #{generator_forward.4} parent=1 // pred_fallthru
      _
    // Predicated region
    $region6: #{generator_forward.4} parent=1 // pred_check
      _
    $region7: #{generator_forward.4} parent=1 // pred_check_branch
      %14 = sbr.rel (0) target = $region9
    $region8: #{generator_forward.4} parent=1 // pred_region
      %s16 = ssub.s32 32768, 32768
      %17 = vsyncadd [#allocation3], %s16
      %s18 = sshll.u32 [#allocation2], 4
      %s19 = int_to_ptr.vmem [resolvable:$true] %s18
      %24 = dma.hbm_to_vmem [thread:$0]  %s1, 32768, %s19, [#allocation3], 2048, 2048, 128
    $region9: #{generator_forward.4} parent=1 // pred_fallthru
      _
    // Predicated region
    $region10: #{generator_forward.4} parent=1 // pred_check
      _
    $region11: #{generator_forward.4} parent=1 // pred_check_branch
      %26 = sbr.rel (0) target = $region13
    $region12: #{generator_forward.4} parent=1 // pred_region
      %s28 = ssub.s32 512, 512
      %29 = vsyncadd [#allocation5], %s28
      %s31 = sshll.u32 [#allocation4], 4
      %s32 = int_to_ptr.vmem [resolvable:$true] %s31
      %34 = dma.hbm_to_vmem [thread:$0]  %s2, 512, %s32, [#allocation5]
    $region13: #{generator_forward.4} parent=1 // pred_fallthru
      _
    // Predicated region
    $region14: #{generator_forward.4} parent=1 // pred_check
      _
    $region15: #{generator_forward.4} parent=1 // pred_check_branch
      %36 = sbr.rel (0) target = $region17
    $region16: #{generator_forward.4} parent=1 // pred_region
      %s38 = ssub.s32 512, 512
      %39 = vsyncadd [#allocation5], %s38
      %s41 = sshll.u32 [#allocation6], 4
      %s42 = int_to_ptr.vmem [resolvable:$true] %s41
      %44 = dma.hbm_to_vmem [thread:$0]  %s3, 512, %s42, [#allocation5]
    $region17: #{generator_forward.4} parent=1 // pred_fallthru
      _
    // Predicated region
    $region18: #{generator_forward.4} parent=1 // pred_check
      _
    $region19: #{generator_forward.4} parent=1 // pred_check_branch
      %46 = sbr.rel (0) target = $region21
    $region20: #{generator_forward.4} parent=1 // pred_region
      %47 = dma.done [#allocation3], 32768
    $region21: #{generator_forward.4} parent=1 // pred_fallthru
      _
    // Predicated region
    $region22: #{generator_forward.4} parent=1 // pred_check
      _
    $region23: #{generator_forward.4} parent=1 // pred_check_branch
      %49 = sbr.rel (0) target = $region25
    $region24: #{generator_forward.4} parent=1 // pred_region
      %50 = dma.done [#allocation5], 512
    $region25: #{generator_forward.4} parent=1 // pred_fallthru
      _
    // Predicated region
    $region26: #{generator_forward.4} parent=1 // pred_check
      _
    $region27: #{generator_forward.4} parent=1 // pred_check_branch
      %52 = sbr.rel (0) target = $region29
    $region28: #{generator_forward.4} parent=1 // pred_region
      %53 = dma.done [#allocation5], 512
    $region29: #{generator_forward.4} parent=1 // pred_fallthru
      _
    %v55 = vld [vmem:[%s0] sm:$0x1]
    %v56 = vld [vmem:[#allocation2] sm:$0xff]
    %v57 = vld [vmem:[#allocation2 + $0x8] sm:$0xff]
    %v58 = vld [vmem:[#allocation2 + $0x10] sm:$0xff]
    %v59 = vld [vmem:[#allocation2 + $0x18] sm:$0xff]
    %v60 = vld [vmem:[#allocation2 + $0x20] sm:$0xff]
    %v61 = vld [vmem:[#allocation2 + $0x28] sm:$0xff]
    %v62 = vld [vmem:[#allocation2 + $0x30] sm:$0xff]
    %v63 = vld [vmem:[#allocation2 + $0x38] sm:$0xff]
    %v64 = vld [vmem:[#allocation2 + $0x40] sm:$0xff]
    %v65 = vld [vmem:[#allocation2 + $0x48] sm:$0xff]
    %v66 = vld [vmem:[#allocation2 + $0x50] sm:$0xff]
    %v67 = vld [vmem:[#allocation2 + $0x58] sm:$0xff]
    %v68 = vld [vmem:[#allocation2 + $0x60] sm:$0xff]
    %v69 = vld [vmem:[#allocation2 + $0x68] sm:$0xff]
    %v70 = vld [vmem:[#allocation2 + $0x70] sm:$0xff]
    %v71 = vld [vmem:[#allocation2 + $0x78] sm:$0xff]
    %v72 = vld [vmem:[#allocation2 + $0x80] sm:$0xff]
    %v73 = vld [vmem:[#allocation2 + $0x88] sm:$0xff]
    %v74 = vld [vmem:[#allocation2 + $0x90] sm:$0xff]
    %v75 = vld [vmem:[#allocation2 + $0x98] sm:$0xff]
    %v76 = vld [vmem:[#allocation2 + $0xa0] sm:$0xff]
    %v77 = vld [vmem:[#allocation2 + $0xa8] sm:$0xff]
    %v78 = vld [vmem:[#allocation2 + $0xb0] sm:$0xff]
    %v79 = vld [vmem:[#allocation2 + $0xb8] sm:$0xff]
    %v80 = vld [vmem:[#allocation2 + $0xc0] sm:$0xff]
    %v81 = vld [vmem:[#allocation2 + $0xc8] sm:$0xff]
    %v82 = vld [vmem:[#allocation2 + $0xd0] sm:$0xff]
    %v83 = vld [vmem:[#allocation2 + $0xd8] sm:$0xff]
    %v84 = vld [vmem:[#allocation2 + $0xe0] sm:$0xff]
    %v85 = vld [vmem:[#allocation2 + $0xe8] sm:$0xff]
    %v86 = vld [vmem:[#allocation2 + $0xf0] sm:$0xff]
    %v87 = vld [vmem:[#allocation2 + $0xf8] sm:$0xff]
    %v88 = vld [vmem:[#allocation2 + $0x100] sm:$0xff]
    %v89 = vld [vmem:[#allocation2 + $0x108] sm:$0xff]
    %v90 = vld [vmem:[#allocation2 + $0x110] sm:$0xff]
    %v91 = vld [vmem:[#allocation2 + $0x118] sm:$0xff]
    %v92 = vld [vmem:[#allocation2 + $0x120] sm:$0xff]
    %v93 = vld [vmem:[#allocation2 + $0x128] sm:$0xff]
    %v94 = vld [vmem:[#allocation2 + $0x130] sm:$0xff]
    %v95 = vld [vmem:[#allocation2 + $0x138] sm:$0xff]
    %v96 = vld [vmem:[#allocation2 + $0x140] sm:$0xff]
    %v97 = vld [vmem:[#allocation2 + $0x148] sm:$0xff]
    %v98 = vld [vmem:[#allocation2 + $0x150] sm:$0xff]
    %v99 = vld [vmem:[#allocation2 + $0x158] sm:$0xff]
    %v100 = vld [vmem:[#allocation2 + $0x160] sm:$0xff]
    %v101 = vld [vmem:[#allocation2 + $0x168] sm:$0xff]
    %v102 = vld [vmem:[#allocation2 + $0x170] sm:$0xff]
    %v103 = vld [vmem:[#allocation2 + $0x178] sm:$0xff]
    %v104 = vld [vmem:[#allocation2 + $0x180] sm:$0xff]
    %v105 = vld [vmem:[#allocation2 + $0x188] sm:$0xff]
    %v106 = vld [vmem:[#allocation2 + $0x190] sm:$0xff]
    %v107 = vld [vmem:[#allocation2 + $0x198] sm:$0xff]
    %v108 = vld [vmem:[#allocation2 + $0x1a0] sm:$0xff]
    %v109 = vld [vmem:[#allocation2 + $0x1a8] sm:$0xff]
    %v110 = vld [vmem:[#allocation2 + $0x1b0] sm:$0xff]
    %v111 = vld [vmem:[#allocation2 + $0x1b8] sm:$0xff]
    %v112 = vld [vmem:[#allocation2 + $0x1c0] sm:$0xff]
    %v113 = vld [vmem:[#allocation2 + $0x1c8] sm:$0xff]
    %v114 = vld [vmem:[#allocation2 + $0x1d0] sm:$0xff]
    %v115 = vld [vmem:[#allocation2 + $0x1d8] sm:$0xff]
    %v116 = vld [vmem:[#allocation2 + $0x1e0] sm:$0xff]
    %v117 = vld [vmem:[#allocation2 + $0x1e8] sm:$0xff]
    %v118 = vld [vmem:[#allocation2 + $0x1f0] sm:$0xff]
    %v119 = vld [vmem:[#allocation2 + $0x1f8] sm:$0xff]
    %v120 = vld [vmem:[#allocation2 + $0x200] sm:$0xff]
    %v121 = vld [vmem:[#allocation2 + $0x208] sm:$0xff]
    %v122 = vld [vmem:[#allocation2 + $0x210] sm:$0xff]
    %v123 = vld [vmem:[#allocation2 + $0x218] sm:$0xff]
    %v124 = vld [vmem:[#allocation2 + $0x220] sm:$0xff]
    %v125 = vld [vmem:[#allocation2 + $0x228] sm:$0xff]
    %v126 = vld [vmem:[#allocation2 + $0x230] sm:$0xff]
    %v127 = vld [vmem:[#allocation2 + $0x238] sm:$0xff]
    %v128 = vld [vmem:[#allocation2 + $0x240] sm:$0xff]
    %v129 = vld [vmem:[#allocation2 + $0x248] sm:$0xff]
    %v130 = vld [vmem:[#allocation2 + $0x250] sm:$0xff]
    %v131 = vld [vmem:[#allocation2 + $0x258] sm:$0xff]
    %v132 = vld [vmem:[#allocation2 + $0x260] sm:$0xff]
    %v133 = vld [vmem:[#allocation2 + $0x268] sm:$0xff]
    %v134 = vld [vmem:[#allocation2 + $0x270] sm:$0xff]
    %v135 = vld [vmem:[#allocation2 + $0x278] sm:$0xff]
    %v136 = vld [vmem:[#allocation2 + $0x280] sm:$0xff]
    %v137 = vld [vmem:[#allocation2 + $0x288] sm:$0xff]
    %v138 = vld [vmem:[#allocation2 + $0x290] sm:$0xff]
    %v139 = vld [vmem:[#allocation2 + $0x298] sm:$0xff]
    %v140 = vld [vmem:[#allocation2 + $0x2a0] sm:$0xff]
    %v141 = vld [vmem:[#allocation2 + $0x2a8] sm:$0xff]
    %v142 = vld [vmem:[#allocation2 + $0x2b0] sm:$0xff]
    %v143 = vld [vmem:[#allocation2 + $0x2b8] sm:$0xff]
    %v144 = vld [vmem:[#allocation2 + $0x2c0] sm:$0xff]
    %v145 = vld [vmem:[#allocation2 + $0x2c8] sm:$0xff]
    %v146 = vld [vmem:[#allocation2 + $0x2d0] sm:$0xff]
    %v147 = vld [vmem:[#allocation2 + $0x2d8] sm:$0xff]
    %v148 = vld [vmem:[#allocation2 + $0x2e0] sm:$0xff]
    %v149 = vld [vmem:[#allocation2 + $0x2e8] sm:$0xff]
    %v150 = vld [vmem:[#allocation2 + $0x2f0] sm:$0xff]
    %v151 = vld [vmem:[#allocation2 + $0x2f8] sm:$0xff]
    %v152 = vld [vmem:[#allocation2 + $0x300] sm:$0xff]
    %v153 = vld [vmem:[#allocation2 + $0x308] sm:$0xff]
    %v154 = vld [vmem:[#allocation2 + $0x310] sm:$0xff]
    %v155 = vld [vmem:[#allocation2 + $0x318] sm:$0xff]
    %v156 = vld [vmem:[#allocation2 + $0x320] sm:$0xff]
    %v157 = vld [vmem:[#allocation2 + $0x328] sm:$0xff]
    %v158 = vld [vmem:[#allocation2 + $0x330] sm:$0xff]
    %v159 = vld [vmem:[#allocation2 + $0x338] sm:$0xff]
    %v160 = vld [vmem:[#allocation2 + $0x340] sm:$0xff]
    %v161 = vld [vmem:[#allocation2 + $0x348] sm:$0xff]
    %v162 = vld [vmem:[#allocation2 + $0x350] sm:$0xff]
    %v163 = vld [vmem:[#allocation2 + $0x358] sm:$0xff]
    %v164 = vld [vmem:[#allocation2 + $0x360] sm:$0xff]
    %v165 = vld [vmem:[#allocation2 + $0x368] sm:$0xff]
    %v166 = vld [vmem:[#allocation2 + $0x370] sm:$0xff]
    %v167 = vld [vmem:[#allocation2 + $0x378] sm:$0xff]
    %v168 = vld [vmem:[#allocation2 + $0x380] sm:$0xff]
    %v169 = vld [vmem:[#allocation2 + $0x388] sm:$0xff]
    %v170 = vld [vmem:[#allocation2 + $0x390] sm:$0xff]
    %v171 = vld [vmem:[#allocation2 + $0x398] sm:$0xff]
    %v172 = vld [vmem:[#allocation2 + $0x3a0] sm:$0xff]
    %v173 = vld [vmem:[#allocation2 + $0x3a8] sm:$0xff]
    %v174 = vld [vmem:[#allocation2 + $0x3b0] sm:$0xff]
    %v175 = vld [vmem:[#allocation2 + $0x3b8] sm:$0xff]
    %v176 = vld [vmem:[#allocation2 + $0x3c0] sm:$0xff]
    %v177 = vld [vmem:[#allocation2 + $0x3c8] sm:$0xff]
    %v178 = vld [vmem:[#allocation2 + $0x3d0] sm:$0xff]
    %v179 = vld [vmem:[#allocation2 + $0x3d8] sm:$0xff]
    %v180 = vld [vmem:[#allocation2 + $0x3e0] sm:$0xff]
    %v181 = vld [vmem:[#allocation2 + $0x3e8] sm:$0xff]
    %v182 = vld [vmem:[#allocation2 + $0x3f0] sm:$0xff]
    %v183 = vld [vmem:[#allocation2 + $0x3f8] sm:$0xff]
    %v184 = vld [vmem:[#allocation2 + $0x400] sm:$0xff]
    %v185 = vld [vmem:[#allocation2 + $0x408] sm:$0xff]
    %v186 = vld [vmem:[#allocation2 + $0x410] sm:$0xff]
    %v187 = vld [vmem:[#allocation2 + $0x418] sm:$0xff]
    %v188 = vld [vmem:[#allocation2 + $0x420] sm:$0xff]
    %v189 = vld [vmem:[#allocation2 + $0x428] sm:$0xff]
    %v190 = vld [vmem:[#allocation2 + $0x430] sm:$0xff]
    %v191 = vld [vmem:[#allocation2 + $0x438] sm:$0xff]
    %v192 = vld [vmem:[#allocation2 + $0x440] sm:$0xff]
    %v193 = vld [vmem:[#allocation2 + $0x448] sm:$0xff]
    %v194 = vld [vmem:[#allocation2 + $0x450] sm:$0xff]
    %v195 = vld [vmem:[#allocation2 + $0x458] sm:$0xff]
    %v196 = vld [vmem:[#allocation2 + $0x460] sm:$0xff]
    %v197 = vld [vmem:[#allocation2 + $0x468] sm:$0xff]
    %v198 = vld [vmem:[#allocation2 + $0x470] sm:$0xff]
    %v199 = vld [vmem:[#allocation2 + $0x478] sm:$0xff]
    %v200 = vld [vmem:[#allocation2 + $0x480] sm:$0xff]
    %v201 = vld [vmem:[#allocation2 + $0x488] sm:$0xff]
    %v202 = vld [vmem:[#allocation2 + $0x490] sm:$0xff]
    %v203 = vld [vmem:[#allocation2 + $0x498] sm:$0xff]
    %v204 = vld [vmem:[#allocation2 + $0x4a0] sm:$0xff]
    %v205 = vld [vmem:[#allocation2 + $0x4a8] sm:$0xff]
    %v206 = vld [vmem:[#allocation2 + $0x4b0] sm:$0xff]
    %v207 = vld [vmem:[#allocation2 + $0x4b8] sm:$0xff]
    %v208 = vld [vmem:[#allocation2 + $0x4c0] sm:$0xff]
    %v209 = vld [vmem:[#allocation2 + $0x4c8] sm:$0xff]
    %v210 = vld [vmem:[#allocation2 + $0x4d0] sm:$0xff]
    %v211 = vld [vmem:[#allocation2 + $0x4d8] sm:$0xff]
    %v212 = vld [vmem:[#allocation2 + $0x4e0] sm:$0xff]
    %v213 = vld [vmem:[#allocation2 + $0x4e8] sm:$0xff]
    %v214 = vld [vmem:[#allocation2 + $0x4f0] sm:$0xff]
    %v215 = vld [vmem:[#allocation2 + $0x4f8] sm:$0xff]
    %v216 = vld [vmem:[#allocation2 + $0x500] sm:$0xff]
    %v217 = vld [vmem:[#allocation2 + $0x508] sm:$0xff]
    %v218 = vld [vmem:[#allocation2 + $0x510] sm:$0xff]
    %v219 = vld [vmem:[#allocation2 + $0x518] sm:$0xff]
    %v220 = vld [vmem:[#allocation2 + $0x520] sm:$0xff]
    %v221 = vld [vmem:[#allocation2 + $0x528] sm:$0xff]
    %v222 = vld [vmem:[#allocation2 + $0x530] sm:$0xff]
    %v223 = vld [vmem:[#allocation2 + $0x538] sm:$0xff]
    %v224 = vld [vmem:[#allocation2 + $0x540] sm:$0xff]
    %v225 = vld [vmem:[#allocation2 + $0x548] sm:$0xff]
    %v226 = vld [vmem:[#allocation2 + $0x550] sm:$0xff]
    %v227 = vld [vmem:[#allocation2 + $0x558] sm:$0xff]
    %v228 = vld [vmem:[#allocation2 + $0x560] sm:$0xff]
    %v229 = vld [vmem:[#allocation2 + $0x568] sm:$0xff]
    %v230 = vld [vmem:[#allocation2 + $0x570] sm:$0xff]
    %v231 = vld [vmem:[#allocation2 + $0x578] sm:$0xff]
    %v232 = vld [vmem:[#allocation2 + $0x580] sm:$0xff]
    %v233 = vld [vmem:[#allocation2 + $0x588] sm:$0xff]
    %v234 = vld [vmem:[#allocation2 + $0x590] sm:$0xff]
    %v235 = vld [vmem:[#allocation2 + $0x598] sm:$0xff]
    %v236 = vld [vmem:[#allocation2 + $0x5a0] sm:$0xff]
    %v237 = vld [vmem:[#allocation2 + $0x5a8] sm:$0xff]
    %v238 = vld [vmem:[#allocation2 + $0x5b0] sm:$0xff]
    %v239 = vld [vmem:[#allocation2 + $0x5b8] sm:$0xff]
    %v240 = vld [vmem:[#allocation2 + $0x5c0] sm:$0xff]
    %v241 = vld [vmem:[#allocation2 + $0x5c8] sm:$0xff]
    %v242 = vld [vmem:[#allocation2 + $0x5d0] sm:$0xff]
    %v243 = vld [vmem:[#allocation2 + $0x5d8] sm:$0xff]
    %v244 = vld [vmem:[#allocation2 + $0x5e0] sm:$0xff]
    %v245 = vld [vmem:[#allocation2 + $0x5e8] sm:$0xff]
    %v246 = vld [vmem:[#allocation2 + $0x5f0] sm:$0xff]
    %v247 = vld [vmem:[#allocation2 + $0x5f8] sm:$0xff]
    %v248 = vld [vmem:[#allocation2 + $0x600] sm:$0xff]
    %v249 = vld [vmem:[#allocation2 + $0x608] sm:$0xff]
    %v250 = vld [vmem:[#allocation2 + $0x610] sm:$0xff]
    %v251 = vld [vmem:[#allocation2 + $0x618] sm:$0xff]
    %v252 = vld [vmem:[#allocation2 + $0x620] sm:$0xff]
    %v253 = vld [vmem:[#allocation2 + $0x628] sm:$0xff]
    %v254 = vld [vmem:[#allocation2 + $0x630] sm:$0xff]
    %v255 = vld [vmem:[#allocation2 + $0x638] sm:$0xff]
    %v256 = vld [vmem:[#allocation2 + $0x640] sm:$0xff]
    %v257 = vld [vmem:[#allocation2 + $0x648] sm:$0xff]
    %v258 = vld [vmem:[#allocation2 + $0x650] sm:$0xff]
    %v259 = vld [vmem:[#allocation2 + $0x658] sm:$0xff]
    %v260 = vld [vmem:[#allocation2 + $0x660] sm:$0xff]
    %v261 = vld [vmem:[#allocation2 + $0x668] sm:$0xff]
    %v262 = vld [vmem:[#allocation2 + $0x670] sm:$0xff]
    %v263 = vld [vmem:[#allocation2 + $0x678] sm:$0xff]
    %v264 = vld [vmem:[#allocation2 + $0x680] sm:$0xff]
    %v265 = vld [vmem:[#allocation2 + $0x688] sm:$0xff]
    %v266 = vld [vmem:[#allocation2 + $0x690] sm:$0xff]
    %v267 = vld [vmem:[#allocation2 + $0x698] sm:$0xff]
    %v268 = vld [vmem:[#allocation2 + $0x6a0] sm:$0xff]
    %v269 = vld [vmem:[#allocation2 + $0x6a8] sm:$0xff]
    %v270 = vld [vmem:[#allocation2 + $0x6b0] sm:$0xff]
    %v271 = vld [vmem:[#allocation2 + $0x6b8] sm:$0xff]
    %v272 = vld [vmem:[#allocation2 + $0x6c0] sm:$0xff]
    %v273 = vld [vmem:[#allocation2 + $0x6c8] sm:$0xff]
    %v274 = vld [vmem:[#allocation2 + $0x6d0] sm:$0xff]
    %v275 = vld [vmem:[#allocation2 + $0x6d8] sm:$0xff]
    %v276 = vld [vmem:[#allocation2 + $0x6e0] sm:$0xff]
    %v277 = vld [vmem:[#allocation2 + $0x6e8] sm:$0xff]
    %v278 = vld [vmem:[#allocation2 + $0x6f0] sm:$0xff]
    %v279 = vld [vmem:[#allocation2 + $0x6f8] sm:$0xff]
    %v280 = vld [vmem:[#allocation2 + $0x700] sm:$0xff]
    %v281 = vld [vmem:[#allocation2 + $0x708] sm:$0xff]
    %v282 = vld [vmem:[#allocation2 + $0x710] sm:$0xff]
    %v283 = vld [vmem:[#allocation2 + $0x718] sm:$0xff]
    %v284 = vld [vmem:[#allocation2 + $0x720] sm:$0xff]
    %v285 = vld [vmem:[#allocation2 + $0x728] sm:$0xff]
    %v286 = vld [vmem:[#allocation2 + $0x730] sm:$0xff]
    %v287 = vld [vmem:[#allocation2 + $0x738] sm:$0xff]
    %v288 = vld [vmem:[#allocation2 + $0x740] sm:$0xff]
    %v289 = vld [vmem:[#allocation2 + $0x748] sm:$0xff]
    %v290 = vld [vmem:[#allocation2 + $0x750] sm:$0xff]
    %v291 = vld [vmem:[#allocation2 + $0x758] sm:$0xff]
    %v292 = vld [vmem:[#allocation2 + $0x760] sm:$0xff]
    %v293 = vld [vmem:[#allocation2 + $0x768] sm:$0xff]
    %v294 = vld [vmem:[#allocation2 + $0x770] sm:$0xff]
    %v295 = vld [vmem:[#allocation2 + $0x778] sm:$0xff]
    %v296 = vld [vmem:[#allocation2 + $0x780] sm:$0xff]
    %v297 = vld [vmem:[#allocation2 + $0x788] sm:$0xff]
    %v298 = vld [vmem:[#allocation2 + $0x790] sm:$0xff]
    %v299 = vld [vmem:[#allocation2 + $0x798] sm:$0xff]
    %v300 = vld [vmem:[#allocation2 + $0x7a0] sm:$0xff]
    %v301 = vld [vmem:[#allocation2 + $0x7a8] sm:$0xff]
    %v302 = vld [vmem:[#allocation2 + $0x7b0] sm:$0xff]
    %v303 = vld [vmem:[#allocation2 + $0x7b8] sm:$0xff]
    %v304 = vld [vmem:[#allocation2 + $0x7c0] sm:$0xff]
    %v305 = vld [vmem:[#allocation2 + $0x7c8] sm:$0xff]
    %v306 = vld [vmem:[#allocation2 + $0x7d0] sm:$0xff]
    %v307 = vld [vmem:[#allocation2 + $0x7d8] sm:$0xff]
    %v308 = vld [vmem:[#allocation2 + $0x7e0] sm:$0xff]
    %v309 = vld [vmem:[#allocation2 + $0x7e8] sm:$0xff]
    %v310 = vld [vmem:[#allocation2 + $0x7f0] sm:$0xff]
    %v311 = vld [vmem:[#allocation2 + $0x7f8] sm:$0xff]
    %v568 = vunpack.c.l.b16 %v56
    %v569 = vunpack.c.h.b16 %v56
    %v570 = vunpack.c.l.b16 %v57
    %v571 = vunpack.c.h.b16 %v57
    %v572 = vunpack.c.l.b16 %v58
    %v573 = vunpack.c.h.b16 %v58
    %v574 = vunpack.c.l.b16 %v59
    %v575 = vunpack.c.h.b16 %v59
    %v576 = vunpack.c.l.b16 %v60
    %v577 = vunpack.c.h.b16 %v60
    %v578 = vunpack.c.l.b16 %v61
    %v579 = vunpack.c.h.b16 %v61
    %v580 = vunpack.c.l.b16 %v62
    %v581 = vunpack.c.h.b16 %v62
    %v582 = vunpack.c.l.b16 %v63
    %v583 = vunpack.c.h.b16 %v63
    %v584 = vunpack.c.l.b16 %v64
    %v585 = vunpack.c.h.b16 %v64
    %v586 = vunpack.c.l.b16 %v65
    %v587 = vunpack.c.h.b16 %v65
    %v588 = vunpack.c.l.b16 %v66
    %v589 = vunpack.c.h.b16 %v66
    %v590 = vunpack.c.l.b16 %v67
    %v591 = vunpack.c.h.b16 %v67
    %v592 = vunpack.c.l.b16 %v68
    %v593 = vunpack.c.h.b16 %v68
    %v594 = vunpack.c.l.b16 %v69
    %v595 = vunpack.c.h.b16 %v69
    %v596 = vunpack.c.l.b16 %v70
    %v597 = vunpack.c.h.b16 %v70
    %v598 = vunpack.c.l.b16 %v71
    %v599 = vunpack.c.h.b16 %v71
    %v600 = vunpack.c.l.b16 %v72
    %v601 = vunpack.c.h.b16 %v72
    %v602 = vunpack.c.l.b16 %v73
    %v603 = vunpack.c.h.b16 %v73
    %v604 = vunpack.c.l.b16 %v74
    %v605 = vunpack.c.h.b16 %v74
    %v606 = vunpack.c.l.b16 %v75
    %v607 = vunpack.c.h.b16 %v75
    %v608 = vunpack.c.l.b16 %v76
    %v609 = vunpack.c.h.b16 %v76
    %v610 = vunpack.c.l.b16 %v77
    %v611 = vunpack.c.h.b16 %v77
    %v612 = vunpack.c.l.b16 %v78
    %v613 = vunpack.c.h.b16 %v78
    %v614 = vunpack.c.l.b16 %v79
    %v615 = vunpack.c.h.b16 %v79
    %v616 = vunpack.c.l.b16 %v80
    %v617 = vunpack.c.h.b16 %v80
    %v618 = vunpack.c.l.b16 %v81
    %v619 = vunpack.c.h.b16 %v81
    %v620 = vunpack.c.l.b16 %v82
    %v621 = vunpack.c.h.b16 %v82
    %v622 = vunpack.c.l.b16 %v83
    %v623 = vunpack.c.h.b16 %v83
    %v624 = vunpack.c.l.b16 %v84
    %v625 = vunpack.c.h.b16 %v84
    %v626 = vunpack.c.l.b16 %v85
    %v627 = vunpack.c.h.b16 %v85
    %v628 = vunpack.c.l.b16 %v86
    %v629 = vunpack.c.h.b16 %v86
    %v630 = vunpack.c.l.b16 %v87
    %v631 = vunpack.c.h.b16 %v87
    %v632 = vunpack.c.l.b16 %v88
    %v633 = vunpack.c.h.b16 %v88
    %v634 = vunpack.c.l.b16 %v89
    %v635 = vunpack.c.h.b16 %v89
    %v636 = vunpack.c.l.b16 %v90
    %v637 = vunpack.c.h.b16 %v90
    %v638 = vunpack.c.l.b16 %v91
    %v639 = vunpack.c.h.b16 %v91
    %v640 = vunpack.c.l.b16 %v92
    %v641 = vunpack.c.h.b16 %v92
    %v642 = vunpack.c.l.b16 %v93
    %v643 = vunpack.c.h.b16 %v93
    %v644 = vunpack.c.l.b16 %v94
    %v645 = vunpack.c.h.b16 %v94
    %v646 = vunpack.c.l.b16 %v95
    %v647 = vunpack.c.h.b16 %v95
    %v648 = vunpack.c.l.b16 %v96
    %v649 = vunpack.c.h.b16 %v96
    %v650 = vunpack.c.l.b16 %v97
    %v651 = vunpack.c.h.b16 %v97
    %v652 = vunpack.c.l.b16 %v98
    %v653 = vunpack.c.h.b16 %v98
    %v654 = vunpack.c.l.b16 %v99
    %v655 = vunpack.c.h.b16 %v99
    %v656 = vunpack.c.l.b16 %v100
    %v657 = vunpack.c.h.b16 %v100
    %v658 = vunpack.c.l.b16 %v101
    %v659 = vunpack.c.h.b16 %v101
    %v660 = vunpack.c.l.b16 %v102
    %v661 = vunpack.c.h.b16 %v102
    %v662 = vunpack.c.l.b16 %v103
    %v663 = vunpack.c.h.b16 %v103
    %v664 = vunpack.c.l.b16 %v104
    %v665 = vunpack.c.h.b16 %v104
    %v666 = vunpack.c.l.b16 %v105
    %v667 = vunpack.c.h.b16 %v105
    %v668 = vunpack.c.l.b16 %v106
    %v669 = vunpack.c.h.b16 %v106
    %v670 = vunpack.c.l.b16 %v107
    %v671 = vunpack.c.h.b16 %v107
    %v672 = vunpack.c.l.b16 %v108
    %v673 = vunpack.c.h.b16 %v108
    %v674 = vunpack.c.l.b16 %v109
    %v675 = vunpack.c.h.b16 %v109
    %v676 = vunpack.c.l.b16 %v110
    %v677 = vunpack.c.h.b16 %v110
    %v678 = vunpack.c.l.b16 %v111
    %v679 = vunpack.c.h.b16 %v111
    %v680 = vunpack.c.l.b16 %v112
    %v681 = vunpack.c.h.b16 %v112
    %v682 = vunpack.c.l.b16 %v113
    %v683 = vunpack.c.h.b16 %v113
    %v684 = vunpack.c.l.b16 %v114
    %v685 = vunpack.c.h.b16 %v114
    %v686 = vunpack.c.l.b16 %v115
    %v687 = vunpack.c.h.b16 %v115
    %v688 = vunpack.c.l.b16 %v116
    %v689 = vunpack.c.h.b16 %v116
    %v690 = vunpack.c.l.b16 %v117
    %v691 = vunpack.c.h.b16 %v117
    %v692 = vunpack.c.l.b16 %v118
    %v693 = vunpack.c.h.b16 %v118
    %v694 = vunpack.c.l.b16 %v119
    %v695 = vunpack.c.h.b16 %v119
    %v696 = vunpack.c.l.b16 %v120
    %v697 = vunpack.c.h.b16 %v120
    %v698 = vunpack.c.l.b16 %v121
    %v699 = vunpack.c.h.b16 %v121
    %v700 = vunpack.c.l.b16 %v122
    %v701 = vunpack.c.h.b16 %v122
    %v702 = vunpack.c.l.b16 %v123
    %v703 = vunpack.c.h.b16 %v123
    %v704 = vunpack.c.l.b16 %v124
    %v705 = vunpack.c.h.b16 %v124
    %v706 = vunpack.c.l.b16 %v125
    %v707 = vunpack.c.h.b16 %v125
    %v708 = vunpack.c.l.b16 %v126
    %v709 = vunpack.c.h.b16 %v126
    %v710 = vunpack.c.l.b16 %v127
    %v711 = vunpack.c.h.b16 %v127
    %v712 = vunpack.c.l.b16 %v128
    %v713 = vunpack.c.h.b16 %v128
    %v714 = vunpack.c.l.b16 %v129
    %v715 = vunpack.c.h.b16 %v129
    %v716 = vunpack.c.l.b16 %v130
    %v717 = vunpack.c.h.b16 %v130
    %v718 = vunpack.c.l.b16 %v131
    %v719 = vunpack.c.h.b16 %v131
    %v720 = vunpack.c.l.b16 %v132
    %v721 = vunpack.c.h.b16 %v132
    %v722 = vunpack.c.l.b16 %v133
    %v723 = vunpack.c.h.b16 %v133
    %v724 = vunpack.c.l.b16 %v134
    %v725 = vunpack.c.h.b16 %v134
    %v726 = vunpack.c.l.b16 %v135
    %v727 = vunpack.c.h.b16 %v135
    %v728 = vunpack.c.l.b16 %v136
    %v729 = vunpack.c.h.b16 %v136
    %v730 = vunpack.c.l.b16 %v137
    %v731 = vunpack.c.h.b16 %v137
    %v732 = vunpack.c.l.b16 %v138
    %v733 = vunpack.c.h.b16 %v138
    %v734 = vunpack.c.l.b16 %v139
    %v735 = vunpack.c.h.b16 %v139
    %v736 = vunpack.c.l.b16 %v140
    %v737 = vunpack.c.h.b16 %v140
    %v738 = vunpack.c.l.b16 %v141
    %v739 = vunpack.c.h.b16 %v141
    %v740 = vunpack.c.l.b16 %v142
    %v741 = vunpack.c.h.b16 %v142
    %v742 = vunpack.c.l.b16 %v143
    %v743 = vunpack.c.h.b16 %v143
    %v744 = vunpack.c.l.b16 %v144
    %v745 = vunpack.c.h.b16 %v144
    %v746 = vunpack.c.l.b16 %v145
    %v747 = vunpack.c.h.b16 %v145
    %v748 = vunpack.c.l.b16 %v146
    %v749 = vunpack.c.h.b16 %v146
    %v750 = vunpack.c.l.b16 %v147
    %v751 = vunpack.c.h.b16 %v147
    %v752 = vunpack.c.l.b16 %v148
    %v753 = vunpack.c.h.b16 %v148
    %v754 = vunpack.c.l.b16 %v149
    %v755 = vunpack.c.h.b16 %v149
    %v756 = vunpack.c.l.b16 %v150
    %v757 = vunpack.c.h.b16 %v150
    %v758 = vunpack.c.l.b16 %v151
    %v759 = vunpack.c.h.b16 %v151
    %v760 = vunpack.c.l.b16 %v152
    %v761 = vunpack.c.h.b16 %v152
    %v762 = vunpack.c.l.b16 %v153
    %v763 = vunpack.c.h.b16 %v153
    %v764 = vunpack.c.l.b16 %v154
    %v765 = vunpack.c.h.b16 %v154
    %v766 = vunpack.c.l.b16 %v155
    %v767 = vunpack.c.h.b16 %v155
    %v768 = vunpack.c.l.b16 %v156
    %v769 = vunpack.c.h.b16 %v156
    %v770 = vunpack.c.l.b16 %v157
    %v771 = vunpack.c.h.b16 %v157
    %v772 = vunpack.c.l.b16 %v158
    %v773 = vunpack.c.h.b16 %v158
    %v774 = vunpack.c.l.b16 %v159
    %v775 = vunpack.c.h.b16 %v159
    %v776 = vunpack.c.l.b16 %v160
    %v777 = vunpack.c.h.b16 %v160
    %v778 = vunpack.c.l.b16 %v161
    %v779 = vunpack.c.h.b16 %v161
    %v780 = vunpack.c.l.b16 %v162
    %v781 = vunpack.c.h.b16 %v162
    %v782 = vunpack.c.l.b16 %v163
    %v783 = vunpack.c.h.b16 %v163
    %v784 = vunpack.c.l.b16 %v164
    %v785 = vunpack.c.h.b16 %v164
    %v786 = vunpack.c.l.b16 %v165
    %v787 = vunpack.c.h.b16 %v165
    %v788 = vunpack.c.l.b16 %v166
    %v789 = vunpack.c.h.b16 %v166
    %v790 = vunpack.c.l.b16 %v167
    %v791 = vunpack.c.h.b16 %v167
    %v792 = vunpack.c.l.b16 %v168
    %v793 = vunpack.c.h.b16 %v168
    %v794 = vunpack.c.l.b16 %v169
    %v795 = vunpack.c.h.b16 %v169
    %v796 = vunpack.c.l.b16 %v170
    %v797 = vunpack.c.h.b16 %v170
    %v798 = vunpack.c.l.b16 %v171
    %v799 = vunpack.c.h.b16 %v171
    %v800 = vunpack.c.l.b16 %v172
    %v801 = vunpack.c.h.b16 %v172
    %v802 = vunpack.c.l.b16 %v173
    %v803 = vunpack.c.h.b16 %v173
    %v804 = vunpack.c.l.b16 %v174
    %v805 = vunpack.c.h.b16 %v174
    %v806 = vunpack.c.l.b16 %v175
    %v807 = vunpack.c.h.b16 %v175
    %v808 = vunpack.c.l.b16 %v176
    %v809 = vunpack.c.h.b16 %v176
    %v810 = vunpack.c.l.b16 %v177
    %v811 = vunpack.c.h.b16 %v177
    %v812 = vunpack.c.l.b16 %v178
    %v813 = vunpack.c.h.b16 %v178
    %v814 = vunpack.c.l.b16 %v179
    %v815 = vunpack.c.h.b16 %v179
    %v816 = vunpack.c.l.b16 %v180
    %v817 = vunpack.c.h.b16 %v180
    %v818 = vunpack.c.l.b16 %v181
    %v819 = vunpack.c.h.b16 %v181
    %v820 = vunpack.c.l.b16 %v182
    %v821 = vunpack.c.h.b16 %v182
    %v822 = vunpack.c.l.b16 %v183
    %v823 = vunpack.c.h.b16 %v183
    %v824 = vunpack.c.l.b16 %v184
    %v825 = vunpack.c.h.b16 %v184
    %v826 = vunpack.c.l.b16 %v185
    %v827 = vunpack.c.h.b16 %v185
    %v828 = vunpack.c.l.b16 %v186
    %v829 = vunpack.c.h.b16 %v186
    %v830 = vunpack.c.l.b16 %v187
    %v831 = vunpack.c.h.b16 %v187
    %v832 = vunpack.c.l.b16 %v188
    %v833 = vunpack.c.h.b16 %v188
    %v834 = vunpack.c.l.b16 %v189
    %v835 = vunpack.c.h.b16 %v189
    %v836 = vunpack.c.l.b16 %v190
    %v837 = vunpack.c.h.b16 %v190
    %v838 = vunpack.c.l.b16 %v191
    %v839 = vunpack.c.h.b16 %v191
    %v840 = vunpack.c.l.b16 %v192
    %v841 = vunpack.c.h.b16 %v192
    %v842 = vunpack.c.l.b16 %v193
    %v843 = vunpack.c.h.b16 %v193
    %v844 = vunpack.c.l.b16 %v194
    %v845 = vunpack.c.h.b16 %v194
    %v846 = vunpack.c.l.b16 %v195
    %v847 = vunpack.c.h.b16 %v195
    %v848 = vunpack.c.l.b16 %v196
    %v849 = vunpack.c.h.b16 %v196
    %v850 = vunpack.c.l.b16 %v197
    %v851 = vunpack.c.h.b16 %v197
    %v852 = vunpack.c.l.b16 %v198
    %v853 = vunpack.c.h.b16 %v198
    %v854 = vunpack.c.l.b16 %v199
    %v855 = vunpack.c.h.b16 %v199
    %v856 = vunpack.c.l.b16 %v200
    %v857 = vunpack.c.h.b16 %v200
    %v858 = vunpack.c.l.b16 %v201
    %v859 = vunpack.c.h.b16 %v201
    %v860 = vunpack.c.l.b16 %v202
    %v861 = vunpack.c.h.b16 %v202
    %v862 = vunpack.c.l.b16 %v203
    %v863 = vunpack.c.h.b16 %v203
    %v864 = vunpack.c.l.b16 %v204
    %v865 = vunpack.c.h.b16 %v204
    %v866 = vunpack.c.l.b16 %v205
    %v867 = vunpack.c.h.b16 %v205
    %v868 = vunpack.c.l.b16 %v206
    %v869 = vunpack.c.h.b16 %v206
    %v870 = vunpack.c.l.b16 %v207
    %v871 = vunpack.c.h.b16 %v207
    %v872 = vunpack.c.l.b16 %v208
    %v873 = vunpack.c.h.b16 %v208
    %v874 = vunpack.c.l.b16 %v209
    %v875 = vunpack.c.h.b16 %v209
    %v876 = vunpack.c.l.b16 %v210
    %v877 = vunpack.c.h.b16 %v210
    %v878 = vunpack.c.l.b16 %v211
    %v879 = vunpack.c.h.b16 %v211
    %v880 = vunpack.c.l.b16 %v212
    %v881 = vunpack.c.h.b16 %v212
    %v882 = vunpack.c.l.b16 %v213
    %v883 = vunpack.c.h.b16 %v213
    %v884 = vunpack.c.l.b16 %v214
    %v885 = vunpack.c.h.b16 %v214
    %v886 = vunpack.c.l.b16 %v215
    %v887 = vunpack.c.h.b16 %v215
    %v888 = vunpack.c.l.b16 %v216
    %v889 = vunpack.c.h.b16 %v216
    %v890 = vunpack.c.l.b16 %v217
    %v891 = vunpack.c.h.b16 %v217
    %v892 = vunpack.c.l.b16 %v218
    %v893 = vunpack.c.h.b16 %v218
    %v894 = vunpack.c.l.b16 %v219
    %v895 = vunpack.c.h.b16 %v219
    %v896 = vunpack.c.l.b16 %v220
    %v897 = vunpack.c.h.b16 %v220
    %v898 = vunpack.c.l.b16 %v221
    %v899 = vunpack.c.h.b16 %v221
    %v900 = vunpack.c.l.b16 %v222
    %v901 = vunpack.c.h.b16 %v222
    %v902 = vunpack.c.l.b16 %v223
    %v903 = vunpack.c.h.b16 %v223
    %v904 = vunpack.c.l.b16 %v224
    %v905 = vunpack.c.h.b16 %v224
    %v906 = vunpack.c.l.b16 %v225
    %v907 = vunpack.c.h.b16 %v225
    %v908 = vunpack.c.l.b16 %v226
    %v909 = vunpack.c.h.b16 %v226
    %v910 = vunpack.c.l.b16 %v227
    %v911 = vunpack.c.h.b16 %v227
    %v912 = vunpack.c.l.b16 %v228
    %v913 = vunpack.c.h.b16 %v228
    %v914 = vunpack.c.l.b16 %v229
    %v915 = vunpack.c.h.b16 %v229
    %v916 = vunpack.c.l.b16 %v230
    %v917 = vunpack.c.h.b16 %v230
    %v918 = vunpack.c.l.b16 %v231
    %v919 = vunpack.c.h.b16 %v231
    %v920 = vunpack.c.l.b16 %v232
    %v921 = vunpack.c.h.b16 %v232
    %v922 = vunpack.c.l.b16 %v233
    %v923 = vunpack.c.h.b16 %v233
    %v924 = vunpack.c.l.b16 %v234
    %v925 = vunpack.c.h.b16 %v234
    %v926 = vunpack.c.l.b16 %v235
    %v927 = vunpack.c.h.b16 %v235
    %v928 = vunpack.c.l.b16 %v236
    %v929 = vunpack.c.h.b16 %v236
    %v930 = vunpack.c.l.b16 %v237
    %v931 = vunpack.c.h.b16 %v237
    %v932 = vunpack.c.l.b16 %v238
    %v933 = vunpack.c.h.b16 %v238
    %v934 = vunpack.c.l.b16 %v239
    %v935 = vunpack.c.h.b16 %v239
    %v936 = vunpack.c.l.b16 %v240
    %v937 = vunpack.c.h.b16 %v240
    %v938 = vunpack.c.l.b16 %v241
    %v939 = vunpack.c.h.b16 %v241
    %v940 = vunpack.c.l.b16 %v242
    %v941 = vunpack.c.h.b16 %v242
    %v942 = vunpack.c.l.b16 %v243
    %v943 = vunpack.c.h.b16 %v243
    %v944 = vunpack.c.l.b16 %v244
    %v945 = vunpack.c.h.b16 %v244
    %v946 = vunpack.c.l.b16 %v245
    %v947 = vunpack.c.h.b16 %v245
    %v948 = vunpack.c.l.b16 %v246
    %v949 = vunpack.c.h.b16 %v246
    %v950 = vunpack.c.l.b16 %v247
    %v951 = vunpack.c.h.b16 %v247
    %v952 = vunpack.c.l.b16 %v248
    %v953 = vunpack.c.h.b16 %v248
    %v954 = vunpack.c.l.b16 %v249
    %v955 = vunpack.c.h.b16 %v249
    %v956 = vunpack.c.l.b16 %v250
    %v957 = vunpack.c.h.b16 %v250
    %v958 = vunpack.c.l.b16 %v251
    %v959 = vunpack.c.h.b16 %v251
    %v960 = vunpack.c.l.b16 %v252
    %v961 = vunpack.c.h.b16 %v252
    %v962 = vunpack.c.l.b16 %v253
    %v963 = vunpack.c.h.b16 %v253
    %v964 = vunpack.c.l.b16 %v254
    %v965 = vunpack.c.h.b16 %v254
    %v966 = vunpack.c.l.b16 %v255
    %v967 = vunpack.c.h.b16 %v255
    %v968 = vunpack.c.l.b16 %v256
    %v969 = vunpack.c.h.b16 %v256
    %v970 = vunpack.c.l.b16 %v257
    %v971 = vunpack.c.h.b16 %v257
    %v972 = vunpack.c.l.b16 %v258
    %v973 = vunpack.c.h.b16 %v258
    %v974 = vunpack.c.l.b16 %v259
    %v975 = vunpack.c.h.b16 %v259
    %v976 = vunpack.c.l.b16 %v260
    %v977 = vunpack.c.h.b16 %v260
    %v978 = vunpack.c.l.b16 %v261
    %v979 = vunpack.c.h.b16 %v261
    %v980 = vunpack.c.l.b16 %v262
    %v981 = vunpack.c.h.b16 %v262
    %v982 = vunpack.c.l.b16 %v263
    %v983 = vunpack.c.h.b16 %v263
    %v984 = vunpack.c.l.b16 %v264
    %v985 = vunpack.c.h.b16 %v264
    %v986 = vunpack.c.l.b16 %v265
    %v987 = vunpack.c.h.b16 %v265
    %v988 = vunpack.c.l.b16 %v266
    %v989 = vunpack.c.h.b16 %v266
    %v990 = vunpack.c.l.b16 %v267
    %v991 = vunpack.c.h.b16 %v267
    %v992 = vunpack.c.l.b16 %v268
    %v993 = vunpack.c.h.b16 %v268
    %v994 = vunpack.c.l.b16 %v269
    %v995 = vunpack.c.h.b16 %v269
    %v996 = vunpack.c.l.b16 %v270
    %v997 = vunpack.c.h.b16 %v270
    %v998 = vunpack.c.l.b16 %v271
    %v999 = vunpack.c.h.b16 %v271
    %v1000 = vunpack.c.l.b16 %v272
    %v1001 = vunpack.c.h.b16 %v272
    %v1002 = vunpack.c.l.b16 %v273
    %v1003 = vunpack.c.h.b16 %v273
    %v1004 = vunpack.c.l.b16 %v274
    %v1005 = vunpack.c.h.b16 %v274
    %v1006 = vunpack.c.l.b16 %v275
    %v1007 = vunpack.c.h.b16 %v275
    %v1008 = vunpack.c.l.b16 %v276
    %v1009 = vunpack.c.h.b16 %v276
    %v1010 = vunpack.c.l.b16 %v277
    %v1011 = vunpack.c.h.b16 %v277
    %v1012 = vunpack.c.l.b16 %v278
    %v1013 = vunpack.c.h.b16 %v278
    %v1014 = vunpack.c.l.b16 %v279
    %v1015 = vunpack.c.h.b16 %v279
    %v1016 = vunpack.c.l.b16 %v280
    %v1017 = vunpack.c.h.b16 %v280
    %v1018 = vunpack.c.l.b16 %v281
    %v1019 = vunpack.c.h.b16 %v281
    %v1020 = vunpack.c.l.b16 %v282
    %v1021 = vunpack.c.h.b16 %v282
    %v1022 = vunpack.c.l.b16 %v283
    %v1023 = vunpack.c.h.b16 %v283
    %v1024 = vunpack.c.l.b16 %v284
    %v1025 = vunpack.c.h.b16 %v284
    %v1026 = vunpack.c.l.b16 %v285
    %v1027 = vunpack.c.h.b16 %v285
    %v1028 = vunpack.c.l.b16 %v286
    %v1029 = vunpack.c.h.b16 %v286
    %v1030 = vunpack.c.l.b16 %v287
    %v1031 = vunpack.c.h.b16 %v287
    %v1032 = vunpack.c.l.b16 %v288
    %v1033 = vunpack.c.h.b16 %v288
    %v1034 = vunpack.c.l.b16 %v289
    %v1035 = vunpack.c.h.b16 %v289
    %v1036 = vunpack.c.l.b16 %v290
    %v1037 = vunpack.c.h.b16 %v290
    %v1038 = vunpack.c.l.b16 %v291
    %v1039 = vunpack.c.h.b16 %v291
    %v1040 = vunpack.c.l.b16 %v292
    %v1041 = vunpack.c.h.b16 %v292
    %v1042 = vunpack.c.l.b16 %v293
    %v1043 = vunpack.c.h.b16 %v293
    %v1044 = vunpack.c.l.b16 %v294
    %v1045 = vunpack.c.h.b16 %v294
    %v1046 = vunpack.c.l.b16 %v295
    %v1047 = vunpack.c.h.b16 %v295
    %v1048 = vunpack.c.l.b16 %v296
    %v1049 = vunpack.c.h.b16 %v296
    %v1050 = vunpack.c.l.b16 %v297
    %v1051 = vunpack.c.h.b16 %v297
    %v1052 = vunpack.c.l.b16 %v298
    %v1053 = vunpack.c.h.b16 %v298
    %v1054 = vunpack.c.l.b16 %v299
    %v1055 = vunpack.c.h.b16 %v299
    %v1056 = vunpack.c.l.b16 %v300
    %v1057 = vunpack.c.h.b16 %v300
    %v1058 = vunpack.c.l.b16 %v301
    %v1059 = vunpack.c.h.b16 %v301
    %v1060 = vunpack.c.l.b16 %v302
    %v1061 = vunpack.c.h.b16 %v302
    %v1062 = vunpack.c.l.b16 %v303
    %v1063 = vunpack.c.h.b16 %v303
    %v1064 = vunpack.c.l.b16 %v304
    %v1065 = vunpack.c.h.b16 %v304
    %v1066 = vunpack.c.l.b16 %v305
    %v1067 = vunpack.c.h.b16 %v305
    %v1068 = vunpack.c.l.b16 %v306
    %v1069 = vunpack.c.h.b16 %v306
    %v1070 = vunpack.c.l.b16 %v307
    %v1071 = vunpack.c.h.b16 %v307
    %v1072 = vunpack.c.l.b16 %v308
    %v1073 = vunpack.c.h.b16 %v308
    %v1074 = vunpack.c.l.b16 %v309
    %v1075 = vunpack.c.h.b16 %v309
    %v1076 = vunpack.c.l.b16 %v310
    %v1077 = vunpack.c.h.b16 %v310
    %v1078 = vunpack.c.l.b16 %v311
    %v1079 = vunpack.c.h.b16 %v311
    %v1080 = vpack.c.b16 %v600, %v568
    %v1081 = vpack.c.b16 %v601, %v569
    %v1082 = vpack.c.b16 %v602, %v570
    %v1083 = vpack.c.b16 %v603, %v571
    %v1084 = vpack.c.b16 %v604, %v572
    %v1085 = vpack.c.b16 %v605, %v573
    %v1086 = vpack.c.b16 %v606, %v574
    %v1087 = vpack.c.b16 %v607, %v575
    %v1088 = vpack.c.b16 %v608, %v576
    %v1089 = vpack.c.b16 %v609, %v577
    %v1090 = vpack.c.b16 %v610, %v578
    %v1091 = vpack.c.b16 %v611, %v579
    %v1092 = vpack.c.b16 %v612, %v580
    %v1093 = vpack.c.b16 %v613, %v581
    %v1094 = vpack.c.b16 %v614, %v582
    %v1095 = vpack.c.b16 %v615, %v583
    %v1096 = vpack.c.b16 %v616, %v584
    %v1097 = vpack.c.b16 %v617, %v585
    %v1098 = vpack.c.b16 %v618, %v586
    %v1099 = vpack.c.b16 %v619, %v587
    %v1100 = vpack.c.b16 %v620, %v588
    %v1101 = vpack.c.b16 %v621, %v589
    %v1102 = vpack.c.b16 %v622, %v590
    %v1103 = vpack.c.b16 %v623, %v591
    %v1104 = vpack.c.b16 %v624, %v592
    %v1105 = vpack.c.b16 %v625, %v593
    %v1106 = vpack.c.b16 %v626, %v594
    %v1107 = vpack.c.b16 %v627, %v595
    %v1108 = vpack.c.b16 %v628, %v596
    %v1109 = vpack.c.b16 %v629, %v597
    %v1110 = vpack.c.b16 %v630, %v598
    %v1111 = vpack.c.b16 %v631, %v599
    %v1112 = vpack.c.b16 %v664, %v632
    %v1113 = vpack.c.b16 %v665, %v633
    %v1114 = vpack.c.b16 %v666, %v634
    %v1115 = vpack.c.b16 %v667, %v635
    %v1116 = vpack.c.b16 %v668, %v636
    %v1117 = vpack.c.b16 %v669, %v637
    %v1118 = vpack.c.b16 %v670, %v638
    %v1119 = vpack.c.b16 %v671, %v639
    %v1120 = vpack.c.b16 %v672, %v640
    %v1121 = vpack.c.b16 %v673, %v641
    %v1122 = vpack.c.b16 %v674, %v642
    %v1123 = vpack.c.b16 %v675, %v643
    %v1124 = vpack.c.b16 %v676, %v644
    %v1125 = vpack.c.b16 %v677, %v645
    %v1126 = vpack.c.b16 %v678, %v646
    %v1127 = vpack.c.b16 %v679, %v647
    %v1128 = vpack.c.b16 %v680, %v648
    %v1129 = vpack.c.b16 %v681, %v649
    %v1130 = vpack.c.b16 %v682, %v650
    %v1131 = vpack.c.b16 %v683, %v651
    %v1132 = vpack.c.b16 %v684, %v652
    %v1133 = vpack.c.b16 %v685, %v653
    %v1134 = vpack.c.b16 %v686, %v654
    %v1135 = vpack.c.b16 %v687, %v655
    %v1136 = vpack.c.b16 %v688, %v656
    %v1137 = vpack.c.b16 %v689, %v657
    %v1138 = vpack.c.b16 %v690, %v658
    %v1139 = vpack.c.b16 %v691, %v659
    %v1140 = vpack.c.b16 %v692, %v660
    %v1141 = vpack.c.b16 %v693, %v661
    %v1142 = vpack.c.b16 %v694, %v662
    %v1143 = vpack.c.b16 %v695, %v663
    %v1144 = vpack.c.b16 %v728, %v696
    %v1145 = vpack.c.b16 %v729, %v697
    %v1146 = vpack.c.b16 %v730, %v698
    %v1147 = vpack.c.b16 %v731, %v699
    %v1148 = vpack.c.b16 %v732, %v700
    %v1149 = vpack.c.b16 %v733, %v701
    %v1150 = vpack.c.b16 %v734, %v702
    %v1151 = vpack.c.b16 %v735, %v703
    %v1152 = vpack.c.b16 %v736, %v704
    %v1153 = vpack.c.b16 %v737, %v705
    %v1154 = vpack.c.b16 %v738, %v706
    %v1155 = vpack.c.b16 %v739, %v707
    %v1156 = vpack.c.b16 %v740, %v708
    %v1157 = vpack.c.b16 %v741, %v709
    %v1158 = vpack.c.b16 %v742, %v710
    %v1159 = vpack.c.b16 %v743, %v711
    %v1160 = vpack.c.b16 %v744, %v712
    %v1161 = vpack.c.b16 %v745, %v713
    %v1162 = vpack.c.b16 %v746, %v714
    %v1163 = vpack.c.b16 %v747, %v715
    %v1164 = vpack.c.b16 %v748, %v716
    %v1165 = vpack.c.b16 %v749, %v717
    %v1166 = vpack.c.b16 %v750, %v718
    %v1167 = vpack.c.b16 %v751, %v719
    %v1168 = vpack.c.b16 %v752, %v720
    %v1169 = vpack.c.b16 %v753, %v721
    %v1170 = vpack.c.b16 %v754, %v722
    %v1171 = vpack.c.b16 %v755, %v723
    %v1172 = vpack.c.b16 %v756, %v724
    %v1173 = vpack.c.b16 %v757, %v725
    %v1174 = vpack.c.b16 %v758, %v726
    %v1175 = vpack.c.b16 %v759, %v727
    %v1176 = vpack.c.b16 %v792, %v760
    %v1177 = vpack.c.b16 %v793, %v761
    %v1178 = vpack.c.b16 %v794, %v762
    %v1179 = vpack.c.b16 %v795, %v763
    %v1180 = vpack.c.b16 %v796, %v764
    %v1181 = vpack.c.b16 %v797, %v765
    %v1182 = vpack.c.b16 %v798, %v766
    %v1183 = vpack.c.b16 %v799, %v767
    %v1184 = vpack.c.b16 %v800, %v768
    %v1185 = vpack.c.b16 %v801, %v769
    %v1186 = vpack.c.b16 %v802, %v770
    %v1187 = vpack.c.b16 %v803, %v771
    %v1188 = vpack.c.b16 %v804, %v772
    %v1189 = vpack.c.b16 %v805, %v773
    %v1190 = vpack.c.b16 %v806, %v774
    %v1191 = vpack.c.b16 %v807, %v775
    %v1192 = vpack.c.b16 %v808, %v776
    %v1193 = vpack.c.b16 %v809, %v777
    %v1194 = vpack.c.b16 %v810, %v778
    %v1195 = vpack.c.b16 %v811, %v779
    %v1196 = vpack.c.b16 %v812, %v780
    %v1197 = vpack.c.b16 %v813, %v781
    %v1198 = vpack.c.b16 %v814, %v782
    %v1199 = vpack.c.b16 %v815, %v783
    %v1200 = vpack.c.b16 %v816, %v784
    %v1201 = vpack.c.b16 %v817, %v785
    %v1202 = vpack.c.b16 %v818, %v786
    %v1203 = vpack.c.b16 %v819, %v787
    %v1204 = vpack.c.b16 %v820, %v788
    %v1205 = vpack.c.b16 %v821, %v789
    %v1206 = vpack.c.b16 %v822, %v790
    %v1207 = vpack.c.b16 %v823, %v791
    %v1208 = vpack.c.b16 %v856, %v824
    %v1209 = vpack.c.b16 %v857, %v825
    %v1210 = vpack.c.b16 %v858, %v826
    %v1211 = vpack.c.b16 %v859, %v827
    %v1212 = vpack.c.b16 %v860, %v828
    %v1213 = vpack.c.b16 %v861, %v829
    %v1214 = vpack.c.b16 %v862, %v830
    %v1215 = vpack.c.b16 %v863, %v831
    %v1216 = vpack.c.b16 %v864, %v832
    %v1217 = vpack.c.b16 %v865, %v833
    %v1218 = vpack.c.b16 %v866, %v834
    %v1219 = vpack.c.b16 %v867, %v835
    %v1220 = vpack.c.b16 %v868, %v836
    %v1221 = vpack.c.b16 %v869, %v837
    %v1222 = vpack.c.b16 %v870, %v838
    %v1223 = vpack.c.b16 %v871, %v839
    %v1224 = vpack.c.b16 %v872, %v840
    %v1225 = vpack.c.b16 %v873, %v841
    %v1226 = vpack.c.b16 %v874, %v842
    %v1227 = vpack.c.b16 %v875, %v843
    %v1228 = vpack.c.b16 %v876, %v844
    %v1229 = vpack.c.b16 %v877, %v845
    %v1230 = vpack.c.b16 %v878, %v846
    %v1231 = vpack.c.b16 %v879, %v847
    %v1232 = vpack.c.b16 %v880, %v848
    %v1233 = vpack.c.b16 %v881, %v849
    %v1234 = vpack.c.b16 %v882, %v850
    %v1235 = vpack.c.b16 %v883, %v851
    %v1236 = vpack.c.b16 %v884, %v852
    %v1237 = vpack.c.b16 %v885, %v853
    %v1238 = vpack.c.b16 %v886, %v854
    %v1239 = vpack.c.b16 %v887, %v855
    %v1240 = vpack.c.b16 %v920, %v888
    %v1241 = vpack.c.b16 %v921, %v889
    %v1242 = vpack.c.b16 %v922, %v890
    %v1243 = vpack.c.b16 %v923, %v891
    %v1244 = vpack.c.b16 %v924, %v892
    %v1245 = vpack.c.b16 %v925, %v893
    %v1246 = vpack.c.b16 %v926, %v894
    %v1247 = vpack.c.b16 %v927, %v895
    %v1248 = vpack.c.b16 %v928, %v896
    %v1249 = vpack.c.b16 %v929, %v897
    %v1250 = vpack.c.b16 %v930, %v898
    %v1251 = vpack.c.b16 %v931, %v899
    %v1252 = vpack.c.b16 %v932, %v900
    %v1253 = vpack.c.b16 %v933, %v901
    %v1254 = vpack.c.b16 %v934, %v902
    %v1255 = vpack.c.b16 %v935, %v903
    %v1256 = vpack.c.b16 %v936, %v904
    %v1257 = vpack.c.b16 %v937, %v905
    %v1258 = vpack.c.b16 %v938, %v906
    %v1259 = vpack.c.b16 %v939, %v907
    %v1260 = vpack.c.b16 %v940, %v908
    %v1261 = vpack.c.b16 %v941, %v909
    %v1262 = vpack.c.b16 %v942, %v910
    %v1263 = vpack.c.b16 %v943, %v911
    %v1264 = vpack.c.b16 %v944, %v912
    %v1265 = vpack.c.b16 %v945, %v913
    %v1266 = vpack.c.b16 %v946, %v914
    %v1267 = vpack.c.b16 %v947, %v915
    %v1268 = vpack.c.b16 %v948, %v916
    %v1269 = vpack.c.b16 %v949, %v917
    %v1270 = vpack.c.b16 %v950, %v918
    %v1271 = vpack.c.b16 %v951, %v919
    %v1272 = vpack.c.b16 %v984, %v952
    %v1273 = vpack.c.b16 %v985, %v953
    %v1274 = vpack.c.b16 %v986, %v954
    %v1275 = vpack.c.b16 %v987, %v955
    %v1276 = vpack.c.b16 %v988, %v956
    %v1277 = vpack.c.b16 %v989, %v957
    %v1278 = vpack.c.b16 %v990, %v958
    %v1279 = vpack.c.b16 %v991, %v959
    %v1280 = vpack.c.b16 %v992, %v960
    %v1281 = vpack.c.b16 %v993, %v961
    %v1282 = vpack.c.b16 %v994, %v962
    %v1283 = vpack.c.b16 %v995, %v963
    %v1284 = vpack.c.b16 %v996, %v964
    %v1285 = vpack.c.b16 %v997, %v965
    %v1286 = vpack.c.b16 %v998, %v966
    %v1287 = vpack.c.b16 %v999, %v967
    %v1288 = vpack.c.b16 %v1000, %v968
    %v1289 = vpack.c.b16 %v1001, %v969
    %v1290 = vpack.c.b16 %v1002, %v970
    %v1291 = vpack.c.b16 %v1003, %v971
    %v1292 = vpack.c.b16 %v1004, %v972
    %v1293 = vpack.c.b16 %v1005, %v973
    %v1294 = vpack.c.b16 %v1006, %v974
    %v1295 = vpack.c.b16 %v1007, %v975
    %v1296 = vpack.c.b16 %v1008, %v976
    %v1297 = vpack.c.b16 %v1009, %v977
    %v1298 = vpack.c.b16 %v1010, %v978
    %v1299 = vpack.c.b16 %v1011, %v979
    %v1300 = vpack.c.b16 %v1012, %v980
    %v1301 = vpack.c.b16 %v1013, %v981
    %v1302 = vpack.c.b16 %v1014, %v982
    %v1303 = vpack.c.b16 %v1015, %v983
    %v1304 = vpack.c.b16 %v1048, %v1016
    %v1305 = vpack.c.b16 %v1049, %v1017
    %v1306 = vpack.c.b16 %v1050, %v1018
    %v1307 = vpack.c.b16 %v1051, %v1019
    %v1308 = vpack.c.b16 %v1052, %v1020
    %v1309 = vpack.c.b16 %v1053, %v1021
    %v1310 = vpack.c.b16 %v1054, %v1022
    %v1311 = vpack.c.b16 %v1055, %v1023
    %v1312 = vpack.c.b16 %v1056, %v1024
    %v1313 = vpack.c.b16 %v1057, %v1025
    %v1314 = vpack.c.b16 %v1058, %v1026
    %v1315 = vpack.c.b16 %v1059, %v1027
    %v1316 = vpack.c.b16 %v1060, %v1028
    %v1317 = vpack.c.b16 %v1061, %v1029
    %v1318 = vpack.c.b16 %v1062, %v1030
    %v1319 = vpack.c.b16 %v1063, %v1031
    %v1320 = vpack.c.b16 %v1064, %v1032
    %v1321 = vpack.c.b16 %v1065, %v1033
    %v1322 = vpack.c.b16 %v1066, %v1034
    %v1323 = vpack.c.b16 %v1067, %v1035
    %v1324 = vpack.c.b16 %v1068, %v1036
    %v1325 = vpack.c.b16 %v1069, %v1037
    %v1326 = vpack.c.b16 %v1070, %v1038
    %v1327 = vpack.c.b16 %v1071, %v1039
    %v1328 = vpack.c.b16 %v1072, %v1040
    %v1329 = vpack.c.b16 %v1073, %v1041
    %v1330 = vpack.c.b16 %v1074, %v1042
    %v1331 = vpack.c.b16 %v1075, %v1043
    %v1332 = vpack.c.b16 %v1076, %v1044
    %v1333 = vpack.c.b16 %v1077, %v1045
    %v1334 = vpack.c.b16 %v1078, %v1046
    %v1335 = vpack.c.b16 %v1079, %v1047
    %1592 = vmatprep.subr.bf16.mxu0 %v1081
    %1593 = vmatpush1.bf16.msra.mxu0 %v1080
    %1594 = vmatprep.subr.bf16.mxu0 %v1113
    %1595 = vmatpush1.bf16.msra.mxu0 %v1112
    %1596 = vmatprep.subr.bf16.mxu0 %v1145
    %1597 = vmatpush1.bf16.msra.mxu0 %v1144
    %1598 = vmatprep.subr.bf16.mxu0 %v1177
    %1599 = vmatpush1.bf16.msra.mxu0 %v1176
    %1600 = vmatprep.subr.bf16.mxu0 %v1209
    %1601 = vmatpush1.bf16.msra.mxu0 %v1208
    %1602 = vmatprep.subr.bf16.mxu0 %v1241
    %1603 = vmatpush1.bf16.msra.mxu0 %v1240
    %1604 = vmatprep.subr.bf16.mxu0 %v1273
    %1605 = vmatpush1.bf16.msra.mxu0 %v1272
    %1606 = vmatprep.subr.bf16.mxu0 %v1305
    %1607 = vmatpush1.bf16.msra.mxu0 %v1304
    %1608 = vmatprep.subr.bf16.mxu0 0
    %1609 = vmatpush1.bf16.msra.mxu0 0
    %1610 = vmatprep.subr.bf16.mxu0 0
    %1611 = vmatpush1.bf16.msra.mxu0 0
    %1612 = vmatprep.subr.bf16.mxu0 0
    %1613 = vmatpush1.bf16.msra.mxu0 0
    %1614 = vmatprep.subr.bf16.mxu0 0
    %1615 = vmatpush1.bf16.msra.mxu0 0
    %1616 = vmatprep.subr.bf16.mxu0 0
    %1617 = vmatpush1.bf16.msra.mxu0 0
    %1618 = vmatprep.subr.bf16.mxu0 0
    %1619 = vmatpush1.bf16.msra.mxu0 0
    %1620 = vmatprep.subr.bf16.mxu0 0
    %1621 = vmatpush1.bf16.msra.mxu0 0
    %1622 = vmatprep.subr.bf16.mxu0 0
    %1623 = vmatpush1.bf16.msra.mxu0 0
    %1624 = vmatprep.mubr.bf16.mxu0 0
    %1625 = vmatmul.mubr.bf16.gmra.mrb[0].mxu0 %v55
    %v1626 = vpop.f32.mrb[0].mxu0
    %v1627 = vadd.f32 0.0, %v1626
    %v1628 = vpop.f32.mrb[0].mxu0
    %v1629 = vadd.f32 0.0, %v1628
    %v1630 = vpop.f32.mrb[0].mxu0
    %v1631 = vpop.f32.mrb[0].mxu0
    %1632 = vdwg.mxu0
    %1633 = vmatprep.subr.bf16.mxu0 %v1083
    %1634 = vmatpush1.bf16.msra.mxu0 %v1082
    %1635 = vmatprep.subr.bf16.mxu0 %v1115
    %1636 = vmatpush1.bf16.msra.mxu0 %v1114
    %1637 = vmatprep.subr.bf16.mxu0 %v1147
    %1638 = vmatpush1.bf16.msra.mxu0 %v1146
    %1639 = vmatprep.subr.bf16.mxu0 %v1179
    %1640 = vmatpush1.bf16.msra.mxu0 %v1178
    %1641 = vmatprep.subr.bf16.mxu0 %v1211
    %1642 = vmatpush1.bf16.msra.mxu0 %v1210
    %1643 = vmatprep.subr.bf16.mxu0 %v1243
    %1644 = vmatpush1.bf16.msra.mxu0 %v1242
    %1645 = vmatprep.subr.bf16.mxu0 %v1275
    %1646 = vmatpush1.bf16.msra.mxu0 %v1274
    %1647 = vmatprep.subr.bf16.mxu0 %v1307
    %1648 = vmatpush1.bf16.msra.mxu0 %v1306
    %1649 = vmatprep.subr.bf16.mxu0 0
    %1650 = vmatpush1.bf16.msra.mxu0 0
    %1651 = vmatprep.subr.bf16.mxu0 0
    %1652 = vmatpush1.bf16.msra.mxu0 0
    %1653 = vmatprep.subr.bf16.mxu0 0
    %1654 = vmatpush1.bf16.msra.mxu0 0
    %1655 = vmatprep.subr.bf16.mxu0 0
    %1656 = vmatpush1.bf16.msra.mxu0 0
    %1657 = vmatprep.subr.bf16.mxu0 0
    %1658 = vmatpush1.bf16.msra.mxu0 0
    %1659 = vmatprep.subr.bf16.mxu0 0
    %1660 = vmatpush1.bf16.msra.mxu0 0
    %1661 = vmatprep.subr.bf16.mxu0 0
    %1662 = vmatpush1.bf16.msra.mxu0 0
    %1663 = vmatprep.subr.bf16.mxu0 0
    %1664 = vmatpush1.bf16.msra.mxu0 0
    %1665 = vmatprep.mubr.bf16.mxu0 0
    %1666 = vmatmul.mubr.bf16.gmra.mrb[0].mxu0 %v55
    %v1667 = vpop.f32.mrb[0].mxu0
    %v1668 = vadd.f32 0.0, %v1667
    %v1669 = vpop.f32.mrb[0].mxu0
    %v1670 = vadd.f32 0.0, %v1669
    %v1671 = vpop.f32.mrb[0].mxu0
    %v1672 = vpop.f32.mrb[0].mxu0
    %1673 = vdwg.mxu0
    %1674 = vmatprep.subr.bf16.mxu0 %v1085
    %1675 = vmatpush1.bf16.msra.mxu0 %v1084
    %1676 = vmatprep.subr.bf16.mxu0 %v1117
    %1677 = vmatpush1.bf16.msra.mxu0 %v1116
    %1678 = vmatprep.subr.bf16.mxu0 %v1149
    %1679 = vmatpush1.bf16.msra.mxu0 %v1148
    %1680 = vmatprep.subr.bf16.mxu0 %v1181
    %1681 = vmatpush1.bf16.msra.mxu0 %v1180
    %1682 = vmatprep.subr.bf16.mxu0 %v1213
    %1683 = vmatpush1.bf16.msra.mxu0 %v1212
    %1684 = vmatprep.subr.bf16.mxu0 %v1245
    %1685 = vmatpush1.bf16.msra.mxu0 %v1244
    %1686 = vmatprep.subr.bf16.mxu0 %v1277
    %1687 = vmatpush1.bf16.msra.mxu0 %v1276
    %1688 = vmatprep.subr.bf16.mxu0 %v1309
    %1689 = vmatpush1.bf16.msra.mxu0 %v1308
    %1690 = vmatprep.subr.bf16.mxu0 0
    %1691 = vmatpush1.bf16.msra.mxu0 0
    %1692 = vmatprep.subr.bf16.mxu0 0
    %1693 = vmatpush1.bf16.msra.mxu0 0
    %1694 = vmatprep.subr.bf16.mxu0 0
    %1695 = vmatpush1.bf16.msra.mxu0 0
    %1696 = vmatprep.subr.bf16.mxu0 0
    %1697 = vmatpush1.bf16.msra.mxu0 0
    %1698 = vmatprep.subr.bf16.mxu0 0
    %1699 = vmatpush1.bf16.msra.mxu0 0
    %1700 = vmatprep.subr.bf16.mxu0 0
    %1701 = vmatpush1.bf16.msra.mxu0 0
    %1702 = vmatprep.subr.bf16.mxu0 0
    %1703 = vmatpush1.bf16.msra.mxu0 0
    %1704 = vmatprep.subr.bf16.mxu0 0
    %1705 = vmatpush1.bf16.msra.mxu0 0
    %1706 = vmatprep.mubr.bf16.mxu0 0
    %1707 = vmatmul.mubr.bf16.gmra.mrb[0].mxu0 %v55
    %v1708 = vpop.f32.mrb[0].mxu0
    %v1709 = vadd.f32 0.0, %v1708
    %v1710 = vpop.f32.mrb[0].mxu0
    %v1711 = vadd.f32 0.0, %v1710
    %v1712 = vpop.f32.mrb[0].mxu0
    %v1713 = vpop.f32.mrb[0].mxu0
    %1714 = vdwg.mxu0
    %1715 = vmatprep.subr.bf16.mxu0 %v1087
    %1716 = vmatpush1.bf16.msra.mxu0 %v1086
    %1717 = vmatprep.subr.bf16.mxu0 %v1119
    %1718 = vmatpush1.bf16.msra.mxu0 %v1118
    %1719 = vmatprep.subr.bf16.mxu0 %v1151
    %1720 = vmatpush1.bf16.msra.mxu0 %v1150
    %1721 = vmatprep.subr.bf16.mxu0 %v1183
    %1722 = vmatpush1.bf16.msra.mxu0 %v1182
    %1723 = vmatprep.subr.bf16.mxu0 %v1215
    %1724 = vmatpush1.bf16.msra.mxu0 %v1214
    %1725 = vmatprep.subr.bf16.mxu0 %v1247
    %1726 = vmatpush1.bf16.msra.mxu0 %v1246
    %1727 = vmatprep.subr.bf16.mxu0 %v1279
    %1728 = vmatpush1.bf16.msra.mxu0 %v1278
    %1729 = vmatprep.subr.bf16.mxu0 %v1311
    %1730 = vmatpush1.bf16.msra.mxu0 %v1310
    %1731 = vmatprep.subr.bf16.mxu0 0
    %1732 = vmatpush1.bf16.msra.mxu0 0
    %1733 = vmatprep.subr.bf16.mxu0 0
    %1734 = vmatpush1.bf16.msra.mxu0 0
    %1735 = vmatprep.subr.bf16.mxu0 0
    %1736 = vmatpush1.bf16.msra.mxu0 0
    %1737 = vmatprep.subr.bf16.mxu0 0
    %1738 = vmatpush1.bf16.msra.mxu0 0
    %1739 = vmatprep.subr.bf16.mxu0 0
    %1740 = vmatpush1.bf16.msra.mxu0 0
    %1741 = vmatprep.subr.bf16.mxu0 0
    %1742 = vmatpush1.bf16.msra.mxu0 0
    %1743 = vmatprep.subr.bf16.mxu0 0
    %1744 = vmatpush1.bf16.msra.mxu0 0
    %1745 = vmatprep.subr.bf16.mxu0 0
    %1746 = vmatpush1.bf16.msra.mxu0 0
    %1747 = vmatprep.mubr.bf16.mxu0 0
    %1748 = vmatmul.mubr.bf16.gmra.mrb[0].mxu0 %v55
    %v1749 = vpop.f32.mrb[0].mxu0
    %v1750 = vadd.f32 0.0, %v1749
    %v1751 = vpop.f32.mrb[0].mxu0
    %v1752 = vadd.f32 0.0, %v1751
    %v1753 = vpop.f32.mrb[0].mxu0
    %v1754 = vpop.f32.mrb[0].mxu0
    %1755 = vdwg.mxu0
    %1756 = vmatprep.subr.bf16.mxu0 %v1089
    %1757 = vmatpush1.bf16.msra.mxu0 %v1088
    %1758 = vmatprep.subr.bf16.mxu0 %v1121
    %1759 = vmatpush1.bf16.msra.mxu0 %v1120
    %1760 = vmatprep.subr.bf16.mxu0 %v1153
    %1761 = vmatpush1.bf16.msra.mxu0 %v1152
    %1762 = vmatprep.subr.bf16.mxu0 %v1185
    %1763 = vmatpush1.bf16.msra.mxu0 %v1184
    %1764 = vmatprep.subr.bf16.mxu0 %v1217
    %1765 = vmatpush1.bf16.msra.mxu0 %v1216
    %1766 = vmatprep.subr.bf16.mxu0 %v1249
    %1767 = vmatpush1.bf16.msra.mxu0 %v1248
    %1768 = vmatprep.subr.bf16.mxu0 %v1281
    %1769 = vmatpush1.bf16.msra.mxu0 %v1280
    %1770 = vmatprep.subr.bf16.mxu0 %v1313
    %1771 = vmatpush1.bf16.msra.mxu0 %v1312
    %1772 = vmatprep.subr.bf16.mxu0 0
    %1773 = vmatpush1.bf16.msra.mxu0 0
    %1774 = vmatprep.subr.bf16.mxu0 0
    %1775 = vmatpush1.bf16.msra.mxu0 0
    %1776 = vmatprep.subr.bf16.mxu0 0
    %1777 = vmatpush1.bf16.msra.mxu0 0
    %1778 = vmatprep.subr.bf16.mxu0 0
    %1779 = vmatpush1.bf16.msra.mxu0 0
    %1780 = vmatprep.subr.bf16.mxu0 0
    %1781 = vmatpush1.bf16.msra.mxu0 0
    %1782 = vmatprep.subr.bf16.mxu0 0
    %1783 = vmatpush1.bf16.msra.mxu0 0
    %1784 = vmatprep.subr.bf16.mxu0 0
    %1785 = vmatpush1.bf16.msra.mxu0 0
    %1786 = vmatprep.subr.bf16.mxu0 0
    %1787 = vmatpush1.bf16.msra.mxu0 0
    %1788 = vmatprep.mubr.bf16.mxu0 0
    %1789 = vmatmul.mubr.bf16.gmra.mrb[0].mxu0 %v55
    %v1790 = vpop.f32.mrb[0].mxu0
    %v1791 = vadd.f32 0.0, %v1790
    %v1792 = vpop.f32.mrb[0].mxu0
    %v1793 = vadd.f32 0.0, %v1792
    %v1794 = vpop.f32.mrb[0].mxu0
    %v1795 = vpop.f32.mrb[0].mxu0
    %1796 = vdwg.mxu0
    %1797 = vmatprep.subr.bf16.mxu0 %v1091
    %1798 = vmatpush1.bf16.msra.mxu0 %v1090
    %1799 = vmatprep.subr.bf16.mxu0 %v1123
    %1800 = vmatpush1.bf16.msra.mxu0 %v1122
    %1801 = vmatprep.subr.bf16.mxu0 %v1155
    %1802 = vmatpush1.bf16.msra.mxu0 %v1154
    %1803 = vmatprep.subr.bf16.mxu0 %v1187
    %1804 = vmatpush1.bf16.msra.mxu0 %v1186
    %1805 = vmatprep.subr.bf16.mxu0 %v1219
    %1806 = vmatpush1.bf16.msra.mxu0 %v1218
    %1807 = vmatprep.subr.bf16.mxu0 %v1251
    %1808 = vmatpush1.bf16.msra.mxu0 %v1250
    %1809 = vmatprep.subr.bf16.mxu0 %v1283
    %1810 = vmatpush1.bf16.msra.mxu0 %v1282
    %1811 = vmatprep.subr.bf16.mxu0 %v1315
    %1812 = vmatpush1.bf16.msra.mxu0 %v1314
    %1813 = vmatprep.subr.bf16.mxu0 0
    %1814 = vmatpush1.bf16.msra.mxu0 0
    %1815 = vmatprep.subr.bf16.mxu0 0
    %1816 = vmatpush1.bf16.msra.mxu0 0
    %1817 = vmatprep.subr.bf16.mxu0 0
    %1818 = vmatpush1.bf16.msra.mxu0 0
    %1819 = vmatprep.subr.bf16.mxu0 0
    %1820 = vmatpush1.bf16.msra.mxu0 0
    %1821 = vmatprep.subr.bf16.mxu0 0
    %1822 = vmatpush1.bf16.msra.mxu0 0
    %1823 = vmatprep.subr.bf16.mxu0 0
    %1824 = vmatpush1.bf16.msra.mxu0 0
    %1825 = vmatprep.subr.bf16.mxu0 0
    %1826 = vmatpush1.bf16.msra.mxu0 0
    %1827 = vmatprep.subr.bf16.mxu0 0
    %1828 = vmatpush1.bf16.msra.mxu0 0
    %1829 = vmatprep.mubr.bf16.mxu0 0
    %1830 = vmatmul.mubr.bf16.gmra.mrb[0].mxu0 %v55
    %v1831 = vpop.f32.mrb[0].mxu0
    %v1832 = vadd.f32 0.0, %v1831
    %v1833 = vpop.f32.mrb[0].mxu0
    %v1834 = vadd.f32 0.0, %v1833
    %v1835 = vpop.f32.mrb[0].mxu0
    %v1836 = vpop.f32.mrb[0].mxu0
    %1837 = vdwg.mxu0
    %1838 = vmatprep.subr.bf16.mxu0 %v1093
    %1839 = vmatpush1.bf16.msra.mxu0 %v1092
    %1840 = vmatprep.subr.bf16.mxu0 %v1125
    %1841 = vmatpush1.bf16.msra.mxu0 %v1124
    %1842 = vmatprep.subr.bf16.mxu0 %v1157
    %1843 = vmatpush1.bf16.msra.mxu0 %v1156
    %1844 = vmatprep.subr.bf16.mxu0 %v1189
    %1845 = vmatpush1.bf16.msra.mxu0 %v1188
    %1846 = vmatprep.subr.bf16.mxu0 %v1221
    %1847 = vmatpush1.bf16.msra.mxu0 %v1220
    %1848 = vmatprep.subr.bf16.mxu0 %v1253
    %1849 = vmatpush1.bf16.msra.mxu0 %v1252
    %1850 = vmatprep.subr.bf16.mxu0 %v1285
    %1851 = vmatpush1.bf16.msra.mxu0 %v1284
    %1852 = vmatprep.subr.bf16.mxu0 %v1317
    %1853 = vmatpush1.bf16.msra.mxu0 %v1316
    %1854 = vmatprep.subr.bf16.mxu0 0
    %1855 = vmatpush1.bf16.msra.mxu0 0
    %1856 = vmatprep.subr.bf16.mxu0 0
    %1857 = vmatpush1.bf16.msra.mxu0 0
    %1858 = vmatprep.subr.bf16.mxu0 0
    %1859 = vmatpush1.bf16.msra.mxu0 0
    %1860 = vmatprep.subr.bf16.mxu0 0
    %1861 = vmatpush1.bf16.msra.mxu0 0
    %1862 = vmatprep.subr.bf16.mxu0 0
    %1863 = vmatpush1.bf16.msra.mxu0 0
    %1864 = vmatprep.subr.bf16.mxu0 0
    %1865 = vmatpush1.bf16.msra.mxu0 0
    %1866 = vmatprep.subr.bf16.mxu0 0
    %1867 = vmatpush1.bf16.msra.mxu0 0
    %1868 = vmatprep.subr.bf16.mxu0 0
    %1869 = vmatpush1.bf16.msra.mxu0 0
    %1870 = vmatprep.mubr.bf16.mxu0 0
    %1871 = vmatmul.mubr.bf16.gmra.mrb[0].mxu0 %v55
    %v1872 = vpop.f32.mrb[0].mxu0
    %v1873 = vadd.f32 0.0, %v1872
    %v1874 = vpop.f32.mrb[0].mxu0
    %v1875 = vadd.f32 0.0, %v1874
    %v1876 = vpop.f32.mrb[0].mxu0
    %v1877 = vpop.f32.mrb[0].mxu0
    %1878 = vdwg.mxu0
    %1879 = vmatprep.subr.bf16.mxu0 %v1095
    %1880 = vmatpush1.bf16.msra.mxu0 %v1094
    %1881 = vmatprep.subr.bf16.mxu0 %v1127
    %1882 = vmatpush1.bf16.msra.mxu0 %v1126
    %1883 = vmatprep.subr.bf16.mxu0 %v1159
    %1884 = vmatpush1.bf16.msra.mxu0 %v1158
    %1885 = vmatprep.subr.bf16.mxu0 %v1191
    %1886 = vmatpush1.bf16.msra.mxu0 %v1190
    %1887 = vmatprep.subr.bf16.mxu0 %v1223
    %1888 = vmatpush1.bf16.msra.mxu0 %v1222
    %1889 = vmatprep.subr.bf16.mxu0 %v1255
    %1890 = vmatpush1.bf16.msra.mxu0 %v1254
    %1891 = vmatprep.subr.bf16.mxu0 %v1287
    %1892 = vmatpush1.bf16.msra.mxu0 %v1286
    %1893 = vmatprep.subr.bf16.mxu0 %v1319
    %1894 = vmatpush1.bf16.msra.mxu0 %v1318
    %1895 = vmatprep.subr.bf16.mxu0 0
    %1896 = vmatpush1.bf16.msra.mxu0 0
    %1897 = vmatprep.subr.bf16.mxu0 0
    %1898 = vmatpush1.bf16.msra.mxu0 0
    %1899 = vmatprep.subr.bf16.mxu0 0
    %1900 = vmatpush1.bf16.msra.mxu0 0
    %1901 = vmatprep.subr.bf16.mxu0 0
    %1902 = vmatpush1.bf16.msra.mxu0 0
    %1903 = vmatprep.subr.bf16.mxu0 0
    %1904 = vmatpush1.bf16.msra.mxu0 0
    %1905 = vmatprep.subr.bf16.mxu0 0
    %1906 = vmatpush1.bf16.msra.mxu0 0
    %1907 = vmatprep.subr.bf16.mxu0 0
    %1908 = vmatpush1.bf16.msra.mxu0 0
    %1909 = vmatprep.subr.bf16.mxu0 0
    %1910 = vmatpush1.bf16.msra.mxu0 0
    %1911 = vmatprep.mubr.bf16.mxu0 0
    %1912 = vmatmul.mubr.bf16.gmra.mrb[0].mxu0 %v55
    %v1913 = vpop.f32.mrb[0].mxu0
    %v1914 = vadd.f32 0.0, %v1913
    %v1915 = vpop.f32.mrb[0].mxu0
    %v1916 = vadd.f32 0.0, %v1915
    %v1917 = vpop.f32.mrb[0].mxu0
    %v1918 = vpop.f32.mrb[0].mxu0
    %1919 = vdwg.mxu0
    %1920 = vmatprep.subr.bf16.mxu0 %v1097
    %1921 = vmatpush1.bf16.msra.mxu0 %v1096
    %1922 = vmatprep.subr.bf16.mxu0 %v1129
    %1923 = vmatpush1.bf16.msra.mxu0 %v1128
    %1924 = vmatprep.subr.bf16.mxu0 %v1161
    %1925 = vmatpush1.bf16.msra.mxu0 %v1160
    %1926 = vmatprep.subr.bf16.mxu0 %v1193
    %1927 = vmatpush1.bf16.msra.mxu0 %v1192
    %1928 = vmatprep.subr.bf16.mxu0 %v1225
    %1929 = vmatpush1.bf16.msra.mxu0 %v1224
    %1930 = vmatprep.subr.bf16.mxu0 %v1257
    %1931 = vmatpush1.bf16.msra.mxu0 %v1256
    %1932 = vmatprep.subr.bf16.mxu0 %v1289
    %1933 = vmatpush1.bf16.msra.mxu0 %v1288
    %1934 = vmatprep.subr.bf16.mxu0 %v1321
    %1935 = vmatpush1.bf16.msra.mxu0 %v1320
    %1936 = vmatprep.subr.bf16.mxu0 0
    %1937 = vmatpush1.bf16.msra.mxu0 0
    %1938 = vmatprep.subr.bf16.mxu0 0
    %1939 = vmatpush1.bf16.msra.mxu0 0
    %1940 = vmatprep.subr.bf16.mxu0 0
    %1941 = vmatpush1.bf16.msra.mxu0 0
    %1942 = vmatprep.subr.bf16.mxu0 0
    %1943 = vmatpush1.bf16.msra.mxu0 0
    %1944 = vmatprep.subr.bf16.mxu0 0
    %1945 = vmatpush1.bf16.msra.mxu0 0
    %1946 = vmatprep.subr.bf16.mxu0 0
    %1947 = vmatpush1.bf16.msra.mxu0 0
    %1948 = vmatprep.subr.bf16.mxu0 0
    %1949 = vmatpush1.bf16.msra.mxu0 0
    %1950 = vmatprep.subr.bf16.mxu0 0
    %1951 = vmatpush1.bf16.msra.mxu0 0
    %1952 = vmatprep.mubr.bf16.mxu0 0
    %1953 = vmatmul.mubr.bf16.gmra.mrb[0].mxu0 %v55
    %v1954 = vpop.f32.mrb[0].mxu0
    %v1955 = vadd.f32 0.0, %v1954
    %v1956 = vpop.f32.mrb[0].mxu0
    %v1957 = vadd.f32 0.0, %v1956
    %v1958 = vpop.f32.mrb[0].mxu0
    %v1959 = vpop.f32.mrb[0].mxu0
    %1960 = vdwg.mxu0
    %1961 = vmatprep.subr.bf16.mxu0 %v1099
    %1962 = vmatpush1.bf16.msra.mxu0 %v1098
    %1963 = vmatprep.subr.bf16.mxu0 %v1131
    %1964 = vmatpush1.bf16.msra.mxu0 %v1130
    %1965 = vmatprep.subr.bf16.mxu0 %v1163
    %1966 = vmatpush1.bf16.msra.mxu0 %v1162
    %1967 = vmatprep.subr.bf16.mxu0 %v1195
    %1968 = vmatpush1.bf16.msra.mxu0 %v1194
    %1969 = vmatprep.subr.bf16.mxu0 %v1227
    %1970 = vmatpush1.bf16.msra.mxu0 %v1226
    %1971 = vmatprep.subr.bf16.mxu0 %v1259
    %1972 = vmatpush1.bf16.msra.mxu0 %v1258
    %1973 = vmatprep.subr.bf16.mxu0 %v1291
    %1974 = vmatpush1.bf16.msra.mxu0 %v1290
    %1975 = vmatprep.subr.bf16.mxu0 %v1323
    %1976 = vmatpush1.bf16.msra.mxu0 %v1322
    %1977 = vmatprep.subr.bf16.mxu0 0
    %1978 = vmatpush1.bf16.msra.mxu0 0
    %1979 = vmatprep.subr.bf16.mxu0 0
    %1980 = vmatpush1.bf16.msra.mxu0 0
    %1981 = vmatprep.subr.bf16.mxu0 0
    %1982 = vmatpush1.bf16.msra.mxu0 0
    %1983 = vmatprep.subr.bf16.mxu0 0
    %1984 = vmatpush1.bf16.msra.mxu0 0
    %1985 = vmatprep.subr.bf16.mxu0 0
    %1986 = vmatpush1.bf16.msra.mxu0 0
    %1987 = vmatprep.subr.bf16.mxu0 0
    %1988 = vmatpush1.bf16.msra.mxu0 0
    %1989 = vmatprep.subr.bf16.mxu0 0
    %1990 = vmatpush1.bf16.msra.mxu0 0
    %1991 = vmatprep.subr.bf16.mxu0 0
    %1992 = vmatpush1.bf16.msra.mxu0 0
    %1993 = vmatprep.mubr.bf16.mxu0 0
    %1994 = vmatmul.mubr.bf16.gmra.mrb[0].mxu0 %v55
    %v1995 = vpop.f32.mrb[0].mxu0
    %v1996 = vadd.f32 0.0, %v1995
    %v1997 = vpop.f32.mrb[0].mxu0
    %v1998 = vadd.f32 0.0, %v1997
    %v1999 = vpop.f32.mrb[0].mxu0
    %v2000 = vpop.f32.mrb[0].mxu0
    %2001 = vdwg.mxu0
    %2002 = vmatprep.subr.bf16.mxu0 %v1101
    %2003 = vmatpush1.bf16.msra.mxu0 %v1100
    %2004 = vmatprep.subr.bf16.mxu0 %v1133
    %2005 = vmatpush1.bf16.msra.mxu0 %v1132
    %2006 = vmatprep.subr.bf16.mxu0 %v1165
    %2007 = vmatpush1.bf16.msra.mxu0 %v1164
    %2008 = vmatprep.subr.bf16.mxu0 %v1197
    %2009 = vmatpush1.bf16.msra.mxu0 %v1196
    %2010 = vmatprep.subr.bf16.mxu0 %v1229
    %2011 = vmatpush1.bf16.msra.mxu0 %v1228
    %2012 = vmatprep.subr.bf16.mxu0 %v1261
    %2013 = vmatpush1.bf16.msra.mxu0 %v1260
    %2014 = vmatprep.subr.bf16.mxu0 %v1293
    %2015 = vmatpush1.bf16.msra.mxu0 %v1292
    %2016 = vmatprep.subr.bf16.mxu0 %v1325
    %2017 = vmatpush1.bf16.msra.mxu0 %v1324
    %2018 = vmatprep.subr.bf16.mxu0 0
    %2019 = vmatpush1.bf16.msra.mxu0 0
    %2020 = vmatprep.subr.bf16.mxu0 0
    %2021 = vmatpush1.bf16.msra.mxu0 0
    %2022 = vmatprep.subr.bf16.mxu0 0
    %2023 = vmatpush1.bf16.msra.mxu0 0
    %2024 = vmatprep.subr.bf16.mxu0 0
    %2025 = vmatpush1.bf16.msra.mxu0 0
    %2026 = vmatprep.subr.bf16.mxu0 0
    %2027 = vmatpush1.bf16.msra.mxu0 0
    %2028 = vmatprep.subr.bf16.mxu0 0
    %2029 = vmatpush1.bf16.msra.mxu0 0
    %2030 = vmatprep.subr.bf16.mxu0 0
    %2031 = vmatpush1.bf16.msra.mxu0 0
    %2032 = vmatprep.subr.bf16.mxu0 0
    %2033 = vmatpush1.bf16.msra.mxu0 0
    %2034 = vmatprep.mubr.bf16.mxu0 0
    %2035 = vmatmul.mubr.bf16.gmra.mrb[0].mxu0 %v55
    %v2036 = vpop.f32.mrb[0].mxu0
    %v2037 = vadd.f32 0.0, %v2036
    %v2038 = vpop.f32.mrb[0].mxu0
    %v2039 = vadd.f32 0.0, %v2038
    %v2040 = vpop.f32.mrb[0].mxu0
    %v2041 = vpop.f32.mrb[0].mxu0
    %2042 = vdwg.mxu0
    %2043 = vmatprep.subr.bf16.mxu0 %v1103
    %2044 = vmatpush1.bf16.msra.mxu0 %v1102
    %2045 = vmatprep.subr.bf16.mxu0 %v1135
    %2046 = vmatpush1.bf16.msra.mxu0 %v1134
    %2047 = vmatprep.subr.bf16.mxu0 %v1167
    %2048 = vmatpush1.bf16.msra.mxu0 %v1166
    %2049 = vmatprep.subr.bf16.mxu0 %v1199
    %2050 = vmatpush1.bf16.msra.mxu0 %v1198
    %2051 = vmatprep.subr.bf16.mxu0 %v1231
    %2052 = vmatpush1.bf16.msra.mxu0 %v1230
    %2053 = vmatprep.subr.bf16.mxu0 %v1263
    %2054 = vmatpush1.bf16.msra.mxu0 %v1262
    %2055 = vmatprep.subr.bf16.mxu0 %v1295
    %2056 = vmatpush1.bf16.msra.mxu0 %v1294
    %2057 = vmatprep.subr.bf16.mxu0 %v1327
    %2058 = vmatpush1.bf16.msra.mxu0 %v1326
    %2059 = vmatprep.subr.bf16.mxu0 0
    %2060 = vmatpush1.bf16.msra.mxu0 0
    %2061 = vmatprep.subr.bf16.mxu0 0
    %2062 = vmatpush1.bf16.msra.mxu0 0
    %2063 = vmatprep.subr.bf16.mxu0 0
    %2064 = vmatpush1.bf16.msra.mxu0 0
    %2065 = vmatprep.subr.bf16.mxu0 0
    %2066 = vmatpush1.bf16.msra.mxu0 0
    %2067 = vmatprep.subr.bf16.mxu0 0
    %2068 = vmatpush1.bf16.msra.mxu0 0
    %2069 = vmatprep.subr.bf16.mxu0 0
    %2070 = vmatpush1.bf16.msra.mxu0 0
    %2071 = vmatprep.subr.bf16.mxu0 0
    %2072 = vmatpush1.bf16.msra.mxu0 0
    %2073 = vmatprep.subr.bf16.mxu0 0
    %2074 = vmatpush1.bf16.msra.mxu0 0
    %2075 = vmatprep.mubr.bf16.mxu0 0
    %2076 = vmatmul.mubr.bf16.gmra.mrb[0].mxu0 %v55
    %v2077 = vpop.f32.mrb[0].mxu0
    %v2078 = vadd.f32 0.0, %v2077
    %v2079 = vpop.f32.mrb[0].mxu0
    %v2080 = vadd.f32 0.0, %v2079
    %v2081 = vpop.f32.mrb[0].mxu0
    %v2082 = vpop.f32.mrb[0].mxu0
    %2083 = vdwg.mxu0
    %2084 = vmatprep.subr.bf16.mxu0 %v1105
    %2085 = vmatpush1.bf16.msra.mxu0 %v1104
    %2086 = vmatprep.subr.bf16.mxu0 %v1137
    %2087 = vmatpush1.bf16.msra.mxu0 %v1136
    %2088 = vmatprep.subr.bf16.mxu0 %v1169
    %2089 = vmatpush1.bf16.msra.mxu0 %v1168
    %2090 = vmatprep.subr.bf16.mxu0 %v1201
    %2091 = vmatpush1.bf16.msra.mxu0 %v1200
    %2092 = vmatprep.subr.bf16.mxu0 %v1233
    %2093 = vmatpush1.bf16.msra.mxu0 %v1232
    %2094 = vmatprep.subr.bf16.mxu0 %v1265
    %2095 = vmatpush1.bf16.msra.mxu0 %v1264
    %2096 = vmatprep.subr.bf16.mxu0 %v1297
    %2097 = vmatpush1.bf16.msra.mxu0 %v1296
    %2098 = vmatprep.subr.bf16.mxu0 %v1329
    %2099 = vmatpush1.bf16.msra.mxu0 %v1328
    %2100 = vmatprep.subr.bf16.mxu0 0
    %2101 = vmatpush1.bf16.msra.mxu0 0
    %2102 = vmatprep.subr.bf16.mxu0 0
    %2103 = vmatpush1.bf16.msra.mxu0 0
    %2104 = vmatprep.subr.bf16.mxu0 0
    %2105 = vmatpush1.bf16.msra.mxu0 0
    %2106 = vmatprep.subr.bf16.mxu0 0
    %2107 = vmatpush1.bf16.msra.mxu0 0
    %2108 = vmatprep.subr.bf16.mxu0 0
    %2109 = vmatpush1.bf16.msra.mxu0 0
    %2110 = vmatprep.subr.bf16.mxu0 0
    %2111 = vmatpush1.bf16.msra.mxu0 0
    %2112 = vmatprep.subr.bf16.mxu0 0
    %2113 = vmatpush1.bf16.msra.mxu0 0
    %2114 = vmatprep.subr.bf16.mxu0 0
    %2115 = vmatpush1.bf16.msra.mxu0 0
    %2116 = vmatprep.mubr.bf16.mxu0 0
    %2117 = vmatmul.mubr.bf16.gmra.mrb[0].mxu0 %v55
    %v2118 = vpop.f32.mrb[0].mxu0
    %v2119 = vadd.f32 0.0, %v2118
    %v2120 = vpop.f32.mrb[0].mxu0
    %v2121 = vadd.f32 0.0, %v2120
    %v2122 = vpop.f32.mrb[0].mxu0
    %v2123 = vpop.f32.mrb[0].mxu0
    %2124 = vdwg.mxu0
    %2125 = vmatprep.subr.bf16.mxu0 %v1107
    %2126 = vmatpush1.bf16.msra.mxu0 %v1106
    %2127 = vmatprep.subr.bf16.mxu0 %v1139
    %2128 = vmatpush1.bf16.msra.mxu0 %v1138
    %2129 = vmatprep.subr.bf16.mxu0 %v1171
    %2130 = vmatpush1.bf16.msra.mxu0 %v1170
    %2131 = vmatprep.subr.bf16.mxu0 %v1203
    %2132 = vmatpush1.bf16.msra.mxu0 %v1202
    %2133 = vmatprep.subr.bf16.mxu0 %v1235
    %2134 = vmatpush1.bf16.msra.mxu0 %v1234
    %2135 = vmatprep.subr.bf16.mxu0 %v1267
    %2136 = vmatpush1.bf16.msra.mxu0 %v1266
    %2137 = vmatprep.subr.bf16.mxu0 %v1299
    %2138 = vmatpush1.bf16.msra.mxu0 %v1298
    %2139 = vmatprep.subr.bf16.mxu0 %v1331
    %2140 = vmatpush1.bf16.msra.mxu0 %v1330
    %2141 = vmatprep.subr.bf16.mxu0 0
    %2142 = vmatpush1.bf16.msra.mxu0 0
    %2143 = vmatprep.subr.bf16.mxu0 0
    %2144 = vmatpush1.bf16.msra.mxu0 0
    %2145 = vmatprep.subr.bf16.mxu0 0
    %2146 = vmatpush1.bf16.msra.mxu0 0
    %2147 = vmatprep.subr.bf16.mxu0 0
    %2148 = vmatpush1.bf16.msra.mxu0 0
    %2149 = vmatprep.subr.bf16.mxu0 0
    %2150 = vmatpush1.bf16.msra.mxu0 0
    %2151 = vmatprep.subr.bf16.mxu0 0
    %2152 = vmatpush1.bf16.msra.mxu0 0
    %2153 = vmatprep.subr.bf16.mxu0 0
    %2154 = vmatpush1.bf16.msra.mxu0 0
    %2155 = vmatprep.subr.bf16.mxu0 0
    %2156 = vmatpush1.bf16.msra.mxu0 0
    %2157 = vmatprep.mubr.bf16.mxu0 0
    %2158 = vmatmul.mubr.bf16.gmra.mrb[0].mxu0 %v55
    %v2159 = vpop.f32.mrb[0].mxu0
    %v2160 = vadd.f32 0.0, %v2159
    %v2161 = vpop.f32.mrb[0].mxu0
    %v2162 = vadd.f32 0.0, %v2161
    %v2163 = vpop.f32.mrb[0].mxu0
    %v2164 = vpop.f32.mrb[0].mxu0
    %2165 = vdwg.mxu0
    %2166 = vmatprep.subr.bf16.mxu0 %v1109
    %2167 = vmatpush1.bf16.msra.mxu0 %v1108
    %2168 = vmatprep.subr.bf16.mxu0 %v1141
    %2169 = vmatpush1.bf16.msra.mxu0 %v1140
    %2170 = vmatprep.subr.bf16.mxu0 %v1173
    %2171 = vmatpush1.bf16.msra.mxu0 %v1172
    %2172 = vmatprep.subr.bf16.mxu0 %v1205
    %2173 = vmatpush1.bf16.msra.mxu0 %v1204
    %2174 = vmatprep.subr.bf16.mxu0 %v1237
    %2175 = vmatpush1.bf16.msra.mxu0 %v1236
    %2176 = vmatprep.subr.bf16.mxu0 %v1269
    %2177 = vmatpush1.bf16.msra.mxu0 %v1268
    %2178 = vmatprep.subr.bf16.mxu0 %v1301
    %2179 = vmatpush1.bf16.msra.mxu0 %v1300
    %2180 = vmatprep.subr.bf16.mxu0 %v1333
    %2181 = vmatpush1.bf16.msra.mxu0 %v1332
    %2182 = vmatprep.subr.bf16.mxu0 0
    %2183 = vmatpush1.bf16.msra.mxu0 0
    %2184 = vmatprep.subr.bf16.mxu0 0
    %2185 = vmatpush1.bf16.msra.mxu0 0
    %2186 = vmatprep.subr.bf16.mxu0 0
    %2187 = vmatpush1.bf16.msra.mxu0 0
    %2188 = vmatprep.subr.bf16.mxu0 0
    %2189 = vmatpush1.bf16.msra.mxu0 0
    %2190 = vmatprep.subr.bf16.mxu0 0
    %2191 = vmatpush1.bf16.msra.mxu0 0
    %2192 = vmatprep.subr.bf16.mxu0 0
    %2193 = vmatpush1.bf16.msra.mxu0 0
    %2194 = vmatprep.subr.bf16.mxu0 0
    %2195 = vmatpush1.bf16.msra.mxu0 0
    %2196 = vmatprep.subr.bf16.mxu0 0
    %2197 = vmatpush1.bf16.msra.mxu0 0
    %2198 = vmatprep.mubr.bf16.mxu0 0
    %2199 = vmatmul.mubr.bf16.gmra.mrb[0].mxu0 %v55
    %v2200 = vpop.f32.mrb[0].mxu0
    %v2201 = vadd.f32 0.0, %v2200
    %v2202 = vpop.f32.mrb[0].mxu0
    %v2203 = vadd.f32 0.0, %v2202
    %v2204 = vpop.f32.mrb[0].mxu0
    %v2205 = vpop.f32.mrb[0].mxu0
    %2206 = vdwg.mxu0
    %2207 = vmatprep.subr.bf16.mxu0 %v1111
    %2208 = vmatpush1.bf16.msra.mxu0 %v1110
    %2209 = vmatprep.subr.bf16.mxu0 %v1143
    %2210 = vmatpush1.bf16.msra.mxu0 %v1142
    %2211 = vmatprep.subr.bf16.mxu0 %v1175
    %2212 = vmatpush1.bf16.msra.mxu0 %v1174
    %2213 = vmatprep.subr.bf16.mxu0 %v1207
    %2214 = vmatpush1.bf16.msra.mxu0 %v1206
    %2215 = vmatprep.subr.bf16.mxu0 %v1239
    %2216 = vmatpush1.bf16.msra.mxu0 %v1238
    %2217 = vmatprep.subr.bf16.mxu0 %v1271
    %2218 = vmatpush1.bf16.msra.mxu0 %v1270
    %2219 = vmatprep.subr.bf16.mxu0 %v1303
    %2220 = vmatpush1.bf16.msra.mxu0 %v1302
    %2221 = vmatprep.subr.bf16.mxu0 %v1335
    %2222 = vmatpush1.bf16.msra.mxu0 %v1334
    %2223 = vmatprep.subr.bf16.mxu0 0
    %2224 = vmatpush1.bf16.msra.mxu0 0
    %2225 = vmatprep.subr.bf16.mxu0 0
    %2226 = vmatpush1.bf16.msra.mxu0 0
    %2227 = vmatprep.subr.bf16.mxu0 0
    %2228 = vmatpush1.bf16.msra.mxu0 0
    %2229 = vmatprep.subr.bf16.mxu0 0
    %2230 = vmatpush1.bf16.msra.mxu0 0
    %2231 = vmatprep.subr.bf16.mxu0 0
    %2232 = vmatpush1.bf16.msra.mxu0 0
    %2233 = vmatprep.subr.bf16.mxu0 0
    %2234 = vmatpush1.bf16.msra.mxu0 0
    %2235 = vmatprep.subr.bf16.mxu0 0
    %2236 = vmatpush1.bf16.msra.mxu0 0
    %2237 = vmatprep.subr.bf16.mxu0 0
    %2238 = vmatpush1.bf16.msra.mxu0 0
    %2239 = vmatprep.mubr.bf16.mxu0 0
    %2240 = vmatmul.mubr.bf16.gmra.mrb[0].mxu0 %v55
    %v2241 = vpop.f32.mrb[0].mxu0
    %v2242 = vadd.f32 0.0, %v2241
    %v2243 = vpop.f32.mrb[0].mxu0
    %v2244 = vadd.f32 0.0, %v2243
    %v2245 = vpop.f32.mrb[0].mxu0
    %v2246 = vpop.f32.mrb[0].mxu0
    %2247 = vdwg.mxu0
    %vm2248 = vcmask 1041408
    %v2249 = vsel %vm2248, %v1627, 0.0
    %v2250 = vrot.slane %v2249, 4
    %v2251 = vadd.f32 %v2249, %v2250
    %v2252 = vrot.slane %v2251, 2
    %v2253 = vadd.f32 %v2251, %v2252
    %v2254 = vrot.slane %v2253, 1
    %v2255 = vadd.f32 %v2253, %v2254
    %v2256 = vsel %vm2248, %v1629, 0.0
    %v2257 = vrot.slane %v2256, 4
    %v2258 = vadd.f32 %v2256, %v2257
    %v2259 = vrot.slane %v2258, 2
    %v2260 = vadd.f32 %v2258, %v2259
    %v2261 = vrot.slane %v2260, 1
    %v2262 = vadd.f32 %v2260, %v2261
    %v2263 = vsel %vm2248, %v1668, 0.0
    %v2264 = vrot.slane %v2263, 4
    %v2265 = vadd.f32 %v2263, %v2264
    %v2266 = vrot.slane %v2265, 2
    %v2267 = vadd.f32 %v2265, %v2266
    %v2268 = vrot.slane %v2267, 1
    %v2269 = vadd.f32 %v2267, %v2268
    %v2270 = vsel %vm2248, %v1670, 0.0
    %v2271 = vrot.slane %v2270, 4
    %v2272 = vadd.f32 %v2270, %v2271
    %v2273 = vrot.slane %v2272, 2
    %v2274 = vadd.f32 %v2272, %v2273
    %v2275 = vrot.slane %v2274, 1
    %v2276 = vadd.f32 %v2274, %v2275
    %v2277 = vsel %vm2248, %v1709, 0.0
    %v2278 = vrot.slane %v2277, 4
    %v2279 = vadd.f32 %v2277, %v2278
    %v2280 = vrot.slane %v2279, 2
    %v2281 = vadd.f32 %v2279, %v2280
    %v2282 = vrot.slane %v2281, 1
    %v2283 = vadd.f32 %v2281, %v2282
    %v2284 = vsel %vm2248, %v1711, 0.0
    %v2285 = vrot.slane %v2284, 4
    %v2286 = vadd.f32 %v2284, %v2285
    %v2287 = vrot.slane %v2286, 2
    %v2288 = vadd.f32 %v2286, %v2287
    %v2289 = vrot.slane %v2288, 1
    %v2290 = vadd.f32 %v2288, %v2289
    %v2291 = vsel %vm2248, %v1750, 0.0
    %v2292 = vrot.slane %v2291, 4
    %v2293 = vadd.f32 %v2291, %v2292
    %v2294 = vrot.slane %v2293, 2
    %v2295 = vadd.f32 %v2293, %v2294
    %v2296 = vrot.slane %v2295, 1
    %v2297 = vadd.f32 %v2295, %v2296
    %v2298 = vsel %vm2248, %v1752, 0.0
    %v2299 = vrot.slane %v2298, 4
    %v2300 = vadd.f32 %v2298, %v2299
    %v2301 = vrot.slane %v2300, 2
    %v2302 = vadd.f32 %v2300, %v2301
    %v2303 = vrot.slane %v2302, 1
    %v2304 = vadd.f32 %v2302, %v2303
    %v2305 = vsel %vm2248, %v1791, 0.0
    %v2306 = vrot.slane %v2305, 4
    %v2307 = vadd.f32 %v2305, %v2306
    %v2308 = vrot.slane %v2307, 2
    %v2309 = vadd.f32 %v2307, %v2308
    %v2310 = vrot.slane %v2309, 1
    %v2311 = vadd.f32 %v2309, %v2310
    %v2312 = vsel %vm2248, %v1793, 0.0
    %v2313 = vrot.slane %v2312, 4
    %v2314 = vadd.f32 %v2312, %v2313
    %v2315 = vrot.slane %v2314, 2
    %v2316 = vadd.f32 %v2314, %v2315
    %v2317 = vrot.slane %v2316, 1
    %v2318 = vadd.f32 %v2316, %v2317
    %v2319 = vsel %vm2248, %v1832, 0.0
    %v2320 = vrot.slane %v2319, 4
    %v2321 = vadd.f32 %v2319, %v2320
    %v2322 = vrot.slane %v2321, 2
    %v2323 = vadd.f32 %v2321, %v2322
    %v2324 = vrot.slane %v2323, 1
    %v2325 = vadd.f32 %v2323, %v2324
    %v2326 = vsel %vm2248, %v1834, 0.0
    %v2327 = vrot.slane %v2326, 4
    %v2328 = vadd.f32 %v2326, %v2327
    %v2329 = vrot.slane %v2328, 2
    %v2330 = vadd.f32 %v2328, %v2329
    %v2331 = vrot.slane %v2330, 1
    %v2332 = vadd.f32 %v2330, %v2331
    %v2333 = vsel %vm2248, %v1873, 0.0
    %v2334 = vrot.slane %v2333, 4
    %v2335 = vadd.f32 %v2333, %v2334
    %v2336 = vrot.slane %v2335, 2
    %v2337 = vadd.f32 %v2335, %v2336
    %v2338 = vrot.slane %v2337, 1
    %v2339 = vadd.f32 %v2337, %v2338
    %v2340 = vsel %vm2248, %v1875, 0.0
    %v2341 = vrot.slane %v2340, 4
    %v2342 = vadd.f32 %v2340, %v2341
    %v2343 = vrot.slane %v2342, 2
    %v2344 = vadd.f32 %v2342, %v2343
    %v2345 = vrot.slane %v2344, 1
    %v2346 = vadd.f32 %v2344, %v2345
    %v2347 = vsel %vm2248, %v1914, 0.0
    %v2348 = vrot.slane %v2347, 4
    %v2349 = vadd.f32 %v2347, %v2348
    %v2350 = vrot.slane %v2349, 2
    %v2351 = vadd.f32 %v2349, %v2350
    %v2352 = vrot.slane %v2351, 1
    %v2353 = vadd.f32 %v2351, %v2352
    %v2354 = vsel %vm2248, %v1916, 0.0
    %v2355 = vrot.slane %v2354, 4
    %v2356 = vadd.f32 %v2354, %v2355
    %v2357 = vrot.slane %v2356, 2
    %v2358 = vadd.f32 %v2356, %v2357
    %v2359 = vrot.slane %v2358, 1
    %v2360 = vadd.f32 %v2358, %v2359
    %v2361 = vsel %vm2248, %v1955, 0.0
    %v2362 = vrot.slane %v2361, 4
    %v2363 = vadd.f32 %v2361, %v2362
    %v2364 = vrot.slane %v2363, 2
    %v2365 = vadd.f32 %v2363, %v2364
    %v2366 = vrot.slane %v2365, 1
    %v2367 = vadd.f32 %v2365, %v2366
    %v2368 = vsel %vm2248, %v1957, 0.0
    %v2369 = vrot.slane %v2368, 4
    %v2370 = vadd.f32 %v2368, %v2369
    %v2371 = vrot.slane %v2370, 2
    %v2372 = vadd.f32 %v2370, %v2371
    %v2373 = vrot.slane %v2372, 1
    %v2374 = vadd.f32 %v2372, %v2373
    %v2375 = vsel %vm2248, %v1996, 0.0
    %v2376 = vrot.slane %v2375, 4
    %v2377 = vadd.f32 %v2375, %v2376
    %v2378 = vrot.slane %v2377, 2
    %v2379 = vadd.f32 %v2377, %v2378
    %v2380 = vrot.slane %v2379, 1
    %v2381 = vadd.f32 %v2379, %v2380
    %v2382 = vsel %vm2248, %v1998, 0.0
    %v2383 = vrot.slane %v2382, 4
    %v2384 = vadd.f32 %v2382, %v2383
    %v2385 = vrot.slane %v2384, 2
    %v2386 = vadd.f32 %v2384, %v2385
    %v2387 = vrot.slane %v2386, 1
    %v2388 = vadd.f32 %v2386, %v2387
    %v2389 = vsel %vm2248, %v2037, 0.0
    %v2390 = vrot.slane %v2389, 4
    %v2391 = vadd.f32 %v2389, %v2390
    %v2392 = vrot.slane %v2391, 2
    %v2393 = vadd.f32 %v2391, %v2392
    %v2394 = vrot.slane %v2393, 1
    %v2395 = vadd.f32 %v2393, %v2394
    %v2396 = vsel %vm2248, %v2039, 0.0
    %v2397 = vrot.slane %v2396, 4
    %v2398 = vadd.f32 %v2396, %v2397
    %v2399 = vrot.slane %v2398, 2
    %v2400 = vadd.f32 %v2398, %v2399
    %v2401 = vrot.slane %v2400, 1
    %v2402 = vadd.f32 %v2400, %v2401
    %v2403 = vsel %vm2248, %v2078, 0.0
    %v2404 = vrot.slane %v2403, 4
    %v2405 = vadd.f32 %v2403, %v2404
    %v2406 = vrot.slane %v2405, 2
    %v2407 = vadd.f32 %v2405, %v2406
    %v2408 = vrot.slane %v2407, 1
    %v2409 = vadd.f32 %v2407, %v2408
    %v2410 = vsel %vm2248, %v2080, 0.0
    %v2411 = vrot.slane %v2410, 4
    %v2412 = vadd.f32 %v2410, %v2411
    %v2413 = vrot.slane %v2412, 2
    %v2414 = vadd.f32 %v2412, %v2413
    %v2415 = vrot.slane %v2414, 1
    %v2416 = vadd.f32 %v2414, %v2415
    %v2417 = vsel %vm2248, %v2119, 0.0
    %v2418 = vrot.slane %v2417, 4
    %v2419 = vadd.f32 %v2417, %v2418
    %v2420 = vrot.slane %v2419, 2
    %v2421 = vadd.f32 %v2419, %v2420
    %v2422 = vrot.slane %v2421, 1
    %v2423 = vadd.f32 %v2421, %v2422
    %v2424 = vsel %vm2248, %v2121, 0.0
    %v2425 = vrot.slane %v2424, 4
    %v2426 = vadd.f32 %v2424, %v2425
    %v2427 = vrot.slane %v2426, 2
    %v2428 = vadd.f32 %v2426, %v2427
    %v2429 = vrot.slane %v2428, 1
    %v2430 = vadd.f32 %v2428, %v2429
    %v2431 = vsel %vm2248, %v2160, 0.0
    %v2432 = vrot.slane %v2431, 4
    %v2433 = vadd.f32 %v2431, %v2432
    %v2434 = vrot.slane %v2433, 2
    %v2435 = vadd.f32 %v2433, %v2434
    %v2436 = vrot.slane %v2435, 1
    %v2437 = vadd.f32 %v2435, %v2436
    %v2438 = vsel %vm2248, %v2162, 0.0
    %v2439 = vrot.slane %v2438, 4
    %v2440 = vadd.f32 %v2438, %v2439
    %v2441 = vrot.slane %v2440, 2
    %v2442 = vadd.f32 %v2440, %v2441
    %v2443 = vrot.slane %v2442, 1
    %v2444 = vadd.f32 %v2442, %v2443
    %v2445 = vsel %vm2248, %v2201, 0.0
    %v2446 = vrot.slane %v2445, 4
    %v2447 = vadd.f32 %v2445, %v2446
    %v2448 = vrot.slane %v2447, 2
    %v2449 = vadd.f32 %v2447, %v2448
    %v2450 = vrot.slane %v2449, 1
    %v2451 = vadd.f32 %v2449, %v2450
    %v2452 = vsel %vm2248, %v2203, 0.0
    %v2453 = vrot.slane %v2452, 4
    %v2454 = vadd.f32 %v2452, %v2453
    %v2455 = vrot.slane %v2454, 2
    %v2456 = vadd.f32 %v2454, %v2455
    %v2457 = vrot.slane %v2456, 1
    %v2458 = vadd.f32 %v2456, %v2457
    %v2459 = vsel %vm2248, %v2242, 0.0
    %v2460 = vrot.slane %v2459, 4
    %v2461 = vadd.f32 %v2459, %v2460
    %v2462 = vrot.slane %v2461, 2
    %v2463 = vadd.f32 %v2461, %v2462
    %v2464 = vrot.slane %v2463, 1
    %v2465 = vadd.f32 %v2463, %v2464
    %v2466 = vsel %vm2248, %v2244, 0.0
    %v2467 = vrot.slane %v2466, 4
    %v2468 = vadd.f32 %v2466, %v2467
    %v2469 = vrot.slane %v2468, 2
    %v2470 = vadd.f32 %v2468, %v2469
    %v2471 = vrot.slane %v2470, 1
    %v2472 = vadd.f32 %v2470, %v2471
    %v2473 = vadd.f32 %v2255, %v2269
    %v2474 = vadd.f32 %v2262, %v2276
    %v2475 = vadd.f32 %v2473, %v2283
    %v2476 = vadd.f32 %v2474, %v2290
    %v2477 = vadd.f32 %v2475, %v2297
    %v2478 = vadd.f32 %v2476, %v2304
    %v2479 = vadd.f32 %v2477, %v2311
    %v2480 = vadd.f32 %v2478, %v2318
    %v2481 = vadd.f32 %v2479, %v2325
    %v2482 = vadd.f32 %v2480, %v2332
    %v2483 = vadd.f32 %v2481, %v2339
    %v2484 = vadd.f32 %v2482, %v2346
    %v2485 = vadd.f32 %v2483, %v2353
    %v2486 = vadd.f32 %v2484, %v2360
    %v2487 = vadd.f32 %v2485, %v2367
    %v2488 = vadd.f32 %v2486, %v2374
    %v2489 = vadd.f32 %v2487, %v2381
    %v2490 = vadd.f32 %v2488, %v2388
    %v2491 = vadd.f32 %v2489, %v2395
    %v2492 = vadd.f32 %v2490, %v2402
    %v2493 = vadd.f32 %v2491, %v2409
    %v2494 = vadd.f32 %v2492, %v2416
    %v2495 = vadd.f32 %v2493, %v2423
    %v2496 = vadd.f32 %v2494, %v2430
    %v2497 = vadd.f32 %v2495, %v2437
    %v2498 = vadd.f32 %v2496, %v2444
    %v2499 = vadd.f32 %v2497, %v2451
    %v2500 = vadd.f32 %v2498, %v2458
    %v2501 = vadd.f32 %v2499, %v2465
    %v2502 = vadd.f32 %v2500, %v2472
    %v2503 = vrcp.pop 32.0
    %v2504 = vmul.f32 %v2501, %v2503
    %v2505 = vmul.f32 %v2502, %v2503
    %v2506 = vlaneseq
    %v2507 = vshrl.u32 %v2506, 7
    %v2508 = vsub.s32 0, %v2507
    %v2509 = vrot.slane %v2504, %v2508
    %v2510 = vlaneseq
    %v2511 = vshrl.u32 %v2510, 7
    %v2512 = vsub.s32 0, %v2511
    %v2513 = vrot.slane %v2505, %v2512
    %v2514 = vsub.f32 %v1627, %v2509
    %v2515 = vsub.f32 %v1629, %v2513
    %v2516 = vsub.f32 %v1668, %v2509
    %v2517 = vsub.f32 %v1670, %v2513
    %v2518 = vsub.f32 %v1709, %v2509
    %v2519 = vsub.f32 %v1711, %v2513
    %v2520 = vsub.f32 %v1750, %v2509
    %v2521 = vsub.f32 %v1752, %v2513
    %v2522 = vsub.f32 %v1791, %v2509
    %v2523 = vsub.f32 %v1793, %v2513
    %v2524 = vsub.f32 %v1832, %v2509
    %v2525 = vsub.f32 %v1834, %v2513
    %v2526 = vsub.f32 %v1873, %v2509
    %v2527 = vsub.f32 %v1875, %v2513
    %v2528 = vsub.f32 %v1914, %v2509
    %v2529 = vsub.f32 %v1916, %v2513
    %v2530 = vsub.f32 %v1955, %v2509
    %v2531 = vsub.f32 %v1957, %v2513
    %v2532 = vsub.f32 %v1996, %v2509
    %v2533 = vsub.f32 %v1998, %v2513
    %v2534 = vsub.f32 %v2037, %v2509
    %v2535 = vsub.f32 %v2039, %v2513
    %v2536 = vsub.f32 %v2078, %v2509
    %v2537 = vsub.f32 %v2080, %v2513
    %v2538 = vsub.f32 %v2119, %v2509
    %v2539 = vsub.f32 %v2121, %v2513
    %v2540 = vsub.f32 %v2160, %v2509
    %v2541 = vsub.f32 %v2162, %v2513
    %v2542 = vsub.f32 %v2201, %v2509
    %v2543 = vsub.f32 %v2203, %v2513
    %v2544 = vsub.f32 %v2242, %v2509
    %v2545 = vsub.f32 %v2244, %v2513
    %v2546 = vmul.f32 %v2514, %v2514
    %v2547 = vmul.f32 %v2515, %v2515
    %v2548 = vmul.f32 %v2516, %v2516
    %v2549 = vmul.f32 %v2517, %v2517
    %v2550 = vmul.f32 %v2518, %v2518
    %v2551 = vmul.f32 %v2519, %v2519
    %v2552 = vmul.f32 %v2520, %v2520
    %v2553 = vmul.f32 %v2521, %v2521
    %v2554 = vmul.f32 %v2522, %v2522
    %v2555 = vmul.f32 %v2523, %v2523
    %v2556 = vmul.f32 %v2524, %v2524
    %v2557 = vmul.f32 %v2525, %v2525
    %v2558 = vmul.f32 %v2526, %v2526
    %v2559 = vmul.f32 %v2527, %v2527
    %v2560 = vmul.f32 %v2528, %v2528
    %v2561 = vmul.f32 %v2529, %v2529
    %v2562 = vmul.f32 %v2530, %v2530
    %v2563 = vmul.f32 %v2531, %v2531
    %v2564 = vmul.f32 %v2532, %v2532
    %v2565 = vmul.f32 %v2533, %v2533
    %v2566 = vmul.f32 %v2534, %v2534
    %v2567 = vmul.f32 %v2535, %v2535
    %v2568 = vmul.f32 %v2536, %v2536
    %v2569 = vmul.f32 %v2537, %v2537
    %v2570 = vmul.f32 %v2538, %v2538
    %v2571 = vmul.f32 %v2539, %v2539
    %v2572 = vmul.f32 %v2540, %v2540
    %v2573 = vmul.f32 %v2541, %v2541
    %v2574 = vmul.f32 %v2542, %v2542
    %v2575 = vmul.f32 %v2543, %v2543
    %v2576 = vmul.f32 %v2544, %v2544
    %v2577 = vmul.f32 %v2545, %v2545
    %v2578 = vsel %vm2248, %v2546, 0.0
    %v2579 = vrot.slane %v2578, 4
    %v2580 = vadd.f32 %v2578, %v2579
    %v2581 = vrot.slane %v2580, 2
    %v2582 = vadd.f32 %v2580, %v2581
    %v2583 = vrot.slane %v2582, 1
    %v2584 = vadd.f32 %v2582, %v2583
    %v2585 = vsel %vm2248, %v2547, 0.0
    %v2586 = vrot.slane %v2585, 4
    %v2587 = vadd.f32 %v2585, %v2586
    %v2588 = vrot.slane %v2587, 2
    %v2589 = vadd.f32 %v2587, %v2588
    %v2590 = vrot.slane %v2589, 1
    %v2591 = vadd.f32 %v2589, %v2590
    %v2592 = vsel %vm2248, %v2548, 0.0
    %v2593 = vrot.slane %v2592, 4
    %v2594 = vadd.f32 %v2592, %v2593
    %v2595 = vrot.slane %v2594, 2
    %v2596 = vadd.f32 %v2594, %v2595
    %v2597 = vrot.slane %v2596, 1
    %v2598 = vadd.f32 %v2596, %v2597
    %v2599 = vsel %vm2248, %v2549, 0.0
    %v2600 = vrot.slane %v2599, 4
    %v2601 = vadd.f32 %v2599, %v2600
    %v2602 = vrot.slane %v2601, 2
    %v2603 = vadd.f32 %v2601, %v2602
    %v2604 = vrot.slane %v2603, 1
    %v2605 = vadd.f32 %v2603, %v2604
    %v2606 = vsel %vm2248, %v2550, 0.0
    %v2607 = vrot.slane %v2606, 4
    %v2608 = vadd.f32 %v2606, %v2607
    %v2609 = vrot.slane %v2608, 2
    %v2610 = vadd.f32 %v2608, %v2609
    %v2611 = vrot.slane %v2610, 1
    %v2612 = vadd.f32 %v2610, %v2611
    %v2613 = vsel %vm2248, %v2551, 0.0
    %v2614 = vrot.slane %v2613, 4
    %v2615 = vadd.f32 %v2613, %v2614
    %v2616 = vrot.slane %v2615, 2
    %v2617 = vadd.f32 %v2615, %v2616
    %v2618 = vrot.slane %v2617, 1
    %v2619 = vadd.f32 %v2617, %v2618
    %v2620 = vsel %vm2248, %v2552, 0.0
    %v2621 = vrot.slane %v2620, 4
    %v2622 = vadd.f32 %v2620, %v2621
    %v2623 = vrot.slane %v2622, 2
    %v2624 = vadd.f32 %v2622, %v2623
    %v2625 = vrot.slane %v2624, 1
    %v2626 = vadd.f32 %v2624, %v2625
    %v2627 = vsel %vm2248, %v2553, 0.0
    %v2628 = vrot.slane %v2627, 4
    %v2629 = vadd.f32 %v2627, %v2628
    %v2630 = vrot.slane %v2629, 2
    %v2631 = vadd.f32 %v2629, %v2630
    %v2632 = vrot.slane %v2631, 1
    %v2633 = vadd.f32 %v2631, %v2632
    %v2634 = vsel %vm2248, %v2554, 0.0
    %v2635 = vrot.slane %v2634, 4
    %v2636 = vadd.f32 %v2634, %v2635
    %v2637 = vrot.slane %v2636, 2
    %v2638 = vadd.f32 %v2636, %v2637
    %v2639 = vrot.slane %v2638, 1
    %v2640 = vadd.f32 %v2638, %v2639
    %v2641 = vsel %vm2248, %v2555, 0.0
    %v2642 = vrot.slane %v2641, 4
    %v2643 = vadd.f32 %v2641, %v2642
    %v2644 = vrot.slane %v2643, 2
    %v2645 = vadd.f32 %v2643, %v2644
    %v2646 = vrot.slane %v2645, 1
    %v2647 = vadd.f32 %v2645, %v2646
    %v2648 = vsel %vm2248, %v2556, 0.0
    %v2649 = vrot.slane %v2648, 4
    %v2650 = vadd.f32 %v2648, %v2649
    %v2651 = vrot.slane %v2650, 2
    %v2652 = vadd.f32 %v2650, %v2651
    %v2653 = vrot.slane %v2652, 1
    %v2654 = vadd.f32 %v2652, %v2653
    %v2655 = vsel %vm2248, %v2557, 0.0
    %v2656 = vrot.slane %v2655, 4
    %v2657 = vadd.f32 %v2655, %v2656
    %v2658 = vrot.slane %v2657, 2
    %v2659 = vadd.f32 %v2657, %v2658
    %v2660 = vrot.slane %v2659, 1
    %v2661 = vadd.f32 %v2659, %v2660
    %v2662 = vsel %vm2248, %v2558, 0.0
    %v2663 = vrot.slane %v2662, 4
    %v2664 = vadd.f32 %v2662, %v2663
    %v2665 = vrot.slane %v2664, 2
    %v2666 = vadd.f32 %v2664, %v2665
    %v2667 = vrot.slane %v2666, 1
    %v2668 = vadd.f32 %v2666, %v2667
    %v2669 = vsel %vm2248, %v2559, 0.0
    %v2670 = vrot.slane %v2669, 4
    %v2671 = vadd.f32 %v2669, %v2670
    %v2672 = vrot.slane %v2671, 2
    %v2673 = vadd.f32 %v2671, %v2672
    %v2674 = vrot.slane %v2673, 1
    %v2675 = vadd.f32 %v2673, %v2674
    %v2676 = vsel %vm2248, %v2560, 0.0
    %v2677 = vrot.slane %v2676, 4
    %v2678 = vadd.f32 %v2676, %v2677
    %v2679 = vrot.slane %v2678, 2
    %v2680 = vadd.f32 %v2678, %v2679
    %v2681 = vrot.slane %v2680, 1
    %v2682 = vadd.f32 %v2680, %v2681
    %v2683 = vsel %vm2248, %v2561, 0.0
    %v2684 = vrot.slane %v2683, 4
    %v2685 = vadd.f32 %v2683, %v2684
    %v2686 = vrot.slane %v2685, 2
    %v2687 = vadd.f32 %v2685, %v2686
    %v2688 = vrot.slane %v2687, 1
    %v2689 = vadd.f32 %v2687, %v2688
    %v2690 = vsel %vm2248, %v2562, 0.0
    %v2691 = vrot.slane %v2690, 4
    %v2692 = vadd.f32 %v2690, %v2691
    %v2693 = vrot.slane %v2692, 2
    %v2694 = vadd.f32 %v2692, %v2693
    %v2695 = vrot.slane %v2694, 1
    %v2696 = vadd.f32 %v2694, %v2695
    %v2697 = vsel %vm2248, %v2563, 0.0
    %v2698 = vrot.slane %v2697, 4
    %v2699 = vadd.f32 %v2697, %v2698
    %v2700 = vrot.slane %v2699, 2
    %v2701 = vadd.f32 %v2699, %v2700
    %v2702 = vrot.slane %v2701, 1
    %v2703 = vadd.f32 %v2701, %v2702
    %v2704 = vsel %vm2248, %v2564, 0.0
    %v2705 = vrot.slane %v2704, 4
    %v2706 = vadd.f32 %v2704, %v2705
    %v2707 = vrot.slane %v2706, 2
    %v2708 = vadd.f32 %v2706, %v2707
    %v2709 = vrot.slane %v2708, 1
    %v2710 = vadd.f32 %v2708, %v2709
    %v2711 = vsel %vm2248, %v2565, 0.0
    %v2712 = vrot.slane %v2711, 4
    %v2713 = vadd.f32 %v2711, %v2712
    %v2714 = vrot.slane %v2713, 2
    %v2715 = vadd.f32 %v2713, %v2714
    %v2716 = vrot.slane %v2715, 1
    %v2717 = vadd.f32 %v2715, %v2716
    %v2718 = vsel %vm2248, %v2566, 0.0
    %v2719 = vrot.slane %v2718, 4
    %v2720 = vadd.f32 %v2718, %v2719
    %v2721 = vrot.slane %v2720, 2
    %v2722 = vadd.f32 %v2720, %v2721
    %v2723 = vrot.slane %v2722, 1
    %v2724 = vadd.f32 %v2722, %v2723
    %v2725 = vsel %vm2248, %v2567, 0.0
    %v2726 = vrot.slane %v2725, 4
    %v2727 = vadd.f32 %v2725, %v2726
    %v2728 = vrot.slane %v2727, 2
    %v2729 = vadd.f32 %v2727, %v2728
    %v2730 = vrot.slane %v2729, 1
    %v2731 = vadd.f32 %v2729, %v2730
    %v2732 = vsel %vm2248, %v2568, 0.0
    %v2733 = vrot.slane %v2732, 4
    %v2734 = vadd.f32 %v2732, %v2733
    %v2735 = vrot.slane %v2734, 2
    %v2736 = vadd.f32 %v2734, %v2735
    %v2737 = vrot.slane %v2736, 1
    %v2738 = vadd.f32 %v2736, %v2737
    %v2739 = vsel %vm2248, %v2569, 0.0
    %v2740 = vrot.slane %v2739, 4
    %v2741 = vadd.f32 %v2739, %v2740
    %v2742 = vrot.slane %v2741, 2
    %v2743 = vadd.f32 %v2741, %v2742
    %v2744 = vrot.slane %v2743, 1
    %v2745 = vadd.f32 %v2743, %v2744
    %v2746 = vsel %vm2248, %v2570, 0.0
    %v2747 = vrot.slane %v2746, 4
    %v2748 = vadd.f32 %v2746, %v2747
    %v2749 = vrot.slane %v2748, 2
    %v2750 = vadd.f32 %v2748, %v2749
    %v2751 = vrot.slane %v2750, 1
    %v2752 = vadd.f32 %v2750, %v2751
    %v2753 = vsel %vm2248, %v2571, 0.0
    %v2754 = vrot.slane %v2753, 4
    %v2755 = vadd.f32 %v2753, %v2754
    %v2756 = vrot.slane %v2755, 2
    %v2757 = vadd.f32 %v2755, %v2756
    %v2758 = vrot.slane %v2757, 1
    %v2759 = vadd.f32 %v2757, %v2758
    %v2760 = vsel %vm2248, %v2572, 0.0
    %v2761 = vrot.slane %v2760, 4
    %v2762 = vadd.f32 %v2760, %v2761
    %v2763 = vrot.slane %v2762, 2
    %v2764 = vadd.f32 %v2762, %v2763
    %v2765 = vrot.slane %v2764, 1
    %v2766 = vadd.f32 %v2764, %v2765
    %v2767 = vsel %vm2248, %v2573, 0.0
    %v2768 = vrot.slane %v2767, 4
    %v2769 = vadd.f32 %v2767, %v2768
    %v2770 = vrot.slane %v2769, 2
    %v2771 = vadd.f32 %v2769, %v2770
    %v2772 = vrot.slane %v2771, 1
    %v2773 = vadd.f32 %v2771, %v2772
    %v2774 = vsel %vm2248, %v2574, 0.0
    %v2775 = vrot.slane %v2774, 4
    %v2776 = vadd.f32 %v2774, %v2775
    %v2777 = vrot.slane %v2776, 2
    %v2778 = vadd.f32 %v2776, %v2777
    %v2779 = vrot.slane %v2778, 1
    %v2780 = vadd.f32 %v2778, %v2779
    %v2781 = vsel %vm2248, %v2575, 0.0
    %v2782 = vrot.slane %v2781, 4
    %v2783 = vadd.f32 %v2781, %v2782
    %v2784 = vrot.slane %v2783, 2
    %v2785 = vadd.f32 %v2783, %v2784
    %v2786 = vrot.slane %v2785, 1
    %v2787 = vadd.f32 %v2785, %v2786
    %v2788 = vsel %vm2248, %v2576, 0.0
    %v2789 = vrot.slane %v2788, 4
    %v2790 = vadd.f32 %v2788, %v2789
    %v2791 = vrot.slane %v2790, 2
    %v2792 = vadd.f32 %v2790, %v2791
    %v2793 = vrot.slane %v2792, 1
    %v2794 = vadd.f32 %v2792, %v2793
    %v2795 = vsel %vm2248, %v2577, 0.0
    %v2796 = vrot.slane %v2795, 4
    %v2797 = vadd.f32 %v2795, %v2796
    %v2798 = vrot.slane %v2797, 2
    %v2799 = vadd.f32 %v2797, %v2798
    %v2800 = vrot.slane %v2799, 1
    %v2801 = vadd.f32 %v2799, %v2800
    %v2802 = vadd.f32 %v2584, %v2598
    %v2803 = vadd.f32 %v2591, %v2605
    %v2804 = vadd.f32 %v2802, %v2612
    %v2805 = vadd.f32 %v2803, %v2619
    %v2806 = vadd.f32 %v2804, %v2626
    %v2807 = vadd.f32 %v2805, %v2633
    %v2808 = vadd.f32 %v2806, %v2640
    %v2809 = vadd.f32 %v2807, %v2647
    %v2810 = vadd.f32 %v2808, %v2654
    %v2811 = vadd.f32 %v2809, %v2661
    %v2812 = vadd.f32 %v2810, %v2668
    %v2813 = vadd.f32 %v2811, %v2675
    %v2814 = vadd.f32 %v2812, %v2682
    %v2815 = vadd.f32 %v2813, %v2689
    %v2816 = vadd.f32 %v2814, %v2696
    %v2817 = vadd.f32 %v2815, %v2703
    %v2818 = vadd.f32 %v2816, %v2710
    %v2819 = vadd.f32 %v2817, %v2717
    %v2820 = vadd.f32 %v2818, %v2724
    %v2821 = vadd.f32 %v2819, %v2731
    %v2822 = vadd.f32 %v2820, %v2738
    %v2823 = vadd.f32 %v2821, %v2745
    %v2824 = vadd.f32 %v2822, %v2752
    %v2825 = vadd.f32 %v2823, %v2759
    %v2826 = vadd.f32 %v2824, %v2766
    %v2827 = vadd.f32 %v2825, %v2773
    %v2828 = vadd.f32 %v2826, %v2780
    %v2829 = vadd.f32 %v2827, %v2787
    %v2830 = vadd.f32 %v2828, %v2794
    %v2831 = vadd.f32 %v2829, %v2801
    %v2832 = vmul.f32 %v2830, %v2503
    %v2833 = vmul.f32 %v2831, %v2503
    %v2834 = vadd.f32 %v2832, 1e-05
    %v2835 = vadd.f32 %v2833, 1e-05
    %v2836 = vrsqrt.pop %v2834
    %v2837 = vrsqrt.pop %v2835
    %v2838 = vlaneseq
    %v2839 = vshrl.u32 %v2838, 7
    %v2840 = vsub.s32 0, %v2839
    %v2841 = vrot.slane %v2836, %v2840
    %v2842 = vlaneseq
    %v2843 = vshrl.u32 %v2842, 7
    %v2844 = vsub.s32 0, %v2843
    %v2845 = vrot.slane %v2837, %v2844
    %v2846 = vmul.f32 %v2514, %v2841
    %v2847 = vmul.f32 %v2515, %v2845
    %v2848 = vmul.f32 %v2516, %v2841
    %v2849 = vmul.f32 %v2517, %v2845
    %v2850 = vmul.f32 %v2518, %v2841
    %v2851 = vmul.f32 %v2519, %v2845
    %v2852 = vmul.f32 %v2520, %v2841
    %v2853 = vmul.f32 %v2521, %v2845
    %v2854 = vmul.f32 %v2522, %v2841
    %v2855 = vmul.f32 %v2523, %v2845
    %v2856 = vmul.f32 %v2524, %v2841
    %v2857 = vmul.f32 %v2525, %v2845
    %v2858 = vmul.f32 %v2526, %v2841
    %v2859 = vmul.f32 %v2527, %v2845
    %v2860 = vmul.f32 %v2528, %v2841
    %v2861 = vmul.f32 %v2529, %v2845
    %v2862 = vmul.f32 %v2530, %v2841
    %v2863 = vmul.f32 %v2531, %v2845
    %v2864 = vmul.f32 %v2532, %v2841
    %v2865 = vmul.f32 %v2533, %v2845
    %v2866 = vmul.f32 %v2534, %v2841
    %v2867 = vmul.f32 %v2535, %v2845
    %v2868 = vmul.f32 %v2536, %v2841
    %v2869 = vmul.f32 %v2537, %v2845
    %v2870 = vmul.f32 %v2538, %v2841
    %v2871 = vmul.f32 %v2539, %v2845
    %v2872 = vmul.f32 %v2540, %v2841
    %v2873 = vmul.f32 %v2541, %v2845
    %v2874 = vmul.f32 %v2542, %v2841
    %v2875 = vmul.f32 %v2543, %v2845
    %v2876 = vmul.f32 %v2544, %v2841
    %v2877 = vmul.f32 %v2545, %v2845
    %v2878 = vld [vmem:[#allocation4] sm:$0xff]
    %v2879 = vld [vmem:[#allocation4 + $0x8] sm:$0xff]
    %v2880 = vld [vmem:[#allocation4 + $0x10] sm:$0xff]
    %v2881 = vld [vmem:[#allocation4 + $0x18] sm:$0xff]
    %v2886 = vlaneseq
    %v2887 = vshrl.u32 %v2886, 7
    %v2888 = vsub.s32 0, %v2887
    %v2889 = vrot.slane %v2878, %v2888
    %v2890 = vlaneseq
    %v2891 = vshrl.u32 %v2890, 7
    %v2892 = vsub.s32 1, %v2891
    %v2893 = vrot.slane %v2878, %v2892
    %v2894 = vlaneseq
    %v2895 = vshrl.u32 %v2894, 7
    %v2896 = vsub.s32 2, %v2895
    %v2897 = vrot.slane %v2878, %v2896
    %v2898 = vlaneseq
    %v2899 = vshrl.u32 %v2898, 7
    %v2900 = vsub.s32 3, %v2899
    %v2901 = vrot.slane %v2878, %v2900
    %v2902 = vlaneseq
    %v2903 = vshrl.u32 %v2902, 7
    %v2904 = vsub.s32 4, %v2903
    %v2905 = vrot.slane %v2878, %v2904
    %v2906 = vlaneseq
    %v2907 = vshrl.u32 %v2906, 7
    %v2908 = vsub.s32 5, %v2907
    %v2909 = vrot.slane %v2878, %v2908
    %v2910 = vlaneseq
    %v2911 = vshrl.u32 %v2910, 7
    %v2912 = vsub.s32 6, %v2911
    %v2913 = vrot.slane %v2878, %v2912
    %v2914 = vlaneseq
    %v2915 = vshrl.u32 %v2914, 7
    %v2916 = vsub.s32 7, %v2915
    %v2917 = vrot.slane %v2878, %v2916
    %v2918 = vlaneseq
    %v2919 = vshrl.u32 %v2918, 7
    %v2920 = vsub.s32 0, %v2919
    %v2921 = vrot.slane %v2879, %v2920
    %v2922 = vlaneseq
    %v2923 = vshrl.u32 %v2922, 7
    %v2924 = vsub.s32 1, %v2923
    %v2925 = vrot.slane %v2879, %v2924
    %v2926 = vlaneseq
    %v2927 = vshrl.u32 %v2926, 7
    %v2928 = vsub.s32 2, %v2927
    %v2929 = vrot.slane %v2879, %v2928
    %v2930 = vlaneseq
    %v2931 = vshrl.u32 %v2930, 7
    %v2932 = vsub.s32 3, %v2931
    %v2933 = vrot.slane %v2879, %v2932
    %v2934 = vlaneseq
    %v2935 = vshrl.u32 %v2934, 7
    %v2936 = vsub.s32 4, %v2935
    %v2937 = vrot.slane %v2879, %v2936
    %v2938 = vlaneseq
    %v2939 = vshrl.u32 %v2938, 7
    %v2940 = vsub.s32 5, %v2939
    %v2941 = vrot.slane %v2879, %v2940
    %v2942 = vlaneseq
    %v2943 = vshrl.u32 %v2942, 7
    %v2944 = vsub.s32 6, %v2943
    %v2945 = vrot.slane %v2879, %v2944
    %v2946 = vlaneseq
    %v2947 = vshrl.u32 %v2946, 7
    %v2948 = vsub.s32 7, %v2947
    %v2949 = vrot.slane %v2879, %v2948
    %v2950 = vlaneseq
    %v2951 = vshrl.u32 %v2950, 7
    %v2952 = vsub.s32 0, %v2951
    %v2953 = vrot.slane %v2880, %v2952
    %v2954 = vlaneseq
    %v2955 = vshrl.u32 %v2954, 7
    %v2956 = vsub.s32 1, %v2955
    %v2957 = vrot.slane %v2880, %v2956
    %v2958 = vlaneseq
    %v2959 = vshrl.u32 %v2958, 7
    %v2960 = vsub.s32 2, %v2959
    %v2961 = vrot.slane %v2880, %v2960
    %v2962 = vlaneseq
    %v2963 = vshrl.u32 %v2962, 7
    %v2964 = vsub.s32 3, %v2963
    %v2965 = vrot.slane %v2880, %v2964
    %v2966 = vlaneseq
    %v2967 = vshrl.u32 %v2966, 7
    %v2968 = vsub.s32 4, %v2967
    %v2969 = vrot.slane %v2880, %v2968
    %v2970 = vlaneseq
    %v2971 = vshrl.u32 %v2970, 7
    %v2972 = vsub.s32 5, %v2971
    %v2973 = vrot.slane %v2880, %v2972
    %v2974 = vlaneseq
    %v2975 = vshrl.u32 %v2974, 7
    %v2976 = vsub.s32 6, %v2975
    %v2977 = vrot.slane %v2880, %v2976
    %v2978 = vlaneseq
    %v2979 = vshrl.u32 %v2978, 7
    %v2980 = vsub.s32 7, %v2979
    %v2981 = vrot.slane %v2880, %v2980
    %v2982 = vlaneseq
    %v2983 = vshrl.u32 %v2982, 7
    %v2984 = vsub.s32 0, %v2983
    %v2985 = vrot.slane %v2881, %v2984
    %v2986 = vlaneseq
    %v2987 = vshrl.u32 %v2986, 7
    %v2988 = vsub.s32 1, %v2987
    %v2989 = vrot.slane %v2881, %v2988
    %v2990 = vlaneseq
    %v2991 = vshrl.u32 %v2990, 7
    %v2992 = vsub.s32 2, %v2991
    %v2993 = vrot.slane %v2881, %v2992
    %v2994 = vlaneseq
    %v2995 = vshrl.u32 %v2994, 7
    %v2996 = vsub.s32 3, %v2995
    %v2997 = vrot.slane %v2881, %v2996
    %v2998 = vlaneseq
    %v2999 = vshrl.u32 %v2998, 7
    %v3000 = vsub.s32 4, %v2999
    %v3001 = vrot.slane %v2881, %v3000
    %v3002 = vlaneseq
    %v3003 = vshrl.u32 %v3002, 7
    %v3004 = vsub.s32 5, %v3003
    %v3005 = vrot.slane %v2881, %v3004
    %v3006 = vlaneseq
    %v3007 = vshrl.u32 %v3006, 7
    %v3008 = vsub.s32 6, %v3007
    %v3009 = vrot.slane %v2881, %v3008
    %v3010 = vlaneseq
    %v3011 = vshrl.u32 %v3010, 7
    %v3012 = vsub.s32 7, %v3011
    %v3013 = vrot.slane %v2881, %v3012
    %v3046 = vmul.f32 %v2846, %v2889
    %v3047 = vmul.f32 %v2847, %v2893
    %v3048 = vmul.f32 %v2848, %v2897
    %v3049 = vmul.f32 %v2849, %v2901
    %v3050 = vmul.f32 %v2850, %v2905
    %v3051 = vmul.f32 %v2851, %v2909
    %v3052 = vmul.f32 %v2852, %v2913
    %v3053 = vmul.f32 %v2853, %v2917
    %v3054 = vmul.f32 %v2854, %v2921
    %v3055 = vmul.f32 %v2855, %v2925
    %v3056 = vmul.f32 %v2856, %v2929
    %v3057 = vmul.f32 %v2857, %v2933
    %v3058 = vmul.f32 %v2858, %v2937
    %v3059 = vmul.f32 %v2859, %v2941
    %v3060 = vmul.f32 %v2860, %v2945
    %v3061 = vmul.f32 %v2861, %v2949
    %v3062 = vmul.f32 %v2862, %v2953
    %v3063 = vmul.f32 %v2863, %v2957
    %v3064 = vmul.f32 %v2864, %v2961
    %v3065 = vmul.f32 %v2865, %v2965
    %v3066 = vmul.f32 %v2866, %v2969
    %v3067 = vmul.f32 %v2867, %v2973
    %v3068 = vmul.f32 %v2868, %v2977
    %v3069 = vmul.f32 %v2869, %v2981
    %v3070 = vmul.f32 %v2870, %v2985
    %v3071 = vmul.f32 %v2871, %v2989
    %v3072 = vmul.f32 %v2872, %v2993
    %v3073 = vmul.f32 %v2873, %v2997
    %v3074 = vmul.f32 %v2874, %v3001
    %v3075 = vmul.f32 %v2875, %v3005
    %v3076 = vmul.f32 %v2876, %v3009
    %v3077 = vmul.f32 %v2877, %v3013
    %v3078 = vld [vmem:[#allocation6] sm:$0xff]
    %v3079 = vld [vmem:[#allocation6 + $0x8] sm:$0xff]
    %v3080 = vld [vmem:[#allocation6 + $0x10] sm:$0xff]
    %v3081 = vld [vmem:[#allocation6 + $0x18] sm:$0xff]
    %v3086 = vlaneseq
    %v3087 = vshrl.u32 %v3086, 7
    %v3088 = vsub.s32 0, %v3087
    %v3089 = vrot.slane %v3078, %v3088
    %v3090 = vlaneseq
    %v3091 = vshrl.u32 %v3090, 7
    %v3092 = vsub.s32 1, %v3091
    %v3093 = vrot.slane %v3078, %v3092
    %v3094 = vlaneseq
    %v3095 = vshrl.u32 %v3094, 7
    %v3096 = vsub.s32 2, %v3095
    %v3097 = vrot.slane %v3078, %v3096
    %v3098 = vlaneseq
    %v3099 = vshrl.u32 %v3098, 7
    %v3100 = vsub.s32 3, %v3099
    %v3101 = vrot.slane %v3078, %v3100
    %v3102 = vlaneseq
    %v3103 = vshrl.u32 %v3102, 7
    %v3104 = vsub.s32 4, %v3103
    %v3105 = vrot.slane %v3078, %v3104
    %v3106 = vlaneseq
    %v3107 = vshrl.u32 %v3106, 7
    %v3108 = vsub.s32 5, %v3107
    %v3109 = vrot.slane %v3078, %v3108
    %v3110 = vlaneseq
    %v3111 = vshrl.u32 %v3110, 7
    %v3112 = vsub.s32 6, %v3111
    %v3113 = vrot.slane %v3078, %v3112
    %v3114 = vlaneseq
    %v3115 = vshrl.u32 %v3114, 7
    %v3116 = vsub.s32 7, %v3115
    %v3117 = vrot.slane %v3078, %v3116
    %v3118 = vlaneseq
    %v3119 = vshrl.u32 %v3118, 7
    %v3120 = vsub.s32 0, %v3119
    %v3121 = vrot.slane %v3079, %v3120
    %v3122 = vlaneseq
    %v3123 = vshrl.u32 %v3122, 7
    %v3124 = vsub.s32 1, %v3123
    %v3125 = vrot.slane %v3079, %v3124
    %v3126 = vlaneseq
    %v3127 = vshrl.u32 %v3126, 7
    %v3128 = vsub.s32 2, %v3127
    %v3129 = vrot.slane %v3079, %v3128
    %v3130 = vlaneseq
    %v3131 = vshrl.u32 %v3130, 7
    %v3132 = vsub.s32 3, %v3131
    %v3133 = vrot.slane %v3079, %v3132
    %v3134 = vlaneseq
    %v3135 = vshrl.u32 %v3134, 7
    %v3136 = vsub.s32 4, %v3135
    %v3137 = vrot.slane %v3079, %v3136
    %v3138 = vlaneseq
    %v3139 = vshrl.u32 %v3138, 7
    %v3140 = vsub.s32 5, %v3139
    %v3141 = vrot.slane %v3079, %v3140
    %v3142 = vlaneseq
    %v3143 = vshrl.u32 %v3142, 7
    %v3144 = vsub.s32 6, %v3143
    %v3145 = vrot.slane %v3079, %v3144
    %v3146 = vlaneseq
    %v3147 = vshrl.u32 %v3146, 7
    %v3148 = vsub.s32 7, %v3147
    %v3149 = vrot.slane %v3079, %v3148
    %v3150 = vlaneseq
    %v3151 = vshrl.u32 %v3150, 7
    %v3152 = vsub.s32 0, %v3151
    %v3153 = vrot.slane %v3080, %v3152
    %v3154 = vlaneseq
    %v3155 = vshrl.u32 %v3154, 7
    %v3156 = vsub.s32 1, %v3155
    %v3157 = vrot.slane %v3080, %v3156
    %v3158 = vlaneseq
    %v3159 = vshrl.u32 %v3158, 7
    %v3160 = vsub.s32 2, %v3159
    %v3161 = vrot.slane %v3080, %v3160
    %v3162 = vlaneseq
    %v3163 = vshrl.u32 %v3162, 7
    %v3164 = vsub.s32 3, %v3163
    %v3165 = vrot.slane %v3080, %v3164
    %v3166 = vlaneseq
    %v3167 = vshrl.u32 %v3166, 7
    %v3168 = vsub.s32 4, %v3167
    %v3169 = vrot.slane %v3080, %v3168
    %v3170 = vlaneseq
    %v3171 = vshrl.u32 %v3170, 7
    %v3172 = vsub.s32 5, %v3171
    %v3173 = vrot.slane %v3080, %v3172
    %v3174 = vlaneseq
    %v3175 = vshrl.u32 %v3174, 7
    %v3176 = vsub.s32 6, %v3175
    %v3177 = vrot.slane %v3080, %v3176
    %v3178 = vlaneseq
    %v3179 = vshrl.u32 %v3178, 7
    %v3180 = vsub.s32 7, %v3179
    %v3181 = vrot.slane %v3080, %v3180
    %v3182 = vlaneseq
    %v3183 = vshrl.u32 %v3182, 7
    %v3184 = vsub.s32 0, %v3183
    %v3185 = vrot.slane %v3081, %v3184
    %v3186 = vlaneseq
    %v3187 = vshrl.u32 %v3186, 7
    %v3188 = vsub.s32 1, %v3187
    %v3189 = vrot.slane %v3081, %v3188
    %v3190 = vlaneseq
    %v3191 = vshrl.u32 %v3190, 7
    %v3192 = vsub.s32 2, %v3191
    %v3193 = vrot.slane %v3081, %v3192
    %v3194 = vlaneseq
    %v3195 = vshrl.u32 %v3194, 7
    %v3196 = vsub.s32 3, %v3195
    %v3197 = vrot.slane %v3081, %v3196
    %v3198 = vlaneseq
    %v3199 = vshrl.u32 %v3198, 7
    %v3200 = vsub.s32 4, %v3199
    %v3201 = vrot.slane %v3081, %v3200
    %v3202 = vlaneseq
    %v3203 = vshrl.u32 %v3202, 7
    %v3204 = vsub.s32 5, %v3203
    %v3205 = vrot.slane %v3081, %v3204
    %v3206 = vlaneseq
    %v3207 = vshrl.u32 %v3206, 7
    %v3208 = vsub.s32 6, %v3207
    %v3209 = vrot.slane %v3081, %v3208
    %v3210 = vlaneseq
    %v3211 = vshrl.u32 %v3210, 7
    %v3212 = vsub.s32 7, %v3211
    %v3213 = vrot.slane %v3081, %v3212
    %v3246 = vadd.f32 %v3046, %v3089
    %v3247 = vadd.f32 %v3047, %v3093
    %v3248 = vadd.f32 %v3048, %v3097
    %v3249 = vadd.f32 %v3049, %v3101
    %v3250 = vadd.f32 %v3050, %v3105
    %v3251 = vadd.f32 %v3051, %v3109
    %v3252 = vadd.f32 %v3052, %v3113
    %v3253 = vadd.f32 %v3053, %v3117
    %v3254 = vadd.f32 %v3054, %v3121
    %v3255 = vadd.f32 %v3055, %v3125
    %v3256 = vadd.f32 %v3056, %v3129
    %v3257 = vadd.f32 %v3057, %v3133
    %v3258 = vadd.f32 %v3058, %v3137
    %v3259 = vadd.f32 %v3059, %v3141
    %v3260 = vadd.f32 %v3060, %v3145
    %v3261 = vadd.f32 %v3061, %v3149
    %v3262 = vadd.f32 %v3062, %v3153
    %v3263 = vadd.f32 %v3063, %v3157
    %v3264 = vadd.f32 %v3064, %v3161
    %v3265 = vadd.f32 %v3065, %v3165
    %v3266 = vadd.f32 %v3066, %v3169
    %v3267 = vadd.f32 %v3067, %v3173
    %v3268 = vadd.f32 %v3068, %v3177
    %v3269 = vadd.f32 %v3069, %v3181
    %v3270 = vadd.f32 %v3070, %v3185
    %v3271 = vadd.f32 %v3071, %v3189
    %v3272 = vadd.f32 %v3072, %v3193
    %v3273 = vadd.f32 %v3073, %v3197
    %v3274 = vadd.f32 %v3074, %v3201
    %v3275 = vadd.f32 %v3075, %v3205
    %v3276 = vadd.f32 %v3076, %v3209
    %v3277 = vadd.f32 %v3077, %v3213
    %v3278 = vmax.f32 %v3246, 0.0
    %v3279 = vmax.f32 %v3247, 0.0
    %v3280 = vmax.f32 %v3248, 0.0
    %v3281 = vmax.f32 %v3249, 0.0
    %v3282 = vmax.f32 %v3250, 0.0
    %v3283 = vmax.f32 %v3251, 0.0
    %v3284 = vmax.f32 %v3252, 0.0
    %v3285 = vmax.f32 %v3253, 0.0
    %v3286 = vmax.f32 %v3254, 0.0
    %v3287 = vmax.f32 %v3255, 0.0
    %v3288 = vmax.f32 %v3256, 0.0
    %v3289 = vmax.f32 %v3257, 0.0
    %v3290 = vmax.f32 %v3258, 0.0
    %v3291 = vmax.f32 %v3259, 0.0
    %v3292 = vmax.f32 %v3260, 0.0
    %v3293 = vmax.f32 %v3261, 0.0
    %v3294 = vmax.f32 %v3262, 0.0
    %v3295 = vmax.f32 %v3263, 0.0
    %v3296 = vmax.f32 %v3264, 0.0
    %v3297 = vmax.f32 %v3265, 0.0
    %v3298 = vmax.f32 %v3266, 0.0
    %v3299 = vmax.f32 %v3267, 0.0
    %v3300 = vmax.f32 %v3268, 0.0
    %v3301 = vmax.f32 %v3269, 0.0
    %v3302 = vmax.f32 %v3270, 0.0
    %v3303 = vmax.f32 %v3271, 0.0
    %v3304 = vmax.f32 %v3272, 0.0
    %v3305 = vmax.f32 %v3273, 0.0
    %v3306 = vmax.f32 %v3274, 0.0
    %v3307 = vmax.f32 %v3275, 0.0
    %v3308 = vmax.f32 %v3276, 0.0
    %v3309 = vmax.f32 %v3277, 0.0
    %v3342 = vcombine.low %v3278, %v3279
    %v3343 = vcombine.low %v3280, %v3281
    %v3345 = vunpack.c.l.s4 1983009808
    %v3346 = vunpack.c.0.s8 %v3345
    %v3347 = vlaneseq
    %v3348 = vshrl.u32 %v3347, 7
    %v3349 = vsub.s32 %v3346, %v3348
    %v3350 = vrot.slane %v3342, %v3349
    %v3352 = vunpack.c.l.s4 1983009808
    %v3353 = vunpack.c.0.s8 %v3352
    %v3354 = vlaneseq
    %v3355 = vshrl.u32 %v3354, 7
    %v3356 = vsub.s32 %v3353, %v3355
    %v3357 = vrot.slane %v3343, %v3356
    %v3358 = vcombine.low %v3350, %v3357
    %v3359 = vcombine.low %v3282, %v3283
    %v3360 = vcombine.low %v3284, %v3285
    %v3362 = vunpack.c.l.s4 1983009808
    %v3363 = vunpack.c.0.s8 %v3362
    %v3364 = vlaneseq
    %v3365 = vshrl.u32 %v3364, 7
    %v3366 = vsub.s32 %v3363, %v3365
    %v3367 = vrot.slane %v3359, %v3366
    %v3369 = vunpack.c.l.s4 1983009808
    %v3370 = vunpack.c.0.s8 %v3369
    %v3371 = vlaneseq
    %v3372 = vshrl.u32 %v3371, 7
    %v3373 = vsub.s32 %v3370, %v3372
    %v3374 = vrot.slane %v3360, %v3373
    %v3375 = vcombine.low %v3367, %v3374
    %v3376 = vcombine.low %v3286, %v3287
    %v3377 = vcombine.low %v3288, %v3289
    %v3379 = vunpack.c.l.s4 1983009808
    %v3380 = vunpack.c.0.s8 %v3379
    %v3381 = vlaneseq
    %v3382 = vshrl.u32 %v3381, 7
    %v3383 = vsub.s32 %v3380, %v3382
    %v3384 = vrot.slane %v3376, %v3383
    %v3386 = vunpack.c.l.s4 1983009808
    %v3387 = vunpack.c.0.s8 %v3386
    %v3388 = vlaneseq
    %v3389 = vshrl.u32 %v3388, 7
    %v3390 = vsub.s32 %v3387, %v3389
    %v3391 = vrot.slane %v3377, %v3390
    %v3392 = vcombine.low %v3384, %v3391
    %v3393 = vcombine.low %v3290, %v3291
    %v3394 = vcombine.low %v3292, %v3293
    %v3396 = vunpack.c.l.s4 1983009808
    %v3397 = vunpack.c.0.s8 %v3396
    %v3398 = vlaneseq
    %v3399 = vshrl.u32 %v3398, 7
    %v3400 = vsub.s32 %v3397, %v3399
    %v3401 = vrot.slane %v3393, %v3400
    %v3403 = vunpack.c.l.s4 1983009808
    %v3404 = vunpack.c.0.s8 %v3403
    %v3405 = vlaneseq
    %v3406 = vshrl.u32 %v3405, 7
    %v3407 = vsub.s32 %v3404, %v3406
    %v3408 = vrot.slane %v3394, %v3407
    %v3409 = vcombine.low %v3401, %v3408
    %v3410 = vcombine.low %v3294, %v3295
    %v3411 = vcombine.low %v3296, %v3297
    %v3413 = vunpack.c.l.s4 1983009808
    %v3414 = vunpack.c.0.s8 %v3413
    %v3415 = vlaneseq
    %v3416 = vshrl.u32 %v3415, 7
    %v3417 = vsub.s32 %v3414, %v3416
    %v3418 = vrot.slane %v3410, %v3417
    %v3420 = vunpack.c.l.s4 1983009808
    %v3421 = vunpack.c.0.s8 %v3420
    %v3422 = vlaneseq
    %v3423 = vshrl.u32 %v3422, 7
    %v3424 = vsub.s32 %v3421, %v3423
    %v3425 = vrot.slane %v3411, %v3424
    %v3426 = vcombine.low %v3418, %v3425
    %v3427 = vcombine.low %v3298, %v3299
    %v3428 = vcombine.low %v3300, %v3301
    %v3430 = vunpack.c.l.s4 1983009808
    %v3431 = vunpack.c.0.s8 %v3430
    %v3432 = vlaneseq
    %v3433 = vshrl.u32 %v3432, 7
    %v3434 = vsub.s32 %v3431, %v3433
    %v3435 = vrot.slane %v3427, %v3434
    %v3437 = vunpack.c.l.s4 1983009808
    %v3438 = vunpack.c.0.s8 %v3437
    %v3439 = vlaneseq
    %v3440 = vshrl.u32 %v3439, 7
    %v3441 = vsub.s32 %v3438, %v3440
    %v3442 = vrot.slane %v3428, %v3441
    %v3443 = vcombine.low %v3435, %v3442
    %v3444 = vcombine.low %v3302, %v3303
    %v3445 = vcombine.low %v3304, %v3305
    %v3447 = vunpack.c.l.s4 1983009808
    %v3448 = vunpack.c.0.s8 %v3447
    %v3449 = vlaneseq
    %v3450 = vshrl.u32 %v3449, 7
    %v3451 = vsub.s32 %v3448, %v3450
    %v3452 = vrot.slane %v3444, %v3451
    %v3454 = vunpack.c.l.s4 1983009808
    %v3455 = vunpack.c.0.s8 %v3454
    %v3456 = vlaneseq
    %v3457 = vshrl.u32 %v3456, 7
    %v3458 = vsub.s32 %v3455, %v3457
    %v3459 = vrot.slane %v3445, %v3458
    %v3460 = vcombine.low %v3452, %v3459
    %v3461 = vcombine.low %v3306, %v3307
    %v3462 = vcombine.low %v3308, %v3309
    %v3464 = vunpack.c.l.s4 1983009808
    %v3465 = vunpack.c.0.s8 %v3464
    %v3466 = vlaneseq
    %v3467 = vshrl.u32 %v3466, 7
    %v3468 = vsub.s32 %v3465, %v3467
    %v3469 = vrot.slane %v3461, %v3468
    %v3471 = vunpack.c.l.s4 1983009808
    %v3472 = vunpack.c.0.s8 %v3471
    %v3473 = vlaneseq
    %v3474 = vshrl.u32 %v3473, 7
    %v3475 = vsub.s32 %v3472, %v3474
    %v3476 = vrot.slane %v3462, %v3475
    %v3477 = vcombine.low %v3469, %v3476
    %3486 = vst [vmem:[%s4] sm:$0xff] %v3358
    %3487 = vst [vmem:[%s4 + $0x8] sm:$0xff] %v3375
    %3488 = vst [vmem:[%s4 + $0x10] sm:$0xff] %v3392
    %3489 = vst [vmem:[%s4 + $0x18] sm:$0xff] %v3409
    %3490 = vst [vmem:[%s4 + $0x20] sm:$0xff] %v3426
    %3491 = vst [vmem:[%s4 + $0x28] sm:$0xff] %v3443
    %3492 = vst [vmem:[%s4 + $0x30] sm:$0xff] %v3460
    %3493 = vst [vmem:[%s4 + $0x38] sm:$0xff] %v3477
    // Predicated region
    $region30: #{generator_forward.4} parent=1 // pred_check
      _
    $region31: #{generator_forward.4} parent=1 // pred_check_branch
      %3495 = sbr.rel (0) target = $region33
    $region32: #{generator_forward.4} parent=1 // pred_region
      _
    $region33: #{generator_forward.4} parent=1 // pred_fallthru
      _
    // Predicated region
    $region34: #{generator_forward.4} parent=1 // pred_check
      _
    $region35: #{generator_forward.4} parent=1 // pred_check_branch
      %3497 = sbr.rel (0) target = $region37
    $region36: #{generator_forward.4} parent=1 // pred_region
      _
    $region37: #{generator_forward.4} parent=1 // pred_fallthru
      _
    %3498 = vsyncpa [#allocation3], 1
    %3499 = vsyncpa [#allocation5], 1

// kernel: generator_forward.5
$region0: #{generator_forward.5}
  #allocation0 [shape = 'u32[]', space=smem, size = 0x4, offset = 0x4, fixed_abs, tag = 'smem constant byte address 0x4 - core index']
  #allocation1 [shape = 'u32[144,128]{1,0:T(1,128)}', space=vmem, size = 0x12000, scoped, tag = 'internal scratch']
  %s0 = inlined_call_operand.vmem [shape: bf16[32,2304], index: 0, kind: input, shape index: {}]
  %s1 = inlined_call_operand.vmem [shape: bf16[2304,512], index: 1, kind: input, shape index: {}]
  %s2 = inlined_call_operand.vmem [shape: f32[1,512], index: 2, kind: input, shape index: {}]
  %s3 = inlined_call_operand.hbm [shape: f32[1,512], index: 3, kind: input, shape index: {}]
  %s4 = inlined_call_operand.vmem [shape: f32[32,512], index: 4, kind: output, shape index: {}]
  %s5 = sld [smem:[#allocation0]]
  $region30: #{generator_forward.5} parent=0
    _
  %s7 = ssub.s32 1, %s5
  %s8 = scalar_select 0, %s7, %s5
  $region1: #{generator_forward.5} parent=0
    #allocation2 [shape = 'u8[2048]{0}', space=vmem, size = 0x800, scoped, tag = 'input window, operand 3, single buffered']
    #allocation3 [shape = 's32[1]{0}', space=sflag, size = 0x4, scoped, tag = 'scoped memory for generator_forward.5']
    %9 = vsyncpa [#allocation3], 0
    // Predicated region
    $region2: #{generator_forward.5} parent=1 // pred_check
      _
    $region3: #{generator_forward.5} parent=1 // pred_check_branch
      %11 = sbr.rel (0) target = $region5
    $region4: #{generator_forward.5} parent=1 // pred_region
      _
    $region5: #{generator_forward.5} parent=1 // pred_fallthru
      _
    // Predicated region
    $region6: #{generator_forward.5} parent=1 // pred_check
      _
    $region7: #{generator_forward.5} parent=1 // pred_check_branch
      %13 = sbr.rel (0) target = $region9
    $region8: #{generator_forward.5} parent=1 // pred_region
      _
    $region9: #{generator_forward.5} parent=1 // pred_fallthru
      _
    // Predicated region
    $region10: #{generator_forward.5} parent=1 // pred_check
      _
    $region11: #{generator_forward.5} parent=1 // pred_check_branch
      %15 = sbr.rel (0) target = $region13
    $region12: #{generator_forward.5} parent=1 // pred_region
      _
    $region13: #{generator_forward.5} parent=1 // pred_fallthru
      _
    // Predicated region
    $region14: #{generator_forward.5} parent=1 // pred_check
      _
    $region15: #{generator_forward.5} parent=1 // pred_check_branch
      %17 = sbr.rel (0) target = $region17
    $region16: #{generator_forward.5} parent=1 // pred_region
      %s19 = ssub.s32 64, 64
      %20 = vsyncadd [#allocation3], %s19
      %s22 = sshll.u32 [#allocation2], 4
      %s23 = int_to_ptr.vmem [resolvable:$true] %s22
      %25 = dma.hbm_to_vmem [thread:$0]  %s3, 64, %s23, [#allocation3]
    $region17: #{generator_forward.5} parent=1 // pred_fallthru
      _
    // Predicated region
    $region18: #{generator_forward.5} parent=1 // pred_check
      _
    $region19: #{generator_forward.5} parent=1 // pred_check_branch
      %27 = sbr.rel (0) target = $region21
    $region20: #{generator_forward.5} parent=1 // pred_region
      %28 = dma.done [#allocation3], 64
    $region21: #{generator_forward.5} parent=1 // pred_fallthru
      _
    %v29 = vld [vmem:[%s0] sm:$0xff]
    %v30 = vld [vmem:[%s0 + $0x8] sm:$0xff]
    %v31 = vld [vmem:[%s0 + $0x10] sm:$0xff]
    %v32 = vld [vmem:[%s0 + $0x18] sm:$0xff]
    %v33 = vld [vmem:[%s0 + $0x20] sm:$0xff]
    %v34 = vld [vmem:[%s0 + $0x28] sm:$0xff]
    %v35 = vld [vmem:[%s0 + $0x30] sm:$0xff]
    %v36 = vld [vmem:[%s0 + $0x38] sm:$0xff]
    %v37 = vld [vmem:[%s0 + $0x40] sm:$0xff]
    %v38 = vld [vmem:[%s0 + $0x48] sm:$0xff]
    %v39 = vld [vmem:[%s0 + $0x50] sm:$0xff]
    %v40 = vld [vmem:[%s0 + $0x58] sm:$0xff]
    %v41 = vld [vmem:[%s0 + $0x60] sm:$0xff]
    %v42 = vld [vmem:[%s0 + $0x68] sm:$0xff]
    %v43 = vld [vmem:[%s0 + $0x70] sm:$0xff]
    %v44 = vld [vmem:[%s0 + $0x78] sm:$0xff]
    %v45 = vld [vmem:[%s0 + $0x80] sm:$0xff]
    %v46 = vld [vmem:[%s0 + $0x88] sm:$0xff]
    %v47 = vld [vmem:[%s0 + $0x90] sm:$0xff]
    %v48 = vld [vmem:[%s0 + $0x98] sm:$0xff]
    %v49 = vld [vmem:[%s0 + $0xa0] sm:$0xff]
    %v50 = vld [vmem:[%s0 + $0xa8] sm:$0xff]
    %v51 = vld [vmem:[%s0 + $0xb0] sm:$0xff]
    %v52 = vld [vmem:[%s0 + $0xb8] sm:$0xff]
    %v53 = vld [vmem:[%s0 + $0xc0] sm:$0xff]
    %v54 = vld [vmem:[%s0 + $0xc8] sm:$0xff]
    %v55 = vld [vmem:[%s0 + $0xd0] sm:$0xff]
    %v56 = vld [vmem:[%s0 + $0xd8] sm:$0xff]
    %v57 = vld [vmem:[%s0 + $0xe0] sm:$0xff]
    %v58 = vld [vmem:[%s0 + $0xe8] sm:$0xff]
    %v59 = vld [vmem:[%s0 + $0xf0] sm:$0xff]
    %v60 = vld [vmem:[%s0 + $0xf8] sm:$0xff]
    %v61 = vld [vmem:[%s0 + $0x100] sm:$0xff]
    %v62 = vld [vmem:[%s0 + $0x108] sm:$0xff]
    %v63 = vld [vmem:[%s0 + $0x110] sm:$0xff]
    %v64 = vld [vmem:[%s0 + $0x118] sm:$0xff]
    %v65 = vld [vmem:[%s1] sm:$0xff]
    %v66 = vld [vmem:[%s1 + $0x8] sm:$0xff]
    %v67 = vld [vmem:[%s1 + $0x10] sm:$0xff]
    %v68 = vld [vmem:[%s1 + $0x18] sm:$0xff]
    %v69 = vld [vmem:[%s1 + $0x20] sm:$0xff]
    %v70 = vld [vmem:[%s1 + $0x28] sm:$0xff]
    %v71 = vld [vmem:[%s1 + $0x30] sm:$0xff]
    %v72 = vld [vmem:[%s1 + $0x38] sm:$0xff]
    %v73 = vld [vmem:[%s1 + $0x40] sm:$0xff]
    %v74 = vld [vmem:[%s1 + $0x48] sm:$0xff]
    %v75 = vld [vmem:[%s1 + $0x50] sm:$0xff]
    %v76 = vld [vmem:[%s1 + $0x58] sm:$0xff]
    %v77 = vld [vmem:[%s1 + $0x60] sm:$0xff]
    %v78 = vld [vmem:[%s1 + $0x68] sm:$0xff]
    %v79 = vld [vmem:[%s1 + $0x70] sm:$0xff]
    %v80 = vld [vmem:[%s1 + $0x78] sm:$0xff]
    %v81 = vld [vmem:[%s1 + $0x80] sm:$0xff]
    %v82 = vld [vmem:[%s1 + $0x88] sm:$0xff]
    %v83 = vld [vmem:[%s1 + $0x90] sm:$0xff]
    %v84 = vld [vmem:[%s1 + $0x98] sm:$0xff]
    %v85 = vld [vmem:[%s1 + $0xa0] sm:$0xff]
    %v86 = vld [vmem:[%s1 + $0xa8] sm:$0xff]
    %v87 = vld [vmem:[%s1 + $0xb0] sm:$0xff]
    %v88 = vld [vmem:[%s1 + $0xb8] sm:$0xff]
    %v89 = vld [vmem:[%s1 + $0xc0] sm:$0xff]
    %v90 = vld [vmem:[%s1 + $0xc8] sm:$0xff]
    %v91 = vld [vmem:[%s1 + $0xd0] sm:$0xff]
    %v92 = vld [vmem:[%s1 + $0xd8] sm:$0xff]
    %v93 = vld [vmem:[%s1 + $0xe0] sm:$0xff]
    %v94 = vld [vmem:[%s1 + $0xe8] sm:$0xff]
    %v95 = vld [vmem:[%s1 + $0xf0] sm:$0xff]
    %v96 = vld [vmem:[%s1 + $0xf8] sm:$0xff]
    %v97 = vld [vmem:[%s1 + $0x100] sm:$0xff]
    %v98 = vld [vmem:[%s1 + $0x108] sm:$0xff]
    %v99 = vld [vmem:[%s1 + $0x110] sm:$0xff]
    %v100 = vld [vmem:[%s1 + $0x118] sm:$0xff]
    %v101 = vld [vmem:[%s1 + $0x120] sm:$0xff]
    %v102 = vld [vmem:[%s1 + $0x128] sm:$0xff]
    %v103 = vld [vmem:[%s1 + $0x130] sm:$0xff]
    %v104 = vld [vmem:[%s1 + $0x138] sm:$0xff]
    %v105 = vld [vmem:[%s1 + $0x140] sm:$0xff]
    %v106 = vld [vmem:[%s1 + $0x148] sm:$0xff]
    %v107 = vld [vmem:[%s1 + $0x150] sm:$0xff]
    %v108 = vld [vmem:[%s1 + $0x158] sm:$0xff]
    %v109 = vld [vmem:[%s1 + $0x160] sm:$0xff]
    %v110 = vld [vmem:[%s1 + $0x168] sm:$0xff]
    %v111 = vld [vmem:[%s1 + $0x170] sm:$0xff]
    %v112 = vld [vmem:[%s1 + $0x178] sm:$0xff]
    %v113 = vld [vmem:[%s1 + $0x180] sm:$0xff]
    %v114 = vld [vmem:[%s1 + $0x188] sm:$0xff]
    %v115 = vld [vmem:[%s1 + $0x190] sm:$0xff]
    %v116 = vld [vmem:[%s1 + $0x198] sm:$0xff]
    %v117 = vld [vmem:[%s1 + $0x1a0] sm:$0xff]
    %v118 = vld [vmem:[%s1 + $0x1a8] sm:$0xff]
    %v119 = vld [vmem:[%s1 + $0x1b0] sm:$0xff]
    %v120 = vld [vmem:[%s1 + $0x1b8] sm:$0xff]
    %v121 = vld [vmem:[%s1 + $0x1c0] sm:$0xff]
    %v122 = vld [vmem:[%s1 + $0x1c8] sm:$0xff]
    %v123 = vld [vmem:[%s1 + $0x1d0] sm:$0xff]
    %v124 = vld [vmem:[%s1 + $0x1d8] sm:$0xff]
    %v125 = vld [vmem:[%s1 + $0x1e0] sm:$0xff]
    %v126 = vld [vmem:[%s1 + $0x1e8] sm:$0xff]
    %v127 = vld [vmem:[%s1 + $0x1f0] sm:$0xff]
    %v128 = vld [vmem:[%s1 + $0x1f8] sm:$0xff]
    %v129 = vld [vmem:[%s1 + $0x200] sm:$0xff]
    %v130 = vld [vmem:[%s1 + $0x208] sm:$0xff]
    %v131 = vld [vmem:[%s1 + $0x210] sm:$0xff]
    %v132 = vld [vmem:[%s1 + $0x218] sm:$0xff]
    %v133 = vld [vmem:[%s1 + $0x220] sm:$0xff]
    %v134 = vld [vmem:[%s1 + $0x228] sm:$0xff]
    %v135 = vld [vmem:[%s1 + $0x230] sm:$0xff]
    %v136 = vld [vmem:[%s1 + $0x238] sm:$0xff]
    %v137 = vld [vmem:[%s1 + $0x240] sm:$0xff]
    %v138 = vld [vmem:[%s1 + $0x248] sm:$0xff]
    %v139 = vld [vmem:[%s1 + $0x250] sm:$0xff]
    %v140 = vld [vmem:[%s1 + $0x258] sm:$0xff]
    %v141 = vld [vmem:[%s1 + $0x260] sm:$0xff]
    %v142 = vld [vmem:[%s1 + $0x268] sm:$0xff]
    %v143 = vld [vmem:[%s1 + $0x270] sm:$0xff]
    %v144 = vld [vmem:[%s1 + $0x278] sm:$0xff]
    %v145 = vld [vmem:[%s1 + $0x280] sm:$0xff]
    %v146 = vld [vmem:[%s1 + $0x288] sm:$0xff]
    %v147 = vld [vmem:[%s1 + $0x290] sm:$0xff]
    %v148 = vld [vmem:[%s1 + $0x298] sm:$0xff]
    %v149 = vld [vmem:[%s1 + $0x2a0] sm:$0xff]
    %v150 = vld [vmem:[%s1 + $0x2a8] sm:$0xff]
    %v151 = vld [vmem:[%s1 + $0x2b0] sm:$0xff]
    %v152 = vld [vmem:[%s1 + $0x2b8] sm:$0xff]
    %v153 = vld [vmem:[%s1 + $0x2c0] sm:$0xff]
    %v154 = vld [vmem:[%s1 + $0x2c8] sm:$0xff]
    %v155 = vld [vmem:[%s1 + $0x2d0] sm:$0xff]
    %v156 = vld [vmem:[%s1 + $0x2d8] sm:$0xff]
    %v157 = vld [vmem:[%s1 + $0x2e0] sm:$0xff]
    %v158 = vld [vmem:[%s1 + $0x2e8] sm:$0xff]
    %v159 = vld [vmem:[%s1 + $0x2f0] sm:$0xff]
    %v160 = vld [vmem:[%s1 + $0x2f8] sm:$0xff]
    %v161 = vld [vmem:[%s1 + $0x300] sm:$0xff]
    %v162 = vld [vmem:[%s1 + $0x308] sm:$0xff]
    %v163 = vld [vmem:[%s1 + $0x310] sm:$0xff]
    %v164 = vld [vmem:[%s1 + $0x318] sm:$0xff]
    %v165 = vld [vmem:[%s1 + $0x320] sm:$0xff]
    %v166 = vld [vmem:[%s1 + $0x328] sm:$0xff]
    %v167 = vld [vmem:[%s1 + $0x330] sm:$0xff]
    %v168 = vld [vmem:[%s1 + $0x338] sm:$0xff]
    %v169 = vld [vmem:[%s1 + $0x340] sm:$0xff]
    %v170 = vld [vmem:[%s1 + $0x348] sm:$0xff]
    %v171 = vld [vmem:[%s1 + $0x350] sm:$0xff]
    %v172 = vld [vmem:[%s1 + $0x358] sm:$0xff]
    %v173 = vld [vmem:[%s1 + $0x360] sm:$0xff]
    %v174 = vld [vmem:[%s1 + $0x368] sm:$0xff]
    %v175 = vld [vmem:[%s1 + $0x370] sm:$0xff]
    %v176 = vld [vmem:[%s1 + $0x378] sm:$0xff]
    %v177 = vld [vmem:[%s1 + $0x380] sm:$0xff]
    %v178 = vld [vmem:[%s1 + $0x388] sm:$0xff]
    %v179 = vld [vmem:[%s1 + $0x390] sm:$0xff]
    %v180 = vld [vmem:[%s1 + $0x398] sm:$0xff]
    %v181 = vld [vmem:[%s1 + $0x3a0] sm:$0xff]
    %v182 = vld [vmem:[%s1 + $0x3a8] sm:$0xff]
    %v183 = vld [vmem:[%s1 + $0x3b0] sm:$0xff]
    %v184 = vld [vmem:[%s1 + $0x3b8] sm:$0xff]
    %v185 = vld [vmem:[%s1 + $0x3c0] sm:$0xff]
    %v186 = vld [vmem:[%s1 + $0x3c8] sm:$0xff]
    %v187 = vld [vmem:[%s1 + $0x3d0] sm:$0xff]
    %v188 = vld [vmem:[%s1 + $0x3d8] sm:$0xff]
    %v189 = vld [vmem:[%s1 + $0x3e0] sm:$0xff]
    %v190 = vld [vmem:[%s1 + $0x3e8] sm:$0xff]
    %v191 = vld [vmem:[%s1 + $0x3f0] sm:$0xff]
    %v192 = vld [vmem:[%s1 + $0x3f8] sm:$0xff]
    %v193 = vld [vmem:[%s1 + $0x400] sm:$0xff]
    %v194 = vld [vmem:[%s1 + $0x408] sm:$0xff]
    %v195 = vld [vmem:[%s1 + $0x410] sm:$0xff]
    %v196 = vld [vmem:[%s1 + $0x418] sm:$0xff]
    %v197 = vld [vmem:[%s1 + $0x420] sm:$0xff]
    %v198 = vld [vmem:[%s1 + $0x428] sm:$0xff]
    %v199 = vld [vmem:[%s1 + $0x430] sm:$0xff]
    %v200 = vld [vmem:[%s1 + $0x438] sm:$0xff]
    %v201 = vld [vmem:[%s1 + $0x440] sm:$0xff]
    %v202 = vld [vmem:[%s1 + $0x448] sm:$0xff]
    %v203 = vld [vmem:[%s1 + $0x450] sm:$0xff]
    %v204 = vld [vmem:[%s1 + $0x458] sm:$0xff]
    %v205 = vld [vmem:[%s1 + $0x460] sm:$0xff]
    %v206 = vld [vmem:[%s1 + $0x468] sm:$0xff]
    %v207 = vld [vmem:[%s1 + $0x470] sm:$0xff]
    %v208 = vld [vmem:[%s1 + $0x478] sm:$0xff]
    %v209 = vld [vmem:[%s1 + $0x480] sm:$0xff]
    %v210 = vld [vmem:[%s1 + $0x488] sm:$0xff]
    %v211 = vld [vmem:[%s1 + $0x490] sm:$0xff]
    %v212 = vld [vmem:[%s1 + $0x498] sm:$0xff]
    %v213 = vld [vmem:[%s1 + $0x4a0] sm:$0xff]
    %v214 = vld [vmem:[%s1 + $0x4a8] sm:$0xff]
    %v215 = vld [vmem:[%s1 + $0x4b0] sm:$0xff]
    %v216 = vld [vmem:[%s1 + $0x4b8] sm:$0xff]
    %v217 = vld [vmem:[%s1 + $0x4c0] sm:$0xff]
    %v218 = vld [vmem:[%s1 + $0x4c8] sm:$0xff]
    %v219 = vld [vmem:[%s1 + $0x4d0] sm:$0xff]
    %v220 = vld [vmem:[%s1 + $0x4d8] sm:$0xff]
    %v221 = vld [vmem:[%s1 + $0x4e0] sm:$0xff]
    %v222 = vld [vmem:[%s1 + $0x4e8] sm:$0xff]
    %v223 = vld [vmem:[%s1 + $0x4f0] sm:$0xff]
    %v224 = vld [vmem:[%s1 + $0x4f8] sm:$0xff]
    %v225 = vld [vmem:[%s1 + $0x500] sm:$0xff]
    %v226 = vld [vmem:[%s1 + $0x508] sm:$0xff]
    %v227 = vld [vmem:[%s1 + $0x510] sm:$0xff]
    %v228 = vld [vmem:[%s1 + $0x518] sm:$0xff]
    %v229 = vld [vmem:[%s1 + $0x520] sm:$0xff]
    %v230 = vld [vmem:[%s1 + $0x528] sm:$0xff]
    %v231 = vld [vmem:[%s1 + $0x530] sm:$0xff]
    %v232 = vld [vmem:[%s1 + $0x538] sm:$0xff]
    %v233 = vld [vmem:[%s1 + $0x540] sm:$0xff]
    %v234 = vld [vmem:[%s1 + $0x548] sm:$0xff]
    %v235 = vld [vmem:[%s1 + $0x550] sm:$0xff]
    %v236 = vld [vmem:[%s1 + $0x558] sm:$0xff]
    %v237 = vld [vmem:[%s1 + $0x560] sm:$0xff]
    %v238 = vld [vmem:[%s1 + $0x568] sm:$0xff]
    %v239 = vld [vmem:[%s1 + $0x570] sm:$0xff]
    %v240 = vld [vmem:[%s1 + $0x578] sm:$0xff]
    %v241 = vld [vmem:[%s1 + $0x580] sm:$0xff]
    %v242 = vld [vmem:[%s1 + $0x588] sm:$0xff]
    %v243 = vld [vmem:[%s1 + $0x590] sm:$0xff]
    %v244 = vld [vmem:[%s1 + $0x598] sm:$0xff]
    %v245 = vld [vmem:[%s1 + $0x5a0] sm:$0xff]
    %v246 = vld [vmem:[%s1 + $0x5a8] sm:$0xff]
    %v247 = vld [vmem:[%s1 + $0x5b0] sm:$0xff]
    %v248 = vld [vmem:[%s1 + $0x5b8] sm:$0xff]
    %v249 = vld [vmem:[%s1 + $0x5c0] sm:$0xff]
    %v250 = vld [vmem:[%s1 + $0x5c8] sm:$0xff]
    %v251 = vld [vmem:[%s1 + $0x5d0] sm:$0xff]
    %v252 = vld [vmem:[%s1 + $0x5d8] sm:$0xff]
    %v253 = vld [vmem:[%s1 + $0x5e0] sm:$0xff]
    %v254 = vld [vmem:[%s1 + $0x5e8] sm:$0xff]
    %v255 = vld [vmem:[%s1 + $0x5f0] sm:$0xff]
    %v256 = vld [vmem:[%s1 + $0x5f8] sm:$0xff]
    %v257 = vld [vmem:[%s1 + $0x600] sm:$0xff]
    %v258 = vld [vmem:[%s1 + $0x608] sm:$0xff]
    %v259 = vld [vmem:[%s1 + $0x610] sm:$0xff]
    %v260 = vld [vmem:[%s1 + $0x618] sm:$0xff]
    %v261 = vld [vmem:[%s1 + $0x620] sm:$0xff]
    %v262 = vld [vmem:[%s1 + $0x628] sm:$0xff]
    %v263 = vld [vmem:[%s1 + $0x630] sm:$0xff]
    %v264 = vld [vmem:[%s1 + $0x638] sm:$0xff]
    %v265 = vld [vmem:[%s1 + $0x640] sm:$0xff]
    %v266 = vld [vmem:[%s1 + $0x648] sm:$0xff]
    %v267 = vld [vmem:[%s1 + $0x650] sm:$0xff]
    %v268 = vld [vmem:[%s1 + $0x658] sm:$0xff]
    %v269 = vld [vmem:[%s1 + $0x660] sm:$0xff]
    %v270 = vld [vmem:[%s1 + $0x668] sm:$0xff]
    %v271 = vld [vmem:[%s1 + $0x670] sm:$0xff]
    %v272 = vld [vmem:[%s1 + $0x678] sm:$0xff]
    %v273 = vld [vmem:[%s1 + $0x680] sm:$0xff]
    %v274 = vld [vmem:[%s1 + $0x688] sm:$0xff]
    %v275 = vld [vmem:[%s1 + $0x690] sm:$0xff]
    %v276 = vld [vmem:[%s1 + $0x698] sm:$0xff]
    %v277 = vld [vmem:[%s1 + $0x6a0] sm:$0xff]
    %v278 = vld [vmem:[%s1 + $0x6a8] sm:$0xff]
    %v279 = vld [vmem:[%s1 + $0x6b0] sm:$0xff]
    %v280 = vld [vmem:[%s1 + $0x6b8] sm:$0xff]
    %v281 = vld [vmem:[%s1 + $0x6c0] sm:$0xff]
    %v282 = vld [vmem:[%s1 + $0x6c8] sm:$0xff]
    %v283 = vld [vmem:[%s1 + $0x6d0] sm:$0xff]
    %v284 = vld [vmem:[%s1 + $0x6d8] sm:$0xff]
    %v285 = vld [vmem:[%s1 + $0x6e0] sm:$0xff]
    %v286 = vld [vmem:[%s1 + $0x6e8] sm:$0xff]
    %v287 = vld [vmem:[%s1 + $0x6f0] sm:$0xff]
    %v288 = vld [vmem:[%s1 + $0x6f8] sm:$0xff]
    %v289 = vld [vmem:[%s1 + $0x700] sm:$0xff]
    %v290 = vld [vmem:[%s1 + $0x708] sm:$0xff]
    %v291 = vld [vmem:[%s1 + $0x710] sm:$0xff]
    %v292 = vld [vmem:[%s1 + $0x718] sm:$0xff]
    %v293 = vld [vmem:[%s1 + $0x720] sm:$0xff]
    %v294 = vld [vmem:[%s1 + $0x728] sm:$0xff]
    %v295 = vld [vmem:[%s1 + $0x730] sm:$0xff]
    %v296 = vld [vmem:[%s1 + $0x738] sm:$0xff]
    %v297 = vld [vmem:[%s1 + $0x740] sm:$0xff]
    %v298 = vld [vmem:[%s1 + $0x748] sm:$0xff]
    %v299 = vld [vmem:[%s1 + $0x750] sm:$0xff]
    %v300 = vld [vmem:[%s1 + $0x758] sm:$0xff]
    %v301 = vld [vmem:[%s1 + $0x760] sm:$0xff]
    %v302 = vld [vmem:[%s1 + $0x768] sm:$0xff]
    %v303 = vld [vmem:[%s1 + $0x770] sm:$0xff]
    %v304 = vld [vmem:[%s1 + $0x778] sm:$0xff]
    %v305 = vld [vmem:[%s1 + $0x780] sm:$0xff]
    %v306 = vld [vmem:[%s1 + $0x788] sm:$0xff]
    %v307 = vld [vmem:[%s1 + $0x790] sm:$0xff]
    %v308 = vld [vmem:[%s1 + $0x798] sm:$0xff]
    %v309 = vld [vmem:[%s1 + $0x7a0] sm:$0xff]
    %v310 = vld [vmem:[%s1 + $0x7a8] sm:$0xff]
    %v311 = vld [vmem:[%s1 + $0x7b0] sm:$0xff]
    %v312 = vld [vmem:[%s1 + $0x7b8] sm:$0xff]
    %v313 = vld [vmem:[%s1 + $0x7c0] sm:$0xff]
    %v314 = vld [vmem:[%s1 + $0x7c8] sm:$0xff]
    %v315 = vld [vmem:[%s1 + $0x7d0] sm:$0xff]
    %v316 = vld [vmem:[%s1 + $0x7d8] sm:$0xff]
    %v317 = vld [vmem:[%s1 + $0x7e0] sm:$0xff]
    %v318 = vld [vmem:[%s1 + $0x7e8] sm:$0xff]
    %v319 = vld [vmem:[%s1 + $0x7f0] sm:$0xff]
    %v320 = vld [vmem:[%s1 + $0x7f8] sm:$0xff]
    %v321 = vld [vmem:[%s1 + $0x800] sm:$0xff]
    %v322 = vld [vmem:[%s1 + $0x808] sm:$0xff]
    %v323 = vld [vmem:[%s1 + $0x810] sm:$0xff]
    %v324 = vld [vmem:[%s1 + $0x818] sm:$0xff]
    %v325 = vld [vmem:[%s1 + $0x820] sm:$0xff]
    %v326 = vld [vmem:[%s1 + $0x828] sm:$0xff]
    %v327 = vld [vmem:[%s1 + $0x830] sm:$0xff]
    %v328 = vld [vmem:[%s1 + $0x838] sm:$0xff]
    %v329 = vld [vmem:[%s1 + $0x840] sm:$0xff]
    %v330 = vld [vmem:[%s1 + $0x848] sm:$0xff]
    %v331 = vld [vmem:[%s1 + $0x850] sm:$0xff]
    %v332 = vld [vmem:[%s1 + $0x858] sm:$0xff]
    %v333 = vld [vmem:[%s1 + $0x860] sm:$0xff]
    %v334 = vld [vmem:[%s1 + $0x868] sm:$0xff]
    %v335 = vld [vmem:[%s1 + $0x870] sm:$0xff]
    %v336 = vld [vmem:[%s1 + $0x878] sm:$0xff]
    %v337 = vld [vmem:[%s1 + $0x880] sm:$0xff]
    %v338 = vld [vmem:[%s1 + $0x888] sm:$0xff]
    %v339 = vld [vmem:[%s1 + $0x890] sm:$0xff]
    %v340 = vld [vmem:[%s1 + $0x898] sm:$0xff]
    %v341 = vld [vmem:[%s1 + $0x8a0] sm:$0xff]
    %v342 = vld [vmem:[%s1 + $0x8a8] sm:$0xff]
    %v343 = vld [vmem:[%s1 + $0x8b0] sm:$0xff]
    %v344 = vld [vmem:[%s1 + $0x8b8] sm:$0xff]
    %v345 = vld [vmem:[%s1 + $0x8c0] sm:$0xff]
    %v346 = vld [vmem:[%s1 + $0x8c8] sm:$0xff]
    %v347 = vld [vmem:[%s1 + $0x8d0] sm:$0xff]
    %v348 = vld [vmem:[%s1 + $0x8d8] sm:$0xff]
    %v349 = vld [vmem:[%s1 + $0x8e0] sm:$0xff]
    %v350 = vld [vmem:[%s1 + $0x8e8] sm:$0xff]
    %v351 = vld [vmem:[%s1 + $0x8f0] sm:$0xff]
    %v352 = vld [vmem:[%s1 + $0x8f8] sm:$0xff]
    %v353 = vld [vmem:[%s1 + $0x900] sm:$0xff]
    %v354 = vld [vmem:[%s1 + $0x908] sm:$0xff]
    %v355 = vld [vmem:[%s1 + $0x910] sm:$0xff]
    %v356 = vld [vmem:[%s1 + $0x918] sm:$0xff]
    %v357 = vld [vmem:[%s1 + $0x920] sm:$0xff]
    %v358 = vld [vmem:[%s1 + $0x928] sm:$0xff]
    %v359 = vld [vmem:[%s1 + $0x930] sm:$0xff]
    %v360 = vld [vmem:[%s1 + $0x938] sm:$0xff]
    %v361 = vld [vmem:[%s1 + $0x940] sm:$0xff]
    %v362 = vld [vmem:[%s1 + $0x948] sm:$0xff]
    %v363 = vld [vmem:[%s1 + $0x950] sm:$0xff]
    %v364 = vld [vmem:[%s1 + $0x958] sm:$0xff]
    %v365 = vld [vmem:[%s1 + $0x960] sm:$0xff]
    %v366 = vld [vmem:[%s1 + $0x968] sm:$0xff]
    %v367 = vld [vmem:[%s1 + $0x970] sm:$0xff]
    %v368 = vld [vmem:[%s1 + $0x978] sm:$0xff]
    %v369 = vld [vmem:[%s1 + $0x980] sm:$0xff]
    %v370 = vld [vmem:[%s1 + $0x988] sm:$0xff]
    %v371 = vld [vmem:[%s1 + $0x990] sm:$0xff]
    %v372 = vld [vmem:[%s1 + $0x998] sm:$0xff]
    %v373 = vld [vmem:[%s1 + $0x9a0] sm:$0xff]
    %v374 = vld [vmem:[%s1 + $0x9a8] sm:$0xff]
    %v375 = vld [vmem:[%s1 + $0x9b0] sm:$0xff]
    %v376 = vld [vmem:[%s1 + $0x9b8] sm:$0xff]
    %v377 = vld [vmem:[%s1 + $0x9c0] sm:$0xff]
    %v378 = vld [vmem:[%s1 + $0x9c8] sm:$0xff]
    %v379 = vld [vmem:[%s1 + $0x9d0] sm:$0xff]
    %v380 = vld [vmem:[%s1 + $0x9d8] sm:$0xff]
    %v381 = vld [vmem:[%s1 + $0x9e0] sm:$0xff]
    %v382 = vld [vmem:[%s1 + $0x9e8] sm:$0xff]
    %v383 = vld [vmem:[%s1 + $0x9f0] sm:$0xff]
    %v384 = vld [vmem:[%s1 + $0x9f8] sm:$0xff]
    %v385 = vld [vmem:[%s1 + $0xa00] sm:$0xff]
    %v386 = vld [vmem:[%s1 + $0xa08] sm:$0xff]
    %v387 = vld [vmem:[%s1 + $0xa10] sm:$0xff]
    %v388 = vld [vmem:[%s1 + $0xa18] sm:$0xff]
    %v389 = vld [vmem:[%s1 + $0xa20] sm:$0xff]
    %v390 = vld [vmem:[%s1 + $0xa28] sm:$0xff]
    %v391 = vld [vmem:[%s1 + $0xa30] sm:$0xff]
    %v392 = vld [vmem:[%s1 + $0xa38] sm:$0xff]
    %v393 = vld [vmem:[%s1 + $0xa40] sm:$0xff]
    %v394 = vld [vmem:[%s1 + $0xa48] sm:$0xff]
    %v395 = vld [vmem:[%s1 + $0xa50] sm:$0xff]
    %v396 = vld [vmem:[%s1 + $0xa58] sm:$0xff]
    %v397 = vld [vmem:[%s1 + $0xa60] sm:$0xff]
    %v398 = vld [vmem:[%s1 + $0xa68] sm:$0xff]
    %v399 = vld [vmem:[%s1 + $0xa70] sm:$0xff]
    %v400 = vld [vmem:[%s1 + $0xa78] sm:$0xff]
    %v401 = vld [vmem:[%s1 + $0xa80] sm:$0xff]
    %v402 = vld [vmem:[%s1 + $0xa88] sm:$0xff]
    %v403 = vld [vmem:[%s1 + $0xa90] sm:$0xff]
    %v404 = vld [vmem:[%s1 + $0xa98] sm:$0xff]
    %v405 = vld [vmem:[%s1 + $0xaa0] sm:$0xff]
    %v406 = vld [vmem:[%s1 + $0xaa8] sm:$0xff]
    %v407 = vld [vmem:[%s1 + $0xab0] sm:$0xff]
    %v408 = vld [vmem:[%s1 + $0xab8] sm:$0xff]
    %v409 = vld [vmem:[%s1 + $0xac0] sm:$0xff]
    %v410 = vld [vmem:[%s1 + $0xac8] sm:$0xff]
    %v411 = vld [vmem:[%s1 + $0xad0] sm:$0xff]
    %v412 = vld [vmem:[%s1 + $0xad8] sm:$0xff]
    %v413 = vld [vmem:[%s1 + $0xae0] sm:$0xff]
    %v414 = vld [vmem:[%s1 + $0xae8] sm:$0xff]
    %v415 = vld [vmem:[%s1 + $0xaf0] sm:$0xff]
    %v416 = vld [vmem:[%s1 + $0xaf8] sm:$0xff]
    %v417 = vld [vmem:[%s1 + $0xb00] sm:$0xff]
    %v418 = vld [vmem:[%s1 + $0xb08] sm:$0xff]
    %v419 = vld [vmem:[%s1 + $0xb10] sm:$0xff]
    %v420 = vld [vmem:[%s1 + $0xb18] sm:$0xff]
    %v421 = vld [vmem:[%s1 + $0xb20] sm:$0xff]
    %v422 = vld [vmem:[%s1 + $0xb28] sm:$0xff]
    %v423 = vld [vmem:[%s1 + $0xb30] sm:$0xff]
    %v424 = vld [vmem:[%s1 + $0xb38] sm:$0xff]
    %v425 = vld [vmem:[%s1 + $0xb40] sm:$0xff]
    %v426 = vld [vmem:[%s1 + $0xb48] sm:$0xff]
    %v427 = vld [vmem:[%s1 + $0xb50] sm:$0xff]
    %v428 = vld [vmem:[%s1 + $0xb58] sm:$0xff]
    %v429 = vld [vmem:[%s1 + $0xb60] sm:$0xff]
    %v430 = vld [vmem:[%s1 + $0xb68] sm:$0xff]
    %v431 = vld [vmem:[%s1 + $0xb70] sm:$0xff]
    %v432 = vld [vmem:[%s1 + $0xb78] sm:$0xff]
    %v433 = vld [vmem:[%s1 + $0xb80] sm:$0xff]
    %v434 = vld [vmem:[%s1 + $0xb88] sm:$0xff]
    %v435 = vld [vmem:[%s1 + $0xb90] sm:$0xff]
    %v436 = vld [vmem:[%s1 + $0xb98] sm:$0xff]
    %v437 = vld [vmem:[%s1 + $0xba0] sm:$0xff]
    %v438 = vld [vmem:[%s1 + $0xba8] sm:$0xff]
    %v439 = vld [vmem:[%s1 + $0xbb0] sm:$0xff]
    %v440 = vld [vmem:[%s1 + $0xbb8] sm:$0xff]
    %v441 = vld [vmem:[%s1 + $0xbc0] sm:$0xff]
    %v442 = vld [vmem:[%s1 + $0xbc8] sm:$0xff]
    %v443 = vld [vmem:[%s1 + $0xbd0] sm:$0xff]
    %v444 = vld [vmem:[%s1 + $0xbd8] sm:$0xff]
    %v445 = vld [vmem:[%s1 + $0xbe0] sm:$0xff]
    %v446 = vld [vmem:[%s1 + $0xbe8] sm:$0xff]
    %v447 = vld [vmem:[%s1 + $0xbf0] sm:$0xff]
    %v448 = vld [vmem:[%s1 + $0xbf8] sm:$0xff]
    %v449 = vld [vmem:[%s1 + $0xc00] sm:$0xff]
    %v450 = vld [vmem:[%s1 + $0xc08] sm:$0xff]
    %v451 = vld [vmem:[%s1 + $0xc10] sm:$0xff]
    %v452 = vld [vmem:[%s1 + $0xc18] sm:$0xff]
    %v453 = vld [vmem:[%s1 + $0xc20] sm:$0xff]
    %v454 = vld [vmem:[%s1 + $0xc28] sm:$0xff]
    %v455 = vld [vmem:[%s1 + $0xc30] sm:$0xff]
    %v456 = vld [vmem:[%s1 + $0xc38] sm:$0xff]
    %v457 = vld [vmem:[%s1 + $0xc40] sm:$0xff]
    %v458 = vld [vmem:[%s1 + $0xc48] sm:$0xff]
    %v459 = vld [vmem:[%s1 + $0xc50] sm:$0xff]
    %v460 = vld [vmem:[%s1 + $0xc58] sm:$0xff]
    %v461 = vld [vmem:[%s1 + $0xc60] sm:$0xff]
    %v462 = vld [vmem:[%s1 + $0xc68] sm:$0xff]
    %v463 = vld [vmem:[%s1 + $0xc70] sm:$0xff]
    %v464 = vld [vmem:[%s1 + $0xc78] sm:$0xff]
    %v465 = vld [vmem:[%s1 + $0xc80] sm:$0xff]
    %v466 = vld [vmem:[%s1 + $0xc88] sm:$0xff]
    %v467 = vld [vmem:[%s1 + $0xc90] sm:$0xff]
    %v468 = vld [vmem:[%s1 + $0xc98] sm:$0xff]
    %v469 = vld [vmem:[%s1 + $0xca0] sm:$0xff]
    %v470 = vld [vmem:[%s1 + $0xca8] sm:$0xff]
    %v471 = vld [vmem:[%s1 + $0xcb0] sm:$0xff]
    %v472 = vld [vmem:[%s1 + $0xcb8] sm:$0xff]
    %v473 = vld [vmem:[%s1 + $0xcc0] sm:$0xff]
    %v474 = vld [vmem:[%s1 + $0xcc8] sm:$0xff]
    %v475 = vld [vmem:[%s1 + $0xcd0] sm:$0xff]
    %v476 = vld [vmem:[%s1 + $0xcd8] sm:$0xff]
    %v477 = vld [vmem:[%s1 + $0xce0] sm:$0xff]
    %v478 = vld [vmem:[%s1 + $0xce8] sm:$0xff]
    %v479 = vld [vmem:[%s1 + $0xcf0] sm:$0xff]
    %v480 = vld [vmem:[%s1 + $0xcf8] sm:$0xff]
    %v481 = vld [vmem:[%s1 + $0xd00] sm:$0xff]
    %v482 = vld [vmem:[%s1 + $0xd08] sm:$0xff]
    %v483 = vld [vmem:[%s1 + $0xd10] sm:$0xff]
    %v484 = vld [vmem:[%s1 + $0xd18] sm:$0xff]
    %v485 = vld [vmem:[%s1 + $0xd20] sm:$0xff]
    %v486 = vld [vmem:[%s1 + $0xd28] sm:$0xff]
    %v487 = vld [vmem:[%s1 + $0xd30] sm:$0xff]
    %v488 = vld [vmem:[%s1 + $0xd38] sm:$0xff]
    %v489 = vld [vmem:[%s1 + $0xd40] sm:$0xff]
    %v490 = vld [vmem:[%s1 + $0xd48] sm:$0xff]
    %v491 = vld [vmem:[%s1 + $0xd50] sm:$0xff]
    %v492 = vld [vmem:[%s1 + $0xd58] sm:$0xff]
    %v493 = vld [vmem:[%s1 + $0xd60] sm:$0xff]
    %v494 = vld [vmem:[%s1 + $0xd68] sm:$0xff]
    %v495 = vld [vmem:[%s1 + $0xd70] sm:$0xff]
    %v496 = vld [vmem:[%s1 + $0xd78] sm:$0xff]
    %v497 = vld [vmem:[%s1 + $0xd80] sm:$0xff]
    %v498 = vld [vmem:[%s1 + $0xd88] sm:$0xff]
    %v499 = vld [vmem:[%s1 + $0xd90] sm:$0xff]
    %v500 = vld [vmem:[%s1 + $0xd98] sm:$0xff]
    %v501 = vld [vmem:[%s1 + $0xda0] sm:$0xff]
    %v502 = vld [vmem:[%s1 + $0xda8] sm:$0xff]
    %v503 = vld [vmem:[%s1 + $0xdb0] sm:$0xff]
    %v504 = vld [vmem:[%s1 + $0xdb8] sm:$0xff]
    %v505 = vld [vmem:[%s1 + $0xdc0] sm:$0xff]
    %v506 = vld [vmem:[%s1 + $0xdc8] sm:$0xff]
    %v507 = vld [vmem:[%s1 + $0xdd0] sm:$0xff]
    %v508 = vld [vmem:[%s1 + $0xdd8] sm:$0xff]
    %v509 = vld [vmem:[%s1 + $0xde0] sm:$0xff]
    %v510 = vld [vmem:[%s1 + $0xde8] sm:$0xff]
    %v511 = vld [vmem:[%s1 + $0xdf0] sm:$0xff]
    %v512 = vld [vmem:[%s1 + $0xdf8] sm:$0xff]
    %v513 = vld [vmem:[%s1 + $0xe00] sm:$0xff]
    %v514 = vld [vmem:[%s1 + $0xe08] sm:$0xff]
    %v515 = vld [vmem:[%s1 + $0xe10] sm:$0xff]
    %v516 = vld [vmem:[%s1 + $0xe18] sm:$0xff]
    %v517 = vld [vmem:[%s1 + $0xe20] sm:$0xff]
    %v518 = vld [vmem:[%s1 + $0xe28] sm:$0xff]
    %v519 = vld [vmem:[%s1 + $0xe30] sm:$0xff]
    %v520 = vld [vmem:[%s1 + $0xe38] sm:$0xff]
    %v521 = vld [vmem:[%s1 + $0xe40] sm:$0xff]
    %v522 = vld [vmem:[%s1 + $0xe48] sm:$0xff]
    %v523 = vld [vmem:[%s1 + $0xe50] sm:$0xff]
    %v524 = vld [vmem:[%s1 + $0xe58] sm:$0xff]
    %v525 = vld [vmem:[%s1 + $0xe60] sm:$0xff]
    %v526 = vld [vmem:[%s1 + $0xe68] sm:$0xff]
    %v527 = vld [vmem:[%s1 + $0xe70] sm:$0xff]
    %v528 = vld [vmem:[%s1 + $0xe78] sm:$0xff]
    %v529 = vld [vmem:[%s1 + $0xe80] sm:$0xff]
    %v530 = vld [vmem:[%s1 + $0xe88] sm:$0xff]
    %v531 = vld [vmem:[%s1 + $0xe90] sm:$0xff]
    %v532 = vld [vmem:[%s1 + $0xe98] sm:$0xff]
    %v533 = vld [vmem:[%s1 + $0xea0] sm:$0xff]
    %v534 = vld [vmem:[%s1 + $0xea8] sm:$0xff]
    %v535 = vld [vmem:[%s1 + $0xeb0] sm:$0xff]
    %v536 = vld [vmem:[%s1 + $0xeb8] sm:$0xff]
    %v537 = vld [vmem:[%s1 + $0xec0] sm:$0xff]
    %v538 = vld [vmem:[%s1 + $0xec8] sm:$0xff]
    %v539 = vld [vmem:[%s1 + $0xed0] sm:$0xff]
    %v540 = vld [vmem:[%s1 + $0xed8] sm:$0xff]
    %v541 = vld [vmem:[%s1 + $0xee0] sm:$0xff]
    %v542 = vld [vmem:[%s1 + $0xee8] sm:$0xff]
    %v543 = vld [vmem:[%s1 + $0xef0] sm:$0xff]
    %v544 = vld [vmem:[%s1 + $0xef8] sm:$0xff]
    %v545 = vld [vmem:[%s1 + $0xf00] sm:$0xff]
    %v546 = vld [vmem:[%s1 + $0xf08] sm:$0xff]
    %v547 = vld [vmem:[%s1 + $0xf10] sm:$0xff]
    %v548 = vld [vmem:[%s1 + $0xf18] sm:$0xff]
    %v549 = vld [vmem:[%s1 + $0xf20] sm:$0xff]
    %v550 = vld [vmem:[%s1 + $0xf28] sm:$0xff]
    %v551 = vld [vmem:[%s1 + $0xf30] sm:$0xff]
    %v552 = vld [vmem:[%s1 + $0xf38] sm:$0xff]
    %v553 = vld [vmem:[%s1 + $0xf40] sm:$0xff]
    %v554 = vld [vmem:[%s1 + $0xf48] sm:$0xff]
    %v555 = vld [vmem:[%s1 + $0xf50] sm:$0xff]
    %v556 = vld [vmem:[%s1 + $0xf58] sm:$0xff]
    %v557 = vld [vmem:[%s1 + $0xf60] sm:$0xff]
    %v558 = vld [vmem:[%s1 + $0xf68] sm:$0xff]
    %v559 = vld [vmem:[%s1 + $0xf70] sm:$0xff]
    %v560 = vld [vmem:[%s1 + $0xf78] sm:$0xff]
    %v561 = vld [vmem:[%s1 + $0xf80] sm:$0xff]
    %v562 = vld [vmem:[%s1 + $0xf88] sm:$0xff]
    %v563 = vld [vmem:[%s1 + $0xf90] sm:$0xff]
    %v564 = vld [vmem:[%s1 + $0xf98] sm:$0xff]
    %v565 = vld [vmem:[%s1 + $0xfa0] sm:$0xff]
    %v566 = vld [vmem:[%s1 + $0xfa8] sm:$0xff]
    %v567 = vld [vmem:[%s1 + $0xfb0] sm:$0xff]
    %v568 = vld [vmem:[%s1 + $0xfb8] sm:$0xff]
    %v569 = vld [vmem:[%s1 + $0xfc0] sm:$0xff]
    %v570 = vld [vmem:[%s1 + $0xfc8] sm:$0xff]
    %v571 = vld [vmem:[%s1 + $0xfd0] sm:$0xff]
    %v572 = vld [vmem:[%s1 + $0xfd8] sm:$0xff]
    %v573 = vld [vmem:[%s1 + $0xfe0] sm:$0xff]
    %v574 = vld [vmem:[%s1 + $0xfe8] sm:$0xff]
    %v575 = vld [vmem:[%s1 + $0xff0] sm:$0xff]
    %v576 = vld [vmem:[%s1 + $0xff8] sm:$0xff]
    %v577 = vld [vmem:[%s1 + $0x1000] sm:$0xff]
    %v578 = vld [vmem:[%s1 + $0x1008] sm:$0xff]
    %v579 = vld [vmem:[%s1 + $0x1010] sm:$0xff]
    %v580 = vld [vmem:[%s1 + $0x1018] sm:$0xff]
    %v581 = vld [vmem:[%s1 + $0x1020] sm:$0xff]
    %v582 = vld [vmem:[%s1 + $0x1028] sm:$0xff]
    %v583 = vld [vmem:[%s1 + $0x1030] sm:$0xff]
    %v584 = vld [vmem:[%s1 + $0x1038] sm:$0xff]
    %v585 = vld [vmem:[%s1 + $0x1040] sm:$0xff]
    %v586 = vld [vmem:[%s1 + $0x1048] sm:$0xff]
    %v587 = vld [vmem:[%s1 + $0x1050] sm:$0xff]
    %v588 = vld [vmem:[%s1 + $0x1058] sm:$0xff]
    %v589 = vld [vmem:[%s1 + $0x1060] sm:$0xff]
    %v590 = vld [vmem:[%s1 + $0x1068] sm:$0xff]
    %v591 = vld [vmem:[%s1 + $0x1070] sm:$0xff]
    %v592 = vld [vmem:[%s1 + $0x1078] sm:$0xff]
    %v593 = vld [vmem:[%s1 + $0x1080] sm:$0xff]
    %v594 = vld [vmem:[%s1 + $0x1088] sm:$0xff]
    %v595 = vld [vmem:[%s1 + $0x1090] sm:$0xff]
    %v596 = vld [vmem:[%s1 + $0x1098] sm:$0xff]
    %v597 = vld [vmem:[%s1 + $0x10a0] sm:$0xff]
    %v598 = vld [vmem:[%s1 + $0x10a8] sm:$0xff]
    %v599 = vld [vmem:[%s1 + $0x10b0] sm:$0xff]
    %v600 = vld [vmem:[%s1 + $0x10b8] sm:$0xff]
    %v601 = vld [vmem:[%s1 + $0x10c0] sm:$0xff]
    %v602 = vld [vmem:[%s1 + $0x10c8] sm:$0xff]
    %v603 = vld [vmem:[%s1 + $0x10d0] sm:$0xff]
    %v604 = vld [vmem:[%s1 + $0x10d8] sm:$0xff]
    %v605 = vld [vmem:[%s1 + $0x10e0] sm:$0xff]
    %v606 = vld [vmem:[%s1 + $0x10e8] sm:$0xff]
    %v607 = vld [vmem:[%s1 + $0x10f0] sm:$0xff]
    %v608 = vld [vmem:[%s1 + $0x10f8] sm:$0xff]
    %v609 = vld [vmem:[%s1 + $0x1100] sm:$0xff]
    %v610 = vld [vmem:[%s1 + $0x1108] sm:$0xff]
    %v611 = vld [vmem:[%s1 + $0x1110] sm:$0xff]
    %v612 = vld [vmem:[%s1 + $0x1118] sm:$0xff]
    %v613 = vld [vmem:[%s1 + $0x1120] sm:$0xff]
    %v614 = vld [vmem:[%s1 + $0x1128] sm:$0xff]
    %v615 = vld [vmem:[%s1 + $0x1130] sm:$0xff]
    %v616 = vld [vmem:[%s1 + $0x1138] sm:$0xff]
    %v617 = vld [vmem:[%s1 + $0x1140] sm:$0xff]
    %v618 = vld [vmem:[%s1 + $0x1148] sm:$0xff]
    %v619 = vld [vmem:[%s1 + $0x1150] sm:$0xff]
    %v620 = vld [vmem:[%s1 + $0x1158] sm:$0xff]
    %v621 = vld [vmem:[%s1 + $0x1160] sm:$0xff]
    %v622 = vld [vmem:[%s1 + $0x1168] sm:$0xff]
    %v623 = vld [vmem:[%s1 + $0x1170] sm:$0xff]
    %v624 = vld [vmem:[%s1 + $0x1178] sm:$0xff]
    %v625 = vld [vmem:[%s1 + $0x1180] sm:$0xff]
    %v626 = vld [vmem:[%s1 + $0x1188] sm:$0xff]
    %v627 = vld [vmem:[%s1 + $0x1190] sm:$0xff]
    %v628 = vld [vmem:[%s1 + $0x1198] sm:$0xff]
    %v629 = vld [vmem:[%s1 + $0x11a0] sm:$0xff]
    %v630 = vld [vmem:[%s1 + $0x11a8] sm:$0xff]
    %v631 = vld [vmem:[%s1 + $0x11b0] sm:$0xff]
    %v632 = vld [vmem:[%s1 + $0x11b8] sm:$0xff]
    %v633 = vld [vmem:[%s1 + $0x11c0] sm:$0xff]
    %v634 = vld [vmem:[%s1 + $0x11c8] sm:$0xff]
    %v635 = vld [vmem:[%s1 + $0x11d0] sm:$0xff]
    %v636 = vld [vmem:[%s1 + $0x11d8] sm:$0xff]
    %v637 = vld [vmem:[%s1 + $0x11e0] sm:$0xff]
    %v638 = vld [vmem:[%s1 + $0x11e8] sm:$0xff]
    %v639 = vld [vmem:[%s1 + $0x11f0] sm:$0xff]
    %v640 = vld [vmem:[%s1 + $0x11f8] sm:$0xff]
    %v677 = vunpack.c.l.b16 %v29
    %v678 = vunpack.c.h.b16 %v29
    %v679 = vunpack.c.l.b16 %v30
    %v680 = vunpack.c.h.b16 %v30
    %v681 = vunpack.c.l.b16 %v31
    %v682 = vunpack.c.h.b16 %v31
    %v683 = vunpack.c.l.b16 %v32
    %v684 = vunpack.c.h.b16 %v32
    %v685 = vunpack.c.l.b16 %v33
    %v686 = vunpack.c.h.b16 %v33
    %v687 = vunpack.c.l.b16 %v34
    %v688 = vunpack.c.h.b16 %v34
    %v689 = vunpack.c.l.b16 %v35
    %v690 = vunpack.c.h.b16 %v35
    %v691 = vunpack.c.l.b16 %v36
    %v692 = vunpack.c.h.b16 %v36
    %v693 = vunpack.c.l.b16 %v37
    %v694 = vunpack.c.h.b16 %v37
    %v695 = vunpack.c.l.b16 %v38
    %v696 = vunpack.c.h.b16 %v38
    %v697 = vunpack.c.l.b16 %v39
    %v698 = vunpack.c.h.b16 %v39
    %v699 = vunpack.c.l.b16 %v40
    %v700 = vunpack.c.h.b16 %v40
    %v701 = vunpack.c.l.b16 %v41
    %v702 = vunpack.c.h.b16 %v41
    %v703 = vunpack.c.l.b16 %v42
    %v704 = vunpack.c.h.b16 %v42
    %v705 = vunpack.c.l.b16 %v43
    %v706 = vunpack.c.h.b16 %v43
    %v707 = vunpack.c.l.b16 %v44
    %v708 = vunpack.c.h.b16 %v44
    %v709 = vunpack.c.l.b16 %v45
    %v710 = vunpack.c.h.b16 %v45
    %v711 = vunpack.c.l.b16 %v46
    %v712 = vunpack.c.h.b16 %v46
    %v713 = vunpack.c.l.b16 %v47
    %v714 = vunpack.c.h.b16 %v47
    %v715 = vunpack.c.l.b16 %v48
    %v716 = vunpack.c.h.b16 %v48
    %v717 = vunpack.c.l.b16 %v49
    %v718 = vunpack.c.h.b16 %v49
    %v719 = vunpack.c.l.b16 %v50
    %v720 = vunpack.c.h.b16 %v50
    %v721 = vunpack.c.l.b16 %v51
    %v722 = vunpack.c.h.b16 %v51
    %v723 = vunpack.c.l.b16 %v52
    %v724 = vunpack.c.h.b16 %v52
    %v725 = vunpack.c.l.b16 %v53
    %v726 = vunpack.c.h.b16 %v53
    %v727 = vunpack.c.l.b16 %v54
    %v728 = vunpack.c.h.b16 %v54
    %v729 = vunpack.c.l.b16 %v55
    %v730 = vunpack.c.h.b16 %v55
    %v731 = vunpack.c.l.b16 %v56
    %v732 = vunpack.c.h.b16 %v56
    %v733 = vunpack.c.l.b16 %v57
    %v734 = vunpack.c.h.b16 %v57
    %v735 = vunpack.c.l.b16 %v58
    %v736 = vunpack.c.h.b16 %v58
    %v737 = vunpack.c.l.b16 %v59
    %v738 = vunpack.c.h.b16 %v59
    %v739 = vunpack.c.l.b16 %v60
    %v740 = vunpack.c.h.b16 %v60
    %v741 = vunpack.c.l.b16 %v61
    %v742 = vunpack.c.h.b16 %v61
    %v743 = vunpack.c.l.b16 %v62
    %v744 = vunpack.c.h.b16 %v62
    %v745 = vunpack.c.l.b16 %v63
    %v746 = vunpack.c.h.b16 %v63
    %v747 = vunpack.c.l.b16 %v64
    %v748 = vunpack.c.h.b16 %v64
    %v749 = vpack.c.b16 %v695, %v677
    %v750 = vpack.c.b16 %v696, %v678
    %v751 = vpack.c.b16 %v697, %v679
    %v752 = vpack.c.b16 %v698, %v680
    %v753 = vpack.c.b16 %v699, %v681
    %v754 = vpack.c.b16 %v700, %v682
    %v755 = vpack.c.b16 %v701, %v683
    %v756 = vpack.c.b16 %v702, %v684
    %v757 = vpack.c.b16 %v703, %v685
    %v758 = vpack.c.b16 %v704, %v686
    %v759 = vpack.c.b16 %v705, %v687
    %v760 = vpack.c.b16 %v706, %v688
    %v761 = vpack.c.b16 %v707, %v689
    %v762 = vpack.c.b16 %v708, %v690
    %v763 = vpack.c.b16 %v709, %v691
    %v764 = vpack.c.b16 %v710, %v692
    %v765 = vpack.c.b16 %v711, %v693
    %v766 = vpack.c.b16 %v712, %v694
    %v767 = vpack.c.b16 %v731, %v713
    %v768 = vpack.c.b16 %v732, %v714
    %v769 = vpack.c.b16 %v733, %v715
    %v770 = vpack.c.b16 %v734, %v716
    %v771 = vpack.c.b16 %v735, %v717
    %v772 = vpack.c.b16 %v736, %v718
    %v773 = vpack.c.b16 %v737, %v719
    %v774 = vpack.c.b16 %v738, %v720
    %v775 = vpack.c.b16 %v739, %v721
    %v776 = vpack.c.b16 %v740, %v722
    %v777 = vpack.c.b16 %v741, %v723
    %v778 = vpack.c.b16 %v742, %v724
    %v779 = vpack.c.b16 %v743, %v725
    %v780 = vpack.c.b16 %v744, %v726
    %v781 = vpack.c.b16 %v745, %v727
    %v782 = vpack.c.b16 %v746, %v728
    %v783 = vpack.c.b16 %v747, %v729
    %v784 = vpack.c.b16 %v748, %v730
    %v1397 = vunpack.c.l.b16 %v65
    %v1398 = vunpack.c.h.b16 %v65
    %v1399 = vunpack.c.l.b16 %v66
    %v1400 = vunpack.c.h.b16 %v66
    %v1401 = vunpack.c.l.b16 %v67
    %v1402 = vunpack.c.h.b16 %v67
    %v1403 = vunpack.c.l.b16 %v68
    %v1404 = vunpack.c.h.b16 %v68
    %v1405 = vunpack.c.l.b16 %v69
    %v1406 = vunpack.c.h.b16 %v69
    %v1407 = vunpack.c.l.b16 %v70
    %v1408 = vunpack.c.h.b16 %v70
    %v1409 = vunpack.c.l.b16 %v71
    %v1410 = vunpack.c.h.b16 %v71
    %v1411 = vunpack.c.l.b16 %v72
    %v1412 = vunpack.c.h.b16 %v72
    %v1413 = vunpack.c.l.b16 %v73
    %v1414 = vunpack.c.h.b16 %v73
    %v1415 = vunpack.c.l.b16 %v74
    %v1416 = vunpack.c.h.b16 %v74
    %v1417 = vunpack.c.l.b16 %v75
    %v1418 = vunpack.c.h.b16 %v75
    %v1419 = vunpack.c.l.b16 %v76
    %v1420 = vunpack.c.h.b16 %v76
    %v1421 = vunpack.c.l.b16 %v77
    %v1422 = vunpack.c.h.b16 %v77
    %v1423 = vunpack.c.l.b16 %v78
    %v1424 = vunpack.c.h.b16 %v78
    %v1425 = vunpack.c.l.b16 %v79
    %v1426 = vunpack.c.h.b16 %v79
    %v1427 = vunpack.c.l.b16 %v80
    %v1428 = vunpack.c.h.b16 %v80
    %v1429 = vunpack.c.l.b16 %v81
    %v1430 = vunpack.c.h.b16 %v81
    %v1431 = vunpack.c.l.b16 %v82
    %v1432 = vunpack.c.h.b16 %v82
    %v1433 = vunpack.c.l.b16 %v83
    %v1434 = vunpack.c.h.b16 %v83
    %v1435 = vunpack.c.l.b16 %v84
    %v1436 = vunpack.c.h.b16 %v84
    %v1437 = vunpack.c.l.b16 %v85
    %v1438 = vunpack.c.h.b16 %v85
    %v1439 = vunpack.c.l.b16 %v86
    %v1440 = vunpack.c.h.b16 %v86
    %v1441 = vunpack.c.l.b16 %v87
    %v1442 = vunpack.c.h.b16 %v87
    %v1443 = vunpack.c.l.b16 %v88
    %v1444 = vunpack.c.h.b16 %v88
    %v1445 = vunpack.c.l.b16 %v89
    %v1446 = vunpack.c.h.b16 %v89
    %v1447 = vunpack.c.l.b16 %v90
    %v1448 = vunpack.c.h.b16 %v90
    %v1449 = vunpack.c.l.b16 %v91
    %v1450 = vunpack.c.h.b16 %v91
    %v1451 = vunpack.c.l.b16 %v92
    %v1452 = vunpack.c.h.b16 %v92
    %v1453 = vunpack.c.l.b16 %v93
    %v1454 = vunpack.c.h.b16 %v93
    %v1455 = vunpack.c.l.b16 %v94
    %v1456 = vunpack.c.h.b16 %v94
    %v1457 = vunpack.c.l.b16 %v95
    %v1458 = vunpack.c.h.b16 %v95
    %v1459 = vunpack.c.l.b16 %v96
    %v1460 = vunpack.c.h.b16 %v96
    %v1461 = vunpack.c.l.b16 %v97
    %v1462 = vunpack.c.h.b16 %v97
    %v1463 = vunpack.c.l.b16 %v98
    %v1464 = vunpack.c.h.b16 %v98
    %v1465 = vunpack.c.l.b16 %v99
    %v1466 = vunpack.c.h.b16 %v99
    %v1467 = vunpack.c.l.b16 %v100
    %v1468 = vunpack.c.h.b16 %v100
    %v1469 = vunpack.c.l.b16 %v101
    %v1470 = vunpack.c.h.b16 %v101
    %v1471 = vunpack.c.l.b16 %v102
    %v1472 = vunpack.c.h.b16 %v102
    %v1473 = vunpack.c.l.b16 %v103
    %v1474 = vunpack.c.h.b16 %v103
    %v1475 = vunpack.c.l.b16 %v104
    %v1476 = vunpack.c.h.b16 %v104
    %v1477 = vunpack.c.l.b16 %v105
    %v1478 = vunpack.c.h.b16 %v105
    %v1479 = vunpack.c.l.b16 %v106
    %v1480 = vunpack.c.h.b16 %v106
    %v1481 = vunpack.c.l.b16 %v107
    %v1482 = vunpack.c.h.b16 %v107
    %v1483 = vunpack.c.l.b16 %v108
    %v1484 = vunpack.c.h.b16 %v108
    %v1485 = vunpack.c.l.b16 %v109
    %v1486 = vunpack.c.h.b16 %v109
    %v1487 = vunpack.c.l.b16 %v110
    %v1488 = vunpack.c.h.b16 %v110
    %v1489 = vunpack.c.l.b16 %v111
    %v1490 = vunpack.c.h.b16 %v111
    %v1491 = vunpack.c.l.b16 %v112
    %v1492 = vunpack.c.h.b16 %v112
    %v1493 = vunpack.c.l.b16 %v113
    %v1494 = vunpack.c.h.b16 %v113
    %v1495 = vunpack.c.l.b16 %v114
    %v1496 = vunpack.c.h.b16 %v114
    %v1497 = vunpack.c.l.b16 %v115
    %v1498 = vunpack.c.h.b16 %v115
    %v1499 = vunpack.c.l.b16 %v116
    %v1500 = vunpack.c.h.b16 %v116
    %v1501 = vunpack.c.l.b16 %v117
    %v1502 = vunpack.c.h.b16 %v117
    %v1503 = vunpack.c.l.b16 %v118
    %v1504 = vunpack.c.h.b16 %v118
    %v1505 = vunpack.c.l.b16 %v119
    %v1506 = vunpack.c.h.b16 %v119
    %v1507 = vunpack.c.l.b16 %v120
    %v1508 = vunpack.c.h.b16 %v120
    %v1509 = vunpack.c.l.b16 %v121
    %v1510 = vunpack.c.h.b16 %v121
    %v1511 = vunpack.c.l.b16 %v122
    %v1512 = vunpack.c.h.b16 %v122
    %v1513 = vunpack.c.l.b16 %v123
    %v1514 = vunpack.c.h.b16 %v123
    %v1515 = vunpack.c.l.b16 %v124
    %v1516 = vunpack.c.h.b16 %v124
    %v1517 = vunpack.c.l.b16 %v125
    %v1518 = vunpack.c.h.b16 %v125
    %v1519 = vunpack.c.l.b16 %v126
    %v1520 = vunpack.c.h.b16 %v126
    %v1521 = vunpack.c.l.b16 %v127
    %v1522 = vunpack.c.h.b16 %v127
    %v1523 = vunpack.c.l.b16 %v128
    %v1524 = vunpack.c.h.b16 %v128
    %v1525 = vunpack.c.l.b16 %v129
    %v1526 = vunpack.c.h.b16 %v129
    %v1527 = vunpack.c.l.b16 %v130
    %v1528 = vunpack.c.h.b16 %v130
    %v1529 = vunpack.c.l.b16 %v131
    %v1530 = vunpack.c.h.b16 %v131
    %v1531 = vunpack.c.l.b16 %v132
    %v1532 = vunpack.c.h.b16 %v132
    %v1533 = vunpack.c.l.b16 %v133
    %v1534 = vunpack.c.h.b16 %v133
    %v1535 = vunpack.c.l.b16 %v134
    %v1536 = vunpack.c.h.b16 %v134
    %v1537 = vunpack.c.l.b16 %v135
    %v1538 = vunpack.c.h.b16 %v135
    %v1539 = vunpack.c.l.b16 %v136
    %v1540 = vunpack.c.h.b16 %v136
    %v1541 = vunpack.c.l.b16 %v137
    %v1542 = vunpack.c.h.b16 %v137
    %v1543 = vunpack.c.l.b16 %v138
    %v1544 = vunpack.c.h.b16 %v138
    %v1545 = vunpack.c.l.b16 %v139
    %v1546 = vunpack.c.h.b16 %v139
    %v1547 = vunpack.c.l.b16 %v140
    %v1548 = vunpack.c.h.b16 %v140
    %v1549 = vunpack.c.l.b16 %v141
    %v1550 = vunpack.c.h.b16 %v141
    %v1551 = vunpack.c.l.b16 %v142
    %v1552 = vunpack.c.h.b16 %v142
    %v1553 = vunpack.c.l.b16 %v143
    %v1554 = vunpack.c.h.b16 %v143
    %v1555 = vunpack.c.l.b16 %v144
    %v1556 = vunpack.c.h.b16 %v144
    %v1557 = vunpack.c.l.b16 %v145
    %v1558 = vunpack.c.h.b16 %v145
    %v1559 = vunpack.c.l.b16 %v146
    %v1560 = vunpack.c.h.b16 %v146
    %v1561 = vunpack.c.l.b16 %v147
    %v1562 = vunpack.c.h.b16 %v147
    %v1563 = vunpack.c.l.b16 %v148
    %v1564 = vunpack.c.h.b16 %v148
    %v1565 = vunpack.c.l.b16 %v149
    %v1566 = vunpack.c.h.b16 %v149
    %v1567 = vunpack.c.l.b16 %v150
    %v1568 = vunpack.c.h.b16 %v150
    %v1569 = vunpack.c.l.b16 %v151
    %v1570 = vunpack.c.h.b16 %v151
    %v1571 = vunpack.c.l.b16 %v152
    %v1572 = vunpack.c.h.b16 %v152
    %v1573 = vunpack.c.l.b16 %v153
    %v1574 = vunpack.c.h.b16 %v153
    %v1575 = vunpack.c.l.b16 %v154
    %v1576 = vunpack.c.h.b16 %v154
    %v1577 = vunpack.c.l.b16 %v155
    %v1578 = vunpack.c.h.b16 %v155
    %v1579 = vunpack.c.l.b16 %v156
    %v1580 = vunpack.c.h.b16 %v156
    %v1581 = vunpack.c.l.b16 %v157
    %v1582 = vunpack.c.h.b16 %v157
    %v1583 = vunpack.c.l.b16 %v158
    %v1584 = vunpack.c.h.b16 %v158
    %v1585 = vunpack.c.l.b16 %v159
    %v1586 = vunpack.c.h.b16 %v159
    %v1587 = vunpack.c.l.b16 %v160
    %v1588 = vunpack.c.h.b16 %v160
    %v1589 = vunpack.c.l.b16 %v161
    %v1590 = vunpack.c.h.b16 %v161
    %v1591 = vunpack.c.l.b16 %v162
    %v1592 = vunpack.c.h.b16 %v162
    %v1593 = vunpack.c.l.b16 %v163
    %v1594 = vunpack.c.h.b16 %v163
    %v1595 = vunpack.c.l.b16 %v164
    %v1596 = vunpack.c.h.b16 %v164
    %v1597 = vunpack.c.l.b16 %v165
    %v1598 = vunpack.c.h.b16 %v165
    %v1599 = vunpack.c.l.b16 %v166
    %v1600 = vunpack.c.h.b16 %v166
    %v1601 = vunpack.c.l.b16 %v167
    %v1602 = vunpack.c.h.b16 %v167
    %v1603 = vunpack.c.l.b16 %v168
    %v1604 = vunpack.c.h.b16 %v168
    %v1605 = vunpack.c.l.b16 %v169
    %v1606 = vunpack.c.h.b16 %v169
    %v1607 = vunpack.c.l.b16 %v170
    %v1608 = vunpack.c.h.b16 %v170
    %v1609 = vunpack.c.l.b16 %v171
    %v1610 = vunpack.c.h.b16 %v171
    %v1611 = vunpack.c.l.b16 %v172
    %v1612 = vunpack.c.h.b16 %v172
    %v1613 = vunpack.c.l.b16 %v173
    %v1614 = vunpack.c.h.b16 %v173
    %v1615 = vunpack.c.l.b16 %v174
    %v1616 = vunpack.c.h.b16 %v174
    %v1617 = vunpack.c.l.b16 %v175
    %v1618 = vunpack.c.h.b16 %v175
    %v1619 = vunpack.c.l.b16 %v176
    %v1620 = vunpack.c.h.b16 %v176
    %v1621 = vunpack.c.l.b16 %v177
    %v1622 = vunpack.c.h.b16 %v177
    %v1623 = vunpack.c.l.b16 %v178
    %v1624 = vunpack.c.h.b16 %v178
    %v1625 = vunpack.c.l.b16 %v179
    %v1626 = vunpack.c.h.b16 %v179
    %v1627 = vunpack.c.l.b16 %v180
    %v1628 = vunpack.c.h.b16 %v180
    %v1629 = vunpack.c.l.b16 %v181
    %v1630 = vunpack.c.h.b16 %v181
    %v1631 = vunpack.c.l.b16 %v182
    %v1632 = vunpack.c.h.b16 %v182
    %v1633 = vunpack.c.l.b16 %v183
    %v1634 = vunpack.c.h.b16 %v183
    %v1635 = vunpack.c.l.b16 %v184
    %v1636 = vunpack.c.h.b16 %v184
    %v1637 = vunpack.c.l.b16 %v185
    %v1638 = vunpack.c.h.b16 %v185
    %v1639 = vunpack.c.l.b16 %v186
    %v1640 = vunpack.c.h.b16 %v186
    %v1641 = vunpack.c.l.b16 %v187
    %v1642 = vunpack.c.h.b16 %v187
    %v1643 = vunpack.c.l.b16 %v188
    %v1644 = vunpack.c.h.b16 %v188
    %v1645 = vunpack.c.l.b16 %v189
    %v1646 = vunpack.c.h.b16 %v189
    %v1647 = vunpack.c.l.b16 %v190
    %v1648 = vunpack.c.h.b16 %v190
    %v1649 = vunpack.c.l.b16 %v191
    %v1650 = vunpack.c.h.b16 %v191
    %v1651 = vunpack.c.l.b16 %v192
    %v1652 = vunpack.c.h.b16 %v192
    %v1653 = vunpack.c.l.b16 %v193
    %v1654 = vunpack.c.h.b16 %v193
    %v1655 = vunpack.c.l.b16 %v194
    %v1656 = vunpack.c.h.b16 %v194
    %v1657 = vunpack.c.l.b16 %v195
    %v1658 = vunpack.c.h.b16 %v195
    %v1659 = vunpack.c.l.b16 %v196
    %v1660 = vunpack.c.h.b16 %v196
    %v1661 = vunpack.c.l.b16 %v197
    %v1662 = vunpack.c.h.b16 %v197
    %v1663 = vunpack.c.l.b16 %v198
    %v1664 = vunpack.c.h.b16 %v198
    %v1665 = vunpack.c.l.b16 %v199
    %v1666 = vunpack.c.h.b16 %v199
    %v1667 = vunpack.c.l.b16 %v200
    %v1668 = vunpack.c.h.b16 %v200
    %v1669 = vunpack.c.l.b16 %v201
    %v1670 = vunpack.c.h.b16 %v201
    %v1671 = vunpack.c.l.b16 %v202
    %v1672 = vunpack.c.h.b16 %v202
    %v1673 = vunpack.c.l.b16 %v203
    %v1674 = vunpack.c.h.b16 %v203
    %v1675 = vunpack.c.l.b16 %v204
    %v1676 = vunpack.c.h.b16 %v204
    %v1677 = vunpack.c.l.b16 %v205
    %v1678 = vunpack.c.h.b16 %v205
    %v1679 = vunpack.c.l.b16 %v206
    %v1680 = vunpack.c.h.b16 %v206
    %v1681 = vunpack.c.l.b16 %v207
    %v1682 = vunpack.c.h.b16 %v207
    %v1683 = vunpack.c.l.b16 %v208
    %v1684 = vunpack.c.h.b16 %v208
    %v1685 = vunpack.c.l.b16 %v209
    %v1686 = vunpack.c.h.b16 %v209
    %v1687 = vunpack.c.l.b16 %v210
    %v1688 = vunpack.c.h.b16 %v210
    %v1689 = vunpack.c.l.b16 %v211
    %v1690 = vunpack.c.h.b16 %v211
    %v1691 = vunpack.c.l.b16 %v212
    %v1692 = vunpack.c.h.b16 %v212
    %v1693 = vunpack.c.l.b16 %v213
    %v1694 = vunpack.c.h.b16 %v213
    %v1695 = vunpack.c.l.b16 %v214
    %v1696 = vunpack.c.h.b16 %v214
    %v1697 = vunpack.c.l.b16 %v215
    %v1698 = vunpack.c.h.b16 %v215
    %v1699 = vunpack.c.l.b16 %v216
    %v1700 = vunpack.c.h.b16 %v216
    %v1701 = vunpack.c.l.b16 %v217
    %v1702 = vunpack.c.h.b16 %v217
    %v1703 = vunpack.c.l.b16 %v218
    %v1704 = vunpack.c.h.b16 %v218
    %v1705 = vunpack.c.l.b16 %v219
    %v1706 = vunpack.c.h.b16 %v219
    %v1707 = vunpack.c.l.b16 %v220
    %v1708 = vunpack.c.h.b16 %v220
    %v1709 = vunpack.c.l.b16 %v221
    %v1710 = vunpack.c.h.b16 %v221
    %v1711 = vunpack.c.l.b16 %v222
    %v1712 = vunpack.c.h.b16 %v222
    %v1713 = vunpack.c.l.b16 %v223
    %v1714 = vunpack.c.h.b16 %v223
    %v1715 = vunpack.c.l.b16 %v224
    %v1716 = vunpack.c.h.b16 %v224
    %v1717 = vunpack.c.l.b16 %v225
    %v1718 = vunpack.c.h.b16 %v225
    %v1719 = vunpack.c.l.b16 %v226
    %v1720 = vunpack.c.h.b16 %v226
    %v1721 = vunpack.c.l.b16 %v227
    %v1722 = vunpack.c.h.b16 %v227
    %v1723 = vunpack.c.l.b16 %v228
    %v1724 = vunpack.c.h.b16 %v228
    %v1725 = vunpack.c.l.b16 %v229
    %v1726 = vunpack.c.h.b16 %v229
    %v1727 = vunpack.c.l.b16 %v230
    %v1728 = vunpack.c.h.b16 %v230
    %v1729 = vunpack.c.l.b16 %v231
    %v1730 = vunpack.c.h.b16 %v231
    %v1731 = vunpack.c.l.b16 %v232
    %v1732 = vunpack.c.h.b16 %v232
    %v1733 = vunpack.c.l.b16 %v233
    %v1734 = vunpack.c.h.b16 %v233
    %v1735 = vunpack.c.l.b16 %v234
    %v1736 = vunpack.c.h.b16 %v234
    %v1737 = vunpack.c.l.b16 %v235
    %v1738 = vunpack.c.h.b16 %v235
    %v1739 = vunpack.c.l.b16 %v236
    %v1740 = vunpack.c.h.b16 %v236
    %v1741 = vunpack.c.l.b16 %v237
    %v1742 = vunpack.c.h.b16 %v237
    %v1743 = vunpack.c.l.b16 %v238
    %v1744 = vunpack.c.h.b16 %v238
    %v1745 = vunpack.c.l.b16 %v239
    %v1746 = vunpack.c.h.b16 %v239
    %v1747 = vunpack.c.l.b16 %v240
    %v1748 = vunpack.c.h.b16 %v240
    %v1749 = vunpack.c.l.b16 %v241
    %v1750 = vunpack.c.h.b16 %v241
    %v1751 = vunpack.c.l.b16 %v242
    %v1752 = vunpack.c.h.b16 %v242
    %v1753 = vunpack.c.l.b16 %v243
    %v1754 = vunpack.c.h.b16 %v243
    %v1755 = vunpack.c.l.b16 %v244
    %v1756 = vunpack.c.h.b16 %v244
    %v1757 = vunpack.c.l.b16 %v245
    %v1758 = vunpack.c.h.b16 %v245
    %v1759 = vunpack.c.l.b16 %v246
    %v1760 = vunpack.c.h.b16 %v246
    %v1761 = vunpack.c.l.b16 %v247
    %v1762 = vunpack.c.h.b16 %v247
    %v1763 = vunpack.c.l.b16 %v248
    %v1764 = vunpack.c.h.b16 %v248
    %v1765 = vunpack.c.l.b16 %v249
    %v1766 = vunpack.c.h.b16 %v249
    %v1767 = vunpack.c.l.b16 %v250
    %v1768 = vunpack.c.h.b16 %v250
    %v1769 = vunpack.c.l.b16 %v251
    %v1770 = vunpack.c.h.b16 %v251
    %v1771 = vunpack.c.l.b16 %v252
    %v1772 = vunpack.c.h.b16 %v252
    %v1773 = vunpack.c.l.b16 %v253
    %v1774 = vunpack.c.h.b16 %v253
    %v1775 = vunpack.c.l.b16 %v254
    %v1776 = vunpack.c.h.b16 %v254
    %v1777 = vunpack.c.l.b16 %v255
    %v1778 = vunpack.c.h.b16 %v255
    %v1779 = vunpack.c.l.b16 %v256
    %v1780 = vunpack.c.h.b16 %v256
    %v1781 = vunpack.c.l.b16 %v257
    %v1782 = vunpack.c.h.b16 %v257
    %v1783 = vunpack.c.l.b16 %v258
    %v1784 = vunpack.c.h.b16 %v258
    %v1785 = vunpack.c.l.b16 %v259
    %v1786 = vunpack.c.h.b16 %v259
    %v1787 = vunpack.c.l.b16 %v260
    %v1788 = vunpack.c.h.b16 %v260
    %v1789 = vunpack.c.l.b16 %v261
    %v1790 = vunpack.c.h.b16 %v261
    %v1791 = vunpack.c.l.b16 %v262
    %v1792 = vunpack.c.h.b16 %v262
    %v1793 = vunpack.c.l.b16 %v263
    %v1794 = vunpack.c.h.b16 %v263
    %v1795 = vunpack.c.l.b16 %v264
    %v1796 = vunpack.c.h.b16 %v264
    %v1797 = vunpack.c.l.b16 %v265
    %v1798 = vunpack.c.h.b16 %v265
    %v1799 = vunpack.c.l.b16 %v266
    %v1800 = vunpack.c.h.b16 %v266
    %v1801 = vunpack.c.l.b16 %v267
    %v1802 = vunpack.c.h.b16 %v267
    %v1803 = vunpack.c.l.b16 %v268
    %v1804 = vunpack.c.h.b16 %v268
    %v1805 = vunpack.c.l.b16 %v269
    %v1806 = vunpack.c.h.b16 %v269
    %v1807 = vunpack.c.l.b16 %v270
    %v1808 = vunpack.c.h.b16 %v270
    %v1809 = vunpack.c.l.b16 %v271
    %v1810 = vunpack.c.h.b16 %v271
    %v1811 = vunpack.c.l.b16 %v272
    %v1812 = vunpack.c.h.b16 %v272
    %v1813 = vunpack.c.l.b16 %v273
    %v1814 = vunpack.c.h.b16 %v273
    %v1815 = vunpack.c.l.b16 %v274
    %v1816 = vunpack.c.h.b16 %v274
    %v1817 = vunpack.c.l.b16 %v275
    %v1818 = vunpack.c.h.b16 %v275
    %v1819 = vunpack.c.l.b16 %v276
    %v1820 = vunpack.c.h.b16 %v276
    %v1821 = vunpack.c.l.b16 %v277
    %v1822 = vunpack.c.h.b16 %v277
    %v1823 = vunpack.c.l.b16 %v278
    %v1824 = vunpack.c.h.b16 %v278
    %v1825 = vunpack.c.l.b16 %v279
    %v1826 = vunpack.c.h.b16 %v279
    %v1827 = vunpack.c.l.b16 %v280
    %v1828 = vunpack.c.h.b16 %v280
    %v1829 = vunpack.c.l.b16 %v281
    %v1830 = vunpack.c.h.b16 %v281
    %v1831 = vunpack.c.l.b16 %v282
    %v1832 = vunpack.c.h.b16 %v282
    %v1833 = vunpack.c.l.b16 %v283
    %v1834 = vunpack.c.h.b16 %v283
    %v1835 = vunpack.c.l.b16 %v284
    %v1836 = vunpack.c.h.b16 %v284
    %v1837 = vunpack.c.l.b16 %v285
    %v1838 = vunpack.c.h.b16 %v285
    %v1839 = vunpack.c.l.b16 %v286
    %v1840 = vunpack.c.h.b16 %v286
    %v1841 = vunpack.c.l.b16 %v287
    %v1842 = vunpack.c.h.b16 %v287
    %v1843 = vunpack.c.l.b16 %v288
    %v1844 = vunpack.c.h.b16 %v288
    %v1845 = vunpack.c.l.b16 %v289
    %v1846 = vunpack.c.h.b16 %v289
    %v1847 = vunpack.c.l.b16 %v290
    %v1848 = vunpack.c.h.b16 %v290
    %v1849 = vunpack.c.l.b16 %v291
    %v1850 = vunpack.c.h.b16 %v291
    %v1851 = vunpack.c.l.b16 %v292
    %v1852 = vunpack.c.h.b16 %v292
    %v1853 = vunpack.c.l.b16 %v293
    %v1854 = vunpack.c.h.b16 %v293
    %v1855 = vunpack.c.l.b16 %v294
    %v1856 = vunpack.c.h.b16 %v294
    %v1857 = vunpack.c.l.b16 %v295
    %v1858 = vunpack.c.h.b16 %v295
    %v1859 = vunpack.c.l.b16 %v296
    %v1860 = vunpack.c.h.b16 %v296
    %v1861 = vunpack.c.l.b16 %v297
    %v1862 = vunpack.c.h.b16 %v297
    %v1863 = vunpack.c.l.b16 %v298
    %v1864 = vunpack.c.h.b16 %v298
    %v1865 = vunpack.c.l.b16 %v299
    %v1866 = vunpack.c.h.b16 %v299
    %v1867 = vunpack.c.l.b16 %v300
    %v1868 = vunpack.c.h.b16 %v300
    %v1869 = vunpack.c.l.b16 %v301
    %v1870 = vunpack.c.h.b16 %v301
    %v1871 = vunpack.c.l.b16 %v302
    %v1872 = vunpack.c.h.b16 %v302
    %v1873 = vunpack.c.l.b16 %v303
    %v1874 = vunpack.c.h.b16 %v303
    %v1875 = vunpack.c.l.b16 %v304
    %v1876 = vunpack.c.h.b16 %v304
    %v1877 = vunpack.c.l.b16 %v305
    %v1878 = vunpack.c.h.b16 %v305
    %v1879 = vunpack.c.l.b16 %v306
    %v1880 = vunpack.c.h.b16 %v306
    %v1881 = vunpack.c.l.b16 %v307
    %v1882 = vunpack.c.h.b16 %v307
    %v1883 = vunpack.c.l.b16 %v308
    %v1884 = vunpack.c.h.b16 %v308
    %v1885 = vunpack.c.l.b16 %v309
    %v1886 = vunpack.c.h.b16 %v309
    %v1887 = vunpack.c.l.b16 %v310
    %v1888 = vunpack.c.h.b16 %v310
    %v1889 = vunpack.c.l.b16 %v311
    %v1890 = vunpack.c.h.b16 %v311
    %v1891 = vunpack.c.l.b16 %v312
    %v1892 = vunpack.c.h.b16 %v312
    %v1893 = vunpack.c.l.b16 %v313
    %v1894 = vunpack.c.h.b16 %v313
    %v1895 = vunpack.c.l.b16 %v314
    %v1896 = vunpack.c.h.b16 %v314
    %v1897 = vunpack.c.l.b16 %v315
    %v1898 = vunpack.c.h.b16 %v315
    %v1899 = vunpack.c.l.b16 %v316
    %v1900 = vunpack.c.h.b16 %v316
    %v1901 = vunpack.c.l.b16 %v317
    %v1902 = vunpack.c.h.b16 %v317
    %v1903 = vunpack.c.l.b16 %v318
    %v1904 = vunpack.c.h.b16 %v318
    %v1905 = vunpack.c.l.b16 %v319
    %v1906 = vunpack.c.h.b16 %v319
    %v1907 = vunpack.c.l.b16 %v320
    %v1908 = vunpack.c.h.b16 %v320
    %v1909 = vunpack.c.l.b16 %v321
    %v1910 = vunpack.c.h.b16 %v321
    %v1911 = vunpack.c.l.b16 %v322
    %v1912 = vunpack.c.h.b16 %v322
    %v1913 = vunpack.c.l.b16 %v323
    %v1914 = vunpack.c.h.b16 %v323
    %v1915 = vunpack.c.l.b16 %v324
    %v1916 = vunpack.c.h.b16 %v324
    %v1917 = vunpack.c.l.b16 %v325
    %v1918 = vunpack.c.h.b16 %v325
    %v1919 = vunpack.c.l.b16 %v326
    %v1920 = vunpack.c.h.b16 %v326
    %v1921 = vunpack.c.l.b16 %v327
    %v1922 = vunpack.c.h.b16 %v327
    %v1923 = vunpack.c.l.b16 %v328
    %v1924 = vunpack.c.h.b16 %v328
    %v1925 = vunpack.c.l.b16 %v329
    %v1926 = vunpack.c.h.b16 %v329
    %v1927 = vunpack.c.l.b16 %v330
    %v1928 = vunpack.c.h.b16 %v330
    %v1929 = vunpack.c.l.b16 %v331
    %v1930 = vunpack.c.h.b16 %v331
    %v1931 = vunpack.c.l.b16 %v332
    %v1932 = vunpack.c.h.b16 %v332
    %v1933 = vunpack.c.l.b16 %v333
    %v1934 = vunpack.c.h.b16 %v333
    %v1935 = vunpack.c.l.b16 %v334
    %v1936 = vunpack.c.h.b16 %v334
    %v1937 = vunpack.c.l.b16 %v335
    %v1938 = vunpack.c.h.b16 %v335
    %v1939 = vunpack.c.l.b16 %v336
    %v1940 = vunpack.c.h.b16 %v336
    %v1941 = vunpack.c.l.b16 %v337
    %v1942 = vunpack.c.h.b16 %v337
    %v1943 = vunpack.c.l.b16 %v338
    %v1944 = vunpack.c.h.b16 %v338
    %v1945 = vunpack.c.l.b16 %v339
    %v1946 = vunpack.c.h.b16 %v339
    %v1947 = vunpack.c.l.b16 %v340
    %v1948 = vunpack.c.h.b16 %v340
    %v1949 = vunpack.c.l.b16 %v341
    %v1950 = vunpack.c.h.b16 %v341
    %v1951 = vunpack.c.l.b16 %v342
    %v1952 = vunpack.c.h.b16 %v342
    %v1953 = vunpack.c.l.b16 %v343
    %v1954 = vunpack.c.h.b16 %v343
    %v1955 = vunpack.c.l.b16 %v344
    %v1956 = vunpack.c.h.b16 %v344
    %v1957 = vunpack.c.l.b16 %v345
    %v1958 = vunpack.c.h.b16 %v345
    %v1959 = vunpack.c.l.b16 %v346
    %v1960 = vunpack.c.h.b16 %v346
    %v1961 = vunpack.c.l.b16 %v347
    %v1962 = vunpack.c.h.b16 %v347
    %v1963 = vunpack.c.l.b16 %v348
    %v1964 = vunpack.c.h.b16 %v348
    %v1965 = vunpack.c.l.b16 %v349
    %v1966 = vunpack.c.h.b16 %v349
    %v1967 = vunpack.c.l.b16 %v350
    %v1968 = vunpack.c.h.b16 %v350
    %v1969 = vunpack.c.l.b16 %v351
    %v1970 = vunpack.c.h.b16 %v351
    %v1971 = vunpack.c.l.b16 %v352
    %v1972 = vunpack.c.h.b16 %v352
    %v1973 = vunpack.c.l.b16 %v353
    %v1974 = vunpack.c.h.b16 %v353
    %v1975 = vunpack.c.l.b16 %v354
    %v1976 = vunpack.c.h.b16 %v354
    %v1977 = vunpack.c.l.b16 %v355
    %v1978 = vunpack.c.h.b16 %v355
    %v1979 = vunpack.c.l.b16 %v356
    %v1980 = vunpack.c.h.b16 %v356
    %v1981 = vunpack.c.l.b16 %v357
    %v1982 = vunpack.c.h.b16 %v357
    %v1983 = vunpack.c.l.b16 %v358
    %v1984 = vunpack.c.h.b16 %v358
    %v1985 = vunpack.c.l.b16 %v359
    %v1986 = vunpack.c.h.b16 %v359
    %v1987 = vunpack.c.l.b16 %v360
    %v1988 = vunpack.c.h.b16 %v360
    %v1989 = vunpack.c.l.b16 %v361
    %v1990 = vunpack.c.h.b16 %v361
    %v1991 = vunpack.c.l.b16 %v362
    %v1992 = vunpack.c.h.b16 %v362
    %v1993 = vunpack.c.l.b16 %v363
    %v1994 = vunpack.c.h.b16 %v363
    %v1995 = vunpack.c.l.b16 %v364
    %v1996 = vunpack.c.h.b16 %v364
    %v1997 = vunpack.c.l.b16 %v365
    %v1998 = vunpack.c.h.b16 %v365
    %v1999 = vunpack.c.l.b16 %v366
    %v2000 = vunpack.c.h.b16 %v366
    %v2001 = vunpack.c.l.b16 %v367
    %v2002 = vunpack.c.h.b16 %v367
    %v2003 = vunpack.c.l.b16 %v368
    %v2004 = vunpack.c.h.b16 %v368
    %v2005 = vunpack.c.l.b16 %v369
    %v2006 = vunpack.c.h.b16 %v369
    %v2007 = vunpack.c.l.b16 %v370
    %v2008 = vunpack.c.h.b16 %v370
    %v2009 = vunpack.c.l.b16 %v371
    %v2010 = vunpack.c.h.b16 %v371
    %v2011 = vunpack.c.l.b16 %v372
    %v2012 = vunpack.c.h.b16 %v372
    %v2013 = vunpack.c.l.b16 %v373
    %v2014 = vunpack.c.h.b16 %v373
    %v2015 = vunpack.c.l.b16 %v374
    %v2016 = vunpack.c.h.b16 %v374
    %v2017 = vunpack.c.l.b16 %v375
    %v2018 = vunpack.c.h.b16 %v375
    %v2019 = vunpack.c.l.b16 %v376
    %v2020 = vunpack.c.h.b16 %v376
    %v2021 = vunpack.c.l.b16 %v377
    %v2022 = vunpack.c.h.b16 %v377
    %v2023 = vunpack.c.l.b16 %v378
    %v2024 = vunpack.c.h.b16 %v378
    %v2025 = vunpack.c.l.b16 %v379
    %v2026 = vunpack.c.h.b16 %v379
    %v2027 = vunpack.c.l.b16 %v380
    %v2028 = vunpack.c.h.b16 %v380
    %v2029 = vunpack.c.l.b16 %v381
    %v2030 = vunpack.c.h.b16 %v381
    %v2031 = vunpack.c.l.b16 %v382
    %v2032 = vunpack.c.h.b16 %v382
    %v2033 = vunpack.c.l.b16 %v383
    %v2034 = vunpack.c.h.b16 %v383
    %v2035 = vunpack.c.l.b16 %v384
    %v2036 = vunpack.c.h.b16 %v384
    %v2037 = vunpack.c.l.b16 %v385
    %v2038 = vunpack.c.h.b16 %v385
    %v2039 = vunpack.c.l.b16 %v386
    %v2040 = vunpack.c.h.b16 %v386
    %v2041 = vunpack.c.l.b16 %v387
    %v2042 = vunpack.c.h.b16 %v387
    %v2043 = vunpack.c.l.b16 %v388
    %v2044 = vunpack.c.h.b16 %v388
    %v2045 = vunpack.c.l.b16 %v389
    %v2046 = vunpack.c.h.b16 %v389
    %v2047 = vunpack.c.l.b16 %v390
    %v2048 = vunpack.c.h.b16 %v390
    %v2049 = vunpack.c.l.b16 %v391
    %v2050 = vunpack.c.h.b16 %v391
    %v2051 = vunpack.c.l.b16 %v392
    %v2052 = vunpack.c.h.b16 %v392
    %v2053 = vunpack.c.l.b16 %v393
    %v2054 = vunpack.c.h.b16 %v393
    %v2055 = vunpack.c.l.b16 %v394
    %v2056 = vunpack.c.h.b16 %v394
    %v2057 = vunpack.c.l.b16 %v395
    %v2058 = vunpack.c.h.b16 %v395
    %v2059 = vunpack.c.l.b16 %v396
    %v2060 = vunpack.c.h.b16 %v396
    %v2061 = vunpack.c.l.b16 %v397
    %v2062 = vunpack.c.h.b16 %v397
    %v2063 = vunpack.c.l.b16 %v398
    %v2064 = vunpack.c.h.b16 %v398
    %v2065 = vunpack.c.l.b16 %v399
    %v2066 = vunpack.c.h.b16 %v399
    %v2067 = vunpack.c.l.b16 %v400
    %v2068 = vunpack.c.h.b16 %v400
    %v2069 = vunpack.c.l.b16 %v401
    %v2070 = vunpack.c.h.b16 %v401
    %v2071 = vunpack.c.l.b16 %v402
    %v2072 = vunpack.c.h.b16 %v402
    %v2073 = vunpack.c.l.b16 %v403
    %v2074 = vunpack.c.h.b16 %v403
    %v2075 = vunpack.c.l.b16 %v404
    %v2076 = vunpack.c.h.b16 %v404
    %v2077 = vunpack.c.l.b16 %v405
    %v2078 = vunpack.c.h.b16 %v405
    %v2079 = vunpack.c.l.b16 %v406
    %v2080 = vunpack.c.h.b16 %v406
    %v2081 = vunpack.c.l.b16 %v407
    %v2082 = vunpack.c.h.b16 %v407
    %v2083 = vunpack.c.l.b16 %v408
    %v2084 = vunpack.c.h.b16 %v408
    %v2085 = vunpack.c.l.b16 %v409
    %v2086 = vunpack.c.h.b16 %v409
    %v2087 = vunpack.c.l.b16 %v410
    %v2088 = vunpack.c.h.b16 %v410
    %v2089 = vunpack.c.l.b16 %v411
    %v2090 = vunpack.c.h.b16 %v411
    %v2091 = vunpack.c.l.b16 %v412
    %v2092 = vunpack.c.h.b16 %v412
    %v2093 = vunpack.c.l.b16 %v413
    %v2094 = vunpack.c.h.b16 %v413
    %v2095 = vunpack.c.l.b16 %v414
    %v2096 = vunpack.c.h.b16 %v414
    %v2097 = vunpack.c.l.b16 %v415
    %v2098 = vunpack.c.h.b16 %v415
    %v2099 = vunpack.c.l.b16 %v416
    %v2100 = vunpack.c.h.b16 %v416
    %v2101 = vunpack.c.l.b16 %v417
    %v2102 = vunpack.c.h.b16 %v417
    %v2103 = vunpack.c.l.b16 %v418
    %v2104 = vunpack.c.h.b16 %v418
    %v2105 = vunpack.c.l.b16 %v419
    %v2106 = vunpack.c.h.b16 %v419
    %v2107 = vunpack.c.l.b16 %v420
    %v2108 = vunpack.c.h.b16 %v420
    %v2109 = vunpack.c.l.b16 %v421
    %v2110 = vunpack.c.h.b16 %v421
    %v2111 = vunpack.c.l.b16 %v422
    %v2112 = vunpack.c.h.b16 %v422
    %v2113 = vunpack.c.l.b16 %v423
    %v2114 = vunpack.c.h.b16 %v423
    %v2115 = vunpack.c.l.b16 %v424
    %v2116 = vunpack.c.h.b16 %v424
    %v2117 = vunpack.c.l.b16 %v425
    %v2118 = vunpack.c.h.b16 %v425
    %v2119 = vunpack.c.l.b16 %v426
    %v2120 = vunpack.c.h.b16 %v426
    %v2121 = vunpack.c.l.b16 %v427
    %v2122 = vunpack.c.h.b16 %v427
    %v2123 = vunpack.c.l.b16 %v428
    %v2124 = vunpack.c.h.b16 %v428
    %v2125 = vunpack.c.l.b16 %v429
    %v2126 = vunpack.c.h.b16 %v429
    %v2127 = vunpack.c.l.b16 %v430
    %v2128 = vunpack.c.h.b16 %v430
    %v2129 = vunpack.c.l.b16 %v431
    %v2130 = vunpack.c.h.b16 %v431
    %v2131 = vunpack.c.l.b16 %v432
    %v2132 = vunpack.c.h.b16 %v432
    %v2133 = vunpack.c.l.b16 %v433
    %v2134 = vunpack.c.h.b16 %v433
    %v2135 = vunpack.c.l.b16 %v434
    %v2136 = vunpack.c.h.b16 %v434
    %v2137 = vunpack.c.l.b16 %v435
    %v2138 = vunpack.c.h.b16 %v435
    %v2139 = vunpack.c.l.b16 %v436
    %v2140 = vunpack.c.h.b16 %v436
    %v2141 = vunpack.c.l.b16 %v437
    %v2142 = vunpack.c.h.b16 %v437
    %v2143 = vunpack.c.l.b16 %v438
    %v2144 = vunpack.c.h.b16 %v438
    %v2145 = vunpack.c.l.b16 %v439
    %v2146 = vunpack.c.h.b16 %v439
    %v2147 = vunpack.c.l.b16 %v440
    %v2148 = vunpack.c.h.b16 %v440
    %v2149 = vunpack.c.l.b16 %v441
    %v2150 = vunpack.c.h.b16 %v441
    %v2151 = vunpack.c.l.b16 %v442
    %v2152 = vunpack.c.h.b16 %v442
    %v2153 = vunpack.c.l.b16 %v443
    %v2154 = vunpack.c.h.b16 %v443
    %v2155 = vunpack.c.l.b16 %v444
    %v2156 = vunpack.c.h.b16 %v444
    %v2157 = vunpack.c.l.b16 %v445
    %v2158 = vunpack.c.h.b16 %v445
    %v2159 = vunpack.c.l.b16 %v446
    %v2160 = vunpack.c.h.b16 %v446
    %v2161 = vunpack.c.l.b16 %v447
    %v2162 = vunpack.c.h.b16 %v447
    %v2163 = vunpack.c.l.b16 %v448
    %v2164 = vunpack.c.h.b16 %v448
    %v2165 = vunpack.c.l.b16 %v449
    %v2166 = vunpack.c.h.b16 %v449
    %v2167 = vunpack.c.l.b16 %v450
    %v2168 = vunpack.c.h.b16 %v450
    %v2169 = vunpack.c.l.b16 %v451
    %v2170 = vunpack.c.h.b16 %v451
    %v2171 = vunpack.c.l.b16 %v452
    %v2172 = vunpack.c.h.b16 %v452
    %v2173 = vunpack.c.l.b16 %v453
    %v2174 = vunpack.c.h.b16 %v453
    %v2175 = vunpack.c.l.b16 %v454
    %v2176 = vunpack.c.h.b16 %v454
    %v2177 = vunpack.c.l.b16 %v455
    %v2178 = vunpack.c.h.b16 %v455
    %v2179 = vunpack.c.l.b16 %v456
    %v2180 = vunpack.c.h.b16 %v456
    %v2181 = vunpack.c.l.b16 %v457
    %v2182 = vunpack.c.h.b16 %v457
    %v2183 = vunpack.c.l.b16 %v458
    %v2184 = vunpack.c.h.b16 %v458
    %v2185 = vunpack.c.l.b16 %v459
    %v2186 = vunpack.c.h.b16 %v459
    %v2187 = vunpack.c.l.b16 %v460
    %v2188 = vunpack.c.h.b16 %v460
    %v2189 = vunpack.c.l.b16 %v461
    %v2190 = vunpack.c.h.b16 %v461
    %v2191 = vunpack.c.l.b16 %v462
    %v2192 = vunpack.c.h.b16 %v462
    %v2193 = vunpack.c.l.b16 %v463
    %v2194 = vunpack.c.h.b16 %v463
    %v2195 = vunpack.c.l.b16 %v464
    %v2196 = vunpack.c.h.b16 %v464
    %v2197 = vunpack.c.l.b16 %v465
    %v2198 = vunpack.c.h.b16 %v465
    %v2199 = vunpack.c.l.b16 %v466
    %v2200 = vunpack.c.h.b16 %v466
    %v2201 = vunpack.c.l.b16 %v467
    %v2202 = vunpack.c.h.b16 %v467
    %v2203 = vunpack.c.l.b16 %v468
    %v2204 = vunpack.c.h.b16 %v468
    %v2205 = vunpack.c.l.b16 %v469
    %v2206 = vunpack.c.h.b16 %v469
    %v2207 = vunpack.c.l.b16 %v470
    %v2208 = vunpack.c.h.b16 %v470
    %v2209 = vunpack.c.l.b16 %v471
    %v2210 = vunpack.c.h.b16 %v471
    %v2211 = vunpack.c.l.b16 %v472
    %v2212 = vunpack.c.h.b16 %v472
    %v2213 = vunpack.c.l.b16 %v473
    %v2214 = vunpack.c.h.b16 %v473
    %v2215 = vunpack.c.l.b16 %v474
    %v2216 = vunpack.c.h.b16 %v474
    %v2217 = vunpack.c.l.b16 %v475
    %v2218 = vunpack.c.h.b16 %v475
    %v2219 = vunpack.c.l.b16 %v476
    %v2220 = vunpack.c.h.b16 %v476
    %v2221 = vunpack.c.l.b16 %v477
    %v2222 = vunpack.c.h.b16 %v477
    %v2223 = vunpack.c.l.b16 %v478
    %v2224 = vunpack.c.h.b16 %v478
    %v2225 = vunpack.c.l.b16 %v479
    %v2226 = vunpack.c.h.b16 %v479
    %v2227 = vunpack.c.l.b16 %v480
    %v2228 = vunpack.c.h.b16 %v480
    %v2229 = vunpack.c.l.b16 %v481
    %v2230 = vunpack.c.h.b16 %v481
    %v2231 = vunpack.c.l.b16 %v482
    %v2232 = vunpack.c.h.b16 %v482
    %v2233 = vunpack.c.l.b16 %v483
    %v2234 = vunpack.c.h.b16 %v483
    %v2235 = vunpack.c.l.b16 %v484
    %v2236 = vunpack.c.h.b16 %v484
    %v2237 = vunpack.c.l.b16 %v485
    %v2238 = vunpack.c.h.b16 %v485
    %v2239 = vunpack.c.l.b16 %v486
    %v2240 = vunpack.c.h.b16 %v486
    %v2241 = vunpack.c.l.b16 %v487
    %v2242 = vunpack.c.h.b16 %v487
    %v2243 = vunpack.c.l.b16 %v488
    %v2244 = vunpack.c.h.b16 %v488
    %v2245 = vunpack.c.l.b16 %v489
    %v2246 = vunpack.c.h.b16 %v489
    %v2247 = vunpack.c.l.b16 %v490
    %v2248 = vunpack.c.h.b16 %v490
    %v2249 = vunpack.c.l.b16 %v491
    %v2250 = vunpack.c.h.b16 %v491
    %v2251 = vunpack.c.l.b16 %v492
    %v2252 = vunpack.c.h.b16 %v492
    %v2253 = vunpack.c.l.b16 %v493
    %v2254 = vunpack.c.h.b16 %v493
    %v2255 = vunpack.c.l.b16 %v494
    %v2256 = vunpack.c.h.b16 %v494
    %v2257 = vunpack.c.l.b16 %v495
    %v2258 = vunpack.c.h.b16 %v495
    %v2259 = vunpack.c.l.b16 %v496
    %v2260 = vunpack.c.h.b16 %v496
    %v2261 = vunpack.c.l.b16 %v497
    %v2262 = vunpack.c.h.b16 %v497
    %v2263 = vunpack.c.l.b16 %v498
    %v2264 = vunpack.c.h.b16 %v498
    %v2265 = vunpack.c.l.b16 %v499
    %v2266 = vunpack.c.h.b16 %v499
    %v2267 = vunpack.c.l.b16 %v500
    %v2268 = vunpack.c.h.b16 %v500
    %v2269 = vunpack.c.l.b16 %v501
    %v2270 = vunpack.c.h.b16 %v501
    %v2271 = vunpack.c.l.b16 %v502
    %v2272 = vunpack.c.h.b16 %v502
    %v2273 = vunpack.c.l.b16 %v503
    %v2274 = vunpack.c.h.b16 %v503
    %v2275 = vunpack.c.l.b16 %v504
    %v2276 = vunpack.c.h.b16 %v504
    %v2277 = vunpack.c.l.b16 %v505
    %v2278 = vunpack.c.h.b16 %v505
    %v2279 = vunpack.c.l.b16 %v506
    %v2280 = vunpack.c.h.b16 %v506
    %v2281 = vunpack.c.l.b16 %v507
    %v2282 = vunpack.c.h.b16 %v507
    %v2283 = vunpack.c.l.b16 %v508
    %v2284 = vunpack.c.h.b16 %v508
    %v2285 = vunpack.c.l.b16 %v509
    %v2286 = vunpack.c.h.b16 %v509
    %v2287 = vunpack.c.l.b16 %v510
    %v2288 = vunpack.c.h.b16 %v510
    %v2289 = vunpack.c.l.b16 %v511
    %v2290 = vunpack.c.h.b16 %v511
    %v2291 = vunpack.c.l.b16 %v512
    %v2292 = vunpack.c.h.b16 %v512
    %v2293 = vunpack.c.l.b16 %v513
    %v2294 = vunpack.c.h.b16 %v513
    %v2295 = vunpack.c.l.b16 %v514
    %v2296 = vunpack.c.h.b16 %v514
    %v2297 = vunpack.c.l.b16 %v515
    %v2298 = vunpack.c.h.b16 %v515
    %v2299 = vunpack.c.l.b16 %v516
    %v2300 = vunpack.c.h.b16 %v516
    %v2301 = vunpack.c.l.b16 %v517
    %v2302 = vunpack.c.h.b16 %v517
    %v2303 = vunpack.c.l.b16 %v518
    %v2304 = vunpack.c.h.b16 %v518
    %v2305 = vunpack.c.l.b16 %v519
    %v2306 = vunpack.c.h.b16 %v519
    %v2307 = vunpack.c.l.b16 %v520
    %v2308 = vunpack.c.h.b16 %v520
    %v2309 = vunpack.c.l.b16 %v521
    %v2310 = vunpack.c.h.b16 %v521
    %v2311 = vunpack.c.l.b16 %v522
    %v2312 = vunpack.c.h.b16 %v522
    %v2313 = vunpack.c.l.b16 %v523
    %v2314 = vunpack.c.h.b16 %v523
    %v2315 = vunpack.c.l.b16 %v524
    %v2316 = vunpack.c.h.b16 %v524
    %v2317 = vunpack.c.l.b16 %v525
    %v2318 = vunpack.c.h.b16 %v525
    %v2319 = vunpack.c.l.b16 %v526
    %v2320 = vunpack.c.h.b16 %v526
    %v2321 = vunpack.c.l.b16 %v527
    %v2322 = vunpack.c.h.b16 %v527
    %v2323 = vunpack.c.l.b16 %v528
    %v2324 = vunpack.c.h.b16 %v528
    %v2325 = vunpack.c.l.b16 %v529
    %v2326 = vunpack.c.h.b16 %v529
    %v2327 = vunpack.c.l.b16 %v530
    %v2328 = vunpack.c.h.b16 %v530
    %v2329 = vunpack.c.l.b16 %v531
    %v2330 = vunpack.c.h.b16 %v531
    %v2331 = vunpack.c.l.b16 %v532
    %v2332 = vunpack.c.h.b16 %v532
    %v2333 = vunpack.c.l.b16 %v533
    %v2334 = vunpack.c.h.b16 %v533
    %v2335 = vunpack.c.l.b16 %v534
    %v2336 = vunpack.c.h.b16 %v534
    %v2337 = vunpack.c.l.b16 %v535
    %v2338 = vunpack.c.h.b16 %v535
    %v2339 = vunpack.c.l.b16 %v536
    %v2340 = vunpack.c.h.b16 %v536
    %v2341 = vunpack.c.l.b16 %v537
    %v2342 = vunpack.c.h.b16 %v537
    %v2343 = vunpack.c.l.b16 %v538
    %v2344 = vunpack.c.h.b16 %v538
    %v2345 = vunpack.c.l.b16 %v539
    %v2346 = vunpack.c.h.b16 %v539
    %v2347 = vunpack.c.l.b16 %v540
    %v2348 = vunpack.c.h.b16 %v540
    %v2349 = vunpack.c.l.b16 %v541
    %v2350 = vunpack.c.h.b16 %v541
    %v2351 = vunpack.c.l.b16 %v542
    %v2352 = vunpack.c.h.b16 %v542
    %v2353 = vunpack.c.l.b16 %v543
    %v2354 = vunpack.c.h.b16 %v543
    %v2355 = vunpack.c.l.b16 %v544
    %v2356 = vunpack.c.h.b16 %v544
    %v2357 = vunpack.c.l.b16 %v545
    %v2358 = vunpack.c.h.b16 %v545
    %v2359 = vunpack.c.l.b16 %v546
    %v2360 = vunpack.c.h.b16 %v546
    %v2361 = vunpack.c.l.b16 %v547
    %v2362 = vunpack.c.h.b16 %v547
    %v2363 = vunpack.c.l.b16 %v548
    %v2364 = vunpack.c.h.b16 %v548
    %v2365 = vunpack.c.l.b16 %v549
    %v2366 = vunpack.c.h.b16 %v549
    %v2367 = vunpack.c.l.b16 %v550
    %v2368 = vunpack.c.h.b16 %v550
    %v2369 = vunpack.c.l.b16 %v551
    %v2370 = vunpack.c.h.b16 %v551
    %v2371 = vunpack.c.l.b16 %v552
    %v2372 = vunpack.c.h.b16 %v552
    %v2373 = vunpack.c.l.b16 %v553
    %v2374 = vunpack.c.h.b16 %v553
    %v2375 = vunpack.c.l.b16 %v554
    %v2376 = vunpack.c.h.b16 %v554
    %v2377 = vunpack.c.l.b16 %v555
    %v2378 = vunpack.c.h.b16 %v555
    %v2379 = vunpack.c.l.b16 %v556
    %v2380 = vunpack.c.h.b16 %v556
    %v2381 = vunpack.c.l.b16 %v557
    %v2382 = vunpack.c.h.b16 %v557
    %v2383 = vunpack.c.l.b16 %v558
    %v2384 = vunpack.c.h.b16 %v558
    %v2385 = vunpack.c.l.b16 %v559
    %v2386 = vunpack.c.h.b16 %v559
    %v2387 = vunpack.c.l.b16 %v560
    %v2388 = vunpack.c.h.b16 %v560
    %v2389 = vunpack.c.l.b16 %v561
    %v2390 = vunpack.c.h.b16 %v561
    %v2391 = vunpack.c.l.b16 %v562
    %v2392 = vunpack.c.h.b16 %v562
    %v2393 = vunpack.c.l.b16 %v563
    %v2394 = vunpack.c.h.b16 %v563
    %v2395 = vunpack.c.l.b16 %v564
    %v2396 = vunpack.c.h.b16 %v564
    %v2397 = vunpack.c.l.b16 %v565
    %v2398 = vunpack.c.h.b16 %v565
    %v2399 = vunpack.c.l.b16 %v566
    %v2400 = vunpack.c.h.b16 %v566
    %v2401 = vunpack.c.l.b16 %v567
    %v2402 = vunpack.c.h.b16 %v567
    %v2403 = vunpack.c.l.b16 %v568
    %v2404 = vunpack.c.h.b16 %v568
    %v2405 = vunpack.c.l.b16 %v569
    %v2406 = vunpack.c.h.b16 %v569
    %v2407 = vunpack.c.l.b16 %v570
    %v2408 = vunpack.c.h.b16 %v570
    %v2409 = vunpack.c.l.b16 %v571
    %v2410 = vunpack.c.h.b16 %v571
    %v2411 = vunpack.c.l.b16 %v572
    %v2412 = vunpack.c.h.b16 %v572
    %v2413 = vunpack.c.l.b16 %v573
    %v2414 = vunpack.c.h.b16 %v573
    %v2415 = vunpack.c.l.b16 %v574
    %v2416 = vunpack.c.h.b16 %v574
    %v2417 = vunpack.c.l.b16 %v575
    %v2418 = vunpack.c.h.b16 %v575
    %v2419 = vunpack.c.l.b16 %v576
    %v2420 = vunpack.c.h.b16 %v576
    %v2421 = vunpack.c.l.b16 %v577
    %v2422 = vunpack.c.h.b16 %v577
    %v2423 = vunpack.c.l.b16 %v578
    %v2424 = vunpack.c.h.b16 %v578
    %v2425 = vunpack.c.l.b16 %v579
    %v2426 = vunpack.c.h.b16 %v579
    %v2427 = vunpack.c.l.b16 %v580
    %v2428 = vunpack.c.h.b16 %v580
    %v2429 = vunpack.c.l.b16 %v581
    %v2430 = vunpack.c.h.b16 %v581
    %v2431 = vunpack.c.l.b16 %v582
    %v2432 = vunpack.c.h.b16 %v582
    %v2433 = vunpack.c.l.b16 %v583
    %v2434 = vunpack.c.h.b16 %v583
    %v2435 = vunpack.c.l.b16 %v584
    %v2436 = vunpack.c.h.b16 %v584
    %v2437 = vunpack.c.l.b16 %v585
    %v2438 = vunpack.c.h.b16 %v585
    %v2439 = vunpack.c.l.b16 %v586
    %v2440 = vunpack.c.h.b16 %v586
    %v2441 = vunpack.c.l.b16 %v587
    %v2442 = vunpack.c.h.b16 %v587
    %v2443 = vunpack.c.l.b16 %v588
    %v2444 = vunpack.c.h.b16 %v588
    %v2445 = vunpack.c.l.b16 %v589
    %v2446 = vunpack.c.h.b16 %v589
    %v2447 = vunpack.c.l.b16 %v590
    %v2448 = vunpack.c.h.b16 %v590
    %v2449 = vunpack.c.l.b16 %v591
    %v2450 = vunpack.c.h.b16 %v591
    %v2451 = vunpack.c.l.b16 %v592
    %v2452 = vunpack.c.h.b16 %v592
    %v2453 = vunpack.c.l.b16 %v593
    %v2454 = vunpack.c.h.b16 %v593
    %v2455 = vunpack.c.l.b16 %v594
    %v2456 = vunpack.c.h.b16 %v594
    %v2457 = vunpack.c.l.b16 %v595
    %v2458 = vunpack.c.h.b16 %v595
    %v2459 = vunpack.c.l.b16 %v596
    %v2460 = vunpack.c.h.b16 %v596
    %v2461 = vunpack.c.l.b16 %v597
    %v2462 = vunpack.c.h.b16 %v597
    %v2463 = vunpack.c.l.b16 %v598
    %v2464 = vunpack.c.h.b16 %v598
    %v2465 = vunpack.c.l.b16 %v599
    %v2466 = vunpack.c.h.b16 %v599
    %v2467 = vunpack.c.l.b16 %v600
    %v2468 = vunpack.c.h.b16 %v600
    %v2469 = vunpack.c.l.b16 %v601
    %v2470 = vunpack.c.h.b16 %v601
    %v2471 = vunpack.c.l.b16 %v602
    %v2472 = vunpack.c.h.b16 %v602
    %v2473 = vunpack.c.l.b16 %v603
    %v2474 = vunpack.c.h.b16 %v603
    %v2475 = vunpack.c.l.b16 %v604
    %v2476 = vunpack.c.h.b16 %v604
    %v2477 = vunpack.c.l.b16 %v605
    %v2478 = vunpack.c.h.b16 %v605
    %v2479 = vunpack.c.l.b16 %v606
    %v2480 = vunpack.c.h.b16 %v606
    %v2481 = vunpack.c.l.b16 %v607
    %v2482 = vunpack.c.h.b16 %v607
    %v2483 = vunpack.c.l.b16 %v608
    %v2484 = vunpack.c.h.b16 %v608
    %v2485 = vunpack.c.l.b16 %v609
    %v2486 = vunpack.c.h.b16 %v609
    %v2487 = vunpack.c.l.b16 %v610
    %v2488 = vunpack.c.h.b16 %v610
    %v2489 = vunpack.c.l.b16 %v611
    %v2490 = vunpack.c.h.b16 %v611
    %v2491 = vunpack.c.l.b16 %v612
    %v2492 = vunpack.c.h.b16 %v612
    %v2493 = vunpack.c.l.b16 %v613
    %v2494 = vunpack.c.h.b16 %v613
    %v2495 = vunpack.c.l.b16 %v614
    %v2496 = vunpack.c.h.b16 %v614
    %v2497 = vunpack.c.l.b16 %v615
    %v2498 = vunpack.c.h.b16 %v615
    %v2499 = vunpack.c.l.b16 %v616
    %v2500 = vunpack.c.h.b16 %v616
    %v2501 = vunpack.c.l.b16 %v617
    %v2502 = vunpack.c.h.b16 %v617
    %v2503 = vunpack.c.l.b16 %v618
    %v2504 = vunpack.c.h.b16 %v618
    %v2505 = vunpack.c.l.b16 %v619
    %v2506 = vunpack.c.h.b16 %v619
    %v2507 = vunpack.c.l.b16 %v620
    %v2508 = vunpack.c.h.b16 %v620
    %v2509 = vunpack.c.l.b16 %v621
    %v2510 = vunpack.c.h.b16 %v621
    %v2511 = vunpack.c.l.b16 %v622
    %v2512 = vunpack.c.h.b16 %v622
    %v2513 = vunpack.c.l.b16 %v623
    %v2514 = vunpack.c.h.b16 %v623
    %v2515 = vunpack.c.l.b16 %v624
    %v2516 = vunpack.c.h.b16 %v624
    %v2517 = vunpack.c.l.b16 %v625
    %v2518 = vunpack.c.h.b16 %v625
    %v2519 = vunpack.c.l.b16 %v626
    %v2520 = vunpack.c.h.b16 %v626
    %v2521 = vunpack.c.l.b16 %v627
    %v2522 = vunpack.c.h.b16 %v627
    %v2523 = vunpack.c.l.b16 %v628
    %v2524 = vunpack.c.h.b16 %v628
    %v2525 = vunpack.c.l.b16 %v629
    %v2526 = vunpack.c.h.b16 %v629
    %v2527 = vunpack.c.l.b16 %v630
    %v2528 = vunpack.c.h.b16 %v630
    %v2529 = vunpack.c.l.b16 %v631
    %v2530 = vunpack.c.h.b16 %v631
    %v2531 = vunpack.c.l.b16 %v632
    %v2532 = vunpack.c.h.b16 %v632
    %v2533 = vunpack.c.l.b16 %v633
    %v2534 = vunpack.c.h.b16 %v633
    %v2535 = vunpack.c.l.b16 %v634
    %v2536 = vunpack.c.h.b16 %v634
    %v2537 = vunpack.c.l.b16 %v635
    %v2538 = vunpack.c.h.b16 %v635
    %v2539 = vunpack.c.l.b16 %v636
    %v2540 = vunpack.c.h.b16 %v636
    %v2541 = vunpack.c.l.b16 %v637
    %v2542 = vunpack.c.h.b16 %v637
    %v2543 = vunpack.c.l.b16 %v638
    %v2544 = vunpack.c.h.b16 %v638
    %v2545 = vunpack.c.l.b16 %v639
    %v2546 = vunpack.c.h.b16 %v639
    %v2547 = vunpack.c.l.b16 %v640
    %v2548 = vunpack.c.h.b16 %v640
    %v2549 = vpack.c.b16 %v1401, %v1397
    %v2550 = vpack.c.b16 %v1402, %v1398
    %v2551 = vpack.c.b16 %v1403, %v1399
    %v2552 = vpack.c.b16 %v1404, %v1400
    %v2553 = vpack.c.b16 %v1409, %v1405
    %v2554 = vpack.c.b16 %v1410, %v1406
    %v2555 = vpack.c.b16 %v1411, %v1407
    %v2556 = vpack.c.b16 %v1412, %v1408
    %v2557 = vpack.c.b16 %v1417, %v1413
    %v2558 = vpack.c.b16 %v1418, %v1414
    %v2559 = vpack.c.b16 %v1419, %v1415
    %v2560 = vpack.c.b16 %v1420, %v1416
    %v2561 = vpack.c.b16 %v1425, %v1421
    %v2562 = vpack.c.b16 %v1426, %v1422
    %v2563 = vpack.c.b16 %v1427, %v1423
    %v2564 = vpack.c.b16 %v1428, %v1424
    %v2565 = vpack.c.b16 %v1433, %v1429
    %v2566 = vpack.c.b16 %v1434, %v1430
    %v2567 = vpack.c.b16 %v1435, %v1431
    %v2568 = vpack.c.b16 %v1436, %v1432
    %v2569 = vpack.c.b16 %v1441, %v1437
    %v2570 = vpack.c.b16 %v1442, %v1438
    %v2571 = vpack.c.b16 %v1443, %v1439
    %v2572 = vpack.c.b16 %v1444, %v1440
    %v2573 = vpack.c.b16 %v1449, %v1445
    %v2574 = vpack.c.b16 %v1450, %v1446
    %v2575 = vpack.c.b16 %v1451, %v1447
    %v2576 = vpack.c.b16 %v1452, %v1448
    %v2577 = vpack.c.b16 %v1457, %v1453
    %v2578 = vpack.c.b16 %v1458, %v1454
    %v2579 = vpack.c.b16 %v1459, %v1455
    %v2580 = vpack.c.b16 %v1460, %v1456
    %v2581 = vpack.c.b16 %v1465, %v1461
    %v2582 = vpack.c.b16 %v1466, %v1462
    %v2583 = vpack.c.b16 %v1467, %v1463
    %v2584 = vpack.c.b16 %v1468, %v1464
    %v2585 = vpack.c.b16 %v1473, %v1469
    %v2586 = vpack.c.b16 %v1474, %v1470
    %v2587 = vpack.c.b16 %v1475, %v1471
    %v2588 = vpack.c.b16 %v1476, %v1472
    %v2589 = vpack.c.b16 %v1481, %v1477
    %v2590 = vpack.c.b16 %v1482, %v1478
    %v2591 = vpack.c.b16 %v1483, %v1479
    %v2592 = vpack.c.b16 %v1484, %v1480
    %v2593 = vpack.c.b16 %v1489, %v1485
    %v2594 = vpack.c.b16 %v1490, %v1486
    %v2595 = vpack.c.b16 %v1491, %v1487
    %v2596 = vpack.c.b16 %v1492, %v1488
    %v2597 = vpack.c.b16 %v1497, %v1493
    %v2598 = vpack.c.b16 %v1498, %v1494
    %v2599 = vpack.c.b16 %v1499, %v1495
    %v2600 = vpack.c.b16 %v1500, %v1496
    %v2601 = vpack.c.b16 %v1505, %v1501
    %v2602 = vpack.c.b16 %v1506, %v1502
    %v2603 = vpack.c.b16 %v1507, %v1503
    %v2604 = vpack.c.b16 %v1508, %v1504
    %v2605 = vpack.c.b16 %v1513, %v1509
    %v2606 = vpack.c.b16 %v1514, %v1510
    %v2607 = vpack.c.b16 %v1515, %v1511
    %v2608 = vpack.c.b16 %v1516, %v1512
    %v2609 = vpack.c.b16 %v1521, %v1517
    %v2610 = vpack.c.b16 %v1522, %v1518
    %v2611 = vpack.c.b16 %v1523, %v1519
    %v2612 = vpack.c.b16 %v1524, %v1520
    %v2613 = vpack.c.b16 %v1529, %v1525
    %v2614 = vpack.c.b16 %v1530, %v1526
    %v2615 = vpack.c.b16 %v1531, %v1527
    %v2616 = vpack.c.b16 %v1532, %v1528
    %v2617 = vpack.c.b16 %v1537, %v1533
    %v2618 = vpack.c.b16 %v1538, %v1534
    %v2619 = vpack.c.b16 %v1539, %v1535
    %v2620 = vpack.c.b16 %v1540, %v1536
    %v2621 = vpack.c.b16 %v1545, %v1541
    %v2622 = vpack.c.b16 %v1546, %v1542
    %v2623 = vpack.c.b16 %v1547, %v1543
    %v2624 = vpack.c.b16 %v1548, %v1544
    %v2625 = vpack.c.b16 %v1553, %v1549
    %v2626 = vpack.c.b16 %v1554, %v1550
    %v2627 = vpack.c.b16 %v1555, %v1551
    %v2628 = vpack.c.b16 %v1556, %v1552
    %v2629 = vpack.c.b16 %v1561, %v1557
    %v2630 = vpack.c.b16 %v1562, %v1558
    %v2631 = vpack.c.b16 %v1563, %v1559
    %v2632 = vpack.c.b16 %v1564, %v1560
    %v2633 = vpack.c.b16 %v1569, %v1565
    %v2634 = vpack.c.b16 %v1570, %v1566
    %v2635 = vpack.c.b16 %v1571, %v1567
    %v2636 = vpack.c.b16 %v1572, %v1568
    %v2637 = vpack.c.b16 %v1577, %v1573
    %v2638 = vpack.c.b16 %v1578, %v1574
    %v2639 = vpack.c.b16 %v1579, %v1575
    %v2640 = vpack.c.b16 %v1580, %v1576
    %v2641 = vpack.c.b16 %v1585, %v1581
    %v2642 = vpack.c.b16 %v1586, %v1582
    %v2643 = vpack.c.b16 %v1587, %v1583
    %v2644 = vpack.c.b16 %v1588, %v1584
    %v2645 = vpack.c.b16 %v1593, %v1589
    %v2646 = vpack.c.b16 %v1594, %v1590
    %v2647 = vpack.c.b16 %v1595, %v1591
    %v2648 = vpack.c.b16 %v1596, %v1592
    %v2649 = vpack.c.b16 %v1601, %v1597
    %v2650 = vpack.c.b16 %v1602, %v1598
    %v2651 = vpack.c.b16 %v1603, %v1599
    %v2652 = vpack.c.b16 %v1604, %v1600
    %v2653 = vpack.c.b16 %v1609, %v1605
    %v2654 = vpack.c.b16 %v1610, %v1606
    %v2655 = vpack.c.b16 %v1611, %v1607
    %v2656 = vpack.c.b16 %v1612, %v1608
    %v2657 = vpack.c.b16 %v1617, %v1613
    %v2658 = vpack.c.b16 %v1618, %v1614
    %v2659 = vpack.c.b16 %v1619, %v1615
    %v2660 = vpack.c.b16 %v1620, %v1616
    %v2661 = vpack.c.b16 %v1625, %v1621
    %v2662 = vpack.c.b16 %v1626, %v1622
    %v2663 = vpack.c.b16 %v1627, %v1623
    %v2664 = vpack.c.b16 %v1628, %v1624
    %v2665 = vpack.c.b16 %v1633, %v1629
    %v2666 = vpack.c.b16 %v1634, %v1630
    %v2667 = vpack.c.b16 %v1635, %v1631
    %v2668 = vpack.c.b16 %v1636, %v1632
    %v2669 = vpack.c.b16 %v1641, %v1637
    %v2670 = vpack.c.b16 %v1642, %v1638
    %v2671 = vpack.c.b16 %v1643, %v1639
    %v2672 = vpack.c.b16 %v1644, %v1640
    %v2673 = vpack.c.b16 %v1649, %v1645
    %v2674 = vpack.c.b16 %v1650, %v1646
    %v2675 = vpack.c.b16 %v1651, %v1647
    %v2676 = vpack.c.b16 %v1652, %v1648
    %v2677 = vpack.c.b16 %v1657, %v1653
    %v2678 = vpack.c.b16 %v1658, %v1654
    %v2679 = vpack.c.b16 %v1659, %v1655
    %v2680 = vpack.c.b16 %v1660, %v1656
    %v2681 = vpack.c.b16 %v1665, %v1661
    %v2682 = vpack.c.b16 %v1666, %v1662
    %v2683 = vpack.c.b16 %v1667, %v1663
    %v2684 = vpack.c.b16 %v1668, %v1664
    %v2685 = vpack.c.b16 %v1673, %v1669
    %v2686 = vpack.c.b16 %v1674, %v1670
    %v2687 = vpack.c.b16 %v1675, %v1671
    %v2688 = vpack.c.b16 %v1676, %v1672
    %v2689 = vpack.c.b16 %v1681, %v1677
    %v2690 = vpack.c.b16 %v1682, %v1678
    %v2691 = vpack.c.b16 %v1683, %v1679
    %v2692 = vpack.c.b16 %v1684, %v1680
    %v2693 = vpack.c.b16 %v1689, %v1685
    %v2694 = vpack.c.b16 %v1690, %v1686
    %v2695 = vpack.c.b16 %v1691, %v1687
    %v2696 = vpack.c.b16 %v1692, %v1688
    %v2697 = vpack.c.b16 %v1697, %v1693
    %v2698 = vpack.c.b16 %v1698, %v1694
    %v2699 = vpack.c.b16 %v1699, %v1695
    %v2700 = vpack.c.b16 %v1700, %v1696
    %v2701 = vpack.c.b16 %v1705, %v1701
    %v2702 = vpack.c.b16 %v1706, %v1702
    %v2703 = vpack.c.b16 %v1707, %v1703
    %v2704 = vpack.c.b16 %v1708, %v1704
    %v2705 = vpack.c.b16 %v1713, %v1709
    %v2706 = vpack.c.b16 %v1714, %v1710
    %v2707 = vpack.c.b16 %v1715, %v1711
    %v2708 = vpack.c.b16 %v1716, %v1712
    %v2709 = vpack.c.b16 %v1721, %v1717
    %v2710 = vpack.c.b16 %v1722, %v1718
    %v2711 = vpack.c.b16 %v1723, %v1719
    %v2712 = vpack.c.b16 %v1724, %v1720
    %v2713 = vpack.c.b16 %v1729, %v1725
    %v2714 = vpack.c.b16 %v1730, %v1726
    %v2715 = vpack.c.b16 %v1731, %v1727
    %v2716 = vpack.c.b16 %v1732, %v1728
    %v2717 = vpack.c.b16 %v1737, %v1733
    %v2718 = vpack.c.b16 %v1738, %v1734
    %v2719 = vpack.c.b16 %v1739, %v1735
    %v2720 = vpack.c.b16 %v1740, %v1736
    %v2721 = vpack.c.b16 %v1745, %v1741
    %v2722 = vpack.c.b16 %v1746, %v1742
    %v2723 = vpack.c.b16 %v1747, %v1743
    %v2724 = vpack.c.b16 %v1748, %v1744
    %v2725 = vpack.c.b16 %v1753, %v1749
    %v2726 = vpack.c.b16 %v1754, %v1750
    %v2727 = vpack.c.b16 %v1755, %v1751
    %v2728 = vpack.c.b16 %v1756, %v1752
    %v2729 = vpack.c.b16 %v1761, %v1757
    %v2730 = vpack.c.b16 %v1762, %v1758
    %v2731 = vpack.c.b16 %v1763, %v1759
    %v2732 = vpack.c.b16 %v1764, %v1760
    %v2733 = vpack.c.b16 %v1769, %v1765
    %v2734 = vpack.c.b16 %v1770, %v1766
    %v2735 = vpack.c.b16 %v1771, %v1767
    %v2736 = vpack.c.b16 %v1772, %v1768
    %v2737 = vpack.c.b16 %v1777, %v1773
    %v2738 = vpack.c.b16 %v1778, %v1774
    %v2739 = vpack.c.b16 %v1779, %v1775
    %v2740 = vpack.c.b16 %v1780, %v1776
    %v2741 = vpack.c.b16 %v1785, %v1781
    %v2742 = vpack.c.b16 %v1786, %v1782
    %v2743 = vpack.c.b16 %v1787, %v1783
    %v2744 = vpack.c.b16 %v1788, %v1784
    %v2745 = vpack.c.b16 %v1793, %v1789
    %v2746 = vpack.c.b16 %v1794, %v1790
    %v2747 = vpack.c.b16 %v1795, %v1791
    %v2748 = vpack.c.b16 %v1796, %v1792
    %v2749 = vpack.c.b16 %v1801, %v1797
    %v2750 = vpack.c.b16 %v1802, %v1798
    %v2751 = vpack.c.b16 %v1803, %v1799
    %v2752 = vpack.c.b16 %v1804, %v1800
    %v2753 = vpack.c.b16 %v1809, %v1805
    %v2754 = vpack.c.b16 %v1810, %v1806
    %v2755 = vpack.c.b16 %v1811, %v1807
    %v2756 = vpack.c.b16 %v1812, %v1808
    %v2757 = vpack.c.b16 %v1817, %v1813
    %v2758 = vpack.c.b16 %v1818, %v1814
    %v2759 = vpack.c.b16 %v1819, %v1815
    %v2760 = vpack.c.b16 %v1820, %v1816
    %v2761 = vpack.c.b16 %v1825, %v1821
    %v2762 = vpack.c.b16 %v1826, %v1822
    %v2763 = vpack.c.b16 %v1827, %v1823
    %v2764 = vpack.c.b16 %v1828, %v1824
    %v2765 = vpack.c.b16 %v1833, %v1829
    %v2766 = vpack.c.b16 %v1834, %v1830
    %v2767 = vpack.c.b16 %v1835, %v1831
    %v2768 = vpack.c.b16 %v1836, %v1832
    %v2769 = vpack.c.b16 %v1841, %v1837
    %v2770 = vpack.c.b16 %v1842, %v1838
    %v2771 = vpack.c.b16 %v1843, %v1839
    %v2772 = vpack.c.b16 %v1844, %v1840
    %v2773 = vpack.c.b16 %v1849, %v1845
    %v2774 = vpack.c.b16 %v1850, %v1846
    %v2775 = vpack.c.b16 %v1851, %v1847
    %v2776 = vpack.c.b16 %v1852, %v1848
    %v2777 = vpack.c.b16 %v1857, %v1853
    %v2778 = vpack.c.b16 %v1858, %v1854
    %v2779 = vpack.c.b16 %v1859, %v1855
    %v2780 = vpack.c.b16 %v1860, %v1856
    %v2781 = vpack.c.b16 %v1865, %v1861
    %v2782 = vpack.c.b16 %v1866, %v1862
    %v2783 = vpack.c.b16 %v1867, %v1863
    %v2784 = vpack.c.b16 %v1868, %v1864
    %v2785 = vpack.c.b16 %v1873, %v1869
    %v2786 = vpack.c.b16 %v1874, %v1870
    %v2787 = vpack.c.b16 %v1875, %v1871
    %v2788 = vpack.c.b16 %v1876, %v1872
    %v2789 = vpack.c.b16 %v1881, %v1877
    %v2790 = vpack.c.b16 %v1882, %v1878
    %v2791 = vpack.c.b16 %v1883, %v1879
    %v2792 = vpack.c.b16 %v1884, %v1880
    %v2793 = vpack.c.b16 %v1889, %v1885
    %v2794 = vpack.c.b16 %v1890, %v1886
    %v2795 = vpack.c.b16 %v1891, %v1887
    %v2796 = vpack.c.b16 %v1892, %v1888
    %v2797 = vpack.c.b16 %v1897, %v1893
    %v2798 = vpack.c.b16 %v1898, %v1894
    %v2799 = vpack.c.b16 %v1899, %v1895
    %v2800 = vpack.c.b16 %v1900, %v1896
    %v2801 = vpack.c.b16 %v1905, %v1901
    %v2802 = vpack.c.b16 %v1906, %v1902
    %v2803 = vpack.c.b16 %v1907, %v1903
    %v2804 = vpack.c.b16 %v1908, %v1904
    %v2805 = vpack.c.b16 %v1913, %v1909
    %v2806 = vpack.c.b16 %v1914, %v1910
    %v2807 = vpack.c.b16 %v1915, %v1911
    %v2808 = vpack.c.b16 %v1916, %v1912
    %v2809 = vpack.c.b16 %v1921, %v1917
    %v2810 = vpack.c.b16 %v1922, %v1918
    %v2811 = vpack.c.b16 %v1923, %v1919
    %v2812 = vpack.c.b16 %v1924, %v1920
    %v2813 = vpack.c.b16 %v1929, %v1925
    %v2814 = vpack.c.b16 %v1930, %v1926
    %v2815 = vpack.c.b16 %v1931, %v1927
    %v2816 = vpack.c.b16 %v1932, %v1928
    %v2817 = vpack.c.b16 %v1937, %v1933
    %v2818 = vpack.c.b16 %v1938, %v1934
    %v2819 = vpack.c.b16 %v1939, %v1935
    %v2820 = vpack.c.b16 %v1940, %v1936
    %v2821 = vpack.c.b16 %v1945, %v1941
    %v2822 = vpack.c.b16 %v1946, %v1942
    %v2823 = vpack.c.b16 %v1947, %v1943
    %v2824 = vpack.c.b16 %v1948, %v1944
    %v2825 = vpack.c.b16 %v1953, %v1949
    %v2826 = vpack.c.b16 %v1954, %v1950
    %v2827 = vpack.c.b16 %v1955, %v1951
    %v2828 = vpack.c.b16 %v1956, %v1952
    %v2829 = vpack.c.b16 %v1961, %v1957
    %v2830 = vpack.c.b16 %v1962, %v1958
    %v2831 = vpack.c.b16 %v1963, %v1959
    %v2832 = vpack.c.b16 %v1964, %v1960
    %v2833 = vpack.c.b16 %v1969, %v1965
    %v2834 = vpack.c.b16 %v1970, %v1966
    %v2835 = vpack.c.b16 %v1971, %v1967
    %v2836 = vpack.c.b16 %v1972, %v1968
    %v2837 = vpack.c.b16 %v1977, %v1973
    %v2838 = vpack.c.b16 %v1978, %v1974
    %v2839 = vpack.c.b16 %v1979, %v1975
    %v2840 = vpack.c.b16 %v1980, %v1976
    %v2841 = vpack.c.b16 %v1985, %v1981
    %v2842 = vpack.c.b16 %v1986, %v1982
    %v2843 = vpack.c.b16 %v1987, %v1983
    %v2844 = vpack.c.b16 %v1988, %v1984
    %v2845 = vpack.c.b16 %v1993, %v1989
    %v2846 = vpack.c.b16 %v1994, %v1990
    %v2847 = vpack.c.b16 %v1995, %v1991
    %v2848 = vpack.c.b16 %v1996, %v1992
    %v2849 = vpack.c.b16 %v2001, %v1997
    %v2850 = vpack.c.b16 %v2002, %v1998
    %v2851 = vpack.c.b16 %v2003, %v1999
    %v2852 = vpack.c.b16 %v2004, %v2000
    %v2853 = vpack.c.b16 %v2009, %v2005
    %v2854 = vpack.c.b16 %v2010, %v2006
    %v2855 = vpack.c.b16 %v2011, %v2007
    %v2856 = vpack.c.b16 %v2012, %v2008
    %v2857 = vpack.c.b16 %v2017, %v2013
    %v2858 = vpack.c.b16 %v2018, %v2014
    %v2859 = vpack.c.b16 %v2019, %v2015
    %v2860 = vpack.c.b16 %v2020, %v2016
    %v2861 = vpack.c.b16 %v2025, %v2021
    %v2862 = vpack.c.b16 %v2026, %v2022
    %v2863 = vpack.c.b16 %v2027, %v2023
    %v2864 = vpack.c.b16 %v2028, %v2024
    %v2865 = vpack.c.b16 %v2033, %v2029
    %v2866 = vpack.c.b16 %v2034, %v2030
    %v2867 = vpack.c.b16 %v2035, %v2031
    %v2868 = vpack.c.b16 %v2036, %v2032
    %v2869 = vpack.c.b16 %v2041, %v2037
    %v2870 = vpack.c.b16 %v2042, %v2038
    %v2871 = vpack.c.b16 %v2043, %v2039
    %v2872 = vpack.c.b16 %v2044, %v2040
    %v2873 = vpack.c.b16 %v2049, %v2045
    %v2874 = vpack.c.b16 %v2050, %v2046
    %v2875 = vpack.c.b16 %v2051, %v2047
    %v2876 = vpack.c.b16 %v2052, %v2048
    %v2877 = vpack.c.b16 %v2057, %v2053
    %v2878 = vpack.c.b16 %v2058, %v2054
    %v2879 = vpack.c.b16 %v2059, %v2055
    %v2880 = vpack.c.b16 %v2060, %v2056
    %v2881 = vpack.c.b16 %v2065, %v2061
    %v2882 = vpack.c.b16 %v2066, %v2062
    %v2883 = vpack.c.b16 %v2067, %v2063
    %v2884 = vpack.c.b16 %v2068, %v2064
    %v2885 = vpack.c.b16 %v2073, %v2069
    %v2886 = vpack.c.b16 %v2074, %v2070
    %v2887 = vpack.c.b16 %v2075, %v2071
    %v2888 = vpack.c.b16 %v2076, %v2072
    %v2889 = vpack.c.b16 %v2081, %v2077
    %v2890 = vpack.c.b16 %v2082, %v2078
    %v2891 = vpack.c.b16 %v2083, %v2079
    %v2892 = vpack.c.b16 %v2084, %v2080
    %v2893 = vpack.c.b16 %v2089, %v2085
    %v2894 = vpack.c.b16 %v2090, %v2086
    %v2895 = vpack.c.b16 %v2091, %v2087
    %v2896 = vpack.c.b16 %v2092, %v2088
    %v2897 = vpack.c.b16 %v2097, %v2093
    %v2898 = vpack.c.b16 %v2098, %v2094
    %v2899 = vpack.c.b16 %v2099, %v2095
    %v2900 = vpack.c.b16 %v2100, %v2096
    %v2901 = vpack.c.b16 %v2105, %v2101
    %v2902 = vpack.c.b16 %v2106, %v2102
    %v2903 = vpack.c.b16 %v2107, %v2103
    %v2904 = vpack.c.b16 %v2108, %v2104
    %v2905 = vpack.c.b16 %v2113, %v2109
    %v2906 = vpack.c.b16 %v2114, %v2110
    %v2907 = vpack.c.b16 %v2115, %v2111
    %v2908 = vpack.c.b16 %v2116, %v2112
    %v2909 = vpack.c.b16 %v2121, %v2117
    %v2910 = vpack.c.b16 %v2122, %v2118
    %v2911 = vpack.c.b16 %v2123, %v2119
    %v2912 = vpack.c.b16 %v2124, %v2120
    %v2913 = vpack.c.b16 %v2129, %v2125
    %v2914 = vpack.c.b16 %v2130, %v2126
    %v2915 = vpack.c.b16 %v2131, %v2127
    %v2916 = vpack.c.b16 %v2132, %v2128
    %v2917 = vpack.c.b16 %v2137, %v2133
    %v2918 = vpack.c.b16 %v2138, %v2134
    %v2919 = vpack.c.b16 %v2139, %v2135
    %v2920 = vpack.c.b16 %v2140, %v2136
    %v2921 = vpack.c.b16 %v2145, %v2141
    %v2922 = vpack.c.b16 %v2146, %v2142
    %v2923 = vpack.c.b16 %v2147, %v2143
    %v2924 = vpack.c.b16 %v2148, %v2144
    %v2925 = vpack.c.b16 %v2153, %v2149
    %v2926 = vpack.c.b16 %v2154, %v2150
    %v2927 = vpack.c.b16 %v2155, %v2151
    %v2928 = vpack.c.b16 %v2156, %v2152
    %v2929 = vpack.c.b16 %v2161, %v2157
    %v2930 = vpack.c.b16 %v2162, %v2158
    %v2931 = vpack.c.b16 %v2163, %v2159
    %v2932 = vpack.c.b16 %v2164, %v2160
    %v2933 = vpack.c.b16 %v2169, %v2165
    %v2934 = vpack.c.b16 %v2170, %v2166
    %v2935 = vpack.c.b16 %v2171, %v2167
    %v2936 = vpack.c.b16 %v2172, %v2168
    %v2937 = vpack.c.b16 %v2177, %v2173
    %v2938 = vpack.c.b16 %v2178, %v2174
    %v2939 = vpack.c.b16 %v2179, %v2175
    %v2940 = vpack.c.b16 %v2180, %v2176
    %v2941 = vpack.c.b16 %v2185, %v2181
    %v2942 = vpack.c.b16 %v2186, %v2182
    %v2943 = vpack.c.b16 %v2187, %v2183
    %v2944 = vpack.c.b16 %v2188, %v2184
    %v2945 = vpack.c.b16 %v2193, %v2189
    %v2946 = vpack.c.b16 %v2194, %v2190
    %v2947 = vpack.c.b16 %v2195, %v2191
    %v2948 = vpack.c.b16 %v2196, %v2192
    %v2949 = vpack.c.b16 %v2201, %v2197
    %v2950 = vpack.c.b16 %v2202, %v2198
    %v2951 = vpack.c.b16 %v2203, %v2199
    %v2952 = vpack.c.b16 %v2204, %v2200
    %v2953 = vpack.c.b16 %v2209, %v2205
    %v2954 = vpack.c.b16 %v2210, %v2206
    %v2955 = vpack.c.b16 %v2211, %v2207
    %v2956 = vpack.c.b16 %v2212, %v2208
    %v2957 = vpack.c.b16 %v2217, %v2213
    %v2958 = vpack.c.b16 %v2218, %v2214
    %v2959 = vpack.c.b16 %v2219, %v2215
    %v2960 = vpack.c.b16 %v2220, %v2216
    %v2961 = vpack.c.b16 %v2225, %v2221
    %v2962 = vpack.c.b16 %v2226, %v2222
    %v2963 = vpack.c.b16 %v2227, %v2223
    %v2964 = vpack.c.b16 %v2228, %v2224
    %v2965 = vpack.c.b16 %v2233, %v2229
    %v2966 = vpack.c.b16 %v2234, %v2230
    %v2967 = vpack.c.b16 %v2235, %v2231
    %v2968 = vpack.c.b16 %v2236, %v2232
    %v2969 = vpack.c.b16 %v2241, %v2237
    %v2970 = vpack.c.b16 %v2242, %v2238
    %v2971 = vpack.c.b16 %v2243, %v2239
    %v2972 = vpack.c.b16 %v2244, %v2240
    %v2973 = vpack.c.b16 %v2249, %v2245
    %v2974 = vpack.c.b16 %v2250, %v2246
    %v2975 = vpack.c.b16 %v2251, %v2247
    %v2976 = vpack.c.b16 %v2252, %v2248
    %v2977 = vpack.c.b16 %v2257, %v2253
    %v2978 = vpack.c.b16 %v2258, %v2254
    %v2979 = vpack.c.b16 %v2259, %v2255
    %v2980 = vpack.c.b16 %v2260, %v2256
    %v2981 = vpack.c.b16 %v2265, %v2261
    %v2982 = vpack.c.b16 %v2266, %v2262
    %v2983 = vpack.c.b16 %v2267, %v2263
    %v2984 = vpack.c.b16 %v2268, %v2264
    %v2985 = vpack.c.b16 %v2273, %v2269
    %v2986 = vpack.c.b16 %v2274, %v2270
    %v2987 = vpack.c.b16 %v2275, %v2271
    %v2988 = vpack.c.b16 %v2276, %v2272
    %v2989 = vpack.c.b16 %v2281, %v2277
    %v2990 = vpack.c.b16 %v2282, %v2278
    %v2991 = vpack.c.b16 %v2283, %v2279
    %v2992 = vpack.c.b16 %v2284, %v2280
    %v2993 = vpack.c.b16 %v2289, %v2285
    %v2994 = vpack.c.b16 %v2290, %v2286
    %v2995 = vpack.c.b16 %v2291, %v2287
    %v2996 = vpack.c.b16 %v2292, %v2288
    %v2997 = vpack.c.b16 %v2297, %v2293
    %v2998 = vpack.c.b16 %v2298, %v2294
    %v2999 = vpack.c.b16 %v2299, %v2295
    %v3000 = vpack.c.b16 %v2300, %v2296
    %v3001 = vpack.c.b16 %v2305, %v2301
    %v3002 = vpack.c.b16 %v2306, %v2302
    %v3003 = vpack.c.b16 %v2307, %v2303
    %v3004 = vpack.c.b16 %v2308, %v2304
    %v3005 = vpack.c.b16 %v2313, %v2309
    %v3006 = vpack.c.b16 %v2314, %v2310
    %v3007 = vpack.c.b16 %v2315, %v2311
    %v3008 = vpack.c.b16 %v2316, %v2312
    %v3009 = vpack.c.b16 %v2321, %v2317
    %v3010 = vpack.c.b16 %v2322, %v2318
    %v3011 = vpack.c.b16 %v2323, %v2319
    %v3012 = vpack.c.b16 %v2324, %v2320
    %v3013 = vpack.c.b16 %v2329, %v2325
    %v3014 = vpack.c.b16 %v2330, %v2326
    %v3015 = vpack.c.b16 %v2331, %v2327
    %v3016 = vpack.c.b16 %v2332, %v2328
    %v3017 = vpack.c.b16 %v2337, %v2333
    %v3018 = vpack.c.b16 %v2338, %v2334
    %v3019 = vpack.c.b16 %v2339, %v2335
    %v3020 = vpack.c.b16 %v2340, %v2336
    %v3021 = vpack.c.b16 %v2345, %v2341
    %v3022 = vpack.c.b16 %v2346, %v2342
    %v3023 = vpack.c.b16 %v2347, %v2343
    %v3024 = vpack.c.b16 %v2348, %v2344
    %v3025 = vpack.c.b16 %v2353, %v2349
    %v3026 = vpack.c.b16 %v2354, %v2350
    %v3027 = vpack.c.b16 %v2355, %v2351
    %v3028 = vpack.c.b16 %v2356, %v2352
    %v3029 = vpack.c.b16 %v2361, %v2357
    %v3030 = vpack.c.b16 %v2362, %v2358
    %v3031 = vpack.c.b16 %v2363, %v2359
    %v3032 = vpack.c.b16 %v2364, %v2360
    %v3033 = vpack.c.b16 %v2369, %v2365
    %v3034 = vpack.c.b16 %v2370, %v2366
    %v3035 = vpack.c.b16 %v2371, %v2367
    %v3036 = vpack.c.b16 %v2372, %v2368
    %v3037 = vpack.c.b16 %v2377, %v2373
    %v3038 = vpack.c.b16 %v2378, %v2374
    %v3039 = vpack.c.b16 %v2379, %v2375
    %v3040 = vpack.c.b16 %v2380, %v2376
    %v3041 = vpack.c.b16 %v2385, %v2381
    %v3042 = vpack.c.b16 %v2386, %v2382
    %v3043 = vpack.c.b16 %v2387, %v2383
    %v3044 = vpack.c.b16 %v2388, %v2384
    %v3045 = vpack.c.b16 %v2393, %v2389
    %v3046 = vpack.c.b16 %v2394, %v2390
    %v3047 = vpack.c.b16 %v2395, %v2391
    %v3048 = vpack.c.b16 %v2396, %v2392
    %v3049 = vpack.c.b16 %v2401, %v2397
    %v3050 = vpack.c.b16 %v2402, %v2398
    %v3051 = vpack.c.b16 %v2403, %v2399
    %v3052 = vpack.c.b16 %v2404, %v2400
    %v3053 = vpack.c.b16 %v2409, %v2405
    %v3054 = vpack.c.b16 %v2410, %v2406
    %v3055 = vpack.c.b16 %v2411, %v2407
    %v3056 = vpack.c.b16 %v2412, %v2408
    %v3057 = vpack.c.b16 %v2417, %v2413
    %v3058 = vpack.c.b16 %v2418, %v2414
    %v3059 = vpack.c.b16 %v2419, %v2415
    %v3060 = vpack.c.b16 %v2420, %v2416
    %v3061 = vpack.c.b16 %v2425, %v2421
    %v3062 = vpack.c.b16 %v2426, %v2422
    %v3063 = vpack.c.b16 %v2427, %v2423
    %v3064 = vpack.c.b16 %v2428, %v2424
    %v3065 = vpack.c.b16 %v2433, %v2429
    %v3066 = vpack.c.b16 %v2434, %v2430
    %v3067 = vpack.c.b16 %v2435, %v2431
    %v3068 = vpack.c.b16 %v2436, %v2432
    %v3069 = vpack.c.b16 %v2441, %v2437
    %v3070 = vpack.c.b16 %v2442, %v2438
    %v3071 = vpack.c.b16 %v2443, %v2439
    %v3072 = vpack.c.b16 %v2444, %v2440
    %v3073 = vpack.c.b16 %v2449, %v2445
    %v3074 = vpack.c.b16 %v2450, %v2446
    %v3075 = vpack.c.b16 %v2451, %v2447
    %v3076 = vpack.c.b16 %v2452, %v2448
    %v3077 = vpack.c.b16 %v2457, %v2453
    %v3078 = vpack.c.b16 %v2458, %v2454
    %v3079 = vpack.c.b16 %v2459, %v2455
    %v3080 = vpack.c.b16 %v2460, %v2456
    %v3081 = vpack.c.b16 %v2465, %v2461
    %v3082 = vpack.c.b16 %v2466, %v2462
    %v3083 = vpack.c.b16 %v2467, %v2463
    %v3084 = vpack.c.b16 %v2468, %v2464
    %v3085 = vpack.c.b16 %v2473, %v2469
    %v3086 = vpack.c.b16 %v2474, %v2470
    %v3087 = vpack.c.b16 %v2475, %v2471
    %v3088 = vpack.c.b16 %v2476, %v2472
    %v3089 = vpack.c.b16 %v2481, %v2477
    %v3090 = vpack.c.b16 %v2482, %v2478
    %v3091 = vpack.c.b16 %v2483, %v2479
    %v3092 = vpack.c.b16 %v2484, %v2480
    %v3093 = vpack.c.b16 %v2489, %v2485
    %v3094 = vpack.c.b16 %v2490, %v2486
    %v3095 = vpack.c.b16 %v2491, %v2487
    %v3096 = vpack.c.b16 %v2492, %v2488
    %v3097 = vpack.c.b16 %v2497, %v2493
    %v3098 = vpack.c.b16 %v2498, %v2494
    %v3099 = vpack.c.b16 %v2499, %v2495
    %v3100 = vpack.c.b16 %v2500, %v2496
    %v3101 = vpack.c.b16 %v2505, %v2501
    %v3102 = vpack.c.b16 %v2506, %v2502
    %v3103 = vpack.c.b16 %v2507, %v2503
    %v3104 = vpack.c.b16 %v2508, %v2504
    %v3105 = vpack.c.b16 %v2513, %v2509
    %v3106 = vpack.c.b16 %v2514, %v2510
    %v3107 = vpack.c.b16 %v2515, %v2511
    %v3108 = vpack.c.b16 %v2516, %v2512
    %v3109 = vpack.c.b16 %v2521, %v2517
    %v3110 = vpack.c.b16 %v2522, %v2518
    %v3111 = vpack.c.b16 %v2523, %v2519
    %v3112 = vpack.c.b16 %v2524, %v2520
    %v3113 = vpack.c.b16 %v2529, %v2525
    %v3114 = vpack.c.b16 %v2530, %v2526
    %v3115 = vpack.c.b16 %v2531, %v2527
    %v3116 = vpack.c.b16 %v2532, %v2528
    %v3117 = vpack.c.b16 %v2537, %v2533
    %v3118 = vpack.c.b16 %v2538, %v2534
    %v3119 = vpack.c.b16 %v2539, %v2535
    %v3120 = vpack.c.b16 %v2540, %v2536
    %v3121 = vpack.c.b16 %v2545, %v2541
    %v3122 = vpack.c.b16 %v2546, %v2542
    %v3123 = vpack.c.b16 %v2547, %v2543
    %v3124 = vpack.c.b16 %v2548, %v2544
    %3701 = vmatprep.subr.bf16.mxu0 %v2550
    %3702 = vmatpush1.bf16.msra.mxu0 %v2549
    %3703 = vmatprep.subr.bf16.mxu0 %v2554
    %3704 = vmatpush1.bf16.msra.mxu0 %v2553
    %3705 = vmatprep.subr.bf16.mxu0 %v2558
    %3706 = vmatpush1.bf16.msra.mxu0 %v2557
    %3707 = vmatprep.subr.bf16.mxu0 %v2562
    %3708 = vmatpush1.bf16.msra.mxu0 %v2561
    %3709 = vmatprep.subr.bf16.mxu0 %v2566
    %3710 = vmatpush1.bf16.msra.mxu0 %v2565
    %3711 = vmatprep.subr.bf16.mxu0 %v2570
    %3712 = vmatpush1.bf16.msra.mxu0 %v2569
    %3713 = vmatprep.subr.bf16.mxu0 %v2574
    %3714 = vmatpush1.bf16.msra.mxu0 %v2573
    %3715 = vmatprep.subr.bf16.mxu0 %v2578
    %3716 = vmatpush1.bf16.msra.mxu0 %v2577
    %3717 = vmatprep.subr.bf16.mxu0 %v2582
    %3718 = vmatpush1.bf16.msra.mxu0 %v2581
    %3719 = vmatprep.subr.bf16.mxu0 %v2586
    %3720 = vmatpush1.bf16.msra.mxu0 %v2585
    %3721 = vmatprep.subr.bf16.mxu0 %v2590
    %3722 = vmatpush1.bf16.msra.mxu0 %v2589
    %3723 = vmatprep.subr.bf16.mxu0 %v2594
    %3724 = vmatpush1.bf16.msra.mxu0 %v2593
    %3725 = vmatprep.subr.bf16.mxu0 %v2598
    %3726 = vmatpush1.bf16.msra.mxu0 %v2597
    %3727 = vmatprep.subr.bf16.mxu0 %v2602
    %3728 = vmatpush1.bf16.msra.mxu0 %v2601
    %3729 = vmatprep.subr.bf16.mxu0 %v2606
    %3730 = vmatpush1.bf16.msra.mxu0 %v2605
    %3731 = vmatprep.subr.bf16.mxu0 %v2610
    %3732 = vmatpush1.bf16.msra.mxu0 %v2609
    %3733 = vmatprep.mubr.bf16.mxu0 %v750
    %3734 = vmatmul.mubr.bf16.gmra.mrb[0].mxu0 %v749
    %v3735 = vpop.f32.mrb[0].mxu0
    %v3736 = vadd.f32 0.0, %v3735
    %v3737 = vpop.f32.mrb[0].mxu0
    %v3738 = vadd.f32 0.0, %v3737
    %v3739 = vpop.f32.mrb[0].mxu0
    %v3740 = vadd.f32 0.0, %v3739
    %v3741 = vpop.f32.mrb[0].mxu0
    %v3742 = vadd.f32 0.0, %v3741
    %3743 = vmatprep.mubr.bf16.mxu0 %v768
    %3744 = vmatmul.mubr.bf16.gmra.mrb[0].mxu0 %v767
    %v3745 = vpop.f32.mrb[0].mxu0
    %v3746 = vadd.f32 0.0, %v3745
    %v3747 = vpop.f32.mrb[0].mxu0
    %v3748 = vadd.f32 0.0, %v3747
    %v3749 = vpop.f32.mrb[0].mxu0
    %v3750 = vadd.f32 0.0, %v3749
    %v3751 = vpop.f32.mrb[0].mxu0
    %v3752 = vadd.f32 0.0, %v3751
    %3753 = vdwg.mxu0
    %3754 = vmatprep.subr.bf16.mxu0 %v2614
    %3755 = vmatpush1.bf16.msra.mxu0 %v2613
    %3756 = vmatprep.subr.bf16.mxu0 %v2618
    %3757 = vmatpush1.bf16.msra.mxu0 %v2617
    %3758 = vmatprep.subr.bf16.mxu0 %v2622
    %3759 = vmatpush1.bf16.msra.mxu0 %v2621
    %3760 = vmatprep.subr.bf16.mxu0 %v2626
    %3761 = vmatpush1.bf16.msra.mxu0 %v2625
    %3762 = vmatprep.subr.bf16.mxu0 %v2630
    %3763 = vmatpush1.bf16.msra.mxu0 %v2629
    %3764 = vmatprep.subr.bf16.mxu0 %v2634
    %3765 = vmatpush1.bf16.msra.mxu0 %v2633
    %3766 = vmatprep.subr.bf16.mxu0 %v2638
    %3767 = vmatpush1.bf16.msra.mxu0 %v2637
    %3768 = vmatprep.subr.bf16.mxu0 %v2642
    %3769 = vmatpush1.bf16.msra.mxu0 %v2641
    %3770 = vmatprep.subr.bf16.mxu0 %v2646
    %3771 = vmatpush1.bf16.msra.mxu0 %v2645
    %3772 = vmatprep.subr.bf16.mxu0 %v2650
    %3773 = vmatpush1.bf16.msra.mxu0 %v2649
    %3774 = vmatprep.subr.bf16.mxu0 %v2654
    %3775 = vmatpush1.bf16.msra.mxu0 %v2653
    %3776 = vmatprep.subr.bf16.mxu0 %v2658
    %3777 = vmatpush1.bf16.msra.mxu0 %v2657
    %3778 = vmatprep.subr.bf16.mxu0 %v2662
    %3779 = vmatpush1.bf16.msra.mxu0 %v2661
    %3780 = vmatprep.subr.bf16.mxu0 %v2666
    %3781 = vmatpush1.bf16.msra.mxu0 %v2665
    %3782 = vmatprep.subr.bf16.mxu0 %v2670
    %3783 = vmatpush1.bf16.msra.mxu0 %v2669
    %3784 = vmatprep.subr.bf16.mxu0 %v2674
    %3785 = vmatpush1.bf16.msra.mxu0 %v2673
    %3786 = vmatprep.mubr.bf16.mxu0 %v752
    %3787 = vmatmul.mubr.bf16.gmra.mrb[0].mxu0 %v751
    %v3788 = vpop.f32.mrb[0].mxu0
    %v3789 = vadd.f32 %v3736, %v3788
    %v3790 = vpop.f32.mrb[0].mxu0
    %v3791 = vadd.f32 %v3738, %v3790
    %v3792 = vpop.f32.mrb[0].mxu0
    %v3793 = vadd.f32 %v3740, %v3792
    %v3794 = vpop.f32.mrb[0].mxu0
    %v3795 = vadd.f32 %v3742, %v3794
    %3796 = vmatprep.mubr.bf16.mxu0 %v770
    %3797 = vmatmul.mubr.bf16.gmra.mrb[0].mxu0 %v769
    %v3798 = vpop.f32.mrb[0].mxu0
    %v3799 = vadd.f32 %v3746, %v3798
    %v3800 = vpop.f32.mrb[0].mxu0
    %v3801 = vadd.f32 %v3748, %v3800
    %v3802 = vpop.f32.mrb[0].mxu0
    %v3803 = vadd.f32 %v3750, %v3802
    %v3804 = vpop.f32.mrb[0].mxu0
    %v3805 = vadd.f32 %v3752, %v3804
    %3806 = vdwg.mxu0
    %3807 = vmatprep.subr.bf16.mxu0 %v2678
    %3808 = vmatpush1.bf16.msra.mxu0 %v2677
    %3809 = vmatprep.subr.bf16.mxu0 %v2682
    %3810 = vmatpush1.bf16.msra.mxu0 %v2681
    %3811 = vmatprep.subr.bf16.mxu0 %v2686
    %3812 = vmatpush1.bf16.msra.mxu0 %v2685
    %3813 = vmatprep.subr.bf16.mxu0 %v2690
    %3814 = vmatpush1.bf16.msra.mxu0 %v2689
    %3815 = vmatprep.subr.bf16.mxu0 %v2694
    %3816 = vmatpush1.bf16.msra.mxu0 %v2693
    %3817 = vmatprep.subr.bf16.mxu0 %v2698
    %3818 = vmatpush1.bf16.msra.mxu0 %v2697
    %3819 = vmatprep.subr.bf16.mxu0 %v2702
    %3820 = vmatpush1.bf16.msra.mxu0 %v2701
    %3821 = vmatprep.subr.bf16.mxu0 %v2706
    %3822 = vmatpush1.bf16.msra.mxu0 %v2705
    %3823 = vmatprep.subr.bf16.mxu0 %v2710
    %3824 = vmatpush1.bf16.msra.mxu0 %v2709
    %3825 = vmatprep.subr.bf16.mxu0 %v2714
    %3826 = vmatpush1.bf16.msra.mxu0 %v2713
    %3827 = vmatprep.subr.bf16.mxu0 %v2718
    %3828 = vmatpush1.bf16.msra.mxu0 %v2717
    %3829 = vmatprep.subr.bf16.mxu0 %v2722
    %3830 = vmatpush1.bf16.msra.mxu0 %v2721
    %3831 = vmatprep.subr.bf16.mxu0 %v2726
    %3832 = vmatpush1.bf16.msra.mxu0 %v2725
    %3833 = vmatprep.subr.bf16.mxu0 %v2730
    %3834 = vmatpush1.bf16.msra.mxu0 %v2729
    %3835 = vmatprep.subr.bf16.mxu0 %v2734
    %3836 = vmatpush1.bf16.msra.mxu0 %v2733
    %3837 = vmatprep.subr.bf16.mxu0 %v2738
    %3838 = vmatpush1.bf16.msra.mxu0 %v2737
    %3839 = vmatprep.mubr.bf16.mxu0 %v754
    %3840 = vmatmul.mubr.bf16.gmra.mrb[0].mxu0 %v753
    %v3841 = vpop.f32.mrb[0].mxu0
    %v3842 = vadd.f32 %v3789, %v3841
    %v3843 = vpop.f32.mrb[0].mxu0
    %v3844 = vadd.f32 %v3791, %v3843
    %v3845 = vpop.f32.mrb[0].mxu0
    %v3846 = vadd.f32 %v3793, %v3845
    %v3847 = vpop.f32.mrb[0].mxu0
    %v3848 = vadd.f32 %v3795, %v3847
    %3849 = vmatprep.mubr.bf16.mxu0 %v772
    %3850 = vmatmul.mubr.bf16.gmra.mrb[0].mxu0 %v771
    %v3851 = vpop.f32.mrb[0].mxu0
    %v3852 = vadd.f32 %v3799, %v3851
    %v3853 = vpop.f32.mrb[0].mxu0
    %v3854 = vadd.f32 %v3801, %v3853
    %v3855 = vpop.f32.mrb[0].mxu0
    %v3856 = vadd.f32 %v3803, %v3855
    %v3857 = vpop.f32.mrb[0].mxu0
    %v3858 = vadd.f32 %v3805, %v3857
    %3859 = vdwg.mxu0
    %3860 = vmatprep.subr.bf16.mxu0 %v2742
    %3861 = vmatpush1.bf16.msra.mxu0 %v2741
    %3862 = vmatprep.subr.bf16.mxu0 %v2746
    %3863 = vmatpush1.bf16.msra.mxu0 %v2745
    %3864 = vmatprep.subr.bf16.mxu0 %v2750
    %3865 = vmatpush1.bf16.msra.mxu0 %v2749
    %3866 = vmatprep.subr.bf16.mxu0 %v2754
    %3867 = vmatpush1.bf16.msra.mxu0 %v2753
    %3868 = vmatprep.subr.bf16.mxu0 %v2758
    %3869 = vmatpush1.bf16.msra.mxu0 %v2757
    %3870 = vmatprep.subr.bf16.mxu0 %v2762
    %3871 = vmatpush1.bf16.msra.mxu0 %v2761
    %3872 = vmatprep.subr.bf16.mxu0 %v2766
    %3873 = vmatpush1.bf16.msra.mxu0 %v2765
    %3874 = vmatprep.subr.bf16.mxu0 %v2770
    %3875 = vmatpush1.bf16.msra.mxu0 %v2769
    %3876 = vmatprep.subr.bf16.mxu0 %v2774
    %3877 = vmatpush1.bf16.msra.mxu0 %v2773
    %3878 = vmatprep.subr.bf16.mxu0 %v2778
    %3879 = vmatpush1.bf16.msra.mxu0 %v2777
    %3880 = vmatprep.subr.bf16.mxu0 %v2782
    %3881 = vmatpush1.bf16.msra.mxu0 %v2781
    %3882 = vmatprep.subr.bf16.mxu0 %v2786
    %3883 = vmatpush1.bf16.msra.mxu0 %v2785
    %3884 = vmatprep.subr.bf16.mxu0 %v2790
    %3885 = vmatpush1.bf16.msra.mxu0 %v2789
    %3886 = vmatprep.subr.bf16.mxu0 %v2794
    %3887 = vmatpush1.bf16.msra.mxu0 %v2793
    %3888 = vmatprep.subr.bf16.mxu0 %v2798
    %3889 = vmatpush1.bf16.msra.mxu0 %v2797
    %3890 = vmatprep.subr.bf16.mxu0 %v2802
    %3891 = vmatpush1.bf16.msra.mxu0 %v2801
    %3892 = vmatprep.mubr.bf16.mxu0 %v756
    %3893 = vmatmul.mubr.bf16.gmra.mrb[0].mxu0 %v755
    %v3894 = vpop.f32.mrb[0].mxu0
    %v3895 = vadd.f32 %v3842, %v3894
    %v3896 = vpop.f32.mrb[0].mxu0
    %v3897 = vadd.f32 %v3844, %v3896
    %v3898 = vpop.f32.mrb[0].mxu0
    %v3899 = vadd.f32 %v3846, %v3898
    %v3900 = vpop.f32.mrb[0].mxu0
    %v3901 = vadd.f32 %v3848, %v3900
    %3902 = vmatprep.mubr.bf16.mxu0 %v774
    %3903 = vmatmul.mubr.bf16.gmra.mrb[0].mxu0 %v773
    %v3904 = vpop.f32.mrb[0].mxu0
    %v3905 = vadd.f32 %v3852, %v3904
    %v3906 = vpop.f32.mrb[0].mxu0
    %v3907 = vadd.f32 %v3854, %v3906
    %v3908 = vpop.f32.mrb[0].mxu0
    %v3909 = vadd.f32 %v3856, %v3908
    %v3910 = vpop.f32.mrb[0].mxu0
    %v3911 = vadd.f32 %v3858, %v3910
    %3912 = vdwg.mxu0
    %3913 = vmatprep.subr.bf16.mxu0 %v2806
    %3914 = vmatpush1.bf16.msra.mxu0 %v2805
    %3915 = vmatprep.subr.bf16.mxu0 %v2810
    %3916 = vmatpush1.bf16.msra.mxu0 %v2809
    %3917 = vmatprep.subr.bf16.mxu0 %v2814
    %3918 = vmatpush1.bf16.msra.mxu0 %v2813
    %3919 = vmatprep.subr.bf16.mxu0 %v2818
    %3920 = vmatpush1.bf16.msra.mxu0 %v2817
    %3921 = vmatprep.subr.bf16.mxu0 %v2822
    %3922 = vmatpush1.bf16.msra.mxu0 %v2821
    %3923 = vmatprep.subr.bf16.mxu0 %v2826
    %3924 = vmatpush1.bf16.msra.mxu0 %v2825
    %3925 = vmatprep.subr.bf16.mxu0 %v2830
    %3926 = vmatpush1.bf16.msra.mxu0 %v2829
    %3927 = vmatprep.subr.bf16.mxu0 %v2834
    %3928 = vmatpush1.bf16.msra.mxu0 %v2833
    %3929 = vmatprep.subr.bf16.mxu0 %v2838
    %3930 = vmatpush1.bf16.msra.mxu0 %v2837
    %3931 = vmatprep.subr.bf16.mxu0 %v2842
    %3932 = vmatpush1.bf16.msra.mxu0 %v2841
    %3933 = vmatprep.subr.bf16.mxu0 %v2846
    %3934 = vmatpush1.bf16.msra.mxu0 %v2845
    %3935 = vmatprep.subr.bf16.mxu0 %v2850
    %3936 = vmatpush1.bf16.msra.mxu0 %v2849
    %3937 = vmatprep.subr.bf16.mxu0 %v2854
    %3938 = vmatpush1.bf16.msra.mxu0 %v2853
    %3939 = vmatprep.subr.bf16.mxu0 %v2858
    %3940 = vmatpush1.bf16.msra.mxu0 %v2857
    %3941 = vmatprep.subr.bf16.mxu0 %v2862
    %3942 = vmatpush1.bf16.msra.mxu0 %v2861
    %3943 = vmatprep.subr.bf16.mxu0 %v2866
    %3944 = vmatpush1.bf16.msra.mxu0 %v2865
    %3945 = vmatprep.mubr.bf16.mxu0 %v758
    %3946 = vmatmul.mubr.bf16.gmra.mrb[0].mxu0 %v757
    %v3947 = vpop.f32.mrb[0].mxu0
    %v3948 = vadd.f32 %v3895, %v3947
    %v3949 = vpop.f32.mrb[0].mxu0
    %v3950 = vadd.f32 %v3897, %v3949
    %v3951 = vpop.f32.mrb[0].mxu0
    %v3952 = vadd.f32 %v3899, %v3951
    %v3953 = vpop.f32.mrb[0].mxu0
    %v3954 = vadd.f32 %v3901, %v3953
    %3955 = vmatprep.mubr.bf16.mxu0 %v776
    %3956 = vmatmul.mubr.bf16.gmra.mrb[0].mxu0 %v775
    %v3957 = vpop.f32.mrb[0].mxu0
    %v3958 = vadd.f32 %v3905, %v3957
    %v3959 = vpop.f32.mrb[0].mxu0
    %v3960 = vadd.f32 %v3907, %v3959
    %v3961 = vpop.f32.mrb[0].mxu0
    %v3962 = vadd.f32 %v3909, %v3961
    %v3963 = vpop.f32.mrb[0].mxu0
    %v3964 = vadd.f32 %v3911, %v3963
    %3965 = vdwg.mxu0
    %3966 = vmatprep.subr.bf16.mxu0 %v2870
    %3967 = vmatpush1.bf16.msra.mxu0 %v2869
    %3968 = vmatprep.subr.bf16.mxu0 %v2874
    %3969 = vmatpush1.bf16.msra.mxu0 %v2873
    %3970 = vmatprep.subr.bf16.mxu0 %v2878
    %3971 = vmatpush1.bf16.msra.mxu0 %v2877
    %3972 = vmatprep.subr.bf16.mxu0 %v2882
    %3973 = vmatpush1.bf16.msra.mxu0 %v2881
    %3974 = vmatprep.subr.bf16.mxu0 %v2886
    %3975 = vmatpush1.bf16.msra.mxu0 %v2885
    %3976 = vmatprep.subr.bf16.mxu0 %v2890
    %3977 = vmatpush1.bf16.msra.mxu0 %v2889
    %3978 = vmatprep.subr.bf16.mxu0 %v2894
    %3979 = vmatpush1.bf16.msra.mxu0 %v2893
    %3980 = vmatprep.subr.bf16.mxu0 %v2898
    %3981 = vmatpush1.bf16.msra.mxu0 %v2897
    %3982 = vmatprep.subr.bf16.mxu0 %v2902
    %3983 = vmatpush1.bf16.msra.mxu0 %v2901
    %3984 = vmatprep.subr.bf16.mxu0 %v2906
    %3985 = vmatpush1.bf16.msra.mxu0 %v2905
    %3986 = vmatprep.subr.bf16.mxu0 %v2910
    %3987 = vmatpush1.bf16.msra.mxu0 %v2909
    %3988 = vmatprep.subr.bf16.mxu0 %v2914
    %3989 = vmatpush1.bf16.msra.mxu0 %v2913
    %3990 = vmatprep.subr.bf16.mxu0 %v2918
    %3991 = vmatpush1.bf16.msra.mxu0 %v2917
    %3992 = vmatprep.subr.bf16.mxu0 %v2922
    %3993 = vmatpush1.bf16.msra.mxu0 %v2921
    %3994 = vmatprep.subr.bf16.mxu0 %v2926
    %3995 = vmatpush1.bf16.msra.mxu0 %v2925
    %3996 = vmatprep.subr.bf16.mxu0 %v2930
    %3997 = vmatpush1.bf16.msra.mxu0 %v2929
    %3998 = vmatprep.mubr.bf16.mxu0 %v760
    %3999 = vmatmul.mubr.bf16.gmra.mrb[0].mxu0 %v759
    %v4000 = vpop.f32.mrb[0].mxu0
    %v4001 = vadd.f32 %v3948, %v4000
    %v4002 = vpop.f32.mrb[0].mxu0
    %v4003 = vadd.f32 %v3950, %v4002
    %v4004 = vpop.f32.mrb[0].mxu0
    %v4005 = vadd.f32 %v3952, %v4004
    %v4006 = vpop.f32.mrb[0].mxu0
    %v4007 = vadd.f32 %v3954, %v4006
    %4008 = vmatprep.mubr.bf16.mxu0 %v778
    %4009 = vmatmul.mubr.bf16.gmra.mrb[0].mxu0 %v777
    %v4010 = vpop.f32.mrb[0].mxu0
    %v4011 = vadd.f32 %v3958, %v4010
    %v4012 = vpop.f32.mrb[0].mxu0
    %v4013 = vadd.f32 %v3960, %v4012
    %v4014 = vpop.f32.mrb[0].mxu0
    %v4015 = vadd.f32 %v3962, %v4014
    %v4016 = vpop.f32.mrb[0].mxu0
    %v4017 = vadd.f32 %v3964, %v4016
    %4018 = vdwg.mxu0
    %4019 = vmatprep.subr.bf16.mxu0 %v2934
    %4020 = vmatpush1.bf16.msra.mxu0 %v2933
    %4021 = vmatprep.subr.bf16.mxu0 %v2938
    %4022 = vmatpush1.bf16.msra.mxu0 %v2937
    %4023 = vmatprep.subr.bf16.mxu0 %v2942
    %4024 = vmatpush1.bf16.msra.mxu0 %v2941
    %4025 = vmatprep.subr.bf16.mxu0 %v2946
    %4026 = vmatpush1.bf16.msra.mxu0 %v2945
    %4027 = vmatprep.subr.bf16.mxu0 %v2950
    %4028 = vmatpush1.bf16.msra.mxu0 %v2949
    %4029 = vmatprep.subr.bf16.mxu0 %v2954
    %4030 = vmatpush1.bf16.msra.mxu0 %v2953
    %4031 = vmatprep.subr.bf16.mxu0 %v2958
    %4032 = vmatpush1.bf16.msra.mxu0 %v2957
    %4033 = vmatprep.subr.bf16.mxu0 %v2962
    %4034 = vmatpush1.bf16.msra.mxu0 %v2961
    %4035 = vmatprep.subr.bf16.mxu0 %v2966
    %4036 = vmatpush1.bf16.msra.mxu0 %v2965
    %4037 = vmatprep.subr.bf16.mxu0 %v2970
    %4038 = vmatpush1.bf16.msra.mxu0 %v2969
    %4039 = vmatprep.subr.bf16.mxu0 %v2974
    %4040 = vmatpush1.bf16.msra.mxu0 %v2973
    %4041 = vmatprep.subr.bf16.mxu0 %v2978
    %4042 = vmatpush1.bf16.msra.mxu0 %v2977
    %4043 = vmatprep.subr.bf16.mxu0 %v2982
    %4044 = vmatpush1.bf16.msra.mxu0 %v2981
    %4045 = vmatprep.subr.bf16.mxu0 %v2986
    %4046 = vmatpush1.bf16.msra.mxu0 %v2985
    %4047 = vmatprep.subr.bf16.mxu0 %v2990
    %4048 = vmatpush1.bf16.msra.mxu0 %v2989
    %4049 = vmatprep.subr.bf16.mxu0 %v2994
    %4050 = vmatpush1.bf16.msra.mxu0 %v2993
    %4051 = vmatprep.mubr.bf16.mxu0 %v762
    %4052 = vmatmul.mubr.bf16.gmra.mrb[0].mxu0 %v761
    %v4053 = vpop.f32.mrb[0].mxu0
    %v4054 = vadd.f32 %v4001, %v4053
    %v4055 = vpop.f32.mrb[0].mxu0
    %v4056 = vadd.f32 %v4003, %v4055
    %v4057 = vpop.f32.mrb[0].mxu0
    %v4058 = vadd.f32 %v4005, %v4057
    %v4059 = vpop.f32.mrb[0].mxu0
    %v4060 = vadd.f32 %v4007, %v4059
    %4061 = vmatprep.mubr.bf16.mxu0 %v780
    %4062 = vmatmul.mubr.bf16.gmra.mrb[0].mxu0 %v779
    %v4063 = vpop.f32.mrb[0].mxu0
    %v4064 = vadd.f32 %v4011, %v4063
    %v4065 = vpop.f32.mrb[0].mxu0
    %v4066 = vadd.f32 %v4013, %v4065
    %v4067 = vpop.f32.mrb[0].mxu0
    %v4068 = vadd.f32 %v4015, %v4067
    %v4069 = vpop.f32.mrb[0].mxu0
    %v4070 = vadd.f32 %v4017, %v4069
    %4071 = vdwg.mxu0
    %4072 = vmatprep.subr.bf16.mxu0 %v2998
    %4073 = vmatpush1.bf16.msra.mxu0 %v2997
    %4074 = vmatprep.subr.bf16.mxu0 %v3002
    %4075 = vmatpush1.bf16.msra.mxu0 %v3001
    %4076 = vmatprep.subr.bf16.mxu0 %v3006
    %4077 = vmatpush1.bf16.msra.mxu0 %v3005
    %4078 = vmatprep.subr.bf16.mxu0 %v3010
    %4079 = vmatpush1.bf16.msra.mxu0 %v3009
    %4080 = vmatprep.subr.bf16.mxu0 %v3014
    %4081 = vmatpush1.bf16.msra.mxu0 %v3013
    %4082 = vmatprep.subr.bf16.mxu0 %v3018
    %4083 = vmatpush1.bf16.msra.mxu0 %v3017
    %4084 = vmatprep.subr.bf16.mxu0 %v3022
    %4085 = vmatpush1.bf16.msra.mxu0 %v3021
    %4086 = vmatprep.subr.bf16.mxu0 %v3026
    %4087 = vmatpush1.bf16.msra.mxu0 %v3025
    %4088 = vmatprep.subr.bf16.mxu0 %v3030
    %4089 = vmatpush1.bf16.msra.mxu0 %v3029
    %4090 = vmatprep.subr.bf16.mxu0 %v3034
    %4091 = vmatpush1.bf16.msra.mxu0 %v3033
    %4092 = vmatprep.subr.bf16.mxu0 %v3038
    %4093 = vmatpush1.bf16.msra.mxu0 %v3037
    %4094 = vmatprep.subr.bf16.mxu0 %v3042
    %4095 = vmatpush1.bf16.msra.mxu0 %v3041
    %4096 = vmatprep.subr.bf16.mxu0 %v3046
    %4097 = vmatpush1.bf16.msra.mxu0 %v3045
    %4098 = vmatprep.subr.bf16.mxu0 %v3050
    %4099 = vmatpush1.bf16.msra.mxu0 %v3049
    %4100 = vmatprep.subr.bf16.mxu0 %v3054
    %4101 = vmatpush1.bf16.msra.mxu0 %v3053
    %4102 = vmatprep.subr.bf16.mxu0 %v3058
    %4103 = vmatpush1.bf16.msra.mxu0 %v3057
    %4104 = vmatprep.mubr.bf16.mxu0 %v764
    %4105 = vmatmul.mubr.bf16.gmra.mrb[0].mxu0 %v763
    %v4106 = vpop.f32.mrb[0].mxu0
    %v4107 = vadd.f32 %v4054, %v4106
    %v4108 = vpop.f32.mrb[0].mxu0
    %v4109 = vadd.f32 %v4056, %v4108
    %v4110 = vpop.f32.mrb[0].mxu0
    %v4111 = vadd.f32 %v4058, %v4110
    %v4112 = vpop.f32.mrb[0].mxu0
    %v4113 = vadd.f32 %v4060, %v4112
    %4114 = vmatprep.mubr.bf16.mxu0 %v782
    %4115 = vmatmul.mubr.bf16.gmra.mrb[0].mxu0 %v781
    %v4116 = vpop.f32.mrb[0].mxu0
    %v4117 = vadd.f32 %v4064, %v4116
    %v4118 = vpop.f32.mrb[0].mxu0
    %v4119 = vadd.f32 %v4066, %v4118
    %v4120 = vpop.f32.mrb[0].mxu0
    %v4121 = vadd.f32 %v4068, %v4120
    %v4122 = vpop.f32.mrb[0].mxu0
    %v4123 = vadd.f32 %v4070, %v4122
    %4124 = vdwg.mxu0
    %4125 = vmatprep.subr.bf16.mxu0 %v3062
    %4126 = vmatpush1.bf16.msra.mxu0 %v3061
    %4127 = vmatprep.subr.bf16.mxu0 %v3066
    %4128 = vmatpush1.bf16.msra.mxu0 %v3065
    %4129 = vmatprep.subr.bf16.mxu0 %v3070
    %4130 = vmatpush1.bf16.msra.mxu0 %v3069
    %4131 = vmatprep.subr.bf16.mxu0 %v3074
    %4132 = vmatpush1.bf16.msra.mxu0 %v3073
    %4133 = vmatprep.subr.bf16.mxu0 %v3078
    %4134 = vmatpush1.bf16.msra.mxu0 %v3077
    %4135 = vmatprep.subr.bf16.mxu0 %v3082
    %4136 = vmatpush1.bf16.msra.mxu0 %v3081
    %4137 = vmatprep.subr.bf16.mxu0 %v3086
    %4138 = vmatpush1.bf16.msra.mxu0 %v3085
    %4139 = vmatprep.subr.bf16.mxu0 %v3090
    %4140 = vmatpush1.bf16.msra.mxu0 %v3089
    %4141 = vmatprep.subr.bf16.mxu0 %v3094
    %4142 = vmatpush1.bf16.msra.mxu0 %v3093
    %4143 = vmatprep.subr.bf16.mxu0 %v3098
    %4144 = vmatpush1.bf16.msra.mxu0 %v3097
    %4145 = vmatprep.subr.bf16.mxu0 %v3102
    %4146 = vmatpush1.bf16.msra.mxu0 %v3101
    %4147 = vmatprep.subr.bf16.mxu0 %v3106
    %4148 = vmatpush1.bf16.msra.mxu0 %v3105
    %4149 = vmatprep.subr.bf16.mxu0 %v3110
    %4150 = vmatpush1.bf16.msra.mxu0 %v3109
    %4151 = vmatprep.subr.bf16.mxu0 %v3114
    %4152 = vmatpush1.bf16.msra.mxu0 %v3113
    %4153 = vmatprep.subr.bf16.mxu0 %v3118
    %4154 = vmatpush1.bf16.msra.mxu0 %v3117
    %4155 = vmatprep.subr.bf16.mxu0 %v3122
    %4156 = vmatpush1.bf16.msra.mxu0 %v3121
    %4157 = vmatprep.mubr.bf16.mxu0 %v766
    %4158 = vmatmul.mubr.bf16.gmra.mrb[0].mxu0 %v765
    %v4159 = vpop.f32.mrb[0].mxu0
    %v4160 = vadd.f32 %v4107, %v4159
    %v4161 = vpop.f32.mrb[0].mxu0
    %v4162 = vadd.f32 %v4109, %v4161
    %v4163 = vpop.f32.mrb[0].mxu0
    %v4164 = vadd.f32 %v4111, %v4163
    %v4165 = vpop.f32.mrb[0].mxu0
    %v4166 = vadd.f32 %v4113, %v4165
    %4167 = vmatprep.mubr.bf16.mxu0 %v784
    %4168 = vmatmul.mubr.bf16.gmra.mrb[0].mxu0 %v783
    %v4169 = vpop.f32.mrb[0].mxu0
    %v4170 = vadd.f32 %v4117, %v4169
    %v4171 = vpop.f32.mrb[0].mxu0
    %v4172 = vadd.f32 %v4119, %v4171
    %v4173 = vpop.f32.mrb[0].mxu0
    %v4174 = vadd.f32 %v4121, %v4173
    %v4175 = vpop.f32.mrb[0].mxu0
    %v4176 = vadd.f32 %v4123, %v4175
    %4177 = vdwg.mxu0
    %4178 = vmatprep.subr.bf16.mxu0 %v2552
    %4179 = vmatpush1.bf16.msra.mxu0 %v2551
    %4180 = vmatprep.subr.bf16.mxu0 %v2556
    %4181 = vmatpush1.bf16.msra.mxu0 %v2555
    %4182 = vmatprep.subr.bf16.mxu0 %v2560
    %4183 = vmatpush1.bf16.msra.mxu0 %v2559
    %4184 = vmatprep.subr.bf16.mxu0 %v2564
    %4185 = vmatpush1.bf16.msra.mxu0 %v2563
    %4186 = vmatprep.subr.bf16.mxu0 %v2568
    %4187 = vmatpush1.bf16.msra.mxu0 %v2567
    %4188 = vmatprep.subr.bf16.mxu0 %v2572
    %4189 = vmatpush1.bf16.msra.mxu0 %v2571
    %4190 = vmatprep.subr.bf16.mxu0 %v2576
    %4191 = vmatpush1.bf16.msra.mxu0 %v2575
    %4192 = vmatprep.subr.bf16.mxu0 %v2580
    %4193 = vmatpush1.bf16.msra.mxu0 %v2579
    %4194 = vmatprep.subr.bf16.mxu0 %v2584
    %4195 = vmatpush1.bf16.msra.mxu0 %v2583
    %4196 = vmatprep.subr.bf16.mxu0 %v2588
    %4197 = vmatpush1.bf16.msra.mxu0 %v2587
    %4198 = vmatprep.subr.bf16.mxu0 %v2592
    %4199 = vmatpush1.bf16.msra.mxu0 %v2591
    %4200 = vmatprep.subr.bf16.mxu0 %v2596
    %4201 = vmatpush1.bf16.msra.mxu0 %v2595
    %4202 = vmatprep.subr.bf16.mxu0 %v2600
    %4203 = vmatpush1.bf16.msra.mxu0 %v2599
    %4204 = vmatprep.subr.bf16.mxu0 %v2604
    %4205 = vmatpush1.bf16.msra.mxu0 %v2603
    %4206 = vmatprep.subr.bf16.mxu0 %v2608
    %4207 = vmatpush1.bf16.msra.mxu0 %v2607
    %4208 = vmatprep.subr.bf16.mxu0 %v2612
    %4209 = vmatpush1.bf16.msra.mxu0 %v2611
    %4210 = vmatprep.mubr.bf16.mxu0 %v750
    %4211 = vmatmul.mubr.bf16.gmra.mrb[0].mxu0 %v749
    %v4212 = vpop.f32.mrb[0].mxu0
    %v4213 = vadd.f32 0.0, %v4212
    %v4214 = vpop.f32.mrb[0].mxu0
    %v4215 = vadd.f32 0.0, %v4214
    %v4216 = vpop.f32.mrb[0].mxu0
    %v4217 = vadd.f32 0.0, %v4216
    %v4218 = vpop.f32.mrb[0].mxu0
    %v4219 = vadd.f32 0.0, %v4218
    %4220 = vmatprep.mubr.bf16.mxu0 %v768
    %4221 = vmatmul.mubr.bf16.gmra.mrb[0].mxu0 %v767
    %v4222 = vpop.f32.mrb[0].mxu0
    %v4223 = vadd.f32 0.0, %v4222
    %v4224 = vpop.f32.mrb[0].mxu0
    %v4225 = vadd.f32 0.0, %v4224
    %v4226 = vpop.f32.mrb[0].mxu0
    %v4227 = vadd.f32 0.0, %v4226
    %v4228 = vpop.f32.mrb[0].mxu0
    %v4229 = vadd.f32 0.0, %v4228
    %4230 = vdwg.mxu0
    %4231 = vmatprep.subr.bf16.mxu0 %v2616
    %4232 = vmatpush1.bf16.msra.mxu0 %v2615
    %4233 = vmatprep.subr.bf16.mxu0 %v2620
    %4234 = vmatpush1.bf16.msra.mxu0 %v2619
    %4235 = vmatprep.subr.bf16.mxu0 %v2624
    %4236 = vmatpush1.bf16.msra.mxu0 %v2623
    %4237 = vmatprep.subr.bf16.mxu0 %v2628
    %4238 = vmatpush1.bf16.msra.mxu0 %v2627
    %4239 = vmatprep.subr.bf16.mxu0 %v2632
    %4240 = vmatpush1.bf16.msra.mxu0 %v2631
    %4241 = vmatprep.subr.bf16.mxu0 %v2636
    %4242 = vmatpush1.bf16.msra.mxu0 %v2635
    %4243 = vmatprep.subr.bf16.mxu0 %v2640
    %4244 = vmatpush1.bf16.msra.mxu0 %v2639
    %4245 = vmatprep.subr.bf16.mxu0 %v2644
    %4246 = vmatpush1.bf16.msra.mxu0 %v2643
    %4247 = vmatprep.subr.bf16.mxu0 %v2648
    %4248 = vmatpush1.bf16.msra.mxu0 %v2647
    %4249 = vmatprep.subr.bf16.mxu0 %v2652
    %4250 = vmatpush1.bf16.msra.mxu0 %v2651
    %4251 = vmatprep.subr.bf16.mxu0 %v2656
    %4252 = vmatpush1.bf16.msra.mxu0 %v2655
    %4253 = vmatprep.subr.bf16.mxu0 %v2660
    %4254 = vmatpush1.bf16.msra.mxu0 %v2659
    %4255 = vmatprep.subr.bf16.mxu0 %v2664
    %4256 = vmatpush1.bf16.msra.mxu0 %v2663
    %4257 = vmatprep.subr.bf16.mxu0 %v2668
    %4258 = vmatpush1.bf16.msra.mxu0 %v2667
    %4259 = vmatprep.subr.bf16.mxu0 %v2672
    %4260 = vmatpush1.bf16.msra.mxu0 %v2671
    %4261 = vmatprep.subr.bf16.mxu0 %v2676
    %4262 = vmatpush1.bf16.msra.mxu0 %v2675
    %4263 = vmatprep.mubr.bf16.mxu0 %v752
    %4264 = vmatmul.mubr.bf16.gmra.mrb[0].mxu0 %v751
    %v4265 = vpop.f32.mrb[0].mxu0
    %v4266 = vadd.f32 %v4213, %v4265
    %v4267 = vpop.f32.mrb[0].mxu0
    %v4268 = vadd.f32 %v4215, %v4267
    %v4269 = vpop.f32.mrb[0].mxu0
    %v4270 = vadd.f32 %v4217, %v4269
    %v4271 = vpop.f32.mrb[0].mxu0
    %v4272 = vadd.f32 %v4219, %v4271
    %4273 = vmatprep.mubr.bf16.mxu0 %v770
    %4274 = vmatmul.mubr.bf16.gmra.mrb[0].mxu0 %v769
    %v4275 = vpop.f32.mrb[0].mxu0
    %v4276 = vadd.f32 %v4223, %v4275
    %v4277 = vpop.f32.mrb[0].mxu0
    %v4278 = vadd.f32 %v4225, %v4277
    %v4279 = vpop.f32.mrb[0].mxu0
    %v4280 = vadd.f32 %v4227, %v4279
    %v4281 = vpop.f32.mrb[0].mxu0
    %v4282 = vadd.f32 %v4229, %v4281
    %4283 = vdwg.mxu0
    %4284 = vmatprep.subr.bf16.mxu0 %v2680
    %4285 = vmatpush1.bf16.msra.mxu0 %v2679
    %4286 = vmatprep.subr.bf16.mxu0 %v2684
    %4287 = vmatpush1.bf16.msra.mxu0 %v2683
    %4288 = vmatprep.subr.bf16.mxu0 %v2688
    %4289 = vmatpush1.bf16.msra.mxu0 %v2687
    %4290 = vmatprep.subr.bf16.mxu0 %v2692
    %4291 = vmatpush1.bf16.msra.mxu0 %v2691
    %4292 = vmatprep.subr.bf16.mxu0 %v2696
    %4293 = vmatpush1.bf16.msra.mxu0 %v2695
    %4294 = vmatprep.subr.bf16.mxu0 %v2700
    %4295 = vmatpush1.bf16.msra.mxu0 %v2699
    %4296 = vmatprep.subr.bf16.mxu0 %v2704
    %4297 = vmatpush1.bf16.msra.mxu0 %v2703
    %4298 = vmatprep.subr.bf16.mxu0 %v2708
    %4299 = vmatpush1.bf16.msra.mxu0 %v2707
    %4300 = vmatprep.subr.bf16.mxu0 %v2712
    %4301 = vmatpush1.bf16.msra.mxu0 %v2711
    %4302 = vmatprep.subr.bf16.mxu0 %v2716
    %4303 = vmatpush1.bf16.msra.mxu0 %v2715
    %4304 = vmatprep.subr.bf16.mxu0 %v2720
    %4305 = vmatpush1.bf16.msra.mxu0 %v2719
    %4306 = vmatprep.subr.bf16.mxu0 %v2724
    %4307 = vmatpush1.bf16.msra.mxu0 %v2723
    %4308 = vmatprep.subr.bf16.mxu0 %v2728
    %4309 = vmatpush1.bf16.msra.mxu0 %v2727
    %4310 = vmatprep.subr.bf16.mxu0 %v2732
    %4311 = vmatpush1.bf16.msra.mxu0 %v2731
    %4312 = vmatprep.subr.bf16.mxu0 %v2736
    %4313 = vmatpush1.bf16.msra.mxu0 %v2735
    %4314 = vmatprep.subr.bf16.mxu0 %v2740
    %4315 = vmatpush1.bf16.msra.mxu0 %v2739
    %4316 = vmatprep.mubr.bf16.mxu0 %v754
    %4317 = vmatmul.mubr.bf16.gmra.mrb[0].mxu0 %v753
    %v4318 = vpop.f32.mrb[0].mxu0
    %v4319 = vadd.f32 %v4266, %v4318
    %v4320 = vpop.f32.mrb[0].mxu0
    %v4321 = vadd.f32 %v4268, %v4320
    %v4322 = vpop.f32.mrb[0].mxu0
    %v4323 = vadd.f32 %v4270, %v4322
    %v4324 = vpop.f32.mrb[0].mxu0
    %v4325 = vadd.f32 %v4272, %v4324
    %4326 = vmatprep.mubr.bf16.mxu0 %v772
    %4327 = vmatmul.mubr.bf16.gmra.mrb[0].mxu0 %v771
    %v4328 = vpop.f32.mrb[0].mxu0
    %v4329 = vadd.f32 %v4276, %v4328
    %v4330 = vpop.f32.mrb[0].mxu0
    %v4331 = vadd.f32 %v4278, %v4330
    %v4332 = vpop.f32.mrb[0].mxu0
    %v4333 = vadd.f32 %v4280, %v4332
    %v4334 = vpop.f32.mrb[0].mxu0
    %v4335 = vadd.f32 %v4282, %v4334
    %4336 = vdwg.mxu0
    %4337 = vmatprep.subr.bf16.mxu0 %v2744
    %4338 = vmatpush1.bf16.msra.mxu0 %v2743
    %4339 = vmatprep.subr.bf16.mxu0 %v2748
    %4340 = vmatpush1.bf16.msra.mxu0 %v2747
    %4341 = vmatprep.subr.bf16.mxu0 %v2752
    %4342 = vmatpush1.bf16.msra.mxu0 %v2751
    %4343 = vmatprep.subr.bf16.mxu0 %v2756
    %4344 = vmatpush1.bf16.msra.mxu0 %v2755
    %4345 = vmatprep.subr.bf16.mxu0 %v2760
    %4346 = vmatpush1.bf16.msra.mxu0 %v2759
    %4347 = vmatprep.subr.bf16.mxu0 %v2764
    %4348 = vmatpush1.bf16.msra.mxu0 %v2763
    %4349 = vmatprep.subr.bf16.mxu0 %v2768
    %4350 = vmatpush1.bf16.msra.mxu0 %v2767
    %4351 = vmatprep.subr.bf16.mxu0 %v2772
    %4352 = vmatpush1.bf16.msra.mxu0 %v2771
    %4353 = vmatprep.subr.bf16.mxu0 %v2776
    %4354 = vmatpush1.bf16.msra.mxu0 %v2775
    %4355 = vmatprep.subr.bf16.mxu0 %v2780
    %4356 = vmatpush1.bf16.msra.mxu0 %v2779
    %4357 = vmatprep.subr.bf16.mxu0 %v2784
    %4358 = vmatpush1.bf16.msra.mxu0 %v2783
    %4359 = vmatprep.subr.bf16.mxu0 %v2788
    %4360 = vmatpush1.bf16.msra.mxu0 %v2787
    %4361 = vmatprep.subr.bf16.mxu0 %v2792
    %4362 = vmatpush1.bf16.msra.mxu0 %v2791
    %4363 = vmatprep.subr.bf16.mxu0 %v2796
    %4364 = vmatpush1.bf16.msra.mxu0 %v2795
    %4365 = vmatprep.subr.bf16.mxu0 %v2800
    %4366 = vmatpush1.bf16.msra.mxu0 %v2799
    %4367 = vmatprep.subr.bf16.mxu0 %v2804
    %4368 = vmatpush1.bf16.msra.mxu0 %v2803
    %4369 = vmatprep.mubr.bf16.mxu0 %v756
    %4370 = vmatmul.mubr.bf16.gmra.mrb[0].mxu0 %v755
    %v4371 = vpop.f32.mrb[0].mxu0
    %v4372 = vadd.f32 %v4319, %v4371
    %v4373 = vpop.f32.mrb[0].mxu0
    %v4374 = vadd.f32 %v4321, %v4373
    %v4375 = vpop.f32.mrb[0].mxu0
    %v4376 = vadd.f32 %v4323, %v4375
    %v4377 = vpop.f32.mrb[0].mxu0
    %v4378 = vadd.f32 %v4325, %v4377
    %4379 = vmatprep.mubr.bf16.mxu0 %v774
    %4380 = vmatmul.mubr.bf16.gmra.mrb[0].mxu0 %v773
    %v4381 = vpop.f32.mrb[0].mxu0
    %v4382 = vadd.f32 %v4329, %v4381
    %v4383 = vpop.f32.mrb[0].mxu0
    %v4384 = vadd.f32 %v4331, %v4383
    %v4385 = vpop.f32.mrb[0].mxu0
    %v4386 = vadd.f32 %v4333, %v4385
    %v4387 = vpop.f32.mrb[0].mxu0
    %v4388 = vadd.f32 %v4335, %v4387
    %4389 = vdwg.mxu0
    %4390 = vmatprep.subr.bf16.mxu0 %v2808
    %4391 = vmatpush1.bf16.msra.mxu0 %v2807
    %4392 = vmatprep.subr.bf16.mxu0 %v2812
    %4393 = vmatpush1.bf16.msra.mxu0 %v2811
    %4394 = vmatprep.subr.bf16.mxu0 %v2816
    %4395 = vmatpush1.bf16.msra.mxu0 %v2815
    %4396 = vmatprep.subr.bf16.mxu0 %v2820
    %4397 = vmatpush1.bf16.msra.mxu0 %v2819
    %4398 = vmatprep.subr.bf16.mxu0 %v2824
    %4399 = vmatpush1.bf16.msra.mxu0 %v2823
    %4400 = vmatprep.subr.bf16.mxu0 %v2828
    %4401 = vmatpush1.bf16.msra.mxu0 %v2827
    %4402 = vmatprep.subr.bf16.mxu0 %v2832
    %4403 = vmatpush1.bf16.msra.mxu0 %v2831
    %4404 = vmatprep.subr.bf16.mxu0 %v2836
    %4405 = vmatpush1.bf16.msra.mxu0 %v2835
    %4406 = vmatprep.subr.bf16.mxu0 %v2840
    %4407 = vmatpush1.bf16.msra.mxu0 %v2839
    %4408 = vmatprep.subr.bf16.mxu0 %v2844
    %4409 = vmatpush1.bf16.msra.mxu0 %v2843
    %4410 = vmatprep.subr.bf16.mxu0 %v2848
    %4411 = vmatpush1.bf16.msra.mxu0 %v2847
    %4412 = vmatprep.subr.bf16.mxu0 %v2852
    %4413 = vmatpush1.bf16.msra.mxu0 %v2851
    %4414 = vmatprep.subr.bf16.mxu0 %v2856
    %4415 = vmatpush1.bf16.msra.mxu0 %v2855
    %4416 = vmatprep.subr.bf16.mxu0 %v2860
    %4417 = vmatpush1.bf16.msra.mxu0 %v2859
    %4418 = vmatprep.subr.bf16.mxu0 %v2864
    %4419 = vmatpush1.bf16.msra.mxu0 %v2863
    %4420 = vmatprep.subr.bf16.mxu0 %v2868
    %4421 = vmatpush1.bf16.msra.mxu0 %v2867
    %4422 = vmatprep.mubr.bf16.mxu0 %v758
    %4423 = vmatmul.mubr.bf16.gmra.mrb[0].mxu0 %v757
    %v4424 = vpop.f32.mrb[0].mxu0
    %v4425 = vadd.f32 %v4372, %v4424
    %v4426 = vpop.f32.mrb[0].mxu0
    %v4427 = vadd.f32 %v4374, %v4426
    %v4428 = vpop.f32.mrb[0].mxu0
    %v4429 = vadd.f32 %v4376, %v4428
    %v4430 = vpop.f32.mrb[0].mxu0
    %v4431 = vadd.f32 %v4378, %v4430
    %4432 = vmatprep.mubr.bf16.mxu0 %v776
    %4433 = vmatmul.mubr.bf16.gmra.mrb[0].mxu0 %v775
    %v4434 = vpop.f32.mrb[0].mxu0
    %v4435 = vadd.f32 %v4382, %v4434
    %v4436 = vpop.f32.mrb[0].mxu0
    %v4437 = vadd.f32 %v4384, %v4436
    %v4438 = vpop.f32.mrb[0].mxu0
    %v4439 = vadd.f32 %v4386, %v4438
    %v4440 = vpop.f32.mrb[0].mxu0
    %v4441 = vadd.f32 %v4388, %v4440
    %4442 = vdwg.mxu0
    %4443 = vmatprep.subr.bf16.mxu0 %v2872
    %4444 = vmatpush1.bf16.msra.mxu0 %v2871
    %4445 = vmatprep.subr.bf16.mxu0 %v2876
    %4446 = vmatpush1.bf16.msra.mxu0 %v2875
    %4447 = vmatprep.subr.bf16.mxu0 %v2880
    %4448 = vmatpush1.bf16.msra.mxu0 %v2879
    %4449 = vmatprep.subr.bf16.mxu0 %v2884
    %4450 = vmatpush1.bf16.msra.mxu0 %v2883
    %4451 = vmatprep.subr.bf16.mxu0 %v2888
    %4452 = vmatpush1.bf16.msra.mxu0 %v2887
    %4453 = vmatprep.subr.bf16.mxu0 %v2892
    %4454 = vmatpush1.bf16.msra.mxu0 %v2891
    %4455 = vmatprep.subr.bf16.mxu0 %v2896
    %4456 = vmatpush1.bf16.msra.mxu0 %v2895
    %4457 = vmatprep.subr.bf16.mxu0 %v2900
    %4458 = vmatpush1.bf16.msra.mxu0 %v2899
    %4459 = vmatprep.subr.bf16.mxu0 %v2904
    %4460 = vmatpush1.bf16.msra.mxu0 %v2903
    %4461 = vmatprep.subr.bf16.mxu0 %v2908
    %4462 = vmatpush1.bf16.msra.mxu0 %v2907
    %4463 = vmatprep.subr.bf16.mxu0 %v2912
    %4464 = vmatpush1.bf16.msra.mxu0 %v2911
    %4465 = vmatprep.subr.bf16.mxu0 %v2916
    %4466 = vmatpush1.bf16.msra.mxu0 %v2915
    %4467 = vmatprep.subr.bf16.mxu0 %v2920
    %4468 = vmatpush1.bf16.msra.mxu0 %v2919
    %4469 = vmatprep.subr.bf16.mxu0 %v2924
    %4470 = vmatpush1.bf16.msra.mxu0 %v2923
    %4471 = vmatprep.subr.bf16.mxu0 %v2928
    %4472 = vmatpush1.bf16.msra.mxu0 %v2927
    %4473 = vmatprep.subr.bf16.mxu0 %v2932
    %4474 = vmatpush1.bf16.msra.mxu0 %v2931
    %4475 = vmatprep.mubr.bf16.mxu0 %v760
    %4476 = vmatmul.mubr.bf16.gmra.mrb[0].mxu0 %v759
    %v4477 = vpop.f32.mrb[0].mxu0
    %v4478 = vadd.f32 %v4425, %v4477
    %v4479 = vpop.f32.mrb[0].mxu0
    %v4480 = vadd.f32 %v4427, %v4479
    %v4481 = vpop.f32.mrb[0].mxu0
    %v4482 = vadd.f32 %v4429, %v4481
    %v4483 = vpop.f32.mrb[0].mxu0
    %v4484 = vadd.f32 %v4431, %v4483
    %4485 = vmatprep.mubr.bf16.mxu0 %v778
    %4486 = vmatmul.mubr.bf16.gmra.mrb[0].mxu0 %v777
    %v4487 = vpop.f32.mrb[0].mxu0
    %v4488 = vadd.f32 %v4435, %v4487
    %v4489 = vpop.f32.mrb[0].mxu0
    %v4490 = vadd.f32 %v4437, %v4489
    %v4491 = vpop.f32.mrb[0].mxu0
    %v4492 = vadd.f32 %v4439, %v4491
    %v4493 = vpop.f32.mrb[0].mxu0
    %v4494 = vadd.f32 %v4441, %v4493
    %4495 = vdwg.mxu0
    %4496 = vmatprep.subr.bf16.mxu0 %v2936
    %4497 = vmatpush1.bf16.msra.mxu0 %v2935
    %4498 = vmatprep.subr.bf16.mxu0 %v2940
    %4499 = vmatpush1.bf16.msra.mxu0 %v2939
    %4500 = vmatprep.subr.bf16.mxu0 %v2944
    %4501 = vmatpush1.bf16.msra.mxu0 %v2943
    %4502 = vmatprep.subr.bf16.mxu0 %v2948
    %4503 = vmatpush1.bf16.msra.mxu0 %v2947
    %4504 = vmatprep.subr.bf16.mxu0 %v2952
    %4505 = vmatpush1.bf16.msra.mxu0 %v2951
    %4506 = vmatprep.subr.bf16.mxu0 %v2956
    %4507 = vmatpush1.bf16.msra.mxu0 %v2955
    %4508 = vmatprep.subr.bf16.mxu0 %v2960
    %4509 = vmatpush1.bf16.msra.mxu0 %v2959
    %4510 = vmatprep.subr.bf16.mxu0 %v2964
    %4511 = vmatpush1.bf16.msra.mxu0 %v2963
    %4512 = vmatprep.subr.bf16.mxu0 %v2968
    %4513 = vmatpush1.bf16.msra.mxu0 %v2967
    %4514 = vmatprep.subr.bf16.mxu0 %v2972
    %4515 = vmatpush1.bf16.msra.mxu0 %v2971
    %4516 = vmatprep.subr.bf16.mxu0 %v2976
    %4517 = vmatpush1.bf16.msra.mxu0 %v2975
    %4518 = vmatprep.subr.bf16.mxu0 %v2980
    %4519 = vmatpush1.bf16.msra.mxu0 %v2979
    %4520 = vmatprep.subr.bf16.mxu0 %v2984
    %4521 = vmatpush1.bf16.msra.mxu0 %v2983
    %4522 = vmatprep.subr.bf16.mxu0 %v2988
    %4523 = vmatpush1.bf16.msra.mxu0 %v2987
    %4524 = vmatprep.subr.bf16.mxu0 %v2992
    %4525 = vmatpush1.bf16.msra.mxu0 %v2991
    %4526 = vmatprep.subr.bf16.mxu0 %v2996
    %4527 = vmatpush1.bf16.msra.mxu0 %v2995
    %4528 = vmatprep.mubr.bf16.mxu0 %v762
    %4529 = vmatmul.mubr.bf16.gmra.mrb[0].mxu0 %v761
    %v4530 = vpop.f32.mrb[0].mxu0
    %v4531 = vadd.f32 %v4478, %v4530
    %v4532 = vpop.f32.mrb[0].mxu0
    %v4533 = vadd.f32 %v4480, %v4532
    %v4534 = vpop.f32.mrb[0].mxu0
    %v4535 = vadd.f32 %v4482, %v4534
    %v4536 = vpop.f32.mrb[0].mxu0
    %v4537 = vadd.f32 %v4484, %v4536
    %4538 = vmatprep.mubr.bf16.mxu0 %v780
    %4539 = vmatmul.mubr.bf16.gmra.mrb[0].mxu0 %v779
    %v4540 = vpop.f32.mrb[0].mxu0
    %v4541 = vadd.f32 %v4488, %v4540
    %v4542 = vpop.f32.mrb[0].mxu0
    %v4543 = vadd.f32 %v4490, %v4542
    %v4544 = vpop.f32.mrb[0].mxu0
    %v4545 = vadd.f32 %v4492, %v4544
    %v4546 = vpop.f32.mrb[0].mxu0
    %v4547 = vadd.f32 %v4494, %v4546
    %4548 = vdwg.mxu0
    %4549 = vmatprep.subr.bf16.mxu0 %v3000
    %4550 = vmatpush1.bf16.msra.mxu0 %v2999
    %4551 = vmatprep.subr.bf16.mxu0 %v3004
    %4552 = vmatpush1.bf16.msra.mxu0 %v3003
    %4553 = vmatprep.subr.bf16.mxu0 %v3008
    %4554 = vmatpush1.bf16.msra.mxu0 %v3007
    %4555 = vmatprep.subr.bf16.mxu0 %v3012
    %4556 = vmatpush1.bf16.msra.mxu0 %v3011
    %4557 = vmatprep.subr.bf16.mxu0 %v3016
    %4558 = vmatpush1.bf16.msra.mxu0 %v3015
    %4559 = vmatprep.subr.bf16.mxu0 %v3020
    %4560 = vmatpush1.bf16.msra.mxu0 %v3019
    %4561 = vmatprep.subr.bf16.mxu0 %v3024
    %4562 = vmatpush1.bf16.msra.mxu0 %v3023
    %4563 = vmatprep.subr.bf16.mxu0 %v3028
    %4564 = vmatpush1.bf16.msra.mxu0 %v3027
    %4565 = vmatprep.subr.bf16.mxu0 %v3032
    %4566 = vmatpush1.bf16.msra.mxu0 %v3031
    %4567 = vmatprep.subr.bf16.mxu0 %v3036
    %4568 = vmatpush1.bf16.msra.mxu0 %v3035
    %4569 = vmatprep.subr.bf16.mxu0 %v3040
    %4570 = vmatpush1.bf16.msra.mxu0 %v3039
    %4571 = vmatprep.subr.bf16.mxu0 %v3044
    %4572 = vmatpush1.bf16.msra.mxu0 %v3043
    %4573 = vmatprep.subr.bf16.mxu0 %v3048
    %4574 = vmatpush1.bf16.msra.mxu0 %v3047
    %4575 = vmatprep.subr.bf16.mxu0 %v3052
    %4576 = vmatpush1.bf16.msra.mxu0 %v3051
    %4577 = vmatprep.subr.bf16.mxu0 %v3056
    %4578 = vmatpush1.bf16.msra.mxu0 %v3055
    %4579 = vmatprep.subr.bf16.mxu0 %v3060
    %4580 = vmatpush1.bf16.msra.mxu0 %v3059
    %4581 = vmatprep.mubr.bf16.mxu0 %v764
    %4582 = vmatmul.mubr.bf16.gmra.mrb[0].mxu0 %v763
    %v4583 = vpop.f32.mrb[0].mxu0
    %v4584 = vadd.f32 %v4531, %v4583
    %v4585 = vpop.f32.mrb[0].mxu0
    %v4586 = vadd.f32 %v4533, %v4585
    %v4587 = vpop.f32.mrb[0].mxu0
    %v4588 = vadd.f32 %v4535, %v4587
    %v4589 = vpop.f32.mrb[0].mxu0
    %v4590 = vadd.f32 %v4537, %v4589
    %4591 = vmatprep.mubr.bf16.mxu0 %v782
    %4592 = vmatmul.mubr.bf16.gmra.mrb[0].mxu0 %v781
    %v4593 = vpop.f32.mrb[0].mxu0
    %v4594 = vadd.f32 %v4541, %v4593
    %v4595 = vpop.f32.mrb[0].mxu0
    %v4596 = vadd.f32 %v4543, %v4595
    %v4597 = vpop.f32.mrb[0].mxu0
    %v4598 = vadd.f32 %v4545, %v4597
    %v4599 = vpop.f32.mrb[0].mxu0
    %v4600 = vadd.f32 %v4547, %v4599
    %4601 = vdwg.mxu0
    %4602 = vmatprep.subr.bf16.mxu0 %v3064
    %4603 = vmatpush1.bf16.msra.mxu0 %v3063
    %4604 = vmatprep.subr.bf16.mxu0 %v3068
    %4605 = vmatpush1.bf16.msra.mxu0 %v3067
    %4606 = vmatprep.subr.bf16.mxu0 %v3072
    %4607 = vmatpush1.bf16.msra.mxu0 %v3071
    %4608 = vmatprep.subr.bf16.mxu0 %v3076
    %4609 = vmatpush1.bf16.msra.mxu0 %v3075
    %4610 = vmatprep.subr.bf16.mxu0 %v3080
    %4611 = vmatpush1.bf16.msra.mxu0 %v3079
    %4612 = vmatprep.subr.bf16.mxu0 %v3084
    %4613 = vmatpush1.bf16.msra.mxu0 %v3083
    %4614 = vmatprep.subr.bf16.mxu0 %v3088
    %4615 = vmatpush1.bf16.msra.mxu0 %v3087
    %4616 = vmatprep.subr.bf16.mxu0 %v3092
    %4617 = vmatpush1.bf16.msra.mxu0 %v3091
    %4618 = vmatprep.subr.bf16.mxu0 %v3096
    %4619 = vmatpush1.bf16.msra.mxu0 %v3095
    %4620 = vmatprep.subr.bf16.mxu0 %v3100
    %4621 = vmatpush1.bf16.msra.mxu0 %v3099
    %4622 = vmatprep.subr.bf16.mxu0 %v3104
    %4623 = vmatpush1.bf16.msra.mxu0 %v3103
    %4624 = vmatprep.subr.bf16.mxu0 %v3108
    %4625 = vmatpush1.bf16.msra.mxu0 %v3107
    %4626 = vmatprep.subr.bf16.mxu0 %v3112
    %4627 = vmatpush1.bf16.msra.mxu0 %v3111
    %4628 = vmatprep.subr.bf16.mxu0 %v3116
    %4629 = vmatpush1.bf16.msra.mxu0 %v3115
    %4630 = vmatprep.subr.bf16.mxu0 %v3120
    %4631 = vmatpush1.bf16.msra.mxu0 %v3119
    %4632 = vmatprep.subr.bf16.mxu0 %v3124
    %4633 = vmatpush1.bf16.msra.mxu0 %v3123
    %4634 = vmatprep.mubr.bf16.mxu0 %v766
    %4635 = vmatmul.mubr.bf16.gmra.mrb[0].mxu0 %v765
    %v4636 = vpop.f32.mrb[0].mxu0
    %v4637 = vadd.f32 %v4584, %v4636
    %v4638 = vpop.f32.mrb[0].mxu0
    %v4639 = vadd.f32 %v4586, %v4638
    %v4640 = vpop.f32.mrb[0].mxu0
    %v4641 = vadd.f32 %v4588, %v4640
    %v4642 = vpop.f32.mrb[0].mxu0
    %v4643 = vadd.f32 %v4590, %v4642
    %4644 = vmatprep.mubr.bf16.mxu0 %v784
    %4645 = vmatmul.mubr.bf16.gmra.mrb[0].mxu0 %v783
    %v4646 = vpop.f32.mrb[0].mxu0
    %v4647 = vadd.f32 %v4594, %v4646
    %v4648 = vpop.f32.mrb[0].mxu0
    %v4649 = vadd.f32 %v4596, %v4648
    %v4650 = vpop.f32.mrb[0].mxu0
    %v4651 = vadd.f32 %v4598, %v4650
    %v4652 = vpop.f32.mrb[0].mxu0
    %v4653 = vadd.f32 %v4600, %v4652
    %4654 = vdwg.mxu0
    %v4655 = vadd.f32 %v4160, %v4164
    %v4656 = vadd.f32 %v4655, %v4170
    %v4657 = vadd.f32 %v4656, %v4174
    %v4658 = vrot.slane %v4657, 4
    %v4659 = vadd.f32 %v4657, %v4658
    %v4660 = vrot.slane %v4659, 2
    %v4661 = vadd.f32 %v4659, %v4660
    %v4662 = vrot.slane %v4661, 1
    %v4663 = vadd.f32 %v4661, %v4662
    %v4664 = vadd.f32 %v4162, %v4166
    %v4665 = vadd.f32 %v4664, %v4172
    %v4666 = vadd.f32 %v4665, %v4176
    %v4667 = vrot.slane %v4666, 4
    %v4668 = vadd.f32 %v4666, %v4667
    %v4669 = vrot.slane %v4668, 2
    %v4670 = vadd.f32 %v4668, %v4669
    %v4671 = vrot.slane %v4670, 1
    %v4672 = vadd.f32 %v4670, %v4671
    %v4673 = vadd.f32 %v4637, %v4641
    %v4674 = vadd.f32 %v4673, %v4647
    %v4675 = vadd.f32 %v4674, %v4651
    %v4676 = vrot.slane %v4675, 4
    %v4677 = vadd.f32 %v4675, %v4676
    %v4678 = vrot.slane %v4677, 2
    %v4679 = vadd.f32 %v4677, %v4678
    %v4680 = vrot.slane %v4679, 1
    %v4681 = vadd.f32 %v4679, %v4680
    %v4682 = vadd.f32 %v4639, %v4643
    %v4683 = vadd.f32 %v4682, %v4649
    %v4684 = vadd.f32 %v4683, %v4653
    %v4685 = vrot.slane %v4684, 4
    %v4686 = vadd.f32 %v4684, %v4685
    %v4687 = vrot.slane %v4686, 2
    %v4688 = vadd.f32 %v4686, %v4687
    %v4689 = vrot.slane %v4688, 1
    %v4690 = vadd.f32 %v4688, %v4689
    %v4691 = vadd.f32 %v4663, %v4672
    %v4692 = vadd.f32 %v4691, %v4681
    %v4693 = vadd.f32 %v4692, %v4690
    %v4694 = vrcp.pop 128.0
    %v4695 = vmul.f32 %v4693, %v4694
    %v4696 = vlaneseq
    %v4697 = vshrl.u32 %v4696, 7
    %v4698 = vsub.s32 0, %v4697
    %v4699 = vrot.slane %v4695, %v4698
    %v4700 = vsub.f32 %v4160, %v4699
    %v4701 = vsub.f32 %v4162, %v4699
    %v4702 = vsub.f32 %v4637, %v4699
    %v4703 = vsub.f32 %v4639, %v4699
    %v4704 = vsub.f32 %v4164, %v4699
    %v4705 = vsub.f32 %v4166, %v4699
    %v4706 = vsub.f32 %v4641, %v4699
    %v4707 = vsub.f32 %v4643, %v4699
    %v4708 = vsub.f32 %v4170, %v4699
    %v4709 = vsub.f32 %v4172, %v4699
    %v4710 = vsub.f32 %v4647, %v4699
    %v4711 = vsub.f32 %v4649, %v4699
    %v4712 = vsub.f32 %v4174, %v4699
    %v4713 = vsub.f32 %v4176, %v4699
    %v4714 = vsub.f32 %v4651, %v4699
    %v4715 = vsub.f32 %v4653, %v4699
    %v4716 = vmul.f32 %v4700, %v4700
    %v4717 = vmul.f32 %v4701, %v4701
    %v4718 = vmul.f32 %v4702, %v4702
    %v4719 = vmul.f32 %v4703, %v4703
    %v4720 = vmul.f32 %v4704, %v4704
    %v4721 = vmul.f32 %v4705, %v4705
    %v4722 = vmul.f32 %v4706, %v4706
    %v4723 = vmul.f32 %v4707, %v4707
    %v4724 = vmul.f32 %v4708, %v4708
    %v4725 = vmul.f32 %v4709, %v4709
    %v4726 = vmul.f32 %v4710, %v4710
    %v4727 = vmul.f32 %v4711, %v4711
    %v4728 = vmul.f32 %v4712, %v4712
    %v4729 = vmul.f32 %v4713, %v4713
    %v4730 = vmul.f32 %v4714, %v4714
    %v4731 = vmul.f32 %v4715, %v4715
    %v4732 = vadd.f32 %v4716, %v4720
    %v4733 = vadd.f32 %v4732, %v4724
    %v4734 = vadd.f32 %v4733, %v4728
    %v4735 = vrot.slane %v4734, 4
    %v4736 = vadd.f32 %v4734, %v4735
    %v4737 = vrot.slane %v4736, 2
    %v4738 = vadd.f32 %v4736, %v4737
    %v4739 = vrot.slane %v4738, 1
    %v4740 = vadd.f32 %v4738, %v4739
    %v4741 = vadd.f32 %v4717, %v4721
    %v4742 = vadd.f32 %v4741, %v4725
    %v4743 = vadd.f32 %v4742, %v4729
    %v4744 = vrot.slane %v4743, 4
    %v4745 = vadd.f32 %v4743, %v4744
    %v4746 = vrot.slane %v4745, 2
    %v4747 = vadd.f32 %v4745, %v4746
    %v4748 = vrot.slane %v4747, 1
    %v4749 = vadd.f32 %v4747, %v4748
    %v4750 = vadd.f32 %v4718, %v4722
    %v4751 = vadd.f32 %v4750, %v4726
    %v4752 = vadd.f32 %v4751, %v4730
    %v4753 = vrot.slane %v4752, 4
    %v4754 = vadd.f32 %v4752, %v4753
    %v4755 = vrot.slane %v4754, 2
    %v4756 = vadd.f32 %v4754, %v4755
    %v4757 = vrot.slane %v4756, 1
    %v4758 = vadd.f32 %v4756, %v4757
    %v4759 = vadd.f32 %v4719, %v4723
    %v4760 = vadd.f32 %v4759, %v4727
    %v4761 = vadd.f32 %v4760, %v4731
    %v4762 = vrot.slane %v4761, 4
    %v4763 = vadd.f32 %v4761, %v4762
    %v4764 = vrot.slane %v4763, 2
    %v4765 = vadd.f32 %v4763, %v4764
    %v4766 = vrot.slane %v4765, 1
    %v4767 = vadd.f32 %v4765, %v4766
    %v4768 = vadd.f32 %v4740, %v4749
    %v4769 = vadd.f32 %v4768, %v4758
    %v4770 = vadd.f32 %v4769, %v4767
    %v4771 = vmul.f32 %v4770, %v4694
    %v4772 = vadd.f32 %v4771, 1e-05
    %v4773 = vrsqrt.pop %v4772
    %v4774 = vlaneseq
    %v4775 = vshrl.u32 %v4774, 7
    %v4776 = vsub.s32 0, %v4775
    %v4777 = vrot.slane %v4773, %v4776
    %v4778 = vmul.f32 %v4700, %v4777
    %v4779 = vmul.f32 %v4701, %v4777
    %v4780 = vmul.f32 %v4702, %v4777
    %v4781 = vmul.f32 %v4703, %v4777
    %v4782 = vmul.f32 %v4704, %v4777
    %v4783 = vmul.f32 %v4705, %v4777
    %v4784 = vmul.f32 %v4706, %v4777
    %v4785 = vmul.f32 %v4707, %v4777
    %v4786 = vmul.f32 %v4708, %v4777
    %v4787 = vmul.f32 %v4709, %v4777
    %v4788 = vmul.f32 %v4710, %v4777
    %v4789 = vmul.f32 %v4711, %v4777
    %v4790 = vmul.f32 %v4712, %v4777
    %v4791 = vmul.f32 %v4713, %v4777
    %v4792 = vmul.f32 %v4714, %v4777
    %v4793 = vmul.f32 %v4715, %v4777
    %v4794 = vld [vmem:[%s2] sm:$0xf]
    %v4796 = vlaneseq
    %v4797 = vshrl.u32 %v4796, 7
    %v4798 = vsub.s32 0, %v4797
    %v4799 = vrot.slane %v4794, %v4798
    %v4800 = vlaneseq
    %v4801 = vshrl.u32 %v4800, 7
    %v4802 = vsub.s32 1, %v4801
    %v4803 = vrot.slane %v4794, %v4802
    %v4804 = vlaneseq
    %v4805 = vshrl.u32 %v4804, 7
    %v4806 = vsub.s32 2, %v4805
    %v4807 = vrot.slane %v4794, %v4806
    %v4808 = vlaneseq
    %v4809 = vshrl.u32 %v4808, 7
    %v4810 = vsub.s32 3, %v4809
    %v4811 = vrot.slane %v4794, %v4810
    %v4816 = vmul.f32 %v4778, %v4799
    %v4817 = vmul.f32 %v4779, %v4803
    %v4818 = vmul.f32 %v4780, %v4807
    %v4819 = vmul.f32 %v4781, %v4811
    %v4820 = vmul.f32 %v4782, %v4799
    %v4821 = vmul.f32 %v4783, %v4803
    %v4822 = vmul.f32 %v4784, %v4807
    %v4823 = vmul.f32 %v4785, %v4811
    %v4824 = vmul.f32 %v4786, %v4799
    %v4825 = vmul.f32 %v4787, %v4803
    %v4826 = vmul.f32 %v4788, %v4807
    %v4827 = vmul.f32 %v4789, %v4811
    %v4828 = vmul.f32 %v4790, %v4799
    %v4829 = vmul.f32 %v4791, %v4803
    %v4830 = vmul.f32 %v4792, %v4807
    %v4831 = vmul.f32 %v4793, %v4811
    %v4832 = vld [vmem:[#allocation2] sm:$0xf]
    %v4834 = vlaneseq
    %v4835 = vshrl.u32 %v4834, 7
    %v4836 = vsub.s32 0, %v4835
    %v4837 = vrot.slane %v4832, %v4836
    %v4838 = vlaneseq
    %v4839 = vshrl.u32 %v4838, 7
    %v4840 = vsub.s32 1, %v4839
    %v4841 = vrot.slane %v4832, %v4840
    %v4842 = vlaneseq
    %v4843 = vshrl.u32 %v4842, 7
    %v4844 = vsub.s32 2, %v4843
    %v4845 = vrot.slane %v4832, %v4844
    %v4846 = vlaneseq
    %v4847 = vshrl.u32 %v4846, 7
    %v4848 = vsub.s32 3, %v4847
    %v4849 = vrot.slane %v4832, %v4848
    %v4854 = vadd.f32 %v4816, %v4837
    %v4855 = vadd.f32 %v4817, %v4841
    %v4856 = vadd.f32 %v4818, %v4845
    %v4857 = vadd.f32 %v4819, %v4849
    %v4858 = vadd.f32 %v4820, %v4837
    %v4859 = vadd.f32 %v4821, %v4841
    %v4860 = vadd.f32 %v4822, %v4845
    %v4861 = vadd.f32 %v4823, %v4849
    %v4862 = vadd.f32 %v4824, %v4837
    %v4863 = vadd.f32 %v4825, %v4841
    %v4864 = vadd.f32 %v4826, %v4845
    %v4865 = vadd.f32 %v4827, %v4849
    %v4866 = vadd.f32 %v4828, %v4837
    %v4867 = vadd.f32 %v4829, %v4841
    %v4868 = vadd.f32 %v4830, %v4845
    %v4869 = vadd.f32 %v4831, %v4849
    %v4870 = vmax.f32 %v4854, 0.0
    %v4871 = vmax.f32 %v4855, 0.0
    %v4872 = vmax.f32 %v4856, 0.0
    %v4873 = vmax.f32 %v4857, 0.0
    %v4874 = vmax.f32 %v4858, 0.0
    %v4875 = vmax.f32 %v4859, 0.0
    %v4876 = vmax.f32 %v4860, 0.0
    %v4877 = vmax.f32 %v4861, 0.0
    %v4878 = vmax.f32 %v4862, 0.0
    %v4879 = vmax.f32 %v4863, 0.0
    %v4880 = vmax.f32 %v4864, 0.0
    %v4881 = vmax.f32 %v4865, 0.0
    %v4882 = vmax.f32 %v4866, 0.0
    %v4883 = vmax.f32 %v4867, 0.0
    %v4884 = vmax.f32 %v4868, 0.0
    %v4885 = vmax.f32 %v4869, 0.0
    %4886 = vst [vmem:[%s4] sm:$0xff] %v4870
    %4887 = vst [vmem:[%s4 + $0x8] sm:$0xff] %v4871
    %4888 = vst [vmem:[%s4 + $0x10] sm:$0xff] %v4872
    %4889 = vst [vmem:[%s4 + $0x18] sm:$0xff] %v4873
    %4890 = vst [vmem:[%s4 + $0x20] sm:$0xff] %v4874
    %4891 = vst [vmem:[%s4 + $0x28] sm:$0xff] %v4875
    %4892 = vst [vmem:[%s4 + $0x30] sm:$0xff] %v4876
    %4893 = vst [vmem:[%s4 + $0x38] sm:$0xff] %v4877
    %4894 = vst [vmem:[%s4 + $0x40] sm:$0xff] %v4878
    %4895 = vst [vmem:[%s4 + $0x48] sm:$0xff] %v4879
    %4896 = vst [vmem:[%s4 + $0x50] sm:$0xff] %v4880
    %4897 = vst [vmem:[%s4 + $0x58] sm:$0xff] %v4881
    %4898 = vst [vmem:[%s4 + $0x60] sm:$0xff] %v4882
    %4899 = vst [vmem:[%s4 + $0x68] sm:$0xff] %v4883
    %4900 = vst [vmem:[%s4 + $0x70] sm:$0xff] %v4884
    %4901 = vst [vmem:[%s4 + $0x78] sm:$0xff] %v4885
    // Predicated region
    $region22: #{generator_forward.5} parent=1 // pred_check
      _
    $region23: #{generator_forward.5} parent=1 // pred_check_branch
      %4903 = sbr.rel (0) target = $region25
    $region24: #{generator_forward.5} parent=1 // pred_region
      _
    $region25: #{generator_forward.5} parent=1 // pred_fallthru
      _
    // Predicated region
    $region26: #{generator_forward.5} parent=1 // pred_check
      _
    $region27: #{generator_forward.5} parent=1 // pred_check_branch
      %4905 = sbr.rel (0) target = $region29
    $region28: #{generator_forward.5} parent=1 // pred_region
      _
    $region29: #{generator_forward.5} parent=1 // pred_fallthru
      _
    %4906 = vsyncpa [#allocation3], 1

// kernel: generator_forward.6
$region0: #{generator_forward.6}
  #allocation0 [shape = 'u32[]', space=smem, size = 0x4, offset = 0x4, fixed_abs, tag = 'smem constant byte address 0x4 - core index']
  #allocation1 [shape = 'u32[144,128]{1,0:T(1,128)}', space=vmem, size = 0x12000, scoped, tag = 'internal scratch']
  %s0 = inlined_call_operand.vmem [shape: bf16[128,1152], index: 0, kind: input, shape index: {}]
  %s1 = inlined_call_operand.vmem [shape: bf16[1152,256], index: 1, kind: input, shape index: {}]
  %s2 = inlined_call_operand.vmem [shape: f32[1,256], index: 2, kind: input, shape index: {}]
  %s3 = inlined_call_operand.vmem [shape: f32[1,256], index: 3, kind: input, shape index: {}]
  %s4 = inlined_call_operand.vmem [shape: f32[128,256], index: 4, kind: output, shape index: {}]
  %s5 = sld [smem:[#allocation0]]
  $region26: #{generator_forward.6} parent=0
    _
  %s7 = ssub.s32 1, %s5
  %s8 = scalar_select 0, %s7, %s5
  // Predicated region
  $region2: #{generator_forward.6} parent=0 // pred_check
    _
  $region3: #{generator_forward.6} parent=0 // pred_check_branch
    %10 = sbr.rel (0) target = $region5
  $region4: #{generator_forward.6} parent=0 // pred_region
    _
  $region5: #{generator_forward.6} parent=0 // pred_fallthru
    _
  // Predicated region
  $region6: #{generator_forward.6} parent=0 // pred_check
    _
  $region7: #{generator_forward.6} parent=0 // pred_check_branch
    %12 = sbr.rel (0) target = $region9
  $region8: #{generator_forward.6} parent=0 // pred_region
    _
  $region9: #{generator_forward.6} parent=0 // pred_fallthru
    _
  // Predicated region
  $region10: #{generator_forward.6} parent=0 // pred_check
    _
  $region11: #{generator_forward.6} parent=0 // pred_check_branch
    %14 = sbr.rel (0) target = $region13
  $region12: #{generator_forward.6} parent=0 // pred_region
    _
  $region13: #{generator_forward.6} parent=0 // pred_fallthru
    _
  // Predicated region
  $region14: #{generator_forward.6} parent=0 // pred_check
    _
  $region15: #{generator_forward.6} parent=0 // pred_check_branch
    %16 = sbr.rel (0) target = $region17
  $region16: #{generator_forward.6} parent=0 // pred_region
    _
  $region17: #{generator_forward.6} parent=0 // pred_fallthru
    _
  %v18 = vld [vmem:[%s0] sm:$0xff]
  %v19 = vld [vmem:[%s0 + $0x8] sm:$0xff]
  %v20 = vld [vmem:[%s0 + $0x10] sm:$0xff]
  %v21 = vld [vmem:[%s0 + $0x18] sm:$0xff]
  %v22 = vld [vmem:[%s0 + $0x20] sm:$0xf]
  %v23 = vld [vmem:[%s0 + $0x24] sm:$0xff]
  %v24 = vld [vmem:[%s0 + $0x2c] sm:$0xff]
  %v25 = vld [vmem:[%s0 + $0x34] sm:$0xff]
  %v26 = vld [vmem:[%s0 + $0x3c] sm:$0xff]
  %v27 = vld [vmem:[%s0 + $0x44] sm:$0xf]
  %v28 = vld [vmem:[%s0 + $0x48] sm:$0xff]
  %v29 = vld [vmem:[%s0 + $0x50] sm:$0xff]
  %v30 = vld [vmem:[%s0 + $0x58] sm:$0xff]
  %v31 = vld [vmem:[%s0 + $0x60] sm:$0xff]
  %v32 = vld [vmem:[%s0 + $0x68] sm:$0xf]
  %v33 = vld [vmem:[%s0 + $0x6c] sm:$0xff]
  %v34 = vld [vmem:[%s0 + $0x74] sm:$0xff]
  %v35 = vld [vmem:[%s0 + $0x7c] sm:$0xff]
  %v36 = vld [vmem:[%s0 + $0x84] sm:$0xff]
  %v37 = vld [vmem:[%s0 + $0x8c] sm:$0xf]
  %v38 = vld [vmem:[%s0 + $0x90] sm:$0xff]
  %v39 = vld [vmem:[%s0 + $0x98] sm:$0xff]
  %v40 = vld [vmem:[%s0 + $0xa0] sm:$0xff]
  %v41 = vld [vmem:[%s0 + $0xa8] sm:$0xff]
  %v42 = vld [vmem:[%s0 + $0xb0] sm:$0xf]
  %v43 = vld [vmem:[%s0 + $0xb4] sm:$0xff]
  %v44 = vld [vmem:[%s0 + $0xbc] sm:$0xff]
  %v45 = vld [vmem:[%s0 + $0xc4] sm:$0xff]
  %v46 = vld [vmem:[%s0 + $0xcc] sm:$0xff]
  %v47 = vld [vmem:[%s0 + $0xd4] sm:$0xf]
  %v48 = vld [vmem:[%s0 + $0xd8] sm:$0xff]
  %v49 = vld [vmem:[%s0 + $0xe0] sm:$0xff]
  %v50 = vld [vmem:[%s0 + $0xe8] sm:$0xff]
  %v51 = vld [vmem:[%s0 + $0xf0] sm:$0xff]
  %v52 = vld [vmem:[%s0 + $0xf8] sm:$0xf]
  %v53 = vld [vmem:[%s0 + $0xfc] sm:$0xff]
  %v54 = vld [vmem:[%s0 + $0x104] sm:$0xff]
  %v55 = vld [vmem:[%s0 + $0x10c] sm:$0xff]
  %v56 = vld [vmem:[%s0 + $0x114] sm:$0xff]
  %v57 = vld [vmem:[%s0 + $0x11c] sm:$0xf]
  %v58 = vld [vmem:[%s0 + $0x120] sm:$0xff]
  %v59 = vld [vmem:[%s0 + $0x128] sm:$0xff]
  %v60 = vld [vmem:[%s0 + $0x130] sm:$0xff]
  %v61 = vld [vmem:[%s0 + $0x138] sm:$0xff]
  %v62 = vld [vmem:[%s0 + $0x140] sm:$0xf]
  %v63 = vld [vmem:[%s0 + $0x144] sm:$0xff]
  %v64 = vld [vmem:[%s0 + $0x14c] sm:$0xff]
  %v65 = vld [vmem:[%s0 + $0x154] sm:$0xff]
  %v66 = vld [vmem:[%s0 + $0x15c] sm:$0xff]
  %v67 = vld [vmem:[%s0 + $0x164] sm:$0xf]
  %v68 = vld [vmem:[%s0 + $0x168] sm:$0xff]
  %v69 = vld [vmem:[%s0 + $0x170] sm:$0xff]
  %v70 = vld [vmem:[%s0 + $0x178] sm:$0xff]
  %v71 = vld [vmem:[%s0 + $0x180] sm:$0xff]
  %v72 = vld [vmem:[%s0 + $0x188] sm:$0xf]
  %v73 = vld [vmem:[%s0 + $0x18c] sm:$0xff]
  %v74 = vld [vmem:[%s0 + $0x194] sm:$0xff]
  %v75 = vld [vmem:[%s0 + $0x19c] sm:$0xff]
  %v76 = vld [vmem:[%s0 + $0x1a4] sm:$0xff]
  %v77 = vld [vmem:[%s0 + $0x1ac] sm:$0xf]
  %v78 = vld [vmem:[%s0 + $0x1b0] sm:$0xff]
  %v79 = vld [vmem:[%s0 + $0x1b8] sm:$0xff]
  %v80 = vld [vmem:[%s0 + $0x1c0] sm:$0xff]
  %v81 = vld [vmem:[%s0 + $0x1c8] sm:$0xff]
  %v82 = vld [vmem:[%s0 + $0x1d0] sm:$0xf]
  %v83 = vld [vmem:[%s0 + $0x1d4] sm:$0xff]
  %v84 = vld [vmem:[%s0 + $0x1dc] sm:$0xff]
  %v85 = vld [vmem:[%s0 + $0x1e4] sm:$0xff]
  %v86 = vld [vmem:[%s0 + $0x1ec] sm:$0xff]
  %v87 = vld [vmem:[%s0 + $0x1f4] sm:$0xf]
  %v88 = vld [vmem:[%s0 + $0x1f8] sm:$0xff]
  %v89 = vld [vmem:[%s0 + $0x200] sm:$0xff]
  %v90 = vld [vmem:[%s0 + $0x208] sm:$0xff]
  %v91 = vld [vmem:[%s0 + $0x210] sm:$0xff]
  %v92 = vld [vmem:[%s0 + $0x218] sm:$0xf]
  %v93 = vld [vmem:[%s0 + $0x21c] sm:$0xff]
  %v94 = vld [vmem:[%s0 + $0x224] sm:$0xff]
  %v95 = vld [vmem:[%s0 + $0x22c] sm:$0xff]
  %v96 = vld [vmem:[%s0 + $0x234] sm:$0xff]
  %v97 = vld [vmem:[%s0 + $0x23c] sm:$0xf]
  %v98 = vld [vmem:[%s1] sm:$0xff]
  %v99 = vld [vmem:[%s1 + $0x8] sm:$0xff]
  %v100 = vld [vmem:[%s1 + $0x10] sm:$0xff]
  %v101 = vld [vmem:[%s1 + $0x18] sm:$0xff]
  %v102 = vld [vmem:[%s1 + $0x20] sm:$0xff]
  %v103 = vld [vmem:[%s1 + $0x28] sm:$0xff]
  %v104 = vld [vmem:[%s1 + $0x30] sm:$0xff]
  %v105 = vld [vmem:[%s1 + $0x38] sm:$0xff]
  %v106 = vld [vmem:[%s1 + $0x40] sm:$0xff]
  %v107 = vld [vmem:[%s1 + $0x48] sm:$0xff]
  %v108 = vld [vmem:[%s1 + $0x50] sm:$0xff]
  %v109 = vld [vmem:[%s1 + $0x58] sm:$0xff]
  %v110 = vld [vmem:[%s1 + $0x60] sm:$0xff]
  %v111 = vld [vmem:[%s1 + $0x68] sm:$0xff]
  %v112 = vld [vmem:[%s1 + $0x70] sm:$0xff]
  %v113 = vld [vmem:[%s1 + $0x78] sm:$0xff]
  %v114 = vld [vmem:[%s1 + $0x80] sm:$0xff]
  %v115 = vld [vmem:[%s1 + $0x88] sm:$0xff]
  %v116 = vld [vmem:[%s1 + $0x90] sm:$0xff]
  %v117 = vld [vmem:[%s1 + $0x98] sm:$0xff]
  %v118 = vld [vmem:[%s1 + $0xa0] sm:$0xff]
  %v119 = vld [vmem:[%s1 + $0xa8] sm:$0xff]
  %v120 = vld [vmem:[%s1 + $0xb0] sm:$0xff]
  %v121 = vld [vmem:[%s1 + $0xb8] sm:$0xff]
  %v122 = vld [vmem:[%s1 + $0xc0] sm:$0xff]
  %v123 = vld [vmem:[%s1 + $0xc8] sm:$0xff]
  %v124 = vld [vmem:[%s1 + $0xd0] sm:$0xff]
  %v125 = vld [vmem:[%s1 + $0xd8] sm:$0xff]
  %v126 = vld [vmem:[%s1 + $0xe0] sm:$0xff]
  %v127 = vld [vmem:[%s1 + $0xe8] sm:$0xff]
  %v128 = vld [vmem:[%s1 + $0xf0] sm:$0xff]
  %v129 = vld [vmem:[%s1 + $0xf8] sm:$0xff]
  %v130 = vld [vmem:[%s1 + $0x100] sm:$0xff]
  %v131 = vld [vmem:[%s1 + $0x108] sm:$0xff]
  %v132 = vld [vmem:[%s1 + $0x110] sm:$0xff]
  %v133 = vld [vmem:[%s1 + $0x118] sm:$0xff]
  %v134 = vld [vmem:[%s1 + $0x120] sm:$0xff]
  %v135 = vld [vmem:[%s1 + $0x128] sm:$0xff]
  %v136 = vld [vmem:[%s1 + $0x130] sm:$0xff]
  %v137 = vld [vmem:[%s1 + $0x138] sm:$0xff]
  %v138 = vld [vmem:[%s1 + $0x140] sm:$0xff]
  %v139 = vld [vmem:[%s1 + $0x148] sm:$0xff]
  %v140 = vld [vmem:[%s1 + $0x150] sm:$0xff]
  %v141 = vld [vmem:[%s1 + $0x158] sm:$0xff]
  %v142 = vld [vmem:[%s1 + $0x160] sm:$0xff]
  %v143 = vld [vmem:[%s1 + $0x168] sm:$0xff]
  %v144 = vld [vmem:[%s1 + $0x170] sm:$0xff]
  %v145 = vld [vmem:[%s1 + $0x178] sm:$0xff]
  %v146 = vld [vmem:[%s1 + $0x180] sm:$0xff]
  %v147 = vld [vmem:[%s1 + $0x188] sm:$0xff]
  %v148 = vld [vmem:[%s1 + $0x190] sm:$0xff]
  %v149 = vld [vmem:[%s1 + $0x198] sm:$0xff]
  %v150 = vld [vmem:[%s1 + $0x1a0] sm:$0xff]
  %v151 = vld [vmem:[%s1 + $0x1a8] sm:$0xff]
  %v152 = vld [vmem:[%s1 + $0x1b0] sm:$0xff]
  %v153 = vld [vmem:[%s1 + $0x1b8] sm:$0xff]
  %v154 = vld [vmem:[%s1 + $0x1c0] sm:$0xff]
  %v155 = vld [vmem:[%s1 + $0x1c8] sm:$0xff]
  %v156 = vld [vmem:[%s1 + $0x1d0] sm:$0xff]
  %v157 = vld [vmem:[%s1 + $0x1d8] sm:$0xff]
  %v158 = vld [vmem:[%s1 + $0x1e0] sm:$0xff]
  %v159 = vld [vmem:[%s1 + $0x1e8] sm:$0xff]
  %v160 = vld [vmem:[%s1 + $0x1f0] sm:$0xff]
  %v161 = vld [vmem:[%s1 + $0x1f8] sm:$0xff]
  %v162 = vld [vmem:[%s1 + $0x200] sm:$0xff]
  %v163 = vld [vmem:[%s1 + $0x208] sm:$0xff]
  %v164 = vld [vmem:[%s1 + $0x210] sm:$0xff]
  %v165 = vld [vmem:[%s1 + $0x218] sm:$0xff]
  %v166 = vld [vmem:[%s1 + $0x220] sm:$0xff]
  %v167 = vld [vmem:[%s1 + $0x228] sm:$0xff]
  %v168 = vld [vmem:[%s1 + $0x230] sm:$0xff]
  %v169 = vld [vmem:[%s1 + $0x238] sm:$0xff]
  %v170 = vld [vmem:[%s1 + $0x240] sm:$0xff]
  %v171 = vld [vmem:[%s1 + $0x248] sm:$0xff]
  %v172 = vld [vmem:[%s1 + $0x250] sm:$0xff]
  %v173 = vld [vmem:[%s1 + $0x258] sm:$0xff]
  %v174 = vld [vmem:[%s1 + $0x260] sm:$0xff]
  %v175 = vld [vmem:[%s1 + $0x268] sm:$0xff]
  %v176 = vld [vmem:[%s1 + $0x270] sm:$0xff]
  %v177 = vld [vmem:[%s1 + $0x278] sm:$0xff]
  %v178 = vld [vmem:[%s1 + $0x280] sm:$0xff]
  %v179 = vld [vmem:[%s1 + $0x288] sm:$0xff]
  %v180 = vld [vmem:[%s1 + $0x290] sm:$0xff]
  %v181 = vld [vmem:[%s1 + $0x298] sm:$0xff]
  %v182 = vld [vmem:[%s1 + $0x2a0] sm:$0xff]
  %v183 = vld [vmem:[%s1 + $0x2a8] sm:$0xff]
  %v184 = vld [vmem:[%s1 + $0x2b0] sm:$0xff]
  %v185 = vld [vmem:[%s1 + $0x2b8] sm:$0xff]
  %v186 = vld [vmem:[%s1 + $0x2c0] sm:$0xff]
  %v187 = vld [vmem:[%s1 + $0x2c8] sm:$0xff]
  %v188 = vld [vmem:[%s1 + $0x2d0] sm:$0xff]
  %v189 = vld [vmem:[%s1 + $0x2d8] sm:$0xff]
  %v190 = vld [vmem:[%s1 + $0x2e0] sm:$0xff]
  %v191 = vld [vmem:[%s1 + $0x2e8] sm:$0xff]
  %v192 = vld [vmem:[%s1 + $0x2f0] sm:$0xff]
  %v193 = vld [vmem:[%s1 + $0x2f8] sm:$0xff]
  %v194 = vld [vmem:[%s1 + $0x300] sm:$0xff]
  %v195 = vld [vmem:[%s1 + $0x308] sm:$0xff]
  %v196 = vld [vmem:[%s1 + $0x310] sm:$0xff]
  %v197 = vld [vmem:[%s1 + $0x318] sm:$0xff]
  %v198 = vld [vmem:[%s1 + $0x320] sm:$0xff]
  %v199 = vld [vmem:[%s1 + $0x328] sm:$0xff]
  %v200 = vld [vmem:[%s1 + $0x330] sm:$0xff]
  %v201 = vld [vmem:[%s1 + $0x338] sm:$0xff]
  %v202 = vld [vmem:[%s1 + $0x340] sm:$0xff]
  %v203 = vld [vmem:[%s1 + $0x348] sm:$0xff]
  %v204 = vld [vmem:[%s1 + $0x350] sm:$0xff]
  %v205 = vld [vmem:[%s1 + $0x358] sm:$0xff]
  %v206 = vld [vmem:[%s1 + $0x360] sm:$0xff]
  %v207 = vld [vmem:[%s1 + $0x368] sm:$0xff]
  %v208 = vld [vmem:[%s1 + $0x370] sm:$0xff]
  %v209 = vld [vmem:[%s1 + $0x378] sm:$0xff]
  %v210 = vld [vmem:[%s1 + $0x380] sm:$0xff]
  %v211 = vld [vmem:[%s1 + $0x388] sm:$0xff]
  %v212 = vld [vmem:[%s1 + $0x390] sm:$0xff]
  %v213 = vld [vmem:[%s1 + $0x398] sm:$0xff]
  %v214 = vld [vmem:[%s1 + $0x3a0] sm:$0xff]
  %v215 = vld [vmem:[%s1 + $0x3a8] sm:$0xff]
  %v216 = vld [vmem:[%s1 + $0x3b0] sm:$0xff]
  %v217 = vld [vmem:[%s1 + $0x3b8] sm:$0xff]
  %v218 = vld [vmem:[%s1 + $0x3c0] sm:$0xff]
  %v219 = vld [vmem:[%s1 + $0x3c8] sm:$0xff]
  %v220 = vld [vmem:[%s1 + $0x3d0] sm:$0xff]
  %v221 = vld [vmem:[%s1 + $0x3d8] sm:$0xff]
  %v222 = vld [vmem:[%s1 + $0x3e0] sm:$0xff]
  %v223 = vld [vmem:[%s1 + $0x3e8] sm:$0xff]
  %v224 = vld [vmem:[%s1 + $0x3f0] sm:$0xff]
  %v225 = vld [vmem:[%s1 + $0x3f8] sm:$0xff]
  %v226 = vld [vmem:[%s1 + $0x400] sm:$0xff]
  %v227 = vld [vmem:[%s1 + $0x408] sm:$0xff]
  %v228 = vld [vmem:[%s1 + $0x410] sm:$0xff]
  %v229 = vld [vmem:[%s1 + $0x418] sm:$0xff]
  %v230 = vld [vmem:[%s1 + $0x420] sm:$0xff]
  %v231 = vld [vmem:[%s1 + $0x428] sm:$0xff]
  %v232 = vld [vmem:[%s1 + $0x430] sm:$0xff]
  %v233 = vld [vmem:[%s1 + $0x438] sm:$0xff]
  %v234 = vld [vmem:[%s1 + $0x440] sm:$0xff]
  %v235 = vld [vmem:[%s1 + $0x448] sm:$0xff]
  %v236 = vld [vmem:[%s1 + $0x450] sm:$0xff]
  %v237 = vld [vmem:[%s1 + $0x458] sm:$0xff]
  %v238 = vld [vmem:[%s1 + $0x460] sm:$0xff]
  %v239 = vld [vmem:[%s1 + $0x468] sm:$0xff]
  %v240 = vld [vmem:[%s1 + $0x470] sm:$0xff]
  %v241 = vld [vmem:[%s1 + $0x478] sm:$0xff]
  %v322 = vunpack.c.l.b16 %v18
  %v323 = vunpack.c.h.b16 %v18
  %v324 = vunpack.c.l.b16 %v19
  %v325 = vunpack.c.h.b16 %v19
  %v326 = vunpack.c.l.b16 %v20
  %v327 = vunpack.c.h.b16 %v20
  %v328 = vunpack.c.l.b16 %v21
  %v329 = vunpack.c.h.b16 %v21
  %v330 = vunpack.c.l.b16 %v22
  %v331 = vunpack.c.l.b16 %v23
  %v332 = vunpack.c.h.b16 %v23
  %v333 = vunpack.c.l.b16 %v24
  %v334 = vunpack.c.h.b16 %v24
  %v335 = vunpack.c.l.b16 %v25
  %v336 = vunpack.c.h.b16 %v25
  %v337 = vunpack.c.l.b16 %v26
  %v338 = vunpack.c.h.b16 %v26
  %v339 = vunpack.c.l.b16 %v27
  %v340 = vunpack.c.l.b16 %v28
  %v341 = vunpack.c.h.b16 %v28
  %v342 = vunpack.c.l.b16 %v29
  %v343 = vunpack.c.h.b16 %v29
  %v344 = vunpack.c.l.b16 %v30
  %v345 = vunpack.c.h.b16 %v30
  %v346 = vunpack.c.l.b16 %v31
  %v347 = vunpack.c.h.b16 %v31
  %v348 = vunpack.c.l.b16 %v32
  %v349 = vunpack.c.l.b16 %v33
  %v350 = vunpack.c.h.b16 %v33
  %v351 = vunpack.c.l.b16 %v34
  %v352 = vunpack.c.h.b16 %v34
  %v353 = vunpack.c.l.b16 %v35
  %v354 = vunpack.c.h.b16 %v35
  %v355 = vunpack.c.l.b16 %v36
  %v356 = vunpack.c.h.b16 %v36
  %v357 = vunpack.c.l.b16 %v37
  %v358 = vunpack.c.l.b16 %v38
  %v359 = vunpack.c.h.b16 %v38
  %v360 = vunpack.c.l.b16 %v39
  %v361 = vunpack.c.h.b16 %v39
  %v362 = vunpack.c.l.b16 %v40
  %v363 = vunpack.c.h.b16 %v40
  %v364 = vunpack.c.l.b16 %v41
  %v365 = vunpack.c.h.b16 %v41
  %v366 = vunpack.c.l.b16 %v42
  %v367 = vunpack.c.l.b16 %v43
  %v368 = vunpack.c.h.b16 %v43
  %v369 = vunpack.c.l.b16 %v44
  %v370 = vunpack.c.h.b16 %v44
  %v371 = vunpack.c.l.b16 %v45
  %v372 = vunpack.c.h.b16 %v45
  %v373 = vunpack.c.l.b16 %v46
  %v374 = vunpack.c.h.b16 %v46
  %v375 = vunpack.c.l.b16 %v47
  %v376 = vunpack.c.l.b16 %v48
  %v377 = vunpack.c.h.b16 %v48
  %v378 = vunpack.c.l.b16 %v49
  %v379 = vunpack.c.h.b16 %v49
  %v380 = vunpack.c.l.b16 %v50
  %v381 = vunpack.c.h.b16 %v50
  %v382 = vunpack.c.l.b16 %v51
  %v383 = vunpack.c.h.b16 %v51
  %v384 = vunpack.c.l.b16 %v52
  %v385 = vunpack.c.l.b16 %v53
  %v386 = vunpack.c.h.b16 %v53
  %v387 = vunpack.c.l.b16 %v54
  %v388 = vunpack.c.h.b16 %v54
  %v389 = vunpack.c.l.b16 %v55
  %v390 = vunpack.c.h.b16 %v55
  %v391 = vunpack.c.l.b16 %v56
  %v392 = vunpack.c.h.b16 %v56
  %v393 = vunpack.c.l.b16 %v57
  %v394 = vunpack.c.l.b16 %v58
  %v395 = vunpack.c.h.b16 %v58
  %v396 = vunpack.c.l.b16 %v59
  %v397 = vunpack.c.h.b16 %v59
  %v398 = vunpack.c.l.b16 %v60
  %v399 = vunpack.c.h.b16 %v60
  %v400 = vunpack.c.l.b16 %v61
  %v401 = vunpack.c.h.b16 %v61
  %v402 = vunpack.c.l.b16 %v62
  %v403 = vunpack.c.l.b16 %v63
  %v404 = vunpack.c.h.b16 %v63
  %v405 = vunpack.c.l.b16 %v64
  %v406 = vunpack.c.h.b16 %v64
  %v407 = vunpack.c.l.b16 %v65
  %v408 = vunpack.c.h.b16 %v65
  %v409 = vunpack.c.l.b16 %v66
  %v410 = vunpack.c.h.b16 %v66
  %v411 = vunpack.c.l.b16 %v67
  %v412 = vunpack.c.l.b16 %v68
  %v413 = vunpack.c.h.b16 %v68
  %v414 = vunpack.c.l.b16 %v69
  %v415 = vunpack.c.h.b16 %v69
  %v416 = vunpack.c.l.b16 %v70
  %v417 = vunpack.c.h.b16 %v70
  %v418 = vunpack.c.l.b16 %v71
  %v419 = vunpack.c.h.b16 %v71
  %v420 = vunpack.c.l.b16 %v72
  %v421 = vunpack.c.l.b16 %v73
  %v422 = vunpack.c.h.b16 %v73
  %v423 = vunpack.c.l.b16 %v74
  %v424 = vunpack.c.h.b16 %v74
  %v425 = vunpack.c.l.b16 %v75
  %v426 = vunpack.c.h.b16 %v75
  %v427 = vunpack.c.l.b16 %v76
  %v428 = vunpack.c.h.b16 %v76
  %v429 = vunpack.c.l.b16 %v77
  %v430 = vunpack.c.l.b16 %v78
  %v431 = vunpack.c.h.b16 %v78
  %v432 = vunpack.c.l.b16 %v79
  %v433 = vunpack.c.h.b16 %v79
  %v434 = vunpack.c.l.b16 %v80
  %v435 = vunpack.c.h.b16 %v80
  %v436 = vunpack.c.l.b16 %v81
  %v437 = vunpack.c.h.b16 %v81
  %v438 = vunpack.c.l.b16 %v82
  %v439 = vunpack.c.l.b16 %v83
  %v440 = vunpack.c.h.b16 %v83
  %v441 = vunpack.c.l.b16 %v84
  %v442 = vunpack.c.h.b16 %v84
  %v443 = vunpack.c.l.b16 %v85
  %v444 = vunpack.c.h.b16 %v85
  %v445 = vunpack.c.l.b16 %v86
  %v446 = vunpack.c.h.b16 %v86
  %v447 = vunpack.c.l.b16 %v87
  %v448 = vunpack.c.l.b16 %v88
  %v449 = vunpack.c.h.b16 %v88
  %v450 = vunpack.c.l.b16 %v89
  %v451 = vunpack.c.h.b16 %v89
  %v452 = vunpack.c.l.b16 %v90
  %v453 = vunpack.c.h.b16 %v90
  %v454 = vunpack.c.l.b16 %v91
  %v455 = vunpack.c.h.b16 %v91
  %v456 = vunpack.c.l.b16 %v92
  %v457 = vunpack.c.l.b16 %v93
  %v458 = vunpack.c.h.b16 %v93
  %v459 = vunpack.c.l.b16 %v94
  %v460 = vunpack.c.h.b16 %v94
  %v461 = vunpack.c.l.b16 %v95
  %v462 = vunpack.c.h.b16 %v95
  %v463 = vunpack.c.l.b16 %v96
  %v464 = vunpack.c.h.b16 %v96
  %v465 = vunpack.c.l.b16 %v97
  %v466 = vpack.c.b16 %v331, %v322
  %v467 = vpack.c.b16 %v332, %v323
  %v468 = vpack.c.b16 %v333, %v324
  %v469 = vpack.c.b16 %v334, %v325
  %v470 = vpack.c.b16 %v335, %v326
  %v471 = vpack.c.b16 %v336, %v327
  %v472 = vpack.c.b16 %v337, %v328
  %v473 = vpack.c.b16 %v338, %v329
  %v474 = vpack.c.b16 %v339, %v330
  %v475 = vpack.c.b16 %v349, %v340
  %v476 = vpack.c.b16 %v350, %v341
  %v477 = vpack.c.b16 %v351, %v342
  %v478 = vpack.c.b16 %v352, %v343
  %v479 = vpack.c.b16 %v353, %v344
  %v480 = vpack.c.b16 %v354, %v345
  %v481 = vpack.c.b16 %v355, %v346
  %v482 = vpack.c.b16 %v356, %v347
  %v483 = vpack.c.b16 %v357, %v348
  %v484 = vpack.c.b16 %v367, %v358
  %v485 = vpack.c.b16 %v368, %v359
  %v486 = vpack.c.b16 %v369, %v360
  %v487 = vpack.c.b16 %v370, %v361
  %v488 = vpack.c.b16 %v371, %v362
  %v489 = vpack.c.b16 %v372, %v363
  %v490 = vpack.c.b16 %v373, %v364
  %v491 = vpack.c.b16 %v374, %v365
  %v492 = vpack.c.b16 %v375, %v366
  %v493 = vpack.c.b16 %v385, %v376
  %v494 = vpack.c.b16 %v386, %v377
  %v495 = vpack.c.b16 %v387, %v378
  %v496 = vpack.c.b16 %v388, %v379
  %v497 = vpack.c.b16 %v389, %v380
  %v498 = vpack.c.b16 %v390, %v381
  %v499 = vpack.c.b16 %v391, %v382
  %v500 = vpack.c.b16 %v392, %v383
  %v501 = vpack.c.b16 %v393, %v384
  %v502 = vpack.c.b16 %v403, %v394
  %v503 = vpack.c.b16 %v404, %v395
  %v504 = vpack.c.b16 %v405, %v396
  %v505 = vpack.c.b16 %v406, %v397
  %v506 = vpack.c.b16 %v407, %v398
  %v507 = vpack.c.b16 %v408, %v399
  %v508 = vpack.c.b16 %v409, %v400
  %v509 = vpack.c.b16 %v410, %v401
  %v510 = vpack.c.b16 %v411, %v402
  %v511 = vpack.c.b16 %v421, %v412
  %v512 = vpack.c.b16 %v422, %v413
  %v513 = vpack.c.b16 %v423, %v414
  %v514 = vpack.c.b16 %v424, %v415
  %v515 = vpack.c.b16 %v425, %v416
  %v516 = vpack.c.b16 %v426, %v417
  %v517 = vpack.c.b16 %v427, %v418
  %v518 = vpack.c.b16 %v428, %v419
  %v519 = vpack.c.b16 %v429, %v420
  %v520 = vpack.c.b16 %v439, %v430
  %v521 = vpack.c.b16 %v440, %v431
  %v522 = vpack.c.b16 %v441, %v432
  %v523 = vpack.c.b16 %v442, %v433
  %v524 = vpack.c.b16 %v443, %v434
  %v525 = vpack.c.b16 %v444, %v435
  %v526 = vpack.c.b16 %v445, %v436
  %v527 = vpack.c.b16 %v446, %v437
  %v528 = vpack.c.b16 %v447, %v438
  %v529 = vpack.c.b16 %v457, %v448
  %v530 = vpack.c.b16 %v458, %v449
  %v531 = vpack.c.b16 %v459, %v450
  %v532 = vpack.c.b16 %v460, %v451
  %v533 = vpack.c.b16 %v461, %v452
  %v534 = vpack.c.b16 %v462, %v453
  %v535 = vpack.c.b16 %v463, %v454
  %v536 = vpack.c.b16 %v464, %v455
  %v537 = vpack.c.b16 %v465, %v456
  %v754 = vunpack.c.l.b16 %v98
  %v755 = vunpack.c.h.b16 %v98
  %v756 = vunpack.c.l.b16 %v99
  %v757 = vunpack.c.h.b16 %v99
  %v758 = vunpack.c.l.b16 %v100
  %v759 = vunpack.c.h.b16 %v100
  %v760 = vunpack.c.l.b16 %v101
  %v761 = vunpack.c.h.b16 %v101
  %v762 = vunpack.c.l.b16 %v102
  %v763 = vunpack.c.h.b16 %v102
  %v764 = vunpack.c.l.b16 %v103
  %v765 = vunpack.c.h.b16 %v103
  %v766 = vunpack.c.l.b16 %v104
  %v767 = vunpack.c.h.b16 %v104
  %v768 = vunpack.c.l.b16 %v105
  %v769 = vunpack.c.h.b16 %v105
  %v770 = vunpack.c.l.b16 %v106
  %v771 = vunpack.c.h.b16 %v106
  %v772 = vunpack.c.l.b16 %v107
  %v773 = vunpack.c.h.b16 %v107
  %v774 = vunpack.c.l.b16 %v108
  %v775 = vunpack.c.h.b16 %v108
  %v776 = vunpack.c.l.b16 %v109
  %v777 = vunpack.c.h.b16 %v109
  %v778 = vunpack.c.l.b16 %v110
  %v779 = vunpack.c.h.b16 %v110
  %v780 = vunpack.c.l.b16 %v111
  %v781 = vunpack.c.h.b16 %v111
  %v782 = vunpack.c.l.b16 %v112
  %v783 = vunpack.c.h.b16 %v112
  %v784 = vunpack.c.l.b16 %v113
  %v785 = vunpack.c.h.b16 %v113
  %v786 = vunpack.c.l.b16 %v114
  %v787 = vunpack.c.h.b16 %v114
  %v788 = vunpack.c.l.b16 %v115
  %v789 = vunpack.c.h.b16 %v115
  %v790 = vunpack.c.l.b16 %v116
  %v791 = vunpack.c.h.b16 %v116
  %v792 = vunpack.c.l.b16 %v117
  %v793 = vunpack.c.h.b16 %v117
  %v794 = vunpack.c.l.b16 %v118
  %v795 = vunpack.c.h.b16 %v118
  %v796 = vunpack.c.l.b16 %v119
  %v797 = vunpack.c.h.b16 %v119
  %v798 = vunpack.c.l.b16 %v120
  %v799 = vunpack.c.h.b16 %v120
  %v800 = vunpack.c.l.b16 %v121
  %v801 = vunpack.c.h.b16 %v121
  %v802 = vunpack.c.l.b16 %v122
  %v803 = vunpack.c.h.b16 %v122
  %v804 = vunpack.c.l.b16 %v123
  %v805 = vunpack.c.h.b16 %v123
  %v806 = vunpack.c.l.b16 %v124
  %v807 = vunpack.c.h.b16 %v124
  %v808 = vunpack.c.l.b16 %v125
  %v809 = vunpack.c.h.b16 %v125
  %v810 = vunpack.c.l.b16 %v126
  %v811 = vunpack.c.h.b16 %v126
  %v812 = vunpack.c.l.b16 %v127
  %v813 = vunpack.c.h.b16 %v127
  %v814 = vunpack.c.l.b16 %v128
  %v815 = vunpack.c.h.b16 %v128
  %v816 = vunpack.c.l.b16 %v129
  %v817 = vunpack.c.h.b16 %v129
  %v818 = vunpack.c.l.b16 %v130
  %v819 = vunpack.c.h.b16 %v130
  %v820 = vunpack.c.l.b16 %v131
  %v821 = vunpack.c.h.b16 %v131
  %v822 = vunpack.c.l.b16 %v132
  %v823 = vunpack.c.h.b16 %v132
  %v824 = vunpack.c.l.b16 %v133
  %v825 = vunpack.c.h.b16 %v133
  %v826 = vunpack.c.l.b16 %v134
  %v827 = vunpack.c.h.b16 %v134
  %v828 = vunpack.c.l.b16 %v135
  %v829 = vunpack.c.h.b16 %v135
  %v830 = vunpack.c.l.b16 %v136
  %v831 = vunpack.c.h.b16 %v136
  %v832 = vunpack.c.l.b16 %v137
  %v833 = vunpack.c.h.b16 %v137
  %v834 = vunpack.c.l.b16 %v138
  %v835 = vunpack.c.h.b16 %v138
  %v836 = vunpack.c.l.b16 %v139
  %v837 = vunpack.c.h.b16 %v139
  %v838 = vunpack.c.l.b16 %v140
  %v839 = vunpack.c.h.b16 %v140
  %v840 = vunpack.c.l.b16 %v141
  %v841 = vunpack.c.h.b16 %v141
  %v842 = vunpack.c.l.b16 %v142
  %v843 = vunpack.c.h.b16 %v142
  %v844 = vunpack.c.l.b16 %v143
  %v845 = vunpack.c.h.b16 %v143
  %v846 = vunpack.c.l.b16 %v144
  %v847 = vunpack.c.h.b16 %v144
  %v848 = vunpack.c.l.b16 %v145
  %v849 = vunpack.c.h.b16 %v145
  %v850 = vunpack.c.l.b16 %v146
  %v851 = vunpack.c.h.b16 %v146
  %v852 = vunpack.c.l.b16 %v147
  %v853 = vunpack.c.h.b16 %v147
  %v854 = vunpack.c.l.b16 %v148
  %v855 = vunpack.c.h.b16 %v148
  %v856 = vunpack.c.l.b16 %v149
  %v857 = vunpack.c.h.b16 %v149
  %v858 = vunpack.c.l.b16 %v150
  %v859 = vunpack.c.h.b16 %v150
  %v860 = vunpack.c.l.b16 %v151
  %v861 = vunpack.c.h.b16 %v151
  %v862 = vunpack.c.l.b16 %v152
  %v863 = vunpack.c.h.b16 %v152
  %v864 = vunpack.c.l.b16 %v153
  %v865 = vunpack.c.h.b16 %v153
  %v866 = vunpack.c.l.b16 %v154
  %v867 = vunpack.c.h.b16 %v154
  %v868 = vunpack.c.l.b16 %v155
  %v869 = vunpack.c.h.b16 %v155
  %v870 = vunpack.c.l.b16 %v156
  %v871 = vunpack.c.h.b16 %v156
  %v872 = vunpack.c.l.b16 %v157
  %v873 = vunpack.c.h.b16 %v157
  %v874 = vunpack.c.l.b16 %v158
  %v875 = vunpack.c.h.b16 %v158
  %v876 = vunpack.c.l.b16 %v159
  %v877 = vunpack.c.h.b16 %v159
  %v878 = vunpack.c.l.b16 %v160
  %v879 = vunpack.c.h.b16 %v160
  %v880 = vunpack.c.l.b16 %v161
  %v881 = vunpack.c.h.b16 %v161
  %v882 = vunpack.c.l.b16 %v162
  %v883 = vunpack.c.h.b16 %v162
  %v884 = vunpack.c.l.b16 %v163
  %v885 = vunpack.c.h.b16 %v163
  %v886 = vunpack.c.l.b16 %v164
  %v887 = vunpack.c.h.b16 %v164
  %v888 = vunpack.c.l.b16 %v165
  %v889 = vunpack.c.h.b16 %v165
  %v890 = vunpack.c.l.b16 %v166
  %v891 = vunpack.c.h.b16 %v166
  %v892 = vunpack.c.l.b16 %v167
  %v893 = vunpack.c.h.b16 %v167
  %v894 = vunpack.c.l.b16 %v168
  %v895 = vunpack.c.h.b16 %v168
  %v896 = vunpack.c.l.b16 %v169
  %v897 = vunpack.c.h.b16 %v169
  %v898 = vunpack.c.l.b16 %v170
  %v899 = vunpack.c.h.b16 %v170
  %v900 = vunpack.c.l.b16 %v171
  %v901 = vunpack.c.h.b16 %v171
  %v902 = vunpack.c.l.b16 %v172
  %v903 = vunpack.c.h.b16 %v172
  %v904 = vunpack.c.l.b16 %v173
  %v905 = vunpack.c.h.b16 %v173
  %v906 = vunpack.c.l.b16 %v174
  %v907 = vunpack.c.h.b16 %v174
  %v908 = vunpack.c.l.b16 %v175
  %v909 = vunpack.c.h.b16 %v175
  %v910 = vunpack.c.l.b16 %v176
  %v911 = vunpack.c.h.b16 %v176
  %v912 = vunpack.c.l.b16 %v177
  %v913 = vunpack.c.h.b16 %v177
  %v914 = vunpack.c.l.b16 %v178
  %v915 = vunpack.c.h.b16 %v178
  %v916 = vunpack.c.l.b16 %v179
  %v917 = vunpack.c.h.b16 %v179
  %v918 = vunpack.c.l.b16 %v180
  %v919 = vunpack.c.h.b16 %v180
  %v920 = vunpack.c.l.b16 %v181
  %v921 = vunpack.c.h.b16 %v181
  %v922 = vunpack.c.l.b16 %v182
  %v923 = vunpack.c.h.b16 %v182
  %v924 = vunpack.c.l.b16 %v183
  %v925 = vunpack.c.h.b16 %v183
  %v926 = vunpack.c.l.b16 %v184
  %v927 = vunpack.c.h.b16 %v184
  %v928 = vunpack.c.l.b16 %v185
  %v929 = vunpack.c.h.b16 %v185
  %v930 = vunpack.c.l.b16 %v186
  %v931 = vunpack.c.h.b16 %v186
  %v932 = vunpack.c.l.b16 %v187
  %v933 = vunpack.c.h.b16 %v187
  %v934 = vunpack.c.l.b16 %v188
  %v935 = vunpack.c.h.b16 %v188
  %v936 = vunpack.c.l.b16 %v189
  %v937 = vunpack.c.h.b16 %v189
  %v938 = vunpack.c.l.b16 %v190
  %v939 = vunpack.c.h.b16 %v190
  %v940 = vunpack.c.l.b16 %v191
  %v941 = vunpack.c.h.b16 %v191
  %v942 = vunpack.c.l.b16 %v192
  %v943 = vunpack.c.h.b16 %v192
  %v944 = vunpack.c.l.b16 %v193
  %v945 = vunpack.c.h.b16 %v193
  %v946 = vunpack.c.l.b16 %v194
  %v947 = vunpack.c.h.b16 %v194
  %v948 = vunpack.c.l.b16 %v195
  %v949 = vunpack.c.h.b16 %v195
  %v950 = vunpack.c.l.b16 %v196
  %v951 = vunpack.c.h.b16 %v196
  %v952 = vunpack.c.l.b16 %v197
  %v953 = vunpack.c.h.b16 %v197
  %v954 = vunpack.c.l.b16 %v198
  %v955 = vunpack.c.h.b16 %v198
  %v956 = vunpack.c.l.b16 %v199
  %v957 = vunpack.c.h.b16 %v199
  %v958 = vunpack.c.l.b16 %v200
  %v959 = vunpack.c.h.b16 %v200
  %v960 = vunpack.c.l.b16 %v201
  %v961 = vunpack.c.h.b16 %v201
  %v962 = vunpack.c.l.b16 %v202
  %v963 = vunpack.c.h.b16 %v202
  %v964 = vunpack.c.l.b16 %v203
  %v965 = vunpack.c.h.b16 %v203
  %v966 = vunpack.c.l.b16 %v204
  %v967 = vunpack.c.h.b16 %v204
  %v968 = vunpack.c.l.b16 %v205
  %v969 = vunpack.c.h.b16 %v205
  %v970 = vunpack.c.l.b16 %v206
  %v971 = vunpack.c.h.b16 %v206
  %v972 = vunpack.c.l.b16 %v207
  %v973 = vunpack.c.h.b16 %v207
  %v974 = vunpack.c.l.b16 %v208
  %v975 = vunpack.c.h.b16 %v208
  %v976 = vunpack.c.l.b16 %v209
  %v977 = vunpack.c.h.b16 %v209
  %v978 = vunpack.c.l.b16 %v210
  %v979 = vunpack.c.h.b16 %v210
  %v980 = vunpack.c.l.b16 %v211
  %v981 = vunpack.c.h.b16 %v211
  %v982 = vunpack.c.l.b16 %v212
  %v983 = vunpack.c.h.b16 %v212
  %v984 = vunpack.c.l.b16 %v213
  %v985 = vunpack.c.h.b16 %v213
  %v986 = vunpack.c.l.b16 %v214
  %v987 = vunpack.c.h.b16 %v214
  %v988 = vunpack.c.l.b16 %v215
  %v989 = vunpack.c.h.b16 %v215
  %v990 = vunpack.c.l.b16 %v216
  %v991 = vunpack.c.h.b16 %v216
  %v992 = vunpack.c.l.b16 %v217
  %v993 = vunpack.c.h.b16 %v217
  %v994 = vunpack.c.l.b16 %v218
  %v995 = vunpack.c.h.b16 %v218
  %v996 = vunpack.c.l.b16 %v219
  %v997 = vunpack.c.h.b16 %v219
  %v998 = vunpack.c.l.b16 %v220
  %v999 = vunpack.c.h.b16 %v220
  %v1000 = vunpack.c.l.b16 %v221
  %v1001 = vunpack.c.h.b16 %v221
  %v1002 = vunpack.c.l.b16 %v222
  %v1003 = vunpack.c.h.b16 %v222
  %v1004 = vunpack.c.l.b16 %v223
  %v1005 = vunpack.c.h.b16 %v223
  %v1006 = vunpack.c.l.b16 %v224
  %v1007 = vunpack.c.h.b16 %v224
  %v1008 = vunpack.c.l.b16 %v225
  %v1009 = vunpack.c.h.b16 %v225
  %v1010 = vunpack.c.l.b16 %v226
  %v1011 = vunpack.c.h.b16 %v226
  %v1012 = vunpack.c.l.b16 %v227
  %v1013 = vunpack.c.h.b16 %v227
  %v1014 = vunpack.c.l.b16 %v228
  %v1015 = vunpack.c.h.b16 %v228
  %v1016 = vunpack.c.l.b16 %v229
  %v1017 = vunpack.c.h.b16 %v229
  %v1018 = vunpack.c.l.b16 %v230
  %v1019 = vunpack.c.h.b16 %v230
  %v1020 = vunpack.c.l.b16 %v231
  %v1021 = vunpack.c.h.b16 %v231
  %v1022 = vunpack.c.l.b16 %v232
  %v1023 = vunpack.c.h.b16 %v232
  %v1024 = vunpack.c.l.b16 %v233
  %v1025 = vunpack.c.h.b16 %v233
  %v1026 = vunpack.c.l.b16 %v234
  %v1027 = vunpack.c.h.b16 %v234
  %v1028 = vunpack.c.l.b16 %v235
  %v1029 = vunpack.c.h.b16 %v235
  %v1030 = vunpack.c.l.b16 %v236
  %v1031 = vunpack.c.h.b16 %v236
  %v1032 = vunpack.c.l.b16 %v237
  %v1033 = vunpack.c.h.b16 %v237
  %v1034 = vunpack.c.l.b16 %v238
  %v1035 = vunpack.c.h.b16 %v238
  %v1036 = vunpack.c.l.b16 %v239
  %v1037 = vunpack.c.h.b16 %v239
  %v1038 = vunpack.c.l.b16 %v240
  %v1039 = vunpack.c.h.b16 %v240
  %v1040 = vunpack.c.l.b16 %v241
  %v1041 = vunpack.c.h.b16 %v241
  %v1042 = vpack.c.b16 %v756, %v754
  %v1043 = vpack.c.b16 %v757, %v755
  %v1044 = vpack.c.b16 %v760, %v758
  %v1045 = vpack.c.b16 %v761, %v759
  %v1046 = vpack.c.b16 %v764, %v762
  %v1047 = vpack.c.b16 %v765, %v763
  %v1048 = vpack.c.b16 %v768, %v766
  %v1049 = vpack.c.b16 %v769, %v767
  %v1050 = vpack.c.b16 %v772, %v770
  %v1051 = vpack.c.b16 %v773, %v771
  %v1052 = vpack.c.b16 %v776, %v774
  %v1053 = vpack.c.b16 %v777, %v775
  %v1054 = vpack.c.b16 %v780, %v778
  %v1055 = vpack.c.b16 %v781, %v779
  %v1056 = vpack.c.b16 %v784, %v782
  %v1057 = vpack.c.b16 %v785, %v783
  %v1058 = vpack.c.b16 %v788, %v786
  %v1059 = vpack.c.b16 %v789, %v787
  %v1060 = vpack.c.b16 %v792, %v790
  %v1061 = vpack.c.b16 %v793, %v791
  %v1062 = vpack.c.b16 %v796, %v794
  %v1063 = vpack.c.b16 %v797, %v795
  %v1064 = vpack.c.b16 %v800, %v798
  %v1065 = vpack.c.b16 %v801, %v799
  %v1066 = vpack.c.b16 %v804, %v802
  %v1067 = vpack.c.b16 %v805, %v803
  %v1068 = vpack.c.b16 %v808, %v806
  %v1069 = vpack.c.b16 %v809, %v807
  %v1070 = vpack.c.b16 %v812, %v810
  %v1071 = vpack.c.b16 %v813, %v811
  %v1072 = vpack.c.b16 %v816, %v814
  %v1073 = vpack.c.b16 %v817, %v815
  %v1074 = vpack.c.b16 %v820, %v818
  %v1075 = vpack.c.b16 %v821, %v819
  %v1076 = vpack.c.b16 %v824, %v822
  %v1077 = vpack.c.b16 %v825, %v823
  %v1078 = vpack.c.b16 %v828, %v826
  %v1079 = vpack.c.b16 %v829, %v827
  %v1080 = vpack.c.b16 %v832, %v830
  %v1081 = vpack.c.b16 %v833, %v831
  %v1082 = vpack.c.b16 %v836, %v834
  %v1083 = vpack.c.b16 %v837, %v835
  %v1084 = vpack.c.b16 %v840, %v838
  %v1085 = vpack.c.b16 %v841, %v839
  %v1086 = vpack.c.b16 %v844, %v842
  %v1087 = vpack.c.b16 %v845, %v843
  %v1088 = vpack.c.b16 %v848, %v846
  %v1089 = vpack.c.b16 %v849, %v847
  %v1090 = vpack.c.b16 %v852, %v850
  %v1091 = vpack.c.b16 %v853, %v851
  %v1092 = vpack.c.b16 %v856, %v854
  %v1093 = vpack.c.b16 %v857, %v855
  %v1094 = vpack.c.b16 %v860, %v858
  %v1095 = vpack.c.b16 %v861, %v859
  %v1096 = vpack.c.b16 %v864, %v862
  %v1097 = vpack.c.b16 %v865, %v863
  %v1098 = vpack.c.b16 %v868, %v866
  %v1099 = vpack.c.b16 %v869, %v867
  %v1100 = vpack.c.b16 %v872, %v870
  %v1101 = vpack.c.b16 %v873, %v871
  %v1102 = vpack.c.b16 %v876, %v874
  %v1103 = vpack.c.b16 %v877, %v875
  %v1104 = vpack.c.b16 %v880, %v878
  %v1105 = vpack.c.b16 %v881, %v879
  %v1106 = vpack.c.b16 %v884, %v882
  %v1107 = vpack.c.b16 %v885, %v883
  %v1108 = vpack.c.b16 %v888, %v886
  %v1109 = vpack.c.b16 %v889, %v887
  %v1110 = vpack.c.b16 %v892, %v890
  %v1111 = vpack.c.b16 %v893, %v891
  %v1112 = vpack.c.b16 %v896, %v894
  %v1113 = vpack.c.b16 %v897, %v895
  %v1114 = vpack.c.b16 %v900, %v898
  %v1115 = vpack.c.b16 %v901, %v899
  %v1116 = vpack.c.b16 %v904, %v902
  %v1117 = vpack.c.b16 %v905, %v903
  %v1118 = vpack.c.b16 %v908, %v906
  %v1119 = vpack.c.b16 %v909, %v907
  %v1120 = vpack.c.b16 %v912, %v910
  %v1121 = vpack.c.b16 %v913, %v911
  %v1122 = vpack.c.b16 %v916, %v914
  %v1123 = vpack.c.b16 %v917, %v915
  %v1124 = vpack.c.b16 %v920, %v918
  %v1125 = vpack.c.b16 %v921, %v919
  %v1126 = vpack.c.b16 %v924, %v922
  %v1127 = vpack.c.b16 %v925, %v923
  %v1128 = vpack.c.b16 %v928, %v926
  %v1129 = vpack.c.b16 %v929, %v927
  %v1130 = vpack.c.b16 %v932, %v930
  %v1131 = vpack.c.b16 %v933, %v931
  %v1132 = vpack.c.b16 %v936, %v934
  %v1133 = vpack.c.b16 %v937, %v935
  %v1134 = vpack.c.b16 %v940, %v938
  %v1135 = vpack.c.b16 %v941, %v939
  %v1136 = vpack.c.b16 %v944, %v942
  %v1137 = vpack.c.b16 %v945, %v943
  %v1138 = vpack.c.b16 %v948, %v946
  %v1139 = vpack.c.b16 %v949, %v947
  %v1140 = vpack.c.b16 %v952, %v950
  %v1141 = vpack.c.b16 %v953, %v951
  %v1142 = vpack.c.b16 %v956, %v954
  %v1143 = vpack.c.b16 %v957, %v955
  %v1144 = vpack.c.b16 %v960, %v958
  %v1145 = vpack.c.b16 %v961, %v959
  %v1146 = vpack.c.b16 %v964, %v962
  %v1147 = vpack.c.b16 %v965, %v963
  %v1148 = vpack.c.b16 %v968, %v966
  %v1149 = vpack.c.b16 %v969, %v967
  %v1150 = vpack.c.b16 %v972, %v970
  %v1151 = vpack.c.b16 %v973, %v971
  %v1152 = vpack.c.b16 %v976, %v974
  %v1153 = vpack.c.b16 %v977, %v975
  %v1154 = vpack.c.b16 %v980, %v978
  %v1155 = vpack.c.b16 %v981, %v979
  %v1156 = vpack.c.b16 %v984, %v982
  %v1157 = vpack.c.b16 %v985, %v983
  %v1158 = vpack.c.b16 %v988, %v986
  %v1159 = vpack.c.b16 %v989, %v987
  %v1160 = vpack.c.b16 %v992, %v990
  %v1161 = vpack.c.b16 %v993, %v991
  %v1162 = vpack.c.b16 %v996, %v994
  %v1163 = vpack.c.b16 %v997, %v995
  %v1164 = vpack.c.b16 %v1000, %v998
  %v1165 = vpack.c.b16 %v1001, %v999
  %v1166 = vpack.c.b16 %v1004, %v1002
  %v1167 = vpack.c.b16 %v1005, %v1003
  %v1168 = vpack.c.b16 %v1008, %v1006
  %v1169 = vpack.c.b16 %v1009, %v1007
  %v1170 = vpack.c.b16 %v1012, %v1010
  %v1171 = vpack.c.b16 %v1013, %v1011
  %v1172 = vpack.c.b16 %v1016, %v1014
  %v1173 = vpack.c.b16 %v1017, %v1015
  %v1174 = vpack.c.b16 %v1020, %v1018
  %v1175 = vpack.c.b16 %v1021, %v1019
  %v1176 = vpack.c.b16 %v1024, %v1022
  %v1177 = vpack.c.b16 %v1025, %v1023
  %v1178 = vpack.c.b16 %v1028, %v1026
  %v1179 = vpack.c.b16 %v1029, %v1027
  %v1180 = vpack.c.b16 %v1032, %v1030
  %v1181 = vpack.c.b16 %v1033, %v1031
  %v1182 = vpack.c.b16 %v1036, %v1034
  %v1183 = vpack.c.b16 %v1037, %v1035
  %v1184 = vpack.c.b16 %v1040, %v1038
  %v1185 = vpack.c.b16 %v1041, %v1039
  %1330 = vmatprep.subr.bf16.mxu0 %v1043
  %1331 = vmatpush1.bf16.msra.mxu0 %v1042
  %1332 = vmatprep.subr.bf16.mxu0 %v1045
  %1333 = vmatpush1.bf16.msra.mxu0 %v1044
  %1334 = vmatprep.subr.bf16.mxu0 %v1047
  %1335 = vmatpush1.bf16.msra.mxu0 %v1046
  %1336 = vmatprep.subr.bf16.mxu0 %v1049
  %1337 = vmatpush1.bf16.msra.mxu0 %v1048
  %1338 = vmatprep.subr.bf16.mxu0 %v1051
  %1339 = vmatpush1.bf16.msra.mxu0 %v1050
  %1340 = vmatprep.subr.bf16.mxu0 %v1053
  %1341 = vmatpush1.bf16.msra.mxu0 %v1052
  %1342 = vmatprep.subr.bf16.mxu0 %v1055
  %1343 = vmatpush1.bf16.msra.mxu0 %v1054
  %1344 = vmatprep.subr.bf16.mxu0 %v1057
  %1345 = vmatpush1.bf16.msra.mxu0 %v1056
  %1346 = vmatprep.subr.bf16.mxu0 %v1059
  %1347 = vmatpush1.bf16.msra.mxu0 %v1058
  %1348 = vmatprep.subr.bf16.mxu0 %v1061
  %1349 = vmatpush1.bf16.msra.mxu0 %v1060
  %1350 = vmatprep.subr.bf16.mxu0 %v1063
  %1351 = vmatpush1.bf16.msra.mxu0 %v1062
  %1352 = vmatprep.subr.bf16.mxu0 %v1065
  %1353 = vmatpush1.bf16.msra.mxu0 %v1064
  %1354 = vmatprep.subr.bf16.mxu0 %v1067
  %1355 = vmatpush1.bf16.msra.mxu0 %v1066
  %1356 = vmatprep.subr.bf16.mxu0 %v1069
  %1357 = vmatpush1.bf16.msra.mxu0 %v1068
  %1358 = vmatprep.subr.bf16.mxu0 %v1071
  %1359 = vmatpush1.bf16.msra.mxu0 %v1070
  %1360 = vmatprep.subr.bf16.mxu0 %v1073
  %1361 = vmatpush1.bf16.msra.mxu0 %v1072
  %1362 = vmatprep.mubr.bf16.mxu0 %v467
  %1363 = vmatmul.mubr.bf16.gmra.mrb[0].mxu0 %v466
  %v1364 = vpop.f32.mrb[0].mxu0
  %v1365 = vadd.f32 0.0, %v1364
  %v1366 = vpop.f32.mrb[0].mxu0
  %v1367 = vadd.f32 0.0, %v1366
  %v1368 = vpop.f32.mrb[0].mxu0
  %v1369 = vadd.f32 0.0, %v1368
  %v1370 = vpop.f32.mrb[0].mxu0
  %v1371 = vadd.f32 0.0, %v1370
  %1372 = vmatprep.mubr.bf16.mxu0 %v476
  %1373 = vmatmul.mubr.bf16.gmra.mrb[0].mxu0 %v475
  %v1374 = vpop.f32.mrb[0].mxu0
  %v1375 = vadd.f32 0.0, %v1374
  %v1376 = vpop.f32.mrb[0].mxu0
  %v1377 = vadd.f32 0.0, %v1376
  %v1378 = vpop.f32.mrb[0].mxu0
  %v1379 = vadd.f32 0.0, %v1378
  %v1380 = vpop.f32.mrb[0].mxu0
  %v1381 = vadd.f32 0.0, %v1380
  %1382 = vmatprep.mubr.bf16.mxu0 %v485
  %1383 = vmatmul.mubr.bf16.gmra.mrb[0].mxu0 %v484
  %v1384 = vpop.f32.mrb[0].mxu0
  %v1385 = vadd.f32 0.0, %v1384
  %v1386 = vpop.f32.mrb[0].mxu0
  %v1387 = vadd.f32 0.0, %v1386
  %v1388 = vpop.f32.mrb[0].mxu0
  %v1389 = vadd.f32 0.0, %v1388
  %v1390 = vpop.f32.mrb[0].mxu0
  %v1391 = vadd.f32 0.0, %v1390
  %1392 = vmatprep.mubr.bf16.mxu0 %v494
  %1393 = vmatmul.mubr.bf16.gmra.mrb[0].mxu0 %v493
  %v1394 = vpop.f32.mrb[0].mxu0
  %v1395 = vadd.f32 0.0, %v1394
  %v1396 = vpop.f32.mrb[0].mxu0
  %v1397 = vadd.f32 0.0, %v1396
  %v1398 = vpop.f32.mrb[0].mxu0
  %v1399 = vadd.f32 0.0, %v1398
  %v1400 = vpop.f32.mrb[0].mxu0
  %v1401 = vadd.f32 0.0, %v1400
  %1402 = vmatprep.mubr.bf16.mxu0 %v503
  %1403 = vmatmul.mubr.bf16.gmra.mrb[0].mxu0 %v502
  %v1404 = vpop.f32.mrb[0].mxu0
  %v1405 = vadd.f32 0.0, %v1404
  %v1406 = vpop.f32.mrb[0].mxu0
  %v1407 = vadd.f32 0.0, %v1406
  %v1408 = vpop.f32.mrb[0].mxu0
  %v1409 = vadd.f32 0.0, %v1408
  %v1410 = vpop.f32.mrb[0].mxu0
  %v1411 = vadd.f32 0.0, %v1410
  %1412 = vmatprep.mubr.bf16.mxu0 %v512
  %1413 = vmatmul.mubr.bf16.gmra.mrb[0].mxu0 %v511
  %v1414 = vpop.f32.mrb[0].mxu0
  %v1415 = vadd.f32 0.0, %v1414
  %v1416 = vpop.f32.mrb[0].mxu0
  %v1417 = vadd.f32 0.0, %v1416
  %v1418 = vpop.f32.mrb[0].mxu0
  %v1419 = vadd.f32 0.0, %v1418
  %v1420 = vpop.f32.mrb[0].mxu0
  %v1421 = vadd.f32 0.0, %v1420
  %1422 = vmatprep.mubr.bf16.mxu0 %v521
  %1423 = vmatmul.mubr.bf16.gmra.mrb[0].mxu0 %v520
  %v1424 = vpop.f32.mrb[0].mxu0
  %v1425 = vadd.f32 0.0, %v1424
  %v1426 = vpop.f32.mrb[0].mxu0
  %v1427 = vadd.f32 0.0, %v1426
  %v1428 = vpop.f32.mrb[0].mxu0
  %v1429 = vadd.f32 0.0, %v1428
  %v1430 = vpop.f32.mrb[0].mxu0
  %v1431 = vadd.f32 0.0, %v1430
  %1432 = vmatprep.mubr.bf16.mxu0 %v530
  %1433 = vmatmul.mubr.bf16.gmra.mrb[0].mxu0 %v529
  %v1434 = vpop.f32.mrb[0].mxu0
  %v1435 = vadd.f32 0.0, %v1434
  %v1436 = vpop.f32.mrb[0].mxu0
  %v1437 = vadd.f32 0.0, %v1436
  %v1438 = vpop.f32.mrb[0].mxu0
  %v1439 = vadd.f32 0.0, %v1438
  %v1440 = vpop.f32.mrb[0].mxu0
  %v1441 = vadd.f32 0.0, %v1440
  %1442 = vdwg.mxu0
  %1443 = vmatprep.subr.bf16.mxu0 %v1075
  %1444 = vmatpush1.bf16.msra.mxu0 %v1074
  %1445 = vmatprep.subr.bf16.mxu0 %v1077
  %1446 = vmatpush1.bf16.msra.mxu0 %v1076
  %1447 = vmatprep.subr.bf16.mxu0 %v1079
  %1448 = vmatpush1.bf16.msra.mxu0 %v1078
  %1449 = vmatprep.subr.bf16.mxu0 %v1081
  %1450 = vmatpush1.bf16.msra.mxu0 %v1080
  %1451 = vmatprep.subr.bf16.mxu0 %v1083
  %1452 = vmatpush1.bf16.msra.mxu0 %v1082
  %1453 = vmatprep.subr.bf16.mxu0 %v1085
  %1454 = vmatpush1.bf16.msra.mxu0 %v1084
  %1455 = vmatprep.subr.bf16.mxu0 %v1087
  %1456 = vmatpush1.bf16.msra.mxu0 %v1086
  %1457 = vmatprep.subr.bf16.mxu0 %v1089
  %1458 = vmatpush1.bf16.msra.mxu0 %v1088
  %1459 = vmatprep.subr.bf16.mxu0 %v1091
  %1460 = vmatpush1.bf16.msra.mxu0 %v1090
  %1461 = vmatprep.subr.bf16.mxu0 %v1093
  %1462 = vmatpush1.bf16.msra.mxu0 %v1092
  %1463 = vmatprep.subr.bf16.mxu0 %v1095
  %1464 = vmatpush1.bf16.msra.mxu0 %v1094
  %1465 = vmatprep.subr.bf16.mxu0 %v1097
  %1466 = vmatpush1.bf16.msra.mxu0 %v1096
  %1467 = vmatprep.subr.bf16.mxu0 %v1099
  %1468 = vmatpush1.bf16.msra.mxu0 %v1098
  %1469 = vmatprep.subr.bf16.mxu0 %v1101
  %1470 = vmatpush1.bf16.msra.mxu0 %v1100
  %1471 = vmatprep.subr.bf16.mxu0 %v1103
  %1472 = vmatpush1.bf16.msra.mxu0 %v1102
  %1473 = vmatprep.subr.bf16.mxu0 %v1105
  %1474 = vmatpush1.bf16.msra.mxu0 %v1104
  %1475 = vmatprep.mubr.bf16.mxu0 %v469
  %1476 = vmatmul.mubr.bf16.gmra.mrb[0].mxu0 %v468
  %v1477 = vpop.f32.mrb[0].mxu0
  %v1478 = vadd.f32 %v1365, %v1477
  %v1479 = vpop.f32.mrb[0].mxu0
  %v1480 = vadd.f32 %v1367, %v1479
  %v1481 = vpop.f32.mrb[0].mxu0
  %v1482 = vadd.f32 %v1369, %v1481
  %v1483 = vpop.f32.mrb[0].mxu0
  %v1484 = vadd.f32 %v1371, %v1483
  %1485 = vmatprep.mubr.bf16.mxu0 %v478
  %1486 = vmatmul.mubr.bf16.gmra.mrb[0].mxu0 %v477
  %v1487 = vpop.f32.mrb[0].mxu0
  %v1488 = vadd.f32 %v1375, %v1487
  %v1489 = vpop.f32.mrb[0].mxu0
  %v1490 = vadd.f32 %v1377, %v1489
  %v1491 = vpop.f32.mrb[0].mxu0
  %v1492 = vadd.f32 %v1379, %v1491
  %v1493 = vpop.f32.mrb[0].mxu0
  %v1494 = vadd.f32 %v1381, %v1493
  %1495 = vmatprep.mubr.bf16.mxu0 %v487
  %1496 = vmatmul.mubr.bf16.gmra.mrb[0].mxu0 %v486
  %v1497 = vpop.f32.mrb[0].mxu0
  %v1498 = vadd.f32 %v1385, %v1497
  %v1499 = vpop.f32.mrb[0].mxu0
  %v1500 = vadd.f32 %v1387, %v1499
  %v1501 = vpop.f32.mrb[0].mxu0
  %v1502 = vadd.f32 %v1389, %v1501
  %v1503 = vpop.f32.mrb[0].mxu0
  %v1504 = vadd.f32 %v1391, %v1503
  %1505 = vmatprep.mubr.bf16.mxu0 %v496
  %1506 = vmatmul.mubr.bf16.gmra.mrb[0].mxu0 %v495
  %v1507 = vpop.f32.mrb[0].mxu0
  %v1508 = vadd.f32 %v1395, %v1507
  %v1509 = vpop.f32.mrb[0].mxu0
  %v1510 = vadd.f32 %v1397, %v1509
  %v1511 = vpop.f32.mrb[0].mxu0
  %v1512 = vadd.f32 %v1399, %v1511
  %v1513 = vpop.f32.mrb[0].mxu0
  %v1514 = vadd.f32 %v1401, %v1513
  %1515 = vmatprep.mubr.bf16.mxu0 %v505
  %1516 = vmatmul.mubr.bf16.gmra.mrb[0].mxu0 %v504
  %v1517 = vpop.f32.mrb[0].mxu0
  %v1518 = vadd.f32 %v1405, %v1517
  %v1519 = vpop.f32.mrb[0].mxu0
  %v1520 = vadd.f32 %v1407, %v1519
  %v1521 = vpop.f32.mrb[0].mxu0
  %v1522 = vadd.f32 %v1409, %v1521
  %v1523 = vpop.f32.mrb[0].mxu0
  %v1524 = vadd.f32 %v1411, %v1523
  %1525 = vmatprep.mubr.bf16.mxu0 %v514
  %1526 = vmatmul.mubr.bf16.gmra.mrb[0].mxu0 %v513
  %v1527 = vpop.f32.mrb[0].mxu0
  %v1528 = vadd.f32 %v1415, %v1527
  %v1529 = vpop.f32.mrb[0].mxu0
  %v1530 = vadd.f32 %v1417, %v1529
  %v1531 = vpop.f32.mrb[0].mxu0
  %v1532 = vadd.f32 %v1419, %v1531
  %v1533 = vpop.f32.mrb[0].mxu0
  %v1534 = vadd.f32 %v1421, %v1533
  %1535 = vmatprep.mubr.bf16.mxu0 %v523
  %1536 = vmatmul.mubr.bf16.gmra.mrb[0].mxu0 %v522
  %v1537 = vpop.f32.mrb[0].mxu0
  %v1538 = vadd.f32 %v1425, %v1537
  %v1539 = vpop.f32.mrb[0].mxu0
  %v1540 = vadd.f32 %v1427, %v1539
  %v1541 = vpop.f32.mrb[0].mxu0
  %v1542 = vadd.f32 %v1429, %v1541
  %v1543 = vpop.f32.mrb[0].mxu0
  %v1544 = vadd.f32 %v1431, %v1543
  %1545 = vmatprep.mubr.bf16.mxu0 %v532
  %1546 = vmatmul.mubr.bf16.gmra.mrb[0].mxu0 %v531
  %v1547 = vpop.f32.mrb[0].mxu0
  %v1548 = vadd.f32 %v1435, %v1547
  %v1549 = vpop.f32.mrb[0].mxu0
  %v1550 = vadd.f32 %v1437, %v1549
  %v1551 = vpop.f32.mrb[0].mxu0
  %v1552 = vadd.f32 %v1439, %v1551
  %v1553 = vpop.f32.mrb[0].mxu0
  %v1554 = vadd.f32 %v1441, %v1553
  %1555 = vdwg.mxu0
  %1556 = vmatprep.subr.bf16.mxu0 %v1107
  %1557 = vmatpush1.bf16.msra.mxu0 %v1106
  %1558 = vmatprep.subr.bf16.mxu0 %v1109
  %1559 = vmatpush1.bf16.msra.mxu0 %v1108
  %1560 = vmatprep.subr.bf16.mxu0 %v1111
  %1561 = vmatpush1.bf16.msra.mxu0 %v1110
  %1562 = vmatprep.subr.bf16.mxu0 %v1113
  %1563 = vmatpush1.bf16.msra.mxu0 %v1112
  %1564 = vmatprep.subr.bf16.mxu0 %v1115
  %1565 = vmatpush1.bf16.msra.mxu0 %v1114
  %1566 = vmatprep.subr.bf16.mxu0 %v1117
  %1567 = vmatpush1.bf16.msra.mxu0 %v1116
  %1568 = vmatprep.subr.bf16.mxu0 %v1119
  %1569 = vmatpush1.bf16.msra.mxu0 %v1118
  %1570 = vmatprep.subr.bf16.mxu0 %v1121
  %1571 = vmatpush1.bf16.msra.mxu0 %v1120
  %1572 = vmatprep.subr.bf16.mxu0 %v1123
  %1573 = vmatpush1.bf16.msra.mxu0 %v1122
  %1574 = vmatprep.subr.bf16.mxu0 %v1125
  %1575 = vmatpush1.bf16.msra.mxu0 %v1124
  %1576 = vmatprep.subr.bf16.mxu0 %v1127
  %1577 = vmatpush1.bf16.msra.mxu0 %v1126
  %1578 = vmatprep.subr.bf16.mxu0 %v1129
  %1579 = vmatpush1.bf16.msra.mxu0 %v1128
  %1580 = vmatprep.subr.bf16.mxu0 %v1131
  %1581 = vmatpush1.bf16.msra.mxu0 %v1130
  %1582 = vmatprep.subr.bf16.mxu0 %v1133
  %1583 = vmatpush1.bf16.msra.mxu0 %v1132
  %1584 = vmatprep.subr.bf16.mxu0 %v1135
  %1585 = vmatpush1.bf16.msra.mxu0 %v1134
  %1586 = vmatprep.subr.bf16.mxu0 %v1137
  %1587 = vmatpush1.bf16.msra.mxu0 %v1136
  %1588 = vmatprep.mubr.bf16.mxu0 %v471
  %1589 = vmatmul.mubr.bf16.gmra.mrb[0].mxu0 %v470
  %v1590 = vpop.f32.mrb[0].mxu0
  %v1591 = vadd.f32 %v1478, %v1590
  %v1592 = vpop.f32.mrb[0].mxu0
  %v1593 = vadd.f32 %v1480, %v1592
  %v1594 = vpop.f32.mrb[0].mxu0
  %v1595 = vadd.f32 %v1482, %v1594
  %v1596 = vpop.f32.mrb[0].mxu0
  %v1597 = vadd.f32 %v1484, %v1596
  %1598 = vmatprep.mubr.bf16.mxu0 %v480
  %1599 = vmatmul.mubr.bf16.gmra.mrb[0].mxu0 %v479
  %v1600 = vpop.f32.mrb[0].mxu0
  %v1601 = vadd.f32 %v1488, %v1600
  %v1602 = vpop.f32.mrb[0].mxu0
  %v1603 = vadd.f32 %v1490, %v1602
  %v1604 = vpop.f32.mrb[0].mxu0
  %v1605 = vadd.f32 %v1492, %v1604
  %v1606 = vpop.f32.mrb[0].mxu0
  %v1607 = vadd.f32 %v1494, %v1606
  %1608 = vmatprep.mubr.bf16.mxu0 %v489
  %1609 = vmatmul.mubr.bf16.gmra.mrb[0].mxu0 %v488
  %v1610 = vpop.f32.mrb[0].mxu0
  %v1611 = vadd.f32 %v1498, %v1610
  %v1612 = vpop.f32.mrb[0].mxu0
  %v1613 = vadd.f32 %v1500, %v1612
  %v1614 = vpop.f32.mrb[0].mxu0
  %v1615 = vadd.f32 %v1502, %v1614
  %v1616 = vpop.f32.mrb[0].mxu0
  %v1617 = vadd.f32 %v1504, %v1616
  %1618 = vmatprep.mubr.bf16.mxu0 %v498
  %1619 = vmatmul.mubr.bf16.gmra.mrb[0].mxu0 %v497
  %v1620 = vpop.f32.mrb[0].mxu0
  %v1621 = vadd.f32 %v1508, %v1620
  %v1622 = vpop.f32.mrb[0].mxu0
  %v1623 = vadd.f32 %v1510, %v1622
  %v1624 = vpop.f32.mrb[0].mxu0
  %v1625 = vadd.f32 %v1512, %v1624
  %v1626 = vpop.f32.mrb[0].mxu0
  %v1627 = vadd.f32 %v1514, %v1626
  %1628 = vmatprep.mubr.bf16.mxu0 %v507
  %1629 = vmatmul.mubr.bf16.gmra.mrb[0].mxu0 %v506
  %v1630 = vpop.f32.mrb[0].mxu0
  %v1631 = vadd.f32 %v1518, %v1630
  %v1632 = vpop.f32.mrb[0].mxu0
  %v1633 = vadd.f32 %v1520, %v1632
  %v1634 = vpop.f32.mrb[0].mxu0
  %v1635 = vadd.f32 %v1522, %v1634
  %v1636 = vpop.f32.mrb[0].mxu0
  %v1637 = vadd.f32 %v1524, %v1636
  %1638 = vmatprep.mubr.bf16.mxu0 %v516
  %1639 = vmatmul.mubr.bf16.gmra.mrb[0].mxu0 %v515
  %v1640 = vpop.f32.mrb[0].mxu0
  %v1641 = vadd.f32 %v1528, %v1640
  %v1642 = vpop.f32.mrb[0].mxu0
  %v1643 = vadd.f32 %v1530, %v1642
  %v1644 = vpop.f32.mrb[0].mxu0
  %v1645 = vadd.f32 %v1532, %v1644
  %v1646 = vpop.f32.mrb[0].mxu0
  %v1647 = vadd.f32 %v1534, %v1646
  %1648 = vmatprep.mubr.bf16.mxu0 %v525
  %1649 = vmatmul.mubr.bf16.gmra.mrb[0].mxu0 %v524
  %v1650 = vpop.f32.mrb[0].mxu0
  %v1651 = vadd.f32 %v1538, %v1650
  %v1652 = vpop.f32.mrb[0].mxu0
  %v1653 = vadd.f32 %v1540, %v1652
  %v1654 = vpop.f32.mrb[0].mxu0
  %v1655 = vadd.f32 %v1542, %v1654
  %v1656 = vpop.f32.mrb[0].mxu0
  %v1657 = vadd.f32 %v1544, %v1656
  %1658 = vmatprep.mubr.bf16.mxu0 %v534
  %1659 = vmatmul.mubr.bf16.gmra.mrb[0].mxu0 %v533
  %v1660 = vpop.f32.mrb[0].mxu0
  %v1661 = vadd.f32 %v1548, %v1660
  %v1662 = vpop.f32.mrb[0].mxu0
  %v1663 = vadd.f32 %v1550, %v1662
  %v1664 = vpop.f32.mrb[0].mxu0
  %v1665 = vadd.f32 %v1552, %v1664
  %v1666 = vpop.f32.mrb[0].mxu0
  %v1667 = vadd.f32 %v1554, %v1666
  %1668 = vdwg.mxu0
  %1669 = vmatprep.subr.bf16.mxu0 %v1139
  %1670 = vmatpush1.bf16.msra.mxu0 %v1138
  %1671 = vmatprep.subr.bf16.mxu0 %v1141
  %1672 = vmatpush1.bf16.msra.mxu0 %v1140
  %1673 = vmatprep.subr.bf16.mxu0 %v1143
  %1674 = vmatpush1.bf16.msra.mxu0 %v1142
  %1675 = vmatprep.subr.bf16.mxu0 %v1145
  %1676 = vmatpush1.bf16.msra.mxu0 %v1144
  %1677 = vmatprep.subr.bf16.mxu0 %v1147
  %1678 = vmatpush1.bf16.msra.mxu0 %v1146
  %1679 = vmatprep.subr.bf16.mxu0 %v1149
  %1680 = vmatpush1.bf16.msra.mxu0 %v1148
  %1681 = vmatprep.subr.bf16.mxu0 %v1151
  %1682 = vmatpush1.bf16.msra.mxu0 %v1150
  %1683 = vmatprep.subr.bf16.mxu0 %v1153
  %1684 = vmatpush1.bf16.msra.mxu0 %v1152
  %1685 = vmatprep.subr.bf16.mxu0 %v1155
  %1686 = vmatpush1.bf16.msra.mxu0 %v1154
  %1687 = vmatprep.subr.bf16.mxu0 %v1157
  %1688 = vmatpush1.bf16.msra.mxu0 %v1156
  %1689 = vmatprep.subr.bf16.mxu0 %v1159
  %1690 = vmatpush1.bf16.msra.mxu0 %v1158
  %1691 = vmatprep.subr.bf16.mxu0 %v1161
  %1692 = vmatpush1.bf16.msra.mxu0 %v1160
  %1693 = vmatprep.subr.bf16.mxu0 %v1163
  %1694 = vmatpush1.bf16.msra.mxu0 %v1162
  %1695 = vmatprep.subr.bf16.mxu0 %v1165
  %1696 = vmatpush1.bf16.msra.mxu0 %v1164
  %1697 = vmatprep.subr.bf16.mxu0 %v1167
  %1698 = vmatpush1.bf16.msra.mxu0 %v1166
  %1699 = vmatprep.subr.bf16.mxu0 %v1169
  %1700 = vmatpush1.bf16.msra.mxu0 %v1168
  %1701 = vmatprep.mubr.bf16.mxu0 %v473
  %1702 = vmatmul.mubr.bf16.gmra.mrb[0].mxu0 %v472
  %v1703 = vpop.f32.mrb[0].mxu0
  %v1704 = vadd.f32 %v1591, %v1703
  %v1705 = vpop.f32.mrb[0].mxu0
  %v1706 = vadd.f32 %v1593, %v1705
  %v1707 = vpop.f32.mrb[0].mxu0
  %v1708 = vadd.f32 %v1595, %v1707
  %v1709 = vpop.f32.mrb[0].mxu0
  %v1710 = vadd.f32 %v1597, %v1709
  %1711 = vmatprep.mubr.bf16.mxu0 %v482
  %1712 = vmatmul.mubr.bf16.gmra.mrb[0].mxu0 %v481
  %v1713 = vpop.f32.mrb[0].mxu0
  %v1714 = vadd.f32 %v1601, %v1713
  %v1715 = vpop.f32.mrb[0].mxu0
  %v1716 = vadd.f32 %v1603, %v1715
  %v1717 = vpop.f32.mrb[0].mxu0
  %v1718 = vadd.f32 %v1605, %v1717
  %v1719 = vpop.f32.mrb[0].mxu0
  %v1720 = vadd.f32 %v1607, %v1719
  %1721 = vmatprep.mubr.bf16.mxu0 %v491
  %1722 = vmatmul.mubr.bf16.gmra.mrb[0].mxu0 %v490
  %v1723 = vpop.f32.mrb[0].mxu0
  %v1724 = vadd.f32 %v1611, %v1723
  %v1725 = vpop.f32.mrb[0].mxu0
  %v1726 = vadd.f32 %v1613, %v1725
  %v1727 = vpop.f32.mrb[0].mxu0
  %v1728 = vadd.f32 %v1615, %v1727
  %v1729 = vpop.f32.mrb[0].mxu0
  %v1730 = vadd.f32 %v1617, %v1729
  %1731 = vmatprep.mubr.bf16.mxu0 %v500
  %1732 = vmatmul.mubr.bf16.gmra.mrb[0].mxu0 %v499
  %v1733 = vpop.f32.mrb[0].mxu0
  %v1734 = vadd.f32 %v1621, %v1733
  %v1735 = vpop.f32.mrb[0].mxu0
  %v1736 = vadd.f32 %v1623, %v1735
  %v1737 = vpop.f32.mrb[0].mxu0
  %v1738 = vadd.f32 %v1625, %v1737
  %v1739 = vpop.f32.mrb[0].mxu0
  %v1740 = vadd.f32 %v1627, %v1739
  %1741 = vmatprep.mubr.bf16.mxu0 %v509
  %1742 = vmatmul.mubr.bf16.gmra.mrb[0].mxu0 %v508
  %v1743 = vpop.f32.mrb[0].mxu0
  %v1744 = vadd.f32 %v1631, %v1743
  %v1745 = vpop.f32.mrb[0].mxu0
  %v1746 = vadd.f32 %v1633, %v1745
  %v1747 = vpop.f32.mrb[0].mxu0
  %v1748 = vadd.f32 %v1635, %v1747
  %v1749 = vpop.f32.mrb[0].mxu0
  %v1750 = vadd.f32 %v1637, %v1749
  %1751 = vmatprep.mubr.bf16.mxu0 %v518
  %1752 = vmatmul.mubr.bf16.gmra.mrb[0].mxu0 %v517
  %v1753 = vpop.f32.mrb[0].mxu0
  %v1754 = vadd.f32 %v1641, %v1753
  %v1755 = vpop.f32.mrb[0].mxu0
  %v1756 = vadd.f32 %v1643, %v1755
  %v1757 = vpop.f32.mrb[0].mxu0
  %v1758 = vadd.f32 %v1645, %v1757
  %v1759 = vpop.f32.mrb[0].mxu0
  %v1760 = vadd.f32 %v1647, %v1759
  %1761 = vmatprep.mubr.bf16.mxu0 %v527
  %1762 = vmatmul.mubr.bf16.gmra.mrb[0].mxu0 %v526
  %v1763 = vpop.f32.mrb[0].mxu0
  %v1764 = vadd.f32 %v1651, %v1763
  %v1765 = vpop.f32.mrb[0].mxu0
  %v1766 = vadd.f32 %v1653, %v1765
  %v1767 = vpop.f32.mrb[0].mxu0
  %v1768 = vadd.f32 %v1655, %v1767
  %v1769 = vpop.f32.mrb[0].mxu0
  %v1770 = vadd.f32 %v1657, %v1769
  %1771 = vmatprep.mubr.bf16.mxu0 %v536
  %1772 = vmatmul.mubr.bf16.gmra.mrb[0].mxu0 %v535
  %v1773 = vpop.f32.mrb[0].mxu0
  %v1774 = vadd.f32 %v1661, %v1773
  %v1775 = vpop.f32.mrb[0].mxu0
  %v1776 = vadd.f32 %v1663, %v1775
  %v1777 = vpop.f32.mrb[0].mxu0
  %v1778 = vadd.f32 %v1665, %v1777
  %v1779 = vpop.f32.mrb[0].mxu0
  %v1780 = vadd.f32 %v1667, %v1779
  %1781 = vdwg.mxu0
  %1782 = vmatprep.subr.bf16.mxu0 %v1171
  %1783 = vmatpush1.bf16.msra.mxu0 %v1170
  %1784 = vmatprep.subr.bf16.mxu0 %v1173
  %1785 = vmatpush1.bf16.msra.mxu0 %v1172
  %1786 = vmatprep.subr.bf16.mxu0 %v1175
  %1787 = vmatpush1.bf16.msra.mxu0 %v1174
  %1788 = vmatprep.subr.bf16.mxu0 %v1177
  %1789 = vmatpush1.bf16.msra.mxu0 %v1176
  %1790 = vmatprep.subr.bf16.mxu0 %v1179
  %1791 = vmatpush1.bf16.msra.mxu0 %v1178
  %1792 = vmatprep.subr.bf16.mxu0 %v1181
  %1793 = vmatpush1.bf16.msra.mxu0 %v1180
  %1794 = vmatprep.subr.bf16.mxu0 %v1183
  %1795 = vmatpush1.bf16.msra.mxu0 %v1182
  %1796 = vmatprep.subr.bf16.mxu0 %v1185
  %1797 = vmatpush1.bf16.msra.mxu0 %v1184
  %1798 = vmatprep.subr.bf16.mxu0 0
  %1799 = vmatpush1.bf16.msra.mxu0 0
  %1800 = vmatprep.subr.bf16.mxu0 0
  %1801 = vmatpush1.bf16.msra.mxu0 0
  %1802 = vmatprep.subr.bf16.mxu0 0
  %1803 = vmatpush1.bf16.msra.mxu0 0
  %1804 = vmatprep.subr.bf16.mxu0 0
  %1805 = vmatpush1.bf16.msra.mxu0 0
  %1806 = vmatprep.subr.bf16.mxu0 0
  %1807 = vmatpush1.bf16.msra.mxu0 0
  %1808 = vmatprep.subr.bf16.mxu0 0
  %1809 = vmatpush1.bf16.msra.mxu0 0
  %1810 = vmatprep.subr.bf16.mxu0 0
  %1811 = vmatpush1.bf16.msra.mxu0 0
  %1812 = vmatprep.subr.bf16.mxu0 0
  %1813 = vmatpush1.bf16.msra.mxu0 0
  %1814 = vmatprep.mubr.bf16.mxu0 0
  %1815 = vmatmul.mubr.bf16.gmra.mrb[0].mxu0 %v474
  %v1816 = vpop.f32.mrb[0].mxu0
  %v1817 = vadd.f32 %v1704, %v1816
  %v1818 = vpop.f32.mrb[0].mxu0
  %v1819 = vadd.f32 %v1706, %v1818
  %v1820 = vpop.f32.mrb[0].mxu0
  %v1821 = vadd.f32 %v1708, %v1820
  %v1822 = vpop.f32.mrb[0].mxu0
  %v1823 = vadd.f32 %v1710, %v1822
  %1824 = vmatprep.mubr.bf16.mxu0 0
  %1825 = vmatmul.mubr.bf16.gmra.mrb[0].mxu0 %v483
  %v1826 = vpop.f32.mrb[0].mxu0
  %v1827 = vadd.f32 %v1714, %v1826
  %v1828 = vpop.f32.mrb[0].mxu0
  %v1829 = vadd.f32 %v1716, %v1828
  %v1830 = vpop.f32.mrb[0].mxu0
  %v1831 = vadd.f32 %v1718, %v1830
  %v1832 = vpop.f32.mrb[0].mxu0
  %v1833 = vadd.f32 %v1720, %v1832
  %1834 = vmatprep.mubr.bf16.mxu0 0
  %1835 = vmatmul.mubr.bf16.gmra.mrb[0].mxu0 %v492
  %v1836 = vpop.f32.mrb[0].mxu0
  %v1837 = vadd.f32 %v1724, %v1836
  %v1838 = vpop.f32.mrb[0].mxu0
  %v1839 = vadd.f32 %v1726, %v1838
  %v1840 = vpop.f32.mrb[0].mxu0
  %v1841 = vadd.f32 %v1728, %v1840
  %v1842 = vpop.f32.mrb[0].mxu0
  %v1843 = vadd.f32 %v1730, %v1842
  %1844 = vmatprep.mubr.bf16.mxu0 0
  %1845 = vmatmul.mubr.bf16.gmra.mrb[0].mxu0 %v501
  %v1846 = vpop.f32.mrb[0].mxu0
  %v1847 = vadd.f32 %v1734, %v1846
  %v1848 = vpop.f32.mrb[0].mxu0
  %v1849 = vadd.f32 %v1736, %v1848
  %v1850 = vpop.f32.mrb[0].mxu0
  %v1851 = vadd.f32 %v1738, %v1850
  %v1852 = vpop.f32.mrb[0].mxu0
  %v1853 = vadd.f32 %v1740, %v1852
  %1854 = vmatprep.mubr.bf16.mxu0 0
  %1855 = vmatmul.mubr.bf16.gmra.mrb[0].mxu0 %v510
  %v1856 = vpop.f32.mrb[0].mxu0
  %v1857 = vadd.f32 %v1744, %v1856
  %v1858 = vpop.f32.mrb[0].mxu0
  %v1859 = vadd.f32 %v1746, %v1858
  %v1860 = vpop.f32.mrb[0].mxu0
  %v1861 = vadd.f32 %v1748, %v1860
  %v1862 = vpop.f32.mrb[0].mxu0
  %v1863 = vadd.f32 %v1750, %v1862
  %1864 = vmatprep.mubr.bf16.mxu0 0
  %1865 = vmatmul.mubr.bf16.gmra.mrb[0].mxu0 %v519
  %v1866 = vpop.f32.mrb[0].mxu0
  %v1867 = vadd.f32 %v1754, %v1866
  %v1868 = vpop.f32.mrb[0].mxu0
  %v1869 = vadd.f32 %v1756, %v1868
  %v1870 = vpop.f32.mrb[0].mxu0
  %v1871 = vadd.f32 %v1758, %v1870
  %v1872 = vpop.f32.mrb[0].mxu0
  %v1873 = vadd.f32 %v1760, %v1872
  %1874 = vmatprep.mubr.bf16.mxu0 0
  %1875 = vmatmul.mubr.bf16.gmra.mrb[0].mxu0 %v528
  %v1876 = vpop.f32.mrb[0].mxu0
  %v1877 = vadd.f32 %v1764, %v1876
  %v1878 = vpop.f32.mrb[0].mxu0
  %v1879 = vadd.f32 %v1766, %v1878
  %v1880 = vpop.f32.mrb[0].mxu0
  %v1881 = vadd.f32 %v1768, %v1880
  %v1882 = vpop.f32.mrb[0].mxu0
  %v1883 = vadd.f32 %v1770, %v1882
  %1884 = vmatprep.mubr.bf16.mxu0 0
  %1885 = vmatmul.mubr.bf16.gmra.mrb[0].mxu0 %v537
  %v1886 = vpop.f32.mrb[0].mxu0
  %v1887 = vadd.f32 %v1774, %v1886
  %v1888 = vpop.f32.mrb[0].mxu0
  %v1889 = vadd.f32 %v1776, %v1888
  %v1890 = vpop.f32.mrb[0].mxu0
  %v1891 = vadd.f32 %v1778, %v1890
  %v1892 = vpop.f32.mrb[0].mxu0
  %v1893 = vadd.f32 %v1780, %v1892
  %1894 = vdwg.mxu0
  %v1895 = vadd.f32 %v1817, %v1821
  %v1896 = vadd.f32 %v1895, %v1827
  %v1897 = vadd.f32 %v1896, %v1831
  %v1898 = vadd.f32 %v1897, %v1837
  %v1899 = vadd.f32 %v1898, %v1841
  %v1900 = vadd.f32 %v1899, %v1847
  %v1901 = vadd.f32 %v1900, %v1851
  %v1902 = vadd.f32 %v1901, %v1857
  %v1903 = vadd.f32 %v1902, %v1861
  %v1904 = vadd.f32 %v1903, %v1867
  %v1905 = vadd.f32 %v1904, %v1871
  %v1906 = vadd.f32 %v1905, %v1877
  %v1907 = vadd.f32 %v1906, %v1881
  %v1908 = vadd.f32 %v1907, %v1887
  %v1909 = vadd.f32 %v1908, %v1891
  %v1910 = vrot.slane %v1909, 4
  %v1911 = vadd.f32 %v1909, %v1910
  %v1912 = vrot.slane %v1911, 2
  %v1913 = vadd.f32 %v1911, %v1912
  %v1914 = vrot.slane %v1913, 1
  %v1915 = vadd.f32 %v1913, %v1914
  %v1916 = vadd.f32 %v1819, %v1823
  %v1917 = vadd.f32 %v1916, %v1829
  %v1918 = vadd.f32 %v1917, %v1833
  %v1919 = vadd.f32 %v1918, %v1839
  %v1920 = vadd.f32 %v1919, %v1843
  %v1921 = vadd.f32 %v1920, %v1849
  %v1922 = vadd.f32 %v1921, %v1853
  %v1923 = vadd.f32 %v1922, %v1859
  %v1924 = vadd.f32 %v1923, %v1863
  %v1925 = vadd.f32 %v1924, %v1869
  %v1926 = vadd.f32 %v1925, %v1873
  %v1927 = vadd.f32 %v1926, %v1879
  %v1928 = vadd.f32 %v1927, %v1883
  %v1929 = vadd.f32 %v1928, %v1889
  %v1930 = vadd.f32 %v1929, %v1893
  %v1931 = vrot.slane %v1930, 4
  %v1932 = vadd.f32 %v1930, %v1931
  %v1933 = vrot.slane %v1932, 2
  %v1934 = vadd.f32 %v1932, %v1933
  %v1935 = vrot.slane %v1934, 1
  %v1936 = vadd.f32 %v1934, %v1935
  %1938 = vrot.lane.b32.xlu0 %v1915, 64
  %v1939 = vpop.permute.xlu0 %1938
  %v1941 = vadd.f32 %v1915, %v1939
  %v1942 = vadd.f32 %v1941, %v1936
  %1944 = vrot.lane.b32.xlu0 %v1936, 64
  %v1945 = vpop.permute.xlu0 %1944
  %v1947 = vadd.f32 %v1942, %v1945
  %v1948 = vrcp.pop 512.0
  %v1949 = vmul.f32 %v1947, %v1948
  %1951 = vrot.lane.b32.xlu0 %v1949, 64
  %v1952 = vpop.permute.xlu0 %1951
  %vm1954 = vcmask 523264
  %v1955 = vsel %vm1954, %v1949, %v1952
  %v1956 = vlaneseq
  %v1957 = vshrl.u32 %v1956, 7
  %v1958 = vsub.s32 0, %v1957
  %v1959 = vrot.slane %v1955, %v1958
  %v1960 = vsub.f32 %v1817, %v1959
  %v1961 = vsub.f32 %v1819, %v1959
  %v1962 = vsub.f32 %v1821, %v1959
  %v1963 = vsub.f32 %v1823, %v1959
  %v1964 = vsub.f32 %v1827, %v1959
  %v1965 = vsub.f32 %v1829, %v1959
  %v1966 = vsub.f32 %v1831, %v1959
  %v1967 = vsub.f32 %v1833, %v1959
  %v1968 = vsub.f32 %v1837, %v1959
  %v1969 = vsub.f32 %v1839, %v1959
  %v1970 = vsub.f32 %v1841, %v1959
  %v1971 = vsub.f32 %v1843, %v1959
  %v1972 = vsub.f32 %v1847, %v1959
  %v1973 = vsub.f32 %v1849, %v1959
  %v1974 = vsub.f32 %v1851, %v1959
  %v1975 = vsub.f32 %v1853, %v1959
  %v1976 = vsub.f32 %v1857, %v1959
  %v1977 = vsub.f32 %v1859, %v1959
  %v1978 = vsub.f32 %v1861, %v1959
  %v1979 = vsub.f32 %v1863, %v1959
  %v1980 = vsub.f32 %v1867, %v1959
  %v1981 = vsub.f32 %v1869, %v1959
  %v1982 = vsub.f32 %v1871, %v1959
  %v1983 = vsub.f32 %v1873, %v1959
  %v1984 = vsub.f32 %v1877, %v1959
  %v1985 = vsub.f32 %v1879, %v1959
  %v1986 = vsub.f32 %v1881, %v1959
  %v1987 = vsub.f32 %v1883, %v1959
  %v1988 = vsub.f32 %v1887, %v1959
  %v1989 = vsub.f32 %v1889, %v1959
  %v1990 = vsub.f32 %v1891, %v1959
  %v1991 = vsub.f32 %v1893, %v1959
  %v1992 = vmul.f32 %v1960, %v1960
  %v1993 = vmul.f32 %v1961, %v1961
  %v1994 = vmul.f32 %v1962, %v1962
  %v1995 = vmul.f32 %v1963, %v1963
  %v1996 = vmul.f32 %v1964, %v1964
  %v1997 = vmul.f32 %v1965, %v1965
  %v1998 = vmul.f32 %v1966, %v1966
  %v1999 = vmul.f32 %v1967, %v1967
  %v2000 = vmul.f32 %v1968, %v1968
  %v2001 = vmul.f32 %v1969, %v1969
  %v2002 = vmul.f32 %v1970, %v1970
  %v2003 = vmul.f32 %v1971, %v1971
  %v2004 = vmul.f32 %v1972, %v1972
  %v2005 = vmul.f32 %v1973, %v1973
  %v2006 = vmul.f32 %v1974, %v1974
  %v2007 = vmul.f32 %v1975, %v1975
  %v2008 = vmul.f32 %v1976, %v1976
  %v2009 = vmul.f32 %v1977, %v1977
  %v2010 = vmul.f32 %v1978, %v1978
  %v2011 = vmul.f32 %v1979, %v1979
  %v2012 = vmul.f32 %v1980, %v1980
  %v2013 = vmul.f32 %v1981, %v1981
  %v2014 = vmul.f32 %v1982, %v1982
  %v2015 = vmul.f32 %v1983, %v1983
  %v2016 = vmul.f32 %v1984, %v1984
  %v2017 = vmul.f32 %v1985, %v1985
  %v2018 = vmul.f32 %v1986, %v1986
  %v2019 = vmul.f32 %v1987, %v1987
  %v2020 = vmul.f32 %v1988, %v1988
  %v2021 = vmul.f32 %v1989, %v1989
  %v2022 = vmul.f32 %v1990, %v1990
  %v2023 = vmul.f32 %v1991, %v1991
  %v2024 = vadd.f32 %v1992, %v1994
  %v2025 = vadd.f32 %v2024, %v1996
  %v2026 = vadd.f32 %v2025, %v1998
  %v2027 = vadd.f32 %v2026, %v2000
  %v2028 = vadd.f32 %v2027, %v2002
  %v2029 = vadd.f32 %v2028, %v2004
  %v2030 = vadd.f32 %v2029, %v2006
  %v2031 = vadd.f32 %v2030, %v2008
  %v2032 = vadd.f32 %v2031, %v2010
  %v2033 = vadd.f32 %v2032, %v2012
  %v2034 = vadd.f32 %v2033, %v2014
  %v2035 = vadd.f32 %v2034, %v2016
  %v2036 = vadd.f32 %v2035, %v2018
  %v2037 = vadd.f32 %v2036, %v2020
  %v2038 = vadd.f32 %v2037, %v2022
  %v2039 = vrot.slane %v2038, 4
  %v2040 = vadd.f32 %v2038, %v2039
  %v2041 = vrot.slane %v2040, 2
  %v2042 = vadd.f32 %v2040, %v2041
  %v2043 = vrot.slane %v2042, 1
  %v2044 = vadd.f32 %v2042, %v2043
  %v2045 = vadd.f32 %v1993, %v1995
  %v2046 = vadd.f32 %v2045, %v1997
  %v2047 = vadd.f32 %v2046, %v1999
  %v2048 = vadd.f32 %v2047, %v2001
  %v2049 = vadd.f32 %v2048, %v2003
  %v2050 = vadd.f32 %v2049, %v2005
  %v2051 = vadd.f32 %v2050, %v2007
  %v2052 = vadd.f32 %v2051, %v2009
  %v2053 = vadd.f32 %v2052, %v2011
  %v2054 = vadd.f32 %v2053, %v2013
  %v2055 = vadd.f32 %v2054, %v2015
  %v2056 = vadd.f32 %v2055, %v2017
  %v2057 = vadd.f32 %v2056, %v2019
  %v2058 = vadd.f32 %v2057, %v2021
  %v2059 = vadd.f32 %v2058, %v2023
  %v2060 = vrot.slane %v2059, 4
  %v2061 = vadd.f32 %v2059, %v2060
  %v2062 = vrot.slane %v2061, 2
  %v2063 = vadd.f32 %v2061, %v2062
  %v2064 = vrot.slane %v2063, 1
  %v2065 = vadd.f32 %v2063, %v2064
  %2067 = vrot.lane.b32.xlu0 %v2044, 64
  %v2068 = vpop.permute.xlu0 %2067
  %v2070 = vadd.f32 %v2044, %v2068
  %v2071 = vadd.f32 %v2070, %v2065
  %2073 = vrot.lane.b32.xlu0 %v2065, 64
  %v2074 = vpop.permute.xlu0 %2073
  %v2076 = vadd.f32 %v2071, %v2074
  %v2077 = vmul.f32 %v2076, %v1948
  %2079 = vrot.lane.b32.xlu0 %v2077, 64
  %v2080 = vpop.permute.xlu0 %2079
  %v2082 = vsel %vm1954, %v2077, %v2080
  %v2083 = vadd.f32 %v2082, 1e-05
  %v2084 = vrsqrt.pop %v2083
  %v2085 = vlaneseq
  %v2086 = vshrl.u32 %v2085, 7
  %v2087 = vsub.s32 0, %v2086
  %v2088 = vrot.slane %v2084, %v2087
  %v2089 = vmul.f32 %v1960, %v2088
  %v2090 = vmul.f32 %v1961, %v2088
  %v2091 = vmul.f32 %v1962, %v2088
  %v2092 = vmul.f32 %v1963, %v2088
  %v2093 = vmul.f32 %v1964, %v2088
  %v2094 = vmul.f32 %v1965, %v2088
  %v2095 = vmul.f32 %v1966, %v2088
  %v2096 = vmul.f32 %v1967, %v2088
  %v2097 = vmul.f32 %v1968, %v2088
  %v2098 = vmul.f32 %v1969, %v2088
  %v2099 = vmul.f32 %v1970, %v2088
  %v2100 = vmul.f32 %v1971, %v2088
  %v2101 = vmul.f32 %v1972, %v2088
  %v2102 = vmul.f32 %v1973, %v2088
  %v2103 = vmul.f32 %v1974, %v2088
  %v2104 = vmul.f32 %v1975, %v2088
  %v2105 = vmul.f32 %v1976, %v2088
  %v2106 = vmul.f32 %v1977, %v2088
  %v2107 = vmul.f32 %v1978, %v2088
  %v2108 = vmul.f32 %v1979, %v2088
  %v2109 = vmul.f32 %v1980, %v2088
  %v2110 = vmul.f32 %v1981, %v2088
  %v2111 = vmul.f32 %v1982, %v2088
  %v2112 = vmul.f32 %v1983, %v2088
  %v2113 = vmul.f32 %v1984, %v2088
  %v2114 = vmul.f32 %v1985, %v2088
  %v2115 = vmul.f32 %v1986, %v2088
  %v2116 = vmul.f32 %v1987, %v2088
  %v2117 = vmul.f32 %v1988, %v2088
  %v2118 = vmul.f32 %v1989, %v2088
  %v2119 = vmul.f32 %v1990, %v2088
  %v2120 = vmul.f32 %v1991, %v2088
  %v2121 = vld [vmem:[%s2] sm:$0x3]
  %v2123 = vlaneseq
  %v2124 = vshrl.u32 %v2123, 7
  %v2125 = vsub.s32 0, %v2124
  %v2126 = vrot.slane %v2121, %v2125
  %v2127 = vlaneseq
  %v2128 = vshrl.u32 %v2127, 7
  %v2129 = vsub.s32 1, %v2128
  %v2130 = vrot.slane %v2121, %v2129
  %v2133 = vmul.f32 %v2089, %v2126
  %v2134 = vmul.f32 %v2090, %v2130
  %v2135 = vmul.f32 %v2091, %v2126
  %v2136 = vmul.f32 %v2092, %v2130
  %v2137 = vmul.f32 %v2093, %v2126
  %v2138 = vmul.f32 %v2094, %v2130
  %v2139 = vmul.f32 %v2095, %v2126
  %v2140 = vmul.f32 %v2096, %v2130
  %v2141 = vmul.f32 %v2097, %v2126
  %v2142 = vmul.f32 %v2098, %v2130
  %v2143 = vmul.f32 %v2099, %v2126
  %v2144 = vmul.f32 %v2100, %v2130
  %v2145 = vmul.f32 %v2101, %v2126
  %v2146 = vmul.f32 %v2102, %v2130
  %v2147 = vmul.f32 %v2103, %v2126
  %v2148 = vmul.f32 %v2104, %v2130
  %v2149 = vmul.f32 %v2105, %v2126
  %v2150 = vmul.f32 %v2106, %v2130
  %v2151 = vmul.f32 %v2107, %v2126
  %v2152 = vmul.f32 %v2108, %v2130
  %v2153 = vmul.f32 %v2109, %v2126
  %v2154 = vmul.f32 %v2110, %v2130
  %v2155 = vmul.f32 %v2111, %v2126
  %v2156 = vmul.f32 %v2112, %v2130
  %v2157 = vmul.f32 %v2113, %v2126
  %v2158 = vmul.f32 %v2114, %v2130
  %v2159 = vmul.f32 %v2115, %v2126
  %v2160 = vmul.f32 %v2116, %v2130
  %v2161 = vmul.f32 %v2117, %v2126
  %v2162 = vmul.f32 %v2118, %v2130
  %v2163 = vmul.f32 %v2119, %v2126
  %v2164 = vmul.f32 %v2120, %v2130
  %v2165 = vld [vmem:[%s3] sm:$0x3]
  %v2167 = vlaneseq
  %v2168 = vshrl.u32 %v2167, 7
  %v2169 = vsub.s32 0, %v2168
  %v2170 = vrot.slane %v2165, %v2169
  %v2171 = vlaneseq
  %v2172 = vshrl.u32 %v2171, 7
  %v2173 = vsub.s32 1, %v2172
  %v2174 = vrot.slane %v2165, %v2173
  %v2177 = vadd.f32 %v2133, %v2170
  %v2178 = vadd.f32 %v2134, %v2174
  %v2179 = vadd.f32 %v2135, %v2170
  %v2180 = vadd.f32 %v2136, %v2174
  %v2181 = vadd.f32 %v2137, %v2170
  %v2182 = vadd.f32 %v2138, %v2174
  %v2183 = vadd.f32 %v2139, %v2170
  %v2184 = vadd.f32 %v2140, %v2174
  %v2185 = vadd.f32 %v2141, %v2170
  %v2186 = vadd.f32 %v2142, %v2174
  %v2187 = vadd.f32 %v2143, %v2170
  %v2188 = vadd.f32 %v2144, %v2174
  %v2189 = vadd.f32 %v2145, %v2170
  %v2190 = vadd.f32 %v2146, %v2174
  %v2191 = vadd.f32 %v2147, %v2170
  %v2192 = vadd.f32 %v2148, %v2174
  %v2193 = vadd.f32 %v2149, %v2170
  %v2194 = vadd.f32 %v2150, %v2174
  %v2195 = vadd.f32 %v2151, %v2170
  %v2196 = vadd.f32 %v2152, %v2174
  %v2197 = vadd.f32 %v2153, %v2170
  %v2198 = vadd.f32 %v2154, %v2174
  %v2199 = vadd.f32 %v2155, %v2170
  %v2200 = vadd.f32 %v2156, %v2174
  %v2201 = vadd.f32 %v2157, %v2170
  %v2202 = vadd.f32 %v2158, %v2174
  %v2203 = vadd.f32 %v2159, %v2170
  %v2204 = vadd.f32 %v2160, %v2174
  %v2205 = vadd.f32 %v2161, %v2170
  %v2206 = vadd.f32 %v2162, %v2174
  %v2207 = vadd.f32 %v2163, %v2170
  %v2208 = vadd.f32 %v2164, %v2174
  %v2209 = vmax.f32 %v2177, 0.0
  %v2210 = vmax.f32 %v2178, 0.0
  %v2211 = vmax.f32 %v2179, 0.0
  %v2212 = vmax.f32 %v2180, 0.0
  %v2213 = vmax.f32 %v2181, 0.0
  %v2214 = vmax.f32 %v2182, 0.0
  %v2215 = vmax.f32 %v2183, 0.0
  %v2216 = vmax.f32 %v2184, 0.0
  %v2217 = vmax.f32 %v2185, 0.0
  %v2218 = vmax.f32 %v2186, 0.0
  %v2219 = vmax.f32 %v2187, 0.0
  %v2220 = vmax.f32 %v2188, 0.0
  %v2221 = vmax.f32 %v2189, 0.0
  %v2222 = vmax.f32 %v2190, 0.0
  %v2223 = vmax.f32 %v2191, 0.0
  %v2224 = vmax.f32 %v2192, 0.0
  %v2225 = vmax.f32 %v2193, 0.0
  %v2226 = vmax.f32 %v2194, 0.0
  %v2227 = vmax.f32 %v2195, 0.0
  %v2228 = vmax.f32 %v2196, 0.0
  %v2229 = vmax.f32 %v2197, 0.0
  %v2230 = vmax.f32 %v2198, 0.0
  %v2231 = vmax.f32 %v2199, 0.0
  %v2232 = vmax.f32 %v2200, 0.0
  %v2233 = vmax.f32 %v2201, 0.0
  %v2234 = vmax.f32 %v2202, 0.0
  %v2235 = vmax.f32 %v2203, 0.0
  %v2236 = vmax.f32 %v2204, 0.0
  %v2237 = vmax.f32 %v2205, 0.0
  %v2238 = vmax.f32 %v2206, 0.0
  %v2239 = vmax.f32 %v2207, 0.0
  %v2240 = vmax.f32 %v2208, 0.0
  %2241 = vst [vmem:[%s4] sm:$0xff] %v2209
  %2242 = vst [vmem:[%s4 + $0x8] sm:$0xff] %v2210
  %2243 = vst [vmem:[%s4 + $0x10] sm:$0xff] %v2211
  %2244 = vst [vmem:[%s4 + $0x18] sm:$0xff] %v2212
  %2245 = vst [vmem:[%s4 + $0x20] sm:$0xff] %v2213
  %2246 = vst [vmem:[%s4 + $0x28] sm:$0xff] %v2214
  %2247 = vst [vmem:[%s4 + $0x30] sm:$0xff] %v2215
  %2248 = vst [vmem:[%s4 + $0x38] sm:$0xff] %v2216
  %2249 = vst [vmem:[%s4 + $0x40] sm:$0xff] %v2217
  %2250 = vst [vmem:[%s4 + $0x48] sm:$0xff] %v2218
  %2251 = vst [vmem:[%s4 + $0x50] sm:$0xff] %v2219
  %2252 = vst [vmem:[%s4 + $0x58] sm:$0xff] %v2220
  %2253 = vst [vmem:[%s4 + $0x60] sm:$0xff] %v2221
  %2254 = vst [vmem:[%s4 + $0x68] sm:$0xff] %v2222
  %2255 = vst [vmem:[%s4 + $0x70] sm:$0xff] %v2223
  %2256 = vst [vmem:[%s4 + $0x78] sm:$0xff] %v2224
  %2257 = vst [vmem:[%s4 + $0x80] sm:$0xff] %v2225
  %2258 = vst [vmem:[%s4 + $0x88] sm:$0xff] %v2226
  %2259 = vst [vmem:[%s4 + $0x90] sm:$0xff] %v2227
  %2260 = vst [vmem:[%s4 + $0x98] sm:$0xff] %v2228
  %2261 = vst [vmem:[%s4 + $0xa0] sm:$0xff] %v2229
  %2262 = vst [vmem:[%s4 + $0xa8] sm:$0xff] %v2230
  %2263 = vst [vmem:[%s4 + $0xb0] sm:$0xff] %v2231
  %2264 = vst [vmem:[%s4 + $0xb8] sm:$0xff] %v2232
  %2265 = vst [vmem:[%s4 + $0xc0] sm:$0xff] %v2233
  %2266 = vst [vmem:[%s4 + $0xc8] sm:$0xff] %v2234
  %2267 = vst [vmem:[%s4 + $0xd0] sm:$0xff] %v2235
  %2268 = vst [vmem:[%s4 + $0xd8] sm:$0xff] %v2236
  %2269 = vst [vmem:[%s4 + $0xe0] sm:$0xff] %v2237
  %2270 = vst [vmem:[%s4 + $0xe8] sm:$0xff] %v2238
  %2271 = vst [vmem:[%s4 + $0xf0] sm:$0xff] %v2239
  %2272 = vst [vmem:[%s4 + $0xf8] sm:$0xff] %v2240
  // Predicated region
  $region18: #{generator_forward.6} parent=0 // pred_check
    _
  $region19: #{generator_forward.6} parent=0 // pred_check_branch
    %2274 = sbr.rel (0) target = $region21
  $region20: #{generator_forward.6} parent=0 // pred_region
    _
  $region21: #{generator_forward.6} parent=0 // pred_fallthru
    _
  // Predicated region
  $region22: #{generator_forward.6} parent=0 // pred_check
    _
  $region23: #{generator_forward.6} parent=0 // pred_check_branch
    %2276 = sbr.rel (0) target = $region25
  $region24: #{generator_forward.6} parent=0 // pred_region
    _
  $region25: #{generator_forward.6} parent=0 // pred_fallthru
    _

// kernel: generator_forward.7
$region0: #{generator_forward.7}
  #allocation0 [shape = 'u32[]', space=smem, size = 0x4, offset = 0x4, fixed_abs, tag = 'smem constant byte address 0x4 - core index']
  #allocation1 [shape = 'u32[144,128]{1,0:T(1,128)}', space=vmem, size = 0x12000, scoped, tag = 'internal scratch']
  %s0 = inlined_call_operand.vmem [shape: bf16[512,576], index: 0, kind: input, shape index: {}]
  %s1 = inlined_call_operand.vmem [shape: bf16[576,128], index: 1, kind: input, shape index: {}]
  %s2 = inlined_call_operand.vmem [shape: f32[1,128], index: 2, kind: input, shape index: {}]
  %s3 = inlined_call_operand.vmem [shape: f32[1,128], index: 3, kind: input, shape index: {}]
  %s4 = inlined_call_operand.vmem [shape: bf16[128,128], index: 4, kind: input, shape index: {}]
  %s5 = inlined_call_operand.vmem [shape: f32[512,128], index: 5, kind: output, shape index: {}]
  %s6 = sld [smem:[#allocation0]]
  $region30: #{generator_forward.7} parent=0
    _
  %s8 = ssub.s32 1, %s6
  %s9 = scalar_select 0, %s8, %s6
  // Predicated region
  $region2: #{generator_forward.7} parent=0 // pred_check
    _
  $region3: #{generator_forward.7} parent=0 // pred_check_branch
    %11 = sbr.rel (0) target = $region5
  $region4: #{generator_forward.7} parent=0 // pred_region
    _
  $region5: #{generator_forward.7} parent=0 // pred_fallthru
    _
  // Predicated region
  $region6: #{generator_forward.7} parent=0 // pred_check
    _
  $region7: #{generator_forward.7} parent=0 // pred_check_branch
    %13 = sbr.rel (0) target = $region9
  $region8: #{generator_forward.7} parent=0 // pred_region
    _
  $region9: #{generator_forward.7} parent=0 // pred_fallthru
    _
  // Predicated region
  $region10: #{generator_forward.7} parent=0 // pred_check
    _
  $region11: #{generator_forward.7} parent=0 // pred_check_branch
    %15 = sbr.rel (0) target = $region13
  $region12: #{generator_forward.7} parent=0 // pred_region
    _
  $region13: #{generator_forward.7} parent=0 // pred_fallthru
    _
  // Predicated region
  $region14: #{generator_forward.7} parent=0 // pred_check
    _
  $region15: #{generator_forward.7} parent=0 // pred_check_branch
    %17 = sbr.rel (0) target = $region17
  $region16: #{generator_forward.7} parent=0 // pred_region
    _
  $region17: #{generator_forward.7} parent=0 // pred_fallthru
    _
  // Predicated region
  $region18: #{generator_forward.7} parent=0 // pred_check
    _
  $region19: #{generator_forward.7} parent=0 // pred_check_branch
    %19 = sbr.rel (0) target = $region21
  $region20: #{generator_forward.7} parent=0 // pred_region
    _
  $region21: #{generator_forward.7} parent=0 // pred_fallthru
    _
  %v21 = vld [vmem:[%s0] sm:$0xff]
  %v22 = vld [vmem:[%s0 + $0x8] sm:$0xff]
  %v23 = vld [vmem:[%s0 + $0x10] sm:$0xf]
  %v24 = vld [vmem:[%s0 + $0x14] sm:$0xff]
  %v25 = vld [vmem:[%s0 + $0x1c] sm:$0xff]
  %v26 = vld [vmem:[%s0 + $0x24] sm:$0xf]
  %v27 = vld [vmem:[%s0 + $0x28] sm:$0xff]
  %v28 = vld [vmem:[%s0 + $0x30] sm:$0xff]
  %v29 = vld [vmem:[%s0 + $0x38] sm:$0xf]
  %v30 = vld [vmem:[%s0 + $0x3c] sm:$0xff]
  %v31 = vld [vmem:[%s0 + $0x44] sm:$0xff]
  %v32 = vld [vmem:[%s0 + $0x4c] sm:$0xf]
  %v33 = vld [vmem:[%s0 + $0x50] sm:$0xff]
  %v34 = vld [vmem:[%s0 + $0x58] sm:$0xff]
  %v35 = vld [vmem:[%s0 + $0x60] sm:$0xf]
  %v36 = vld [vmem:[%s0 + $0x64] sm:$0xff]
  %v37 = vld [vmem:[%s0 + $0x6c] sm:$0xff]
  %v38 = vld [vmem:[%s0 + $0x74] sm:$0xf]
  %v39 = vld [vmem:[%s0 + $0x78] sm:$0xff]
  %v40 = vld [vmem:[%s0 + $0x80] sm:$0xff]
  %v41 = vld [vmem:[%s0 + $0x88] sm:$0xf]
  %v42 = vld [vmem:[%s0 + $0x8c] sm:$0xff]
  %v43 = vld [vmem:[%s0 + $0x94] sm:$0xff]
  %v44 = vld [vmem:[%s0 + $0x9c] sm:$0xf]
  %v45 = vld [vmem:[%s0 + $0xa0] sm:$0xff]
  %v46 = vld [vmem:[%s0 + $0xa8] sm:$0xff]
  %v47 = vld [vmem:[%s0 + $0xb0] sm:$0xf]
  %v48 = vld [vmem:[%s0 + $0xb4] sm:$0xff]
  %v49 = vld [vmem:[%s0 + $0xbc] sm:$0xff]
  %v50 = vld [vmem:[%s0 + $0xc4] sm:$0xf]
  %v51 = vld [vmem:[%s0 + $0xc8] sm:$0xff]
  %v52 = vld [vmem:[%s0 + $0xd0] sm:$0xff]
  %v53 = vld [vmem:[%s0 + $0xd8] sm:$0xf]
  %v54 = vld [vmem:[%s0 + $0xdc] sm:$0xff]
  %v55 = vld [vmem:[%s0 + $0xe4] sm:$0xff]
  %v56 = vld [vmem:[%s0 + $0xec] sm:$0xf]
  %v57 = vld [vmem:[%s0 + $0xf0] sm:$0xff]
  %v58 = vld [vmem:[%s0 + $0xf8] sm:$0xff]
  %v59 = vld [vmem:[%s0 + $0x100] sm:$0xf]
  %v60 = vld [vmem:[%s0 + $0x104] sm:$0xff]
  %v61 = vld [vmem:[%s0 + $0x10c] sm:$0xff]
  %v62 = vld [vmem:[%s0 + $0x114] sm:$0xf]
  %v63 = vld [vmem:[%s0 + $0x118] sm:$0xff]
  %v64 = vld [vmem:[%s0 + $0x120] sm:$0xff]
  %v65 = vld [vmem:[%s0 + $0x128] sm:$0xf]
  %v66 = vld [vmem:[%s0 + $0x12c] sm:$0xff]
  %v67 = vld [vmem:[%s0 + $0x134] sm:$0xff]
  %v68 = vld [vmem:[%s0 + $0x13c] sm:$0xf]
  %v69 = vld [vmem:[%s0 + $0x140] sm:$0xff]
  %v70 = vld [vmem:[%s0 + $0x148] sm:$0xff]
  %v71 = vld [vmem:[%s0 + $0x150] sm:$0xf]
  %v72 = vld [vmem:[%s0 + $0x154] sm:$0xff]
  %v73 = vld [vmem:[%s0 + $0x15c] sm:$0xff]
  %v74 = vld [vmem:[%s0 + $0x164] sm:$0xf]
  %v75 = vld [vmem:[%s0 + $0x168] sm:$0xff]
  %v76 = vld [vmem:[%s0 + $0x170] sm:$0xff]
  %v77 = vld [vmem:[%s0 + $0x178] sm:$0xf]
  %v78 = vld [vmem:[%s0 + $0x17c] sm:$0xff]
  %v79 = vld [vmem:[%s0 + $0x184] sm:$0xff]
  %v80 = vld [vmem:[%s0 + $0x18c] sm:$0xf]
  %v81 = vld [vmem:[%s0 + $0x190] sm:$0xff]
  %v82 = vld [vmem:[%s0 + $0x198] sm:$0xff]
  %v83 = vld [vmem:[%s0 + $0x1a0] sm:$0xf]
  %v84 = vld [vmem:[%s0 + $0x1a4] sm:$0xff]
  %v85 = vld [vmem:[%s0 + $0x1ac] sm:$0xff]
  %v86 = vld [vmem:[%s0 + $0x1b4] sm:$0xf]
  %v87 = vld [vmem:[%s0 + $0x1b8] sm:$0xff]
  %v88 = vld [vmem:[%s0 + $0x1c0] sm:$0xff]
  %v89 = vld [vmem:[%s0 + $0x1c8] sm:$0xf]
  %v90 = vld [vmem:[%s0 + $0x1cc] sm:$0xff]
  %v91 = vld [vmem:[%s0 + $0x1d4] sm:$0xff]
  %v92 = vld [vmem:[%s0 + $0x1dc] sm:$0xf]
  %v93 = vld [vmem:[%s0 + $0x1e0] sm:$0xff]
  %v94 = vld [vmem:[%s0 + $0x1e8] sm:$0xff]
  %v95 = vld [vmem:[%s0 + $0x1f0] sm:$0xf]
  %v96 = vld [vmem:[%s0 + $0x1f4] sm:$0xff]
  %v97 = vld [vmem:[%s0 + $0x1fc] sm:$0xff]
  %v98 = vld [vmem:[%s0 + $0x204] sm:$0xf]
  %v99 = vld [vmem:[%s0 + $0x208] sm:$0xff]
  %v100 = vld [vmem:[%s0 + $0x210] sm:$0xff]
  %v101 = vld [vmem:[%s0 + $0x218] sm:$0xf]
  %v102 = vld [vmem:[%s0 + $0x21c] sm:$0xff]
  %v103 = vld [vmem:[%s0 + $0x224] sm:$0xff]
  %v104 = vld [vmem:[%s0 + $0x22c] sm:$0xf]
  %v105 = vld [vmem:[%s0 + $0x230] sm:$0xff]
  %v106 = vld [vmem:[%s0 + $0x238] sm:$0xff]
  %v107 = vld [vmem:[%s0 + $0x240] sm:$0xf]
  %v108 = vld [vmem:[%s0 + $0x244] sm:$0xff]
  %v109 = vld [vmem:[%s0 + $0x24c] sm:$0xff]
  %v110 = vld [vmem:[%s0 + $0x254] sm:$0xf]
  %v111 = vld [vmem:[%s0 + $0x258] sm:$0xff]
  %v112 = vld [vmem:[%s0 + $0x260] sm:$0xff]
  %v113 = vld [vmem:[%s0 + $0x268] sm:$0xf]
  %v114 = vld [vmem:[%s0 + $0x26c] sm:$0xff]
  %v115 = vld [vmem:[%s0 + $0x274] sm:$0xff]
  %v116 = vld [vmem:[%s0 + $0x27c] sm:$0xf]
  %v117 = vld [vmem:[%s0 + $0x280] sm:$0xff]
  %v118 = vld [vmem:[%s0 + $0x288] sm:$0xff]
  %v119 = vld [vmem:[%s0 + $0x290] sm:$0xf]
  %v120 = vld [vmem:[%s0 + $0x294] sm:$0xff]
  %v121 = vld [vmem:[%s0 + $0x29c] sm:$0xff]
  %v122 = vld [vmem:[%s0 + $0x2a4] sm:$0xf]
  %v123 = vld [vmem:[%s0 + $0x2a8] sm:$0xff]
  %v124 = vld [vmem:[%s0 + $0x2b0] sm:$0xff]
  %v125 = vld [vmem:[%s0 + $0x2b8] sm:$0xf]
  %v126 = vld [vmem:[%s0 + $0x2bc] sm:$0xff]
  %v127 = vld [vmem:[%s0 + $0x2c4] sm:$0xff]
  %v128 = vld [vmem:[%s0 + $0x2cc] sm:$0xf]
  %v129 = vld [vmem:[%s0 + $0x2d0] sm:$0xff]
  %v130 = vld [vmem:[%s0 + $0x2d8] sm:$0xff]
  %v131 = vld [vmem:[%s0 + $0x2e0] sm:$0xf]
  %v132 = vld [vmem:[%s0 + $0x2e4] sm:$0xff]
  %v133 = vld [vmem:[%s0 + $0x2ec] sm:$0xff]
  %v134 = vld [vmem:[%s0 + $0x2f4] sm:$0xf]
  %v135 = vld [vmem:[%s0 + $0x2f8] sm:$0xff]
  %v136 = vld [vmem:[%s0 + $0x300] sm:$0xff]
  %v137 = vld [vmem:[%s0 + $0x308] sm:$0xf]
  %v138 = vld [vmem:[%s0 + $0x30c] sm:$0xff]
  %v139 = vld [vmem:[%s0 + $0x314] sm:$0xff]
  %v140 = vld [vmem:[%s0 + $0x31c] sm:$0xf]
  %v141 = vld [vmem:[%s0 + $0x320] sm:$0xff]
  %v142 = vld [vmem:[%s0 + $0x328] sm:$0xff]
  %v143 = vld [vmem:[%s0 + $0x330] sm:$0xf]
  %v144 = vld [vmem:[%s0 + $0x334] sm:$0xff]
  %v145 = vld [vmem:[%s0 + $0x33c] sm:$0xff]
  %v146 = vld [vmem:[%s0 + $0x344] sm:$0xf]
  %v147 = vld [vmem:[%s0 + $0x348] sm:$0xff]
  %v148 = vld [vmem:[%s0 + $0x350] sm:$0xff]
  %v149 = vld [vmem:[%s0 + $0x358] sm:$0xf]
  %v150 = vld [vmem:[%s0 + $0x35c] sm:$0xff]
  %v151 = vld [vmem:[%s0 + $0x364] sm:$0xff]
  %v152 = vld [vmem:[%s0 + $0x36c] sm:$0xf]
  %v153 = vld [vmem:[%s0 + $0x370] sm:$0xff]
  %v154 = vld [vmem:[%s0 + $0x378] sm:$0xff]
  %v155 = vld [vmem:[%s0 + $0x380] sm:$0xf]
  %v156 = vld [vmem:[%s0 + $0x384] sm:$0xff]
  %v157 = vld [vmem:[%s0 + $0x38c] sm:$0xff]
  %v158 = vld [vmem:[%s0 + $0x394] sm:$0xf]
  %v159 = vld [vmem:[%s0 + $0x398] sm:$0xff]
  %v160 = vld [vmem:[%s0 + $0x3a0] sm:$0xff]
  %v161 = vld [vmem:[%s0 + $0x3a8] sm:$0xf]
  %v162 = vld [vmem:[%s0 + $0x3ac] sm:$0xff]
  %v163 = vld [vmem:[%s0 + $0x3b4] sm:$0xff]
  %v164 = vld [vmem:[%s0 + $0x3bc] sm:$0xf]
  %v165 = vld [vmem:[%s0 + $0x3c0] sm:$0xff]
  %v166 = vld [vmem:[%s0 + $0x3c8] sm:$0xff]
  %v167 = vld [vmem:[%s0 + $0x3d0] sm:$0xf]
  %v168 = vld [vmem:[%s0 + $0x3d4] sm:$0xff]
  %v169 = vld [vmem:[%s0 + $0x3dc] sm:$0xff]
  %v170 = vld [vmem:[%s0 + $0x3e4] sm:$0xf]
  %v171 = vld [vmem:[%s0 + $0x3e8] sm:$0xff]
  %v172 = vld [vmem:[%s0 + $0x3f0] sm:$0xff]
  %v173 = vld [vmem:[%s0 + $0x3f8] sm:$0xf]
  %v174 = vld [vmem:[%s0 + $0x3fc] sm:$0xff]
  %v175 = vld [vmem:[%s0 + $0x404] sm:$0xff]
  %v176 = vld [vmem:[%s0 + $0x40c] sm:$0xf]
  %v177 = vld [vmem:[%s0 + $0x410] sm:$0xff]
  %v178 = vld [vmem:[%s0 + $0x418] sm:$0xff]
  %v179 = vld [vmem:[%s0 + $0x420] sm:$0xf]
  %v180 = vld [vmem:[%s0 + $0x424] sm:$0xff]
  %v181 = vld [vmem:[%s0 + $0x42c] sm:$0xff]
  %v182 = vld [vmem:[%s0 + $0x434] sm:$0xf]
  %v183 = vld [vmem:[%s0 + $0x438] sm:$0xff]
  %v184 = vld [vmem:[%s0 + $0x440] sm:$0xff]
  %v185 = vld [vmem:[%s0 + $0x448] sm:$0xf]
  %v186 = vld [vmem:[%s0 + $0x44c] sm:$0xff]
  %v187 = vld [vmem:[%s0 + $0x454] sm:$0xff]
  %v188 = vld [vmem:[%s0 + $0x45c] sm:$0xf]
  %v189 = vld [vmem:[%s0 + $0x460] sm:$0xff]
  %v190 = vld [vmem:[%s0 + $0x468] sm:$0xff]
  %v191 = vld [vmem:[%s0 + $0x470] sm:$0xf]
  %v192 = vld [vmem:[%s0 + $0x474] sm:$0xff]
  %v193 = vld [vmem:[%s0 + $0x47c] sm:$0xff]
  %v194 = vld [vmem:[%s0 + $0x484] sm:$0xf]
  %v195 = vld [vmem:[%s0 + $0x488] sm:$0xff]
  %v196 = vld [vmem:[%s0 + $0x490] sm:$0xff]
  %v197 = vld [vmem:[%s0 + $0x498] sm:$0xf]
  %v198 = vld [vmem:[%s0 + $0x49c] sm:$0xff]
  %v199 = vld [vmem:[%s0 + $0x4a4] sm:$0xff]
  %v200 = vld [vmem:[%s0 + $0x4ac] sm:$0xf]
  %v201 = vld [vmem:[%s0 + $0x4b0] sm:$0xff]
  %v202 = vld [vmem:[%s0 + $0x4b8] sm:$0xff]
  %v203 = vld [vmem:[%s0 + $0x4c0] sm:$0xf]
  %v204 = vld [vmem:[%s0 + $0x4c4] sm:$0xff]
  %v205 = vld [vmem:[%s0 + $0x4cc] sm:$0xff]
  %v206 = vld [vmem:[%s0 + $0x4d4] sm:$0xf]
  %v207 = vld [vmem:[%s0 + $0x4d8] sm:$0xff]
  %v208 = vld [vmem:[%s0 + $0x4e0] sm:$0xff]
  %v209 = vld [vmem:[%s0 + $0x4e8] sm:$0xf]
  %v210 = vld [vmem:[%s0 + $0x4ec] sm:$0xff]
  %v211 = vld [vmem:[%s0 + $0x4f4] sm:$0xff]
  %v212 = vld [vmem:[%s0 + $0x4fc] sm:$0xf]
  %v213 = vld [vmem:[%s1] sm:$0xf]
  %v214 = vld [vmem:[%s1 + $0x4] sm:$0xf]
  %v215 = vld [vmem:[%s1 + $0x8] sm:$0xf]
  %v216 = vld [vmem:[%s1 + $0xc] sm:$0xf]
  %v217 = vld [vmem:[%s1 + $0x10] sm:$0xf]
  %v218 = vld [vmem:[%s1 + $0x14] sm:$0xf]
  %v219 = vld [vmem:[%s1 + $0x18] sm:$0xf]
  %v220 = vld [vmem:[%s1 + $0x1c] sm:$0xf]
  %v221 = vld [vmem:[%s1 + $0x20] sm:$0xf]
  %v222 = vld [vmem:[%s1 + $0x24] sm:$0xf]
  %v223 = vld [vmem:[%s1 + $0x28] sm:$0xf]
  %v224 = vld [vmem:[%s1 + $0x2c] sm:$0xf]
  %v225 = vld [vmem:[%s1 + $0x30] sm:$0xf]
  %v226 = vld [vmem:[%s1 + $0x34] sm:$0xf]
  %v227 = vld [vmem:[%s1 + $0x38] sm:$0xf]
  %v228 = vld [vmem:[%s1 + $0x3c] sm:$0xf]
  %v229 = vld [vmem:[%s1 + $0x40] sm:$0xf]
  %v230 = vld [vmem:[%s1 + $0x44] sm:$0xf]
  %v231 = vld [vmem:[%s1 + $0x48] sm:$0xf]
  %v232 = vld [vmem:[%s1 + $0x4c] sm:$0xf]
  %v233 = vld [vmem:[%s1 + $0x50] sm:$0xf]
  %v234 = vld [vmem:[%s1 + $0x54] sm:$0xf]
  %v235 = vld [vmem:[%s1 + $0x58] sm:$0xf]
  %v236 = vld [vmem:[%s1 + $0x5c] sm:$0xf]
  %v237 = vld [vmem:[%s1 + $0x60] sm:$0xf]
  %v238 = vld [vmem:[%s1 + $0x64] sm:$0xf]
  %v239 = vld [vmem:[%s1 + $0x68] sm:$0xf]
  %v240 = vld [vmem:[%s1 + $0x6c] sm:$0xf]
  %v241 = vld [vmem:[%s1 + $0x70] sm:$0xf]
  %v242 = vld [vmem:[%s1 + $0x74] sm:$0xf]
  %v243 = vld [vmem:[%s1 + $0x78] sm:$0xf]
  %v244 = vld [vmem:[%s1 + $0x7c] sm:$0xf]
  %v245 = vld [vmem:[%s1 + $0x80] sm:$0xf]
  %v246 = vld [vmem:[%s1 + $0x84] sm:$0xf]
  %v247 = vld [vmem:[%s1 + $0x88] sm:$0xf]
  %v248 = vld [vmem:[%s1 + $0x8c] sm:$0xf]
  %v249 = vld [vmem:[%s1 + $0x90] sm:$0xf]
  %v250 = vld [vmem:[%s1 + $0x94] sm:$0xf]
  %v251 = vld [vmem:[%s1 + $0x98] sm:$0xf]
  %v252 = vld [vmem:[%s1 + $0x9c] sm:$0xf]
  %v253 = vld [vmem:[%s1 + $0xa0] sm:$0xf]
  %v254 = vld [vmem:[%s1 + $0xa4] sm:$0xf]
  %v255 = vld [vmem:[%s1 + $0xa8] sm:$0xf]
  %v256 = vld [vmem:[%s1 + $0xac] sm:$0xf]
  %v257 = vld [vmem:[%s1 + $0xb0] sm:$0xf]
  %v258 = vld [vmem:[%s1 + $0xb4] sm:$0xf]
  %v259 = vld [vmem:[%s1 + $0xb8] sm:$0xf]
  %v260 = vld [vmem:[%s1 + $0xbc] sm:$0xf]
  %v261 = vld [vmem:[%s1 + $0xc0] sm:$0xf]
  %v262 = vld [vmem:[%s1 + $0xc4] sm:$0xf]
  %v263 = vld [vmem:[%s1 + $0xc8] sm:$0xf]
  %v264 = vld [vmem:[%s1 + $0xcc] sm:$0xf]
  %v265 = vld [vmem:[%s1 + $0xd0] sm:$0xf]
  %v266 = vld [vmem:[%s1 + $0xd4] sm:$0xf]
  %v267 = vld [vmem:[%s1 + $0xd8] sm:$0xf]
  %v268 = vld [vmem:[%s1 + $0xdc] sm:$0xf]
  %v269 = vld [vmem:[%s1 + $0xe0] sm:$0xf]
  %v270 = vld [vmem:[%s1 + $0xe4] sm:$0xf]
  %v271 = vld [vmem:[%s1 + $0xe8] sm:$0xf]
  %v272 = vld [vmem:[%s1 + $0xec] sm:$0xf]
  %v273 = vld [vmem:[%s1 + $0xf0] sm:$0xf]
  %v274 = vld [vmem:[%s1 + $0xf4] sm:$0xf]
  %v275 = vld [vmem:[%s1 + $0xf8] sm:$0xf]
  %v276 = vld [vmem:[%s1 + $0xfc] sm:$0xf]
  %v277 = vld [vmem:[%s1 + $0x100] sm:$0xf]
  %v278 = vld [vmem:[%s1 + $0x104] sm:$0xf]
  %v279 = vld [vmem:[%s1 + $0x108] sm:$0xf]
  %v280 = vld [vmem:[%s1 + $0x10c] sm:$0xf]
  %v281 = vld [vmem:[%s1 + $0x110] sm:$0xf]
  %v282 = vld [vmem:[%s1 + $0x114] sm:$0xf]
  %v283 = vld [vmem:[%s1 + $0x118] sm:$0xf]
  %v284 = vld [vmem:[%s1 + $0x11c] sm:$0xf]
  %v477 = vunpack.c.l.b16 %v21
  %v478 = vunpack.c.h.b16 %v21
  %v479 = vunpack.c.l.b16 %v22
  %v480 = vunpack.c.h.b16 %v22
  %v481 = vunpack.c.l.b16 %v23
  %v482 = vunpack.c.l.b16 %v24
  %v483 = vunpack.c.h.b16 %v24
  %v484 = vunpack.c.l.b16 %v25
  %v485 = vunpack.c.h.b16 %v25
  %v486 = vunpack.c.l.b16 %v26
  %v487 = vunpack.c.l.b16 %v27
  %v488 = vunpack.c.h.b16 %v27
  %v489 = vunpack.c.l.b16 %v28
  %v490 = vunpack.c.h.b16 %v28
  %v491 = vunpack.c.l.b16 %v29
  %v492 = vunpack.c.l.b16 %v30
  %v493 = vunpack.c.h.b16 %v30
  %v494 = vunpack.c.l.b16 %v31
  %v495 = vunpack.c.h.b16 %v31
  %v496 = vunpack.c.l.b16 %v32
  %v497 = vunpack.c.l.b16 %v33
  %v498 = vunpack.c.h.b16 %v33
  %v499 = vunpack.c.l.b16 %v34
  %v500 = vunpack.c.h.b16 %v34
  %v501 = vunpack.c.l.b16 %v35
  %v502 = vunpack.c.l.b16 %v36
  %v503 = vunpack.c.h.b16 %v36
  %v504 = vunpack.c.l.b16 %v37
  %v505 = vunpack.c.h.b16 %v37
  %v506 = vunpack.c.l.b16 %v38
  %v507 = vunpack.c.l.b16 %v39
  %v508 = vunpack.c.h.b16 %v39
  %v509 = vunpack.c.l.b16 %v40
  %v510 = vunpack.c.h.b16 %v40
  %v511 = vunpack.c.l.b16 %v41
  %v512 = vunpack.c.l.b16 %v42
  %v513 = vunpack.c.h.b16 %v42
  %v514 = vunpack.c.l.b16 %v43
  %v515 = vunpack.c.h.b16 %v43
  %v516 = vunpack.c.l.b16 %v44
  %v517 = vunpack.c.l.b16 %v45
  %v518 = vunpack.c.h.b16 %v45
  %v519 = vunpack.c.l.b16 %v46
  %v520 = vunpack.c.h.b16 %v46
  %v521 = vunpack.c.l.b16 %v47
  %v522 = vunpack.c.l.b16 %v48
  %v523 = vunpack.c.h.b16 %v48
  %v524 = vunpack.c.l.b16 %v49
  %v525 = vunpack.c.h.b16 %v49
  %v526 = vunpack.c.l.b16 %v50
  %v527 = vunpack.c.l.b16 %v51
  %v528 = vunpack.c.h.b16 %v51
  %v529 = vunpack.c.l.b16 %v52
  %v530 = vunpack.c.h.b16 %v52
  %v531 = vunpack.c.l.b16 %v53
  %v532 = vunpack.c.l.b16 %v54
  %v533 = vunpack.c.h.b16 %v54
  %v534 = vunpack.c.l.b16 %v55
  %v535 = vunpack.c.h.b16 %v55
  %v536 = vunpack.c.l.b16 %v56
  %v537 = vunpack.c.l.b16 %v57
  %v538 = vunpack.c.h.b16 %v57
  %v539 = vunpack.c.l.b16 %v58
  %v540 = vunpack.c.h.b16 %v58
  %v541 = vunpack.c.l.b16 %v59
  %v542 = vunpack.c.l.b16 %v60
  %v543 = vunpack.c.h.b16 %v60
  %v544 = vunpack.c.l.b16 %v61
  %v545 = vunpack.c.h.b16 %v61
  %v546 = vunpack.c.l.b16 %v62
  %v547 = vunpack.c.l.b16 %v63
  %v548 = vunpack.c.h.b16 %v63
  %v549 = vunpack.c.l.b16 %v64
  %v550 = vunpack.c.h.b16 %v64
  %v551 = vunpack.c.l.b16 %v65
  %v552 = vunpack.c.l.b16 %v66
  %v553 = vunpack.c.h.b16 %v66
  %v554 = vunpack.c.l.b16 %v67
  %v555 = vunpack.c.h.b16 %v67
  %v556 = vunpack.c.l.b16 %v68
  %v557 = vunpack.c.l.b16 %v69
  %v558 = vunpack.c.h.b16 %v69
  %v559 = vunpack.c.l.b16 %v70
  %v560 = vunpack.c.h.b16 %v70
  %v561 = vunpack.c.l.b16 %v71
  %v562 = vunpack.c.l.b16 %v72
  %v563 = vunpack.c.h.b16 %v72
  %v564 = vunpack.c.l.b16 %v73
  %v565 = vunpack.c.h.b16 %v73
  %v566 = vunpack.c.l.b16 %v74
  %v567 = vunpack.c.l.b16 %v75
  %v568 = vunpack.c.h.b16 %v75
  %v569 = vunpack.c.l.b16 %v76
  %v570 = vunpack.c.h.b16 %v76
  %v571 = vunpack.c.l.b16 %v77
  %v572 = vunpack.c.l.b16 %v78
  %v573 = vunpack.c.h.b16 %v78
  %v574 = vunpack.c.l.b16 %v79
  %v575 = vunpack.c.h.b16 %v79
  %v576 = vunpack.c.l.b16 %v80
  %v577 = vunpack.c.l.b16 %v81
  %v578 = vunpack.c.h.b16 %v81
  %v579 = vunpack.c.l.b16 %v82
  %v580 = vunpack.c.h.b16 %v82
  %v581 = vunpack.c.l.b16 %v83
  %v582 = vunpack.c.l.b16 %v84
  %v583 = vunpack.c.h.b16 %v84
  %v584 = vunpack.c.l.b16 %v85
  %v585 = vunpack.c.h.b16 %v85
  %v586 = vunpack.c.l.b16 %v86
  %v587 = vunpack.c.l.b16 %v87
  %v588 = vunpack.c.h.b16 %v87
  %v589 = vunpack.c.l.b16 %v88
  %v590 = vunpack.c.h.b16 %v88
  %v591 = vunpack.c.l.b16 %v89
  %v592 = vunpack.c.l.b16 %v90
  %v593 = vunpack.c.h.b16 %v90
  %v594 = vunpack.c.l.b16 %v91
  %v595 = vunpack.c.h.b16 %v91
  %v596 = vunpack.c.l.b16 %v92
  %v597 = vunpack.c.l.b16 %v93
  %v598 = vunpack.c.h.b16 %v93
  %v599 = vunpack.c.l.b16 %v94
  %v600 = vunpack.c.h.b16 %v94
  %v601 = vunpack.c.l.b16 %v95
  %v602 = vunpack.c.l.b16 %v96
  %v603 = vunpack.c.h.b16 %v96
  %v604 = vunpack.c.l.b16 %v97
  %v605 = vunpack.c.h.b16 %v97
  %v606 = vunpack.c.l.b16 %v98
  %v607 = vunpack.c.l.b16 %v99
  %v608 = vunpack.c.h.b16 %v99
  %v609 = vunpack.c.l.b16 %v100
  %v610 = vunpack.c.h.b16 %v100
  %v611 = vunpack.c.l.b16 %v101
  %v612 = vunpack.c.l.b16 %v102
  %v613 = vunpack.c.h.b16 %v102
  %v614 = vunpack.c.l.b16 %v103
  %v615 = vunpack.c.h.b16 %v103
  %v616 = vunpack.c.l.b16 %v104
  %v617 = vunpack.c.l.b16 %v105
  %v618 = vunpack.c.h.b16 %v105
  %v619 = vunpack.c.l.b16 %v106
  %v620 = vunpack.c.h.b16 %v106
  %v621 = vunpack.c.l.b16 %v107
  %v622 = vunpack.c.l.b16 %v108
  %v623 = vunpack.c.h.b16 %v108
  %v624 = vunpack.c.l.b16 %v109
  %v625 = vunpack.c.h.b16 %v109
  %v626 = vunpack.c.l.b16 %v110
  %v627 = vunpack.c.l.b16 %v111
  %v628 = vunpack.c.h.b16 %v111
  %v629 = vunpack.c.l.b16 %v112
  %v630 = vunpack.c.h.b16 %v112
  %v631 = vunpack.c.l.b16 %v113
  %v632 = vunpack.c.l.b16 %v114
  %v633 = vunpack.c.h.b16 %v114
  %v634 = vunpack.c.l.b16 %v115
  %v635 = vunpack.c.h.b16 %v115
  %v636 = vunpack.c.l.b16 %v116
  %v637 = vunpack.c.l.b16 %v117
  %v638 = vunpack.c.h.b16 %v117
  %v639 = vunpack.c.l.b16 %v118
  %v640 = vunpack.c.h.b16 %v118
  %v641 = vunpack.c.l.b16 %v119
  %v642 = vunpack.c.l.b16 %v120
  %v643 = vunpack.c.h.b16 %v120
  %v644 = vunpack.c.l.b16 %v121
  %v645 = vunpack.c.h.b16 %v121
  %v646 = vunpack.c.l.b16 %v122
  %v647 = vunpack.c.l.b16 %v123
  %v648 = vunpack.c.h.b16 %v123
  %v649 = vunpack.c.l.b16 %v124
  %v650 = vunpack.c.h.b16 %v124
  %v651 = vunpack.c.l.b16 %v125
  %v652 = vunpack.c.l.b16 %v126
  %v653 = vunpack.c.h.b16 %v126
  %v654 = vunpack.c.l.b16 %v127
  %v655 = vunpack.c.h.b16 %v127
  %v656 = vunpack.c.l.b16 %v128
  %v657 = vunpack.c.l.b16 %v129
  %v658 = vunpack.c.h.b16 %v129
  %v659 = vunpack.c.l.b16 %v130
  %v660 = vunpack.c.h.b16 %v130
  %v661 = vunpack.c.l.b16 %v131
  %v662 = vunpack.c.l.b16 %v132
  %v663 = vunpack.c.h.b16 %v132
  %v664 = vunpack.c.l.b16 %v133
  %v665 = vunpack.c.h.b16 %v133
  %v666 = vunpack.c.l.b16 %v134
  %v667 = vunpack.c.l.b16 %v135
  %v668 = vunpack.c.h.b16 %v135
  %v669 = vunpack.c.l.b16 %v136
  %v670 = vunpack.c.h.b16 %v136
  %v671 = vunpack.c.l.b16 %v137
  %v672 = vunpack.c.l.b16 %v138
  %v673 = vunpack.c.h.b16 %v138
  %v674 = vunpack.c.l.b16 %v139
  %v675 = vunpack.c.h.b16 %v139
  %v676 = vunpack.c.l.b16 %v140
  %v677 = vunpack.c.l.b16 %v141
  %v678 = vunpack.c.h.b16 %v141
  %v679 = vunpack.c.l.b16 %v142
  %v680 = vunpack.c.h.b16 %v142
  %v681 = vunpack.c.l.b16 %v143
  %v682 = vunpack.c.l.b16 %v144
  %v683 = vunpack.c.h.b16 %v144
  %v684 = vunpack.c.l.b16 %v145
  %v685 = vunpack.c.h.b16 %v145
  %v686 = vunpack.c.l.b16 %v146
  %v687 = vunpack.c.l.b16 %v147
  %v688 = vunpack.c.h.b16 %v147
  %v689 = vunpack.c.l.b16 %v148
  %v690 = vunpack.c.h.b16 %v148
  %v691 = vunpack.c.l.b16 %v149
  %v692 = vunpack.c.l.b16 %v150
  %v693 = vunpack.c.h.b16 %v150
  %v694 = vunpack.c.l.b16 %v151
  %v695 = vunpack.c.h.b16 %v151
  %v696 = vunpack.c.l.b16 %v152
  %v697 = vunpack.c.l.b16 %v153
  %v698 = vunpack.c.h.b16 %v153
  %v699 = vunpack.c.l.b16 %v154
  %v700 = vunpack.c.h.b16 %v154
  %v701 = vunpack.c.l.b16 %v155
  %v702 = vunpack.c.l.b16 %v156
  %v703 = vunpack.c.h.b16 %v156
  %v704 = vunpack.c.l.b16 %v157
  %v705 = vunpack.c.h.b16 %v157
  %v706 = vunpack.c.l.b16 %v158
  %v707 = vunpack.c.l.b16 %v159
  %v708 = vunpack.c.h.b16 %v159
  %v709 = vunpack.c.l.b16 %v160
  %v710 = vunpack.c.h.b16 %v160
  %v711 = vunpack.c.l.b16 %v161
  %v712 = vunpack.c.l.b16 %v162
  %v713 = vunpack.c.h.b16 %v162
  %v714 = vunpack.c.l.b16 %v163
  %v715 = vunpack.c.h.b16 %v163
  %v716 = vunpack.c.l.b16 %v164
  %v717 = vunpack.c.l.b16 %v165
  %v718 = vunpack.c.h.b16 %v165
  %v719 = vunpack.c.l.b16 %v166
  %v720 = vunpack.c.h.b16 %v166
  %v721 = vunpack.c.l.b16 %v167
  %v722 = vunpack.c.l.b16 %v168
  %v723 = vunpack.c.h.b16 %v168
  %v724 = vunpack.c.l.b16 %v169
  %v725 = vunpack.c.h.b16 %v169
  %v726 = vunpack.c.l.b16 %v170
  %v727 = vunpack.c.l.b16 %v171
  %v728 = vunpack.c.h.b16 %v171
  %v729 = vunpack.c.l.b16 %v172
  %v730 = vunpack.c.h.b16 %v172
  %v731 = vunpack.c.l.b16 %v173
  %v732 = vunpack.c.l.b16 %v174
  %v733 = vunpack.c.h.b16 %v174
  %v734 = vunpack.c.l.b16 %v175
  %v735 = vunpack.c.h.b16 %v175
  %v736 = vunpack.c.l.b16 %v176
  %v737 = vunpack.c.l.b16 %v177
  %v738 = vunpack.c.h.b16 %v177
  %v739 = vunpack.c.l.b16 %v178
  %v740 = vunpack.c.h.b16 %v178
  %v741 = vunpack.c.l.b16 %v179
  %v742 = vunpack.c.l.b16 %v180
  %v743 = vunpack.c.h.b16 %v180
  %v744 = vunpack.c.l.b16 %v181
  %v745 = vunpack.c.h.b16 %v181
  %v746 = vunpack.c.l.b16 %v182
  %v747 = vunpack.c.l.b16 %v183
  %v748 = vunpack.c.h.b16 %v183
  %v749 = vunpack.c.l.b16 %v184
  %v750 = vunpack.c.h.b16 %v184
  %v751 = vunpack.c.l.b16 %v185
  %v752 = vunpack.c.l.b16 %v186
  %v753 = vunpack.c.h.b16 %v186
  %v754 = vunpack.c.l.b16 %v187
  %v755 = vunpack.c.h.b16 %v187
  %v756 = vunpack.c.l.b16 %v188
  %v757 = vunpack.c.l.b16 %v189
  %v758 = vunpack.c.h.b16 %v189
  %v759 = vunpack.c.l.b16 %v190
  %v760 = vunpack.c.h.b16 %v190
  %v761 = vunpack.c.l.b16 %v191
  %v762 = vunpack.c.l.b16 %v192
  %v763 = vunpack.c.h.b16 %v192
  %v764 = vunpack.c.l.b16 %v193
  %v765 = vunpack.c.h.b16 %v193
  %v766 = vunpack.c.l.b16 %v194
  %v767 = vunpack.c.l.b16 %v195
  %v768 = vunpack.c.h.b16 %v195
  %v769 = vunpack.c.l.b16 %v196
  %v770 = vunpack.c.h.b16 %v196
  %v771 = vunpack.c.l.b16 %v197
  %v772 = vunpack.c.l.b16 %v198
  %v773 = vunpack.c.h.b16 %v198
  %v774 = vunpack.c.l.b16 %v199
  %v775 = vunpack.c.h.b16 %v199
  %v776 = vunpack.c.l.b16 %v200
  %v777 = vunpack.c.l.b16 %v201
  %v778 = vunpack.c.h.b16 %v201
  %v779 = vunpack.c.l.b16 %v202
  %v780 = vunpack.c.h.b16 %v202
  %v781 = vunpack.c.l.b16 %v203
  %v782 = vunpack.c.l.b16 %v204
  %v783 = vunpack.c.h.b16 %v204
  %v784 = vunpack.c.l.b16 %v205
  %v785 = vunpack.c.h.b16 %v205
  %v786 = vunpack.c.l.b16 %v206
  %v787 = vunpack.c.l.b16 %v207
  %v788 = vunpack.c.h.b16 %v207
  %v789 = vunpack.c.l.b16 %v208
  %v790 = vunpack.c.h.b16 %v208
  %v791 = vunpack.c.l.b16 %v209
  %v792 = vunpack.c.l.b16 %v210
  %v793 = vunpack.c.h.b16 %v210
  %v794 = vunpack.c.l.b16 %v211
  %v795 = vunpack.c.h.b16 %v211
  %v796 = vunpack.c.l.b16 %v212
  %v797 = vpack.c.b16 %v482, %v477
  %v798 = vpack.c.b16 %v483, %v478
  %v799 = vpack.c.b16 %v484, %v479
  %v800 = vpack.c.b16 %v485, %v480
  %v801 = vpack.c.b16 %v486, %v481
  %v802 = vpack.c.b16 %v492, %v487
  %v803 = vpack.c.b16 %v493, %v488
  %v804 = vpack.c.b16 %v494, %v489
  %v805 = vpack.c.b16 %v495, %v490
  %v806 = vpack.c.b16 %v496, %v491
  %v807 = vpack.c.b16 %v502, %v497
  %v808 = vpack.c.b16 %v503, %v498
  %v809 = vpack.c.b16 %v504, %v499
  %v810 = vpack.c.b16 %v505, %v500
  %v811 = vpack.c.b16 %v506, %v501
  %v812 = vpack.c.b16 %v512, %v507
  %v813 = vpack.c.b16 %v513, %v508
  %v814 = vpack.c.b16 %v514, %v509
  %v815 = vpack.c.b16 %v515, %v510
  %v816 = vpack.c.b16 %v516, %v511
  %v817 = vpack.c.b16 %v522, %v517
  %v818 = vpack.c.b16 %v523, %v518
  %v819 = vpack.c.b16 %v524, %v519
  %v820 = vpack.c.b16 %v525, %v520
  %v821 = vpack.c.b16 %v526, %v521
  %v822 = vpack.c.b16 %v532, %v527
  %v823 = vpack.c.b16 %v533, %v528
  %v824 = vpack.c.b16 %v534, %v529
  %v825 = vpack.c.b16 %v535, %v530
  %v826 = vpack.c.b16 %v536, %v531
  %v827 = vpack.c.b16 %v542, %v537
  %v828 = vpack.c.b16 %v543, %v538
  %v829 = vpack.c.b16 %v544, %v539
  %v830 = vpack.c.b16 %v545, %v540
  %v831 = vpack.c.b16 %v546, %v541
  %v832 = vpack.c.b16 %v552, %v547
  %v833 = vpack.c.b16 %v553, %v548
  %v834 = vpack.c.b16 %v554, %v549
  %v835 = vpack.c.b16 %v555, %v550
  %v836 = vpack.c.b16 %v556, %v551
  %v837 = vpack.c.b16 %v562, %v557
  %v838 = vpack.c.b16 %v563, %v558
  %v839 = vpack.c.b16 %v564, %v559
  %v840 = vpack.c.b16 %v565, %v560
  %v841 = vpack.c.b16 %v566, %v561
  %v842 = vpack.c.b16 %v572, %v567
  %v843 = vpack.c.b16 %v573, %v568
  %v844 = vpack.c.b16 %v574, %v569
  %v845 = vpack.c.b16 %v575, %v570
  %v846 = vpack.c.b16 %v576, %v571
  %v847 = vpack.c.b16 %v582, %v577
  %v848 = vpack.c.b16 %v583, %v578
  %v849 = vpack.c.b16 %v584, %v579
  %v850 = vpack.c.b16 %v585, %v580
  %v851 = vpack.c.b16 %v586, %v581
  %v852 = vpack.c.b16 %v592, %v587
  %v853 = vpack.c.b16 %v593, %v588
  %v854 = vpack.c.b16 %v594, %v589
  %v855 = vpack.c.b16 %v595, %v590
  %v856 = vpack.c.b16 %v596, %v591
  %v857 = vpack.c.b16 %v602, %v597
  %v858 = vpack.c.b16 %v603, %v598
  %v859 = vpack.c.b16 %v604, %v599
  %v860 = vpack.c.b16 %v605, %v600
  %v861 = vpack.c.b16 %v606, %v601
  %v862 = vpack.c.b16 %v612, %v607
  %v863 = vpack.c.b16 %v613, %v608
  %v864 = vpack.c.b16 %v614, %v609
  %v865 = vpack.c.b16 %v615, %v610
  %v866 = vpack.c.b16 %v616, %v611
  %v867 = vpack.c.b16 %v622, %v617
  %v868 = vpack.c.b16 %v623, %v618
  %v869 = vpack.c.b16 %v624, %v619
  %v870 = vpack.c.b16 %v625, %v620
  %v871 = vpack.c.b16 %v626, %v621
  %v872 = vpack.c.b16 %v632, %v627
  %v873 = vpack.c.b16 %v633, %v628
  %v874 = vpack.c.b16 %v634, %v629
  %v875 = vpack.c.b16 %v635, %v630
  %v876 = vpack.c.b16 %v636, %v631
  %v877 = vpack.c.b16 %v642, %v637
  %v878 = vpack.c.b16 %v643, %v638
  %v879 = vpack.c.b16 %v644, %v639
  %v880 = vpack.c.b16 %v645, %v640
  %v881 = vpack.c.b16 %v646, %v641
  %v882 = vpack.c.b16 %v652, %v647
  %v883 = vpack.c.b16 %v653, %v648
  %v884 = vpack.c.b16 %v654, %v649
  %v885 = vpack.c.b16 %v655, %v650
  %v886 = vpack.c.b16 %v656, %v651
  %v887 = vpack.c.b16 %v662, %v657
  %v888 = vpack.c.b16 %v663, %v658
  %v889 = vpack.c.b16 %v664, %v659
  %v890 = vpack.c.b16 %v665, %v660
  %v891 = vpack.c.b16 %v666, %v661
  %v892 = vpack.c.b16 %v672, %v667
  %v893 = vpack.c.b16 %v673, %v668
  %v894 = vpack.c.b16 %v674, %v669
  %v895 = vpack.c.b16 %v675, %v670
  %v896 = vpack.c.b16 %v676, %v671
  %v897 = vpack.c.b16 %v682, %v677
  %v898 = vpack.c.b16 %v683, %v678
  %v899 = vpack.c.b16 %v684, %v679
  %v900 = vpack.c.b16 %v685, %v680
  %v901 = vpack.c.b16 %v686, %v681
  %v902 = vpack.c.b16 %v692, %v687
  %v903 = vpack.c.b16 %v693, %v688
  %v904 = vpack.c.b16 %v694, %v689
  %v905 = vpack.c.b16 %v695, %v690
  %v906 = vpack.c.b16 %v696, %v691
  %v907 = vpack.c.b16 %v702, %v697
  %v908 = vpack.c.b16 %v703, %v698
  %v909 = vpack.c.b16 %v704, %v699
  %v910 = vpack.c.b16 %v705, %v700
  %v911 = vpack.c.b16 %v706, %v701
  %v912 = vpack.c.b16 %v712, %v707
  %v913 = vpack.c.b16 %v713, %v708
  %v914 = vpack.c.b16 %v714, %v709
  %v915 = vpack.c.b16 %v715, %v710
  %v916 = vpack.c.b16 %v716, %v711
  %v917 = vpack.c.b16 %v722, %v717
  %v918 = vpack.c.b16 %v723, %v718
  %v919 = vpack.c.b16 %v724, %v719
  %v920 = vpack.c.b16 %v725, %v720
  %v921 = vpack.c.b16 %v726, %v721
  %v922 = vpack.c.b16 %v732, %v727
  %v923 = vpack.c.b16 %v733, %v728
  %v924 = vpack.c.b16 %v734, %v729
  %v925 = vpack.c.b16 %v735, %v730
  %v926 = vpack.c.b16 %v736, %v731
  %v927 = vpack.c.b16 %v742, %v737
  %v928 = vpack.c.b16 %v743, %v738
  %v929 = vpack.c.b16 %v744, %v739
  %v930 = vpack.c.b16 %v745, %v740
  %v931 = vpack.c.b16 %v746, %v741
  %v932 = vpack.c.b16 %v752, %v747
  %v933 = vpack.c.b16 %v753, %v748
  %v934 = vpack.c.b16 %v754, %v749
  %v935 = vpack.c.b16 %v755, %v750
  %v936 = vpack.c.b16 %v756, %v751
  %v937 = vpack.c.b16 %v762, %v757
  %v938 = vpack.c.b16 %v763, %v758
  %v939 = vpack.c.b16 %v764, %v759
  %v940 = vpack.c.b16 %v765, %v760
  %v941 = vpack.c.b16 %v766, %v761
  %v942 = vpack.c.b16 %v772, %v767
  %v943 = vpack.c.b16 %v773, %v768
  %v944 = vpack.c.b16 %v774, %v769
  %v945 = vpack.c.b16 %v775, %v770
  %v946 = vpack.c.b16 %v776, %v771
  %v947 = vpack.c.b16 %v782, %v777
  %v948 = vpack.c.b16 %v783, %v778
  %v949 = vpack.c.b16 %v784, %v779
  %v950 = vpack.c.b16 %v785, %v780
  %v951 = vpack.c.b16 %v786, %v781
  %v952 = vpack.c.b16 %v792, %v787
  %v953 = vpack.c.b16 %v793, %v788
  %v954 = vpack.c.b16 %v794, %v789
  %v955 = vpack.c.b16 %v795, %v790
  %v956 = vpack.c.b16 %v796, %v791
  %v1157 = vunpack.c.l.b16 %v213
  %v1158 = vunpack.c.l.b16 %v214
  %v1159 = vunpack.c.l.b16 %v215
  %v1160 = vunpack.c.l.b16 %v216
  %v1161 = vunpack.c.l.b16 %v217
  %v1162 = vunpack.c.l.b16 %v218
  %v1163 = vunpack.c.l.b16 %v219
  %v1164 = vunpack.c.l.b16 %v220
  %v1165 = vunpack.c.l.b16 %v221
  %v1166 = vunpack.c.l.b16 %v222
  %v1167 = vunpack.c.l.b16 %v223
  %v1168 = vunpack.c.l.b16 %v224
  %v1169 = vunpack.c.l.b16 %v225
  %v1170 = vunpack.c.l.b16 %v226
  %v1171 = vunpack.c.l.b16 %v227
  %v1172 = vunpack.c.l.b16 %v228
  %v1173 = vunpack.c.l.b16 %v229
  %v1174 = vunpack.c.l.b16 %v230
  %v1175 = vunpack.c.l.b16 %v231
  %v1176 = vunpack.c.l.b16 %v232
  %v1177 = vunpack.c.l.b16 %v233
  %v1178 = vunpack.c.l.b16 %v234
  %v1179 = vunpack.c.l.b16 %v235
  %v1180 = vunpack.c.l.b16 %v236
  %v1181 = vunpack.c.l.b16 %v237
  %v1182 = vunpack.c.l.b16 %v238
  %v1183 = vunpack.c.l.b16 %v239
  %v1184 = vunpack.c.l.b16 %v240
  %v1185 = vunpack.c.l.b16 %v241
  %v1186 = vunpack.c.l.b16 %v242
  %v1187 = vunpack.c.l.b16 %v243
  %v1188 = vunpack.c.l.b16 %v244
  %v1189 = vunpack.c.l.b16 %v245
  %v1190 = vunpack.c.l.b16 %v246
  %v1191 = vunpack.c.l.b16 %v247
  %v1192 = vunpack.c.l.b16 %v248
  %v1193 = vunpack.c.l.b16 %v249
  %v1194 = vunpack.c.l.b16 %v250
  %v1195 = vunpack.c.l.b16 %v251
  %v1196 = vunpack.c.l.b16 %v252
  %v1197 = vunpack.c.l.b16 %v253
  %v1198 = vunpack.c.l.b16 %v254
  %v1199 = vunpack.c.l.b16 %v255
  %v1200 = vunpack.c.l.b16 %v256
  %v1201 = vunpack.c.l.b16 %v257
  %v1202 = vunpack.c.l.b16 %v258
  %v1203 = vunpack.c.l.b16 %v259
  %v1204 = vunpack.c.l.b16 %v260
  %v1205 = vunpack.c.l.b16 %v261
  %v1206 = vunpack.c.l.b16 %v262
  %v1207 = vunpack.c.l.b16 %v263
  %v1208 = vunpack.c.l.b16 %v264
  %v1209 = vunpack.c.l.b16 %v265
  %v1210 = vunpack.c.l.b16 %v266
  %v1211 = vunpack.c.l.b16 %v267
  %v1212 = vunpack.c.l.b16 %v268
  %v1213 = vunpack.c.l.b16 %v269
  %v1214 = vunpack.c.l.b16 %v270
  %v1215 = vunpack.c.l.b16 %v271
  %v1216 = vunpack.c.l.b16 %v272
  %v1217 = vunpack.c.l.b16 %v273
  %v1218 = vunpack.c.l.b16 %v274
  %v1219 = vunpack.c.l.b16 %v275
  %v1220 = vunpack.c.l.b16 %v276
  %v1221 = vunpack.c.l.b16 %v277
  %v1222 = vunpack.c.l.b16 %v278
  %v1223 = vunpack.c.l.b16 %v279
  %v1224 = vunpack.c.l.b16 %v280
  %v1225 = vunpack.c.l.b16 %v281
  %v1226 = vunpack.c.l.b16 %v282
  %v1227 = vunpack.c.l.b16 %v283
  %v1228 = vunpack.c.l.b16 %v284
  %v1229 = vpack.c.b16 %v1158, %v1157
  %v1230 = vpack.c.b16 %v1160, %v1159
  %v1231 = vpack.c.b16 %v1162, %v1161
  %v1232 = vpack.c.b16 %v1164, %v1163
  %v1233 = vpack.c.b16 %v1166, %v1165
  %v1234 = vpack.c.b16 %v1168, %v1167
  %v1235 = vpack.c.b16 %v1170, %v1169
  %v1236 = vpack.c.b16 %v1172, %v1171
  %v1237 = vpack.c.b16 %v1174, %v1173
  %v1238 = vpack.c.b16 %v1176, %v1175
  %v1239 = vpack.c.b16 %v1178, %v1177
  %v1240 = vpack.c.b16 %v1180, %v1179
  %v1241 = vpack.c.b16 %v1182, %v1181
  %v1242 = vpack.c.b16 %v1184, %v1183
  %v1243 = vpack.c.b16 %v1186, %v1185
  %v1244 = vpack.c.b16 %v1188, %v1187
  %v1245 = vpack.c.b16 %v1190, %v1189
  %v1246 = vpack.c.b16 %v1192, %v1191
  %v1247 = vpack.c.b16 %v1194, %v1193
  %v1248 = vpack.c.b16 %v1196, %v1195
  %v1249 = vpack.c.b16 %v1198, %v1197
  %v1250 = vpack.c.b16 %v1200, %v1199
  %v1251 = vpack.c.b16 %v1202, %v1201
  %v1252 = vpack.c.b16 %v1204, %v1203
  %v1253 = vpack.c.b16 %v1206, %v1205
  %v1254 = vpack.c.b16 %v1208, %v1207
  %v1255 = vpack.c.b16 %v1210, %v1209
  %v1256 = vpack.c.b16 %v1212, %v1211
  %v1257 = vpack.c.b16 %v1214, %v1213
  %v1258 = vpack.c.b16 %v1216, %v1215
  %v1259 = vpack.c.b16 %v1218, %v1217
  %v1260 = vpack.c.b16 %v1220, %v1219
  %v1261 = vpack.c.b16 %v1222, %v1221
  %v1262 = vpack.c.b16 %v1224, %v1223
  %v1263 = vpack.c.b16 %v1226, %v1225
  %v1264 = vpack.c.b16 %v1228, %v1227
  %vm1301 = vcmask 523264
  %v1303 = vsel %vm1301, %v801, 0
  %v1306 = vsel %vm1301, %v806, 0
  %v1309 = vsel %vm1301, %v811, 0
  %v1312 = vsel %vm1301, %v816, 0
  %v1315 = vsel %vm1301, %v821, 0
  %v1318 = vsel %vm1301, %v826, 0
  %v1321 = vsel %vm1301, %v831, 0
  %v1324 = vsel %vm1301, %v836, 0
  %v1327 = vsel %vm1301, %v841, 0
  %v1330 = vsel %vm1301, %v846, 0
  %v1333 = vsel %vm1301, %v851, 0
  %v1336 = vsel %vm1301, %v856, 0
  %v1339 = vsel %vm1301, %v861, 0
  %v1342 = vsel %vm1301, %v866, 0
  %v1345 = vsel %vm1301, %v871, 0
  %v1348 = vsel %vm1301, %v876, 0
  %v1351 = vsel %vm1301, %v881, 0
  %v1354 = vsel %vm1301, %v886, 0
  %v1357 = vsel %vm1301, %v891, 0
  %v1360 = vsel %vm1301, %v896, 0
  %v1363 = vsel %vm1301, %v901, 0
  %v1366 = vsel %vm1301, %v906, 0
  %v1369 = vsel %vm1301, %v911, 0
  %v1372 = vsel %vm1301, %v916, 0
  %v1375 = vsel %vm1301, %v921, 0
  %v1378 = vsel %vm1301, %v926, 0
  %v1381 = vsel %vm1301, %v931, 0
  %v1384 = vsel %vm1301, %v936, 0
  %v1387 = vsel %vm1301, %v941, 0
  %v1390 = vsel %vm1301, %v946, 0
  %v1393 = vsel %vm1301, %v951, 0
  %v1396 = vsel %vm1301, %v956, 0
  %1398 = vmatprep.subr.bf16.mxu0 0
  %1399 = vmatpush1.bf16.msra.mxu0 %v1229
  %1400 = vmatprep.subr.bf16.mxu0 0
  %1401 = vmatpush1.bf16.msra.mxu0 %v1230
  %1402 = vmatprep.subr.bf16.mxu0 0
  %1403 = vmatpush1.bf16.msra.mxu0 %v1231
  %1404 = vmatprep.subr.bf16.mxu0 0
  %1405 = vmatpush1.bf16.msra.mxu0 %v1232
  %1406 = vmatprep.subr.bf16.mxu0 0
  %1407 = vmatpush1.bf16.msra.mxu0 %v1233
  %1408 = vmatprep.subr.bf16.mxu0 0
  %1409 = vmatpush1.bf16.msra.mxu0 %v1234
  %1410 = vmatprep.subr.bf16.mxu0 0
  %1411 = vmatpush1.bf16.msra.mxu0 %v1235
  %1412 = vmatprep.subr.bf16.mxu0 0
  %1413 = vmatpush1.bf16.msra.mxu0 %v1236
  %1414 = vmatprep.subr.bf16.mxu0 0
  %1415 = vmatpush1.bf16.msra.mxu0 %v1237
  %1416 = vmatprep.subr.bf16.mxu0 0
  %1417 = vmatpush1.bf16.msra.mxu0 %v1238
  %1418 = vmatprep.subr.bf16.mxu0 0
  %1419 = vmatpush1.bf16.msra.mxu0 %v1239
  %1420 = vmatprep.subr.bf16.mxu0 0
  %1421 = vmatpush1.bf16.msra.mxu0 %v1240
  %1422 = vmatprep.subr.bf16.mxu0 0
  %1423 = vmatpush1.bf16.msra.mxu0 %v1241
  %1424 = vmatprep.subr.bf16.mxu0 0
  %1425 = vmatpush1.bf16.msra.mxu0 %v1242
  %1426 = vmatprep.subr.bf16.mxu0 0
  %1427 = vmatpush1.bf16.msra.mxu0 %v1243
  %1428 = vmatprep.subr.bf16.mxu0 0
  %1429 = vmatpush1.bf16.msra.mxu0 %v1244
  %1430 = vmatprep.mubr.bf16.mxu0 %v798
  %1431 = vmatmul.mubr.bf16.gmra.mrb[0].mxu0 %v797
  %v1432 = vpop.f32.mrb[0].mxu0
  %v1433 = vadd.f32 0.0, %v1432
  %v1434 = vpop.f32.mrb[0].mxu0
  %v1435 = vpop.f32.mrb[0].mxu0
  %v1436 = vadd.f32 0.0, %v1435
  %v1437 = vpop.f32.mrb[0].mxu0
  %1438 = vmatprep.mubr.bf16.mxu0 %v803
  %1439 = vmatmul.mubr.bf16.gmra.mrb[0].mxu0 %v802
  %v1440 = vpop.f32.mrb[0].mxu0
  %v1441 = vadd.f32 0.0, %v1440
  %v1442 = vpop.f32.mrb[0].mxu0
  %v1443 = vpop.f32.mrb[0].mxu0
  %v1444 = vadd.f32 0.0, %v1443
  %v1445 = vpop.f32.mrb[0].mxu0
  %1446 = vmatprep.mubr.bf16.mxu0 %v808
  %1447 = vmatmul.mubr.bf16.gmra.mrb[0].mxu0 %v807
  %v1448 = vpop.f32.mrb[0].mxu0
  %v1449 = vadd.f32 0.0, %v1448
  %v1450 = vpop.f32.mrb[0].mxu0
  %v1451 = vpop.f32.mrb[0].mxu0
  %v1452 = vadd.f32 0.0, %v1451
  %v1453 = vpop.f32.mrb[0].mxu0
  %1454 = vmatprep.mubr.bf16.mxu0 %v813
  %1455 = vmatmul.mubr.bf16.gmra.mrb[0].mxu0 %v812
  %v1456 = vpop.f32.mrb[0].mxu0
  %v1457 = vadd.f32 0.0, %v1456
  %v1458 = vpop.f32.mrb[0].mxu0
  %v1459 = vpop.f32.mrb[0].mxu0
  %v1460 = vadd.f32 0.0, %v1459
  %v1461 = vpop.f32.mrb[0].mxu0
  %1462 = vmatprep.mubr.bf16.mxu0 %v818
  %1463 = vmatmul.mubr.bf16.gmra.mrb[0].mxu0 %v817
  %v1464 = vpop.f32.mrb[0].mxu0
  %v1465 = vadd.f32 0.0, %v1464
  %v1466 = vpop.f32.mrb[0].mxu0
  %v1467 = vpop.f32.mrb[0].mxu0
  %v1468 = vadd.f32 0.0, %v1467
  %v1469 = vpop.f32.mrb[0].mxu0
  %1470 = vmatprep.mubr.bf16.mxu0 %v823
  %1471 = vmatmul.mubr.bf16.gmra.mrb[0].mxu0 %v822
  %v1472 = vpop.f32.mrb[0].mxu0
  %v1473 = vadd.f32 0.0, %v1472
  %v1474 = vpop.f32.mrb[0].mxu0
  %v1475 = vpop.f32.mrb[0].mxu0
  %v1476 = vadd.f32 0.0, %v1475
  %v1477 = vpop.f32.mrb[0].mxu0
  %1478 = vmatprep.mubr.bf16.mxu0 %v828
  %1479 = vmatmul.mubr.bf16.gmra.mrb[0].mxu0 %v827
  %v1480 = vpop.f32.mrb[0].mxu0
  %v1481 = vadd.f32 0.0, %v1480
  %v1482 = vpop.f32.mrb[0].mxu0
  %v1483 = vpop.f32.mrb[0].mxu0
  %v1484 = vadd.f32 0.0, %v1483
  %v1485 = vpop.f32.mrb[0].mxu0
  %1486 = vmatprep.mubr.bf16.mxu0 %v833
  %1487 = vmatmul.mubr.bf16.gmra.mrb[0].mxu0 %v832
  %v1488 = vpop.f32.mrb[0].mxu0
  %v1489 = vadd.f32 0.0, %v1488
  %v1490 = vpop.f32.mrb[0].mxu0
  %v1491 = vpop.f32.mrb[0].mxu0
  %v1492 = vadd.f32 0.0, %v1491
  %v1493 = vpop.f32.mrb[0].mxu0
  %1494 = vmatprep.mubr.bf16.mxu0 %v838
  %1495 = vmatmul.mubr.bf16.gmra.mrb[0].mxu0 %v837
  %v1496 = vpop.f32.mrb[0].mxu0
  %v1497 = vadd.f32 0.0, %v1496
  %v1498 = vpop.f32.mrb[0].mxu0
  %v1499 = vpop.f32.mrb[0].mxu0
  %v1500 = vadd.f32 0.0, %v1499
  %v1501 = vpop.f32.mrb[0].mxu0
  %1502 = vmatprep.mubr.bf16.mxu0 %v843
  %1503 = vmatmul.mubr.bf16.gmra.mrb[0].mxu0 %v842
  %v1504 = vpop.f32.mrb[0].mxu0
  %v1505 = vadd.f32 0.0, %v1504
  %v1506 = vpop.f32.mrb[0].mxu0
  %v1507 = vpop.f32.mrb[0].mxu0
  %v1508 = vadd.f32 0.0, %v1507
  %v1509 = vpop.f32.mrb[0].mxu0
  %1510 = vmatprep.mubr.bf16.mxu0 %v848
  %1511 = vmatmul.mubr.bf16.gmra.mrb[0].mxu0 %v847
  %v1512 = vpop.f32.mrb[0].mxu0
  %v1513 = vadd.f32 0.0, %v1512
  %v1514 = vpop.f32.mrb[0].mxu0
  %v1515 = vpop.f32.mrb[0].mxu0
  %v1516 = vadd.f32 0.0, %v1515
  %v1517 = vpop.f32.mrb[0].mxu0
  %1518 = vmatprep.mubr.bf16.mxu0 %v853
  %1519 = vmatmul.mubr.bf16.gmra.mrb[0].mxu0 %v852
  %v1520 = vpop.f32.mrb[0].mxu0
  %v1521 = vadd.f32 0.0, %v1520
  %v1522 = vpop.f32.mrb[0].mxu0
  %v1523 = vpop.f32.mrb[0].mxu0
  %v1524 = vadd.f32 0.0, %v1523
  %v1525 = vpop.f32.mrb[0].mxu0
  %1526 = vmatprep.mubr.bf16.mxu0 %v858
  %1527 = vmatmul.mubr.bf16.gmra.mrb[0].mxu0 %v857
  %v1528 = vpop.f32.mrb[0].mxu0
  %v1529 = vadd.f32 0.0, %v1528
  %v1530 = vpop.f32.mrb[0].mxu0
  %v1531 = vpop.f32.mrb[0].mxu0
  %v1532 = vadd.f32 0.0, %v1531
  %v1533 = vpop.f32.mrb[0].mxu0
  %1534 = vmatprep.mubr.bf16.mxu0 %v863
  %1535 = vmatmul.mubr.bf16.gmra.mrb[0].mxu0 %v862
  %v1536 = vpop.f32.mrb[0].mxu0
  %v1537 = vadd.f32 0.0, %v1536
  %v1538 = vpop.f32.mrb[0].mxu0
  %v1539 = vpop.f32.mrb[0].mxu0
  %v1540 = vadd.f32 0.0, %v1539
  %v1541 = vpop.f32.mrb[0].mxu0
  %1542 = vmatprep.mubr.bf16.mxu0 %v868
  %1543 = vmatmul.mubr.bf16.gmra.mrb[0].mxu0 %v867
  %v1544 = vpop.f32.mrb[0].mxu0
  %v1545 = vadd.f32 0.0, %v1544
  %v1546 = vpop.f32.mrb[0].mxu0
  %v1547 = vpop.f32.mrb[0].mxu0
  %v1548 = vadd.f32 0.0, %v1547
  %v1549 = vpop.f32.mrb[0].mxu0
  %1550 = vmatprep.mubr.bf16.mxu0 %v873
  %1551 = vmatmul.mubr.bf16.gmra.mrb[0].mxu0 %v872
  %v1552 = vpop.f32.mrb[0].mxu0
  %v1553 = vadd.f32 0.0, %v1552
  %v1554 = vpop.f32.mrb[0].mxu0
  %v1555 = vpop.f32.mrb[0].mxu0
  %v1556 = vadd.f32 0.0, %v1555
  %v1557 = vpop.f32.mrb[0].mxu0
  %1558 = vmatprep.mubr.bf16.mxu0 %v878
  %1559 = vmatmul.mubr.bf16.gmra.mrb[0].mxu0 %v877
  %v1560 = vpop.f32.mrb[0].mxu0
  %v1561 = vadd.f32 0.0, %v1560
  %v1562 = vpop.f32.mrb[0].mxu0
  %v1563 = vpop.f32.mrb[0].mxu0
  %v1564 = vadd.f32 0.0, %v1563
  %v1565 = vpop.f32.mrb[0].mxu0
  %1566 = vmatprep.mubr.bf16.mxu0 %v883
  %1567 = vmatmul.mubr.bf16.gmra.mrb[0].mxu0 %v882
  %v1568 = vpop.f32.mrb[0].mxu0
  %v1569 = vadd.f32 0.0, %v1568
  %v1570 = vpop.f32.mrb[0].mxu0
  %v1571 = vpop.f32.mrb[0].mxu0
  %v1572 = vadd.f32 0.0, %v1571
  %v1573 = vpop.f32.mrb[0].mxu0
  %1574 = vmatprep.mubr.bf16.mxu0 %v888
  %1575 = vmatmul.mubr.bf16.gmra.mrb[0].mxu0 %v887
  %v1576 = vpop.f32.mrb[0].mxu0
  %v1577 = vadd.f32 0.0, %v1576
  %v1578 = vpop.f32.mrb[0].mxu0
  %v1579 = vpop.f32.mrb[0].mxu0
  %v1580 = vadd.f32 0.0, %v1579
  %v1581 = vpop.f32.mrb[0].mxu0
  %1582 = vmatprep.mubr.bf16.mxu0 %v893
  %1583 = vmatmul.mubr.bf16.gmra.mrb[0].mxu0 %v892
  %v1584 = vpop.f32.mrb[0].mxu0
  %v1585 = vadd.f32 0.0, %v1584
  %v1586 = vpop.f32.mrb[0].mxu0
  %v1587 = vpop.f32.mrb[0].mxu0
  %v1588 = vadd.f32 0.0, %v1587
  %v1589 = vpop.f32.mrb[0].mxu0
  %1590 = vmatprep.mubr.bf16.mxu0 %v898
  %1591 = vmatmul.mubr.bf16.gmra.mrb[0].mxu0 %v897
  %v1592 = vpop.f32.mrb[0].mxu0
  %v1593 = vadd.f32 0.0, %v1592
  %v1594 = vpop.f32.mrb[0].mxu0
  %v1595 = vpop.f32.mrb[0].mxu0
  %v1596 = vadd.f32 0.0, %v1595
  %v1597 = vpop.f32.mrb[0].mxu0
  %1598 = vmatprep.mubr.bf16.mxu0 %v903
  %1599 = vmatmul.mubr.bf16.gmra.mrb[0].mxu0 %v902
  %v1600 = vpop.f32.mrb[0].mxu0
  %v1601 = vadd.f32 0.0, %v1600
  %v1602 = vpop.f32.mrb[0].mxu0
  %v1603 = vpop.f32.mrb[0].mxu0
  %v1604 = vadd.f32 0.0, %v1603
  %v1605 = vpop.f32.mrb[0].mxu0
  %1606 = vmatprep.mubr.bf16.mxu0 %v908
  %1607 = vmatmul.mubr.bf16.gmra.mrb[0].mxu0 %v907
  %v1608 = vpop.f32.mrb[0].mxu0
  %v1609 = vadd.f32 0.0, %v1608
  %v1610 = vpop.f32.mrb[0].mxu0
  %v1611 = vpop.f32.mrb[0].mxu0
  %v1612 = vadd.f32 0.0, %v1611
  %v1613 = vpop.f32.mrb[0].mxu0
  %1614 = vmatprep.mubr.bf16.mxu0 %v913
  %1615 = vmatmul.mubr.bf16.gmra.mrb[0].mxu0 %v912
  %v1616 = vpop.f32.mrb[0].mxu0
  %v1617 = vadd.f32 0.0, %v1616
  %v1618 = vpop.f32.mrb[0].mxu0
  %v1619 = vpop.f32.mrb[0].mxu0
  %v1620 = vadd.f32 0.0, %v1619
  %v1621 = vpop.f32.mrb[0].mxu0
  %1622 = vmatprep.mubr.bf16.mxu0 %v918
  %1623 = vmatmul.mubr.bf16.gmra.mrb[0].mxu0 %v917
  %v1624 = vpop.f32.mrb[0].mxu0
  %v1625 = vadd.f32 0.0, %v1624
  %v1626 = vpop.f32.mrb[0].mxu0
  %v1627 = vpop.f32.mrb[0].mxu0
  %v1628 = vadd.f32 0.0, %v1627
  %v1629 = vpop.f32.mrb[0].mxu0
  %1630 = vmatprep.mubr.bf16.mxu0 %v923
  %1631 = vmatmul.mubr.bf16.gmra.mrb[0].mxu0 %v922
  %v1632 = vpop.f32.mrb[0].mxu0
  %v1633 = vadd.f32 0.0, %v1632
  %v1634 = vpop.f32.mrb[0].mxu0
  %v1635 = vpop.f32.mrb[0].mxu0
  %v1636 = vadd.f32 0.0, %v1635
  %v1637 = vpop.f32.mrb[0].mxu0
  %1638 = vmatprep.mubr.bf16.mxu0 %v928
  %1639 = vmatmul.mubr.bf16.gmra.mrb[0].mxu0 %v927
  %v1640 = vpop.f32.mrb[0].mxu0
  %v1641 = vadd.f32 0.0, %v1640
  %v1642 = vpop.f32.mrb[0].mxu0
  %v1643 = vpop.f32.mrb[0].mxu0
  %v1644 = vadd.f32 0.0, %v1643
  %v1645 = vpop.f32.mrb[0].mxu0
  %1646 = vmatprep.mubr.bf16.mxu0 %v933
  %1647 = vmatmul.mubr.bf16.gmra.mrb[0].mxu0 %v932
  %v1648 = vpop.f32.mrb[0].mxu0
  %v1649 = vadd.f32 0.0, %v1648
  %v1650 = vpop.f32.mrb[0].mxu0
  %v1651 = vpop.f32.mrb[0].mxu0
  %v1652 = vadd.f32 0.0, %v1651
  %v1653 = vpop.f32.mrb[0].mxu0
  %1654 = vmatprep.mubr.bf16.mxu0 %v938
  %1655 = vmatmul.mubr.bf16.gmra.mrb[0].mxu0 %v937
  %v1656 = vpop.f32.mrb[0].mxu0
  %v1657 = vadd.f32 0.0, %v1656
  %v1658 = vpop.f32.mrb[0].mxu0
  %v1659 = vpop.f32.mrb[0].mxu0
  %v1660 = vadd.f32 0.0, %v1659
  %v1661 = vpop.f32.mrb[0].mxu0
  %1662 = vmatprep.mubr.bf16.mxu0 %v943
  %1663 = vmatmul.mubr.bf16.gmra.mrb[0].mxu0 %v942
  %v1664 = vpop.f32.mrb[0].mxu0
  %v1665 = vadd.f32 0.0, %v1664
  %v1666 = vpop.f32.mrb[0].mxu0
  %v1667 = vpop.f32.mrb[0].mxu0
  %v1668 = vadd.f32 0.0, %v1667
  %v1669 = vpop.f32.mrb[0].mxu0
  %1670 = vmatprep.mubr.bf16.mxu0 %v948
  %1671 = vmatmul.mubr.bf16.gmra.mrb[0].mxu0 %v947
  %v1672 = vpop.f32.mrb[0].mxu0
  %v1673 = vadd.f32 0.0, %v1672
  %v1674 = vpop.f32.mrb[0].mxu0
  %v1675 = vpop.f32.mrb[0].mxu0
  %v1676 = vadd.f32 0.0, %v1675
  %v1677 = vpop.f32.mrb[0].mxu0
  %1678 = vmatprep.mubr.bf16.mxu0 %v953
  %1679 = vmatmul.mubr.bf16.gmra.mrb[0].mxu0 %v952
  %v1680 = vpop.f32.mrb[0].mxu0
  %v1681 = vadd.f32 0.0, %v1680
  %v1682 = vpop.f32.mrb[0].mxu0
  %v1683 = vpop.f32.mrb[0].mxu0
  %v1684 = vadd.f32 0.0, %v1683
  %v1685 = vpop.f32.mrb[0].mxu0
  %1686 = vdwg.mxu0
  %1687 = vmatprep.subr.bf16.mxu0 0
  %1688 = vmatpush1.bf16.msra.mxu0 %v1245
  %1689 = vmatprep.subr.bf16.mxu0 0
  %1690 = vmatpush1.bf16.msra.mxu0 %v1246
  %1691 = vmatprep.subr.bf16.mxu0 0
  %1692 = vmatpush1.bf16.msra.mxu0 %v1247
  %1693 = vmatprep.subr.bf16.mxu0 0
  %1694 = vmatpush1.bf16.msra.mxu0 %v1248
  %1695 = vmatprep.subr.bf16.mxu0 0
  %1696 = vmatpush1.bf16.msra.mxu0 %v1249
  %1697 = vmatprep.subr.bf16.mxu0 0
  %1698 = vmatpush1.bf16.msra.mxu0 %v1250
  %1699 = vmatprep.subr.bf16.mxu0 0
  %1700 = vmatpush1.bf16.msra.mxu0 %v1251
  %1701 = vmatprep.subr.bf16.mxu0 0
  %1702 = vmatpush1.bf16.msra.mxu0 %v1252
  %1703 = vmatprep.subr.bf16.mxu0 0
  %1704 = vmatpush1.bf16.msra.mxu0 %v1253
  %1705 = vmatprep.subr.bf16.mxu0 0
  %1706 = vmatpush1.bf16.msra.mxu0 %v1254
  %1707 = vmatprep.subr.bf16.mxu0 0
  %1708 = vmatpush1.bf16.msra.mxu0 %v1255
  %1709 = vmatprep.subr.bf16.mxu0 0
  %1710 = vmatpush1.bf16.msra.mxu0 %v1256
  %1711 = vmatprep.subr.bf16.mxu0 0
  %1712 = vmatpush1.bf16.msra.mxu0 %v1257
  %1713 = vmatprep.subr.bf16.mxu0 0
  %1714 = vmatpush1.bf16.msra.mxu0 %v1258
  %1715 = vmatprep.subr.bf16.mxu0 0
  %1716 = vmatpush1.bf16.msra.mxu0 %v1259
  %1717 = vmatprep.subr.bf16.mxu0 0
  %1718 = vmatpush1.bf16.msra.mxu0 %v1260
  %1719 = vmatprep.mubr.bf16.mxu0 %v800
  %1720 = vmatmul.mubr.bf16.gmra.mrb[0].mxu0 %v799
  %v1721 = vpop.f32.mrb[0].mxu0
  %v1722 = vadd.f32 %v1433, %v1721
  %v1723 = vpop.f32.mrb[0].mxu0
  %v1724 = vpop.f32.mrb[0].mxu0
  %v1725 = vadd.f32 %v1436, %v1724
  %v1726 = vpop.f32.mrb[0].mxu0
  %1727 = vmatprep.mubr.bf16.mxu0 %v805
  %1728 = vmatmul.mubr.bf16.gmra.mrb[0].mxu0 %v804
  %v1729 = vpop.f32.mrb[0].mxu0
  %v1730 = vadd.f32 %v1441, %v1729
  %v1731 = vpop.f32.mrb[0].mxu0
  %v1732 = vpop.f32.mrb[0].mxu0
  %v1733 = vadd.f32 %v1444, %v1732
  %v1734 = vpop.f32.mrb[0].mxu0
  %1735 = vmatprep.mubr.bf16.mxu0 %v810
  %1736 = vmatmul.mubr.bf16.gmra.mrb[0].mxu0 %v809
  %v1737 = vpop.f32.mrb[0].mxu0
  %v1738 = vadd.f32 %v1449, %v1737
  %v1739 = vpop.f32.mrb[0].mxu0
  %v1740 = vpop.f32.mrb[0].mxu0
  %v1741 = vadd.f32 %v1452, %v1740
  %v1742 = vpop.f32.mrb[0].mxu0
  %1743 = vmatprep.mubr.bf16.mxu0 %v815
  %1744 = vmatmul.mubr.bf16.gmra.mrb[0].mxu0 %v814
  %v1745 = vpop.f32.mrb[0].mxu0
  %v1746 = vadd.f32 %v1457, %v1745
  %v1747 = vpop.f32.mrb[0].mxu0
  %v1748 = vpop.f32.mrb[0].mxu0
  %v1749 = vadd.f32 %v1460, %v1748
  %v1750 = vpop.f32.mrb[0].mxu0
  %1751 = vmatprep.mubr.bf16.mxu0 %v820
  %1752 = vmatmul.mubr.bf16.gmra.mrb[0].mxu0 %v819
  %v1753 = vpop.f32.mrb[0].mxu0
  %v1754 = vadd.f32 %v1465, %v1753
  %v1755 = vpop.f32.mrb[0].mxu0
  %v1756 = vpop.f32.mrb[0].mxu0
  %v1757 = vadd.f32 %v1468, %v1756
  %v1758 = vpop.f32.mrb[0].mxu0
  %1759 = vmatprep.mubr.bf16.mxu0 %v825
  %1760 = vmatmul.mubr.bf16.gmra.mrb[0].mxu0 %v824
  %v1761 = vpop.f32.mrb[0].mxu0
  %v1762 = vadd.f32 %v1473, %v1761
  %v1763 = vpop.f32.mrb[0].mxu0
  %v1764 = vpop.f32.mrb[0].mxu0
  %v1765 = vadd.f32 %v1476, %v1764
  %v1766 = vpop.f32.mrb[0].mxu0
  %1767 = vmatprep.mubr.bf16.mxu0 %v830
  %1768 = vmatmul.mubr.bf16.gmra.mrb[0].mxu0 %v829
  %v1769 = vpop.f32.mrb[0].mxu0
  %v1770 = vadd.f32 %v1481, %v1769
  %v1771 = vpop.f32.mrb[0].mxu0
  %v1772 = vpop.f32.mrb[0].mxu0
  %v1773 = vadd.f32 %v1484, %v1772
  %v1774 = vpop.f32.mrb[0].mxu0
  %1775 = vmatprep.mubr.bf16.mxu0 %v835
  %1776 = vmatmul.mubr.bf16.gmra.mrb[0].mxu0 %v834
  %v1777 = vpop.f32.mrb[0].mxu0
  %v1778 = vadd.f32 %v1489, %v1777
  %v1779 = vpop.f32.mrb[0].mxu0
  %v1780 = vpop.f32.mrb[0].mxu0
  %v1781 = vadd.f32 %v1492, %v1780
  %v1782 = vpop.f32.mrb[0].mxu0
  %1783 = vmatprep.mubr.bf16.mxu0 %v840
  %1784 = vmatmul.mubr.bf16.gmra.mrb[0].mxu0 %v839
  %v1785 = vpop.f32.mrb[0].mxu0
  %v1786 = vadd.f32 %v1497, %v1785
  %v1787 = vpop.f32.mrb[0].mxu0
  %v1788 = vpop.f32.mrb[0].mxu0
  %v1789 = vadd.f32 %v1500, %v1788
  %v1790 = vpop.f32.mrb[0].mxu0
  %1791 = vmatprep.mubr.bf16.mxu0 %v845
  %1792 = vmatmul.mubr.bf16.gmra.mrb[0].mxu0 %v844
  %v1793 = vpop.f32.mrb[0].mxu0
  %v1794 = vadd.f32 %v1505, %v1793
  %v1795 = vpop.f32.mrb[0].mxu0
  %v1796 = vpop.f32.mrb[0].mxu0
  %v1797 = vadd.f32 %v1508, %v1796
  %v1798 = vpop.f32.mrb[0].mxu0
  %1799 = vmatprep.mubr.bf16.mxu0 %v850
  %1800 = vmatmul.mubr.bf16.gmra.mrb[0].mxu0 %v849
  %v1801 = vpop.f32.mrb[0].mxu0
  %v1802 = vadd.f32 %v1513, %v1801
  %v1803 = vpop.f32.mrb[0].mxu0
  %v1804 = vpop.f32.mrb[0].mxu0
  %v1805 = vadd.f32 %v1516, %v1804
  %v1806 = vpop.f32.mrb[0].mxu0
  %1807 = vmatprep.mubr.bf16.mxu0 %v855
  %1808 = vmatmul.mubr.bf16.gmra.mrb[0].mxu0 %v854
  %v1809 = vpop.f32.mrb[0].mxu0
  %v1810 = vadd.f32 %v1521, %v1809
  %v1811 = vpop.f32.mrb[0].mxu0
  %v1812 = vpop.f32.mrb[0].mxu0
  %v1813 = vadd.f32 %v1524, %v1812
  %v1814 = vpop.f32.mrb[0].mxu0
  %1815 = vmatprep.mubr.bf16.mxu0 %v860
  %1816 = vmatmul.mubr.bf16.gmra.mrb[0].mxu0 %v859
  %v1817 = vpop.f32.mrb[0].mxu0
  %v1818 = vadd.f32 %v1529, %v1817
  %v1819 = vpop.f32.mrb[0].mxu0
  %v1820 = vpop.f32.mrb[0].mxu0
  %v1821 = vadd.f32 %v1532, %v1820
  %v1822 = vpop.f32.mrb[0].mxu0
  %1823 = vmatprep.mubr.bf16.mxu0 %v865
  %1824 = vmatmul.mubr.bf16.gmra.mrb[0].mxu0 %v864
  %v1825 = vpop.f32.mrb[0].mxu0
  %v1826 = vadd.f32 %v1537, %v1825
  %v1827 = vpop.f32.mrb[0].mxu0
  %v1828 = vpop.f32.mrb[0].mxu0
  %v1829 = vadd.f32 %v1540, %v1828
  %v1830 = vpop.f32.mrb[0].mxu0
  %1831 = vmatprep.mubr.bf16.mxu0 %v870
  %1832 = vmatmul.mubr.bf16.gmra.mrb[0].mxu0 %v869
  %v1833 = vpop.f32.mrb[0].mxu0
  %v1834 = vadd.f32 %v1545, %v1833
  %v1835 = vpop.f32.mrb[0].mxu0
  %v1836 = vpop.f32.mrb[0].mxu0
  %v1837 = vadd.f32 %v1548, %v1836
  %v1838 = vpop.f32.mrb[0].mxu0
  %1839 = vmatprep.mubr.bf16.mxu0 %v875
  %1840 = vmatmul.mubr.bf16.gmra.mrb[0].mxu0 %v874
  %v1841 = vpop.f32.mrb[0].mxu0
  %v1842 = vadd.f32 %v1553, %v1841
  %v1843 = vpop.f32.mrb[0].mxu0
  %v1844 = vpop.f32.mrb[0].mxu0
  %v1845 = vadd.f32 %v1556, %v1844
  %v1846 = vpop.f32.mrb[0].mxu0
  %1847 = vmatprep.mubr.bf16.mxu0 %v880
  %1848 = vmatmul.mubr.bf16.gmra.mrb[0].mxu0 %v879
  %v1849 = vpop.f32.mrb[0].mxu0
  %v1850 = vadd.f32 %v1561, %v1849
  %v1851 = vpop.f32.mrb[0].mxu0
  %v1852 = vpop.f32.mrb[0].mxu0
  %v1853 = vadd.f32 %v1564, %v1852
  %v1854 = vpop.f32.mrb[0].mxu0
  %1855 = vmatprep.mubr.bf16.mxu0 %v885
  %1856 = vmatmul.mubr.bf16.gmra.mrb[0].mxu0 %v884
  %v1857 = vpop.f32.mrb[0].mxu0
  %v1858 = vadd.f32 %v1569, %v1857
  %v1859 = vpop.f32.mrb[0].mxu0
  %v1860 = vpop.f32.mrb[0].mxu0
  %v1861 = vadd.f32 %v1572, %v1860
  %v1862 = vpop.f32.mrb[0].mxu0
  %1863 = vmatprep.mubr.bf16.mxu0 %v890
  %1864 = vmatmul.mubr.bf16.gmra.mrb[0].mxu0 %v889
  %v1865 = vpop.f32.mrb[0].mxu0
  %v1866 = vadd.f32 %v1577, %v1865
  %v1867 = vpop.f32.mrb[0].mxu0
  %v1868 = vpop.f32.mrb[0].mxu0
  %v1869 = vadd.f32 %v1580, %v1868
  %v1870 = vpop.f32.mrb[0].mxu0
  %1871 = vmatprep.mubr.bf16.mxu0 %v895
  %1872 = vmatmul.mubr.bf16.gmra.mrb[0].mxu0 %v894
  %v1873 = vpop.f32.mrb[0].mxu0
  %v1874 = vadd.f32 %v1585, %v1873
  %v1875 = vpop.f32.mrb[0].mxu0
  %v1876 = vpop.f32.mrb[0].mxu0
  %v1877 = vadd.f32 %v1588, %v1876
  %v1878 = vpop.f32.mrb[0].mxu0
  %1879 = vmatprep.mubr.bf16.mxu0 %v900
  %1880 = vmatmul.mubr.bf16.gmra.mrb[0].mxu0 %v899
  %v1881 = vpop.f32.mrb[0].mxu0
  %v1882 = vadd.f32 %v1593, %v1881
  %v1883 = vpop.f32.mrb[0].mxu0
  %v1884 = vpop.f32.mrb[0].mxu0
  %v1885 = vadd.f32 %v1596, %v1884
  %v1886 = vpop.f32.mrb[0].mxu0
  %1887 = vmatprep.mubr.bf16.mxu0 %v905
  %1888 = vmatmul.mubr.bf16.gmra.mrb[0].mxu0 %v904
  %v1889 = vpop.f32.mrb[0].mxu0
  %v1890 = vadd.f32 %v1601, %v1889
  %v1891 = vpop.f32.mrb[0].mxu0
  %v1892 = vpop.f32.mrb[0].mxu0
  %v1893 = vadd.f32 %v1604, %v1892
  %v1894 = vpop.f32.mrb[0].mxu0
  %1895 = vmatprep.mubr.bf16.mxu0 %v910
  %1896 = vmatmul.mubr.bf16.gmra.mrb[0].mxu0 %v909
  %v1897 = vpop.f32.mrb[0].mxu0
  %v1898 = vadd.f32 %v1609, %v1897
  %v1899 = vpop.f32.mrb[0].mxu0
  %v1900 = vpop.f32.mrb[0].mxu0
  %v1901 = vadd.f32 %v1612, %v1900
  %v1902 = vpop.f32.mrb[0].mxu0
  %1903 = vmatprep.mubr.bf16.mxu0 %v915
  %1904 = vmatmul.mubr.bf16.gmra.mrb[0].mxu0 %v914
  %v1905 = vpop.f32.mrb[0].mxu0
  %v1906 = vadd.f32 %v1617, %v1905
  %v1907 = vpop.f32.mrb[0].mxu0
  %v1908 = vpop.f32.mrb[0].mxu0
  %v1909 = vadd.f32 %v1620, %v1908
  %v1910 = vpop.f32.mrb[0].mxu0
  %1911 = vmatprep.mubr.bf16.mxu0 %v920
  %1912 = vmatmul.mubr.bf16.gmra.mrb[0].mxu0 %v919
  %v1913 = vpop.f32.mrb[0].mxu0
  %v1914 = vadd.f32 %v1625, %v1913
  %v1915 = vpop.f32.mrb[0].mxu0
  %v1916 = vpop.f32.mrb[0].mxu0
  %v1917 = vadd.f32 %v1628, %v1916
  %v1918 = vpop.f32.mrb[0].mxu0
  %1919 = vmatprep.mubr.bf16.mxu0 %v925
  %1920 = vmatmul.mubr.bf16.gmra.mrb[0].mxu0 %v924
  %v1921 = vpop.f32.mrb[0].mxu0
  %v1922 = vadd.f32 %v1633, %v1921
  %v1923 = vpop.f32.mrb[0].mxu0
  %v1924 = vpop.f32.mrb[0].mxu0
  %v1925 = vadd.f32 %v1636, %v1924
  %v1926 = vpop.f32.mrb[0].mxu0
  %1927 = vmatprep.mubr.bf16.mxu0 %v930
  %1928 = vmatmul.mubr.bf16.gmra.mrb[0].mxu0 %v929
  %v1929 = vpop.f32.mrb[0].mxu0
  %v1930 = vadd.f32 %v1641, %v1929
  %v1931 = vpop.f32.mrb[0].mxu0
  %v1932 = vpop.f32.mrb[0].mxu0
  %v1933 = vadd.f32 %v1644, %v1932
  %v1934 = vpop.f32.mrb[0].mxu0
  %1935 = vmatprep.mubr.bf16.mxu0 %v935
  %1936 = vmatmul.mubr.bf16.gmra.mrb[0].mxu0 %v934
  %v1937 = vpop.f32.mrb[0].mxu0
  %v1938 = vadd.f32 %v1649, %v1937
  %v1939 = vpop.f32.mrb[0].mxu0
  %v1940 = vpop.f32.mrb[0].mxu0
  %v1941 = vadd.f32 %v1652, %v1940
  %v1942 = vpop.f32.mrb[0].mxu0
  %1943 = vmatprep.mubr.bf16.mxu0 %v940
  %1944 = vmatmul.mubr.bf16.gmra.mrb[0].mxu0 %v939
  %v1945 = vpop.f32.mrb[0].mxu0
  %v1946 = vadd.f32 %v1657, %v1945
  %v1947 = vpop.f32.mrb[0].mxu0
  %v1948 = vpop.f32.mrb[0].mxu0
  %v1949 = vadd.f32 %v1660, %v1948
  %v1950 = vpop.f32.mrb[0].mxu0
  %1951 = vmatprep.mubr.bf16.mxu0 %v945
  %1952 = vmatmul.mubr.bf16.gmra.mrb[0].mxu0 %v944
  %v1953 = vpop.f32.mrb[0].mxu0
  %v1954 = vadd.f32 %v1665, %v1953
  %v1955 = vpop.f32.mrb[0].mxu0
  %v1956 = vpop.f32.mrb[0].mxu0
  %v1957 = vadd.f32 %v1668, %v1956
  %v1958 = vpop.f32.mrb[0].mxu0
  %1959 = vmatprep.mubr.bf16.mxu0 %v950
  %1960 = vmatmul.mubr.bf16.gmra.mrb[0].mxu0 %v949
  %v1961 = vpop.f32.mrb[0].mxu0
  %v1962 = vadd.f32 %v1673, %v1961
  %v1963 = vpop.f32.mrb[0].mxu0
  %v1964 = vpop.f32.mrb[0].mxu0
  %v1965 = vadd.f32 %v1676, %v1964
  %v1966 = vpop.f32.mrb[0].mxu0
  %1967 = vmatprep.mubr.bf16.mxu0 %v955
  %1968 = vmatmul.mubr.bf16.gmra.mrb[0].mxu0 %v954
  %v1969 = vpop.f32.mrb[0].mxu0
  %v1970 = vadd.f32 %v1681, %v1969
  %v1971 = vpop.f32.mrb[0].mxu0
  %v1972 = vpop.f32.mrb[0].mxu0
  %v1973 = vadd.f32 %v1684, %v1972
  %v1974 = vpop.f32.mrb[0].mxu0
  %1975 = vdwg.mxu0
  %1976 = vmatprep.subr.bf16.mxu0 0
  %1977 = vmatpush1.bf16.msra.mxu0 %v1261
  %1978 = vmatprep.subr.bf16.mxu0 0
  %1979 = vmatpush1.bf16.msra.mxu0 %v1262
  %1980 = vmatprep.subr.bf16.mxu0 0
  %1981 = vmatpush1.bf16.msra.mxu0 %v1263
  %1982 = vmatprep.subr.bf16.mxu0 0
  %1983 = vmatpush1.bf16.msra.mxu0 %v1264
  %1984 = vmatprep.subr.bf16.mxu0 0
  %1985 = vmatpush1.bf16.msra.mxu0 0
  %1986 = vmatprep.subr.bf16.mxu0 0
  %1987 = vmatpush1.bf16.msra.mxu0 0
  %1988 = vmatprep.subr.bf16.mxu0 0
  %1989 = vmatpush1.bf16.msra.mxu0 0
  %1990 = vmatprep.subr.bf16.mxu0 0
  %1991 = vmatpush1.bf16.msra.mxu0 0
  %1992 = vmatprep.subr.bf16.mxu0 0
  %1993 = vmatpush1.bf16.msra.mxu0 0
  %1994 = vmatprep.subr.bf16.mxu0 0
  %1995 = vmatpush1.bf16.msra.mxu0 0
  %1996 = vmatprep.subr.bf16.mxu0 0
  %1997 = vmatpush1.bf16.msra.mxu0 0
  %1998 = vmatprep.subr.bf16.mxu0 0
  %1999 = vmatpush1.bf16.msra.mxu0 0
  %2000 = vmatprep.subr.bf16.mxu0 0
  %2001 = vmatpush1.bf16.msra.mxu0 0
  %2002 = vmatprep.subr.bf16.mxu0 0
  %2003 = vmatpush1.bf16.msra.mxu0 0
  %2004 = vmatprep.subr.bf16.mxu0 0
  %2005 = vmatpush1.bf16.msra.mxu0 0
  %2006 = vmatprep.subr.bf16.mxu0 0
  %2007 = vmatpush1.bf16.msra.mxu0 0
  %2008 = vmatprep.mubr.bf16.mxu0 0
  %2009 = vmatmul.mubr.bf16.gmra.mrb[0].mxu0 %v1303
  %v2010 = vpop.f32.mrb[0].mxu0
  %v2011 = vadd.f32 %v1722, %v2010
  %v2012 = vpop.f32.mrb[0].mxu0
  %v2013 = vpop.f32.mrb[0].mxu0
  %v2014 = vadd.f32 %v1725, %v2013
  %v2015 = vpop.f32.mrb[0].mxu0
  %2016 = vmatprep.mubr.bf16.mxu0 0
  %2017 = vmatmul.mubr.bf16.gmra.mrb[0].mxu0 %v1306
  %v2018 = vpop.f32.mrb[0].mxu0
  %v2019 = vadd.f32 %v1730, %v2018
  %v2020 = vpop.f32.mrb[0].mxu0
  %v2021 = vpop.f32.mrb[0].mxu0
  %v2022 = vadd.f32 %v1733, %v2021
  %v2023 = vpop.f32.mrb[0].mxu0
  %2024 = vmatprep.mubr.bf16.mxu0 0
  %2025 = vmatmul.mubr.bf16.gmra.mrb[0].mxu0 %v1309
  %v2026 = vpop.f32.mrb[0].mxu0
  %v2027 = vadd.f32 %v1738, %v2026
  %v2028 = vpop.f32.mrb[0].mxu0
  %v2029 = vpop.f32.mrb[0].mxu0
  %v2030 = vadd.f32 %v1741, %v2029
  %v2031 = vpop.f32.mrb[0].mxu0
  %2032 = vmatprep.mubr.bf16.mxu0 0
  %2033 = vmatmul.mubr.bf16.gmra.mrb[0].mxu0 %v1312
  %v2034 = vpop.f32.mrb[0].mxu0
  %v2035 = vadd.f32 %v1746, %v2034
  %v2036 = vpop.f32.mrb[0].mxu0
  %v2037 = vpop.f32.mrb[0].mxu0
  %v2038 = vadd.f32 %v1749, %v2037
  %v2039 = vpop.f32.mrb[0].mxu0
  %2040 = vmatprep.mubr.bf16.mxu0 0
  %2041 = vmatmul.mubr.bf16.gmra.mrb[0].mxu0 %v1315
  %v2042 = vpop.f32.mrb[0].mxu0
  %v2043 = vadd.f32 %v1754, %v2042
  %v2044 = vpop.f32.mrb[0].mxu0
  %v2045 = vpop.f32.mrb[0].mxu0
  %v2046 = vadd.f32 %v1757, %v2045
  %v2047 = vpop.f32.mrb[0].mxu0
  %2048 = vmatprep.mubr.bf16.mxu0 0
  %2049 = vmatmul.mubr.bf16.gmra.mrb[0].mxu0 %v1318
  %v2050 = vpop.f32.mrb[0].mxu0
  %v2051 = vadd.f32 %v1762, %v2050
  %v2052 = vpop.f32.mrb[0].mxu0
  %v2053 = vpop.f32.mrb[0].mxu0
  %v2054 = vadd.f32 %v1765, %v2053
  %v2055 = vpop.f32.mrb[0].mxu0
  %2056 = vmatprep.mubr.bf16.mxu0 0
  %2057 = vmatmul.mubr.bf16.gmra.mrb[0].mxu0 %v1321
  %v2058 = vpop.f32.mrb[0].mxu0
  %v2059 = vadd.f32 %v1770, %v2058
  %v2060 = vpop.f32.mrb[0].mxu0
  %v2061 = vpop.f32.mrb[0].mxu0
  %v2062 = vadd.f32 %v1773, %v2061
  %v2063 = vpop.f32.mrb[0].mxu0
  %2064 = vmatprep.mubr.bf16.mxu0 0
  %2065 = vmatmul.mubr.bf16.gmra.mrb[0].mxu0 %v1324
  %v2066 = vpop.f32.mrb[0].mxu0
  %v2067 = vadd.f32 %v1778, %v2066
  %v2068 = vpop.f32.mrb[0].mxu0
  %v2069 = vpop.f32.mrb[0].mxu0
  %v2070 = vadd.f32 %v1781, %v2069
  %v2071 = vpop.f32.mrb[0].mxu0
  %2072 = vmatprep.mubr.bf16.mxu0 0
  %2073 = vmatmul.mubr.bf16.gmra.mrb[0].mxu0 %v1327
  %v2074 = vpop.f32.mrb[0].mxu0
  %v2075 = vadd.f32 %v1786, %v2074
  %v2076 = vpop.f32.mrb[0].mxu0
  %v2077 = vpop.f32.mrb[0].mxu0
  %v2078 = vadd.f32 %v1789, %v2077
  %v2079 = vpop.f32.mrb[0].mxu0
  %2080 = vmatprep.mubr.bf16.mxu0 0
  %2081 = vmatmul.mubr.bf16.gmra.mrb[0].mxu0 %v1330
  %v2082 = vpop.f32.mrb[0].mxu0
  %v2083 = vadd.f32 %v1794, %v2082
  %v2084 = vpop.f32.mrb[0].mxu0
  %v2085 = vpop.f32.mrb[0].mxu0
  %v2086 = vadd.f32 %v1797, %v2085
  %v2087 = vpop.f32.mrb[0].mxu0
  %2088 = vmatprep.mubr.bf16.mxu0 0
  %2089 = vmatmul.mubr.bf16.gmra.mrb[0].mxu0 %v1333
  %v2090 = vpop.f32.mrb[0].mxu0
  %v2091 = vadd.f32 %v1802, %v2090
  %v2092 = vpop.f32.mrb[0].mxu0
  %v2093 = vpop.f32.mrb[0].mxu0
  %v2094 = vadd.f32 %v1805, %v2093
  %v2095 = vpop.f32.mrb[0].mxu0
  %2096 = vmatprep.mubr.bf16.mxu0 0
  %2097 = vmatmul.mubr.bf16.gmra.mrb[0].mxu0 %v1336
  %v2098 = vpop.f32.mrb[0].mxu0
  %v2099 = vadd.f32 %v1810, %v2098
  %v2100 = vpop.f32.mrb[0].mxu0
  %v2101 = vpop.f32.mrb[0].mxu0
  %v2102 = vadd.f32 %v1813, %v2101
  %v2103 = vpop.f32.mrb[0].mxu0
  %2104 = vmatprep.mubr.bf16.mxu0 0
  %2105 = vmatmul.mubr.bf16.gmra.mrb[0].mxu0 %v1339
  %v2106 = vpop.f32.mrb[0].mxu0
  %v2107 = vadd.f32 %v1818, %v2106
  %v2108 = vpop.f32.mrb[0].mxu0
  %v2109 = vpop.f32.mrb[0].mxu0
  %v2110 = vadd.f32 %v1821, %v2109
  %v2111 = vpop.f32.mrb[0].mxu0
  %2112 = vmatprep.mubr.bf16.mxu0 0
  %2113 = vmatmul.mubr.bf16.gmra.mrb[0].mxu0 %v1342
  %v2114 = vpop.f32.mrb[0].mxu0
  %v2115 = vadd.f32 %v1826, %v2114
  %v2116 = vpop.f32.mrb[0].mxu0
  %v2117 = vpop.f32.mrb[0].mxu0
  %v2118 = vadd.f32 %v1829, %v2117
  %v2119 = vpop.f32.mrb[0].mxu0
  %2120 = vmatprep.mubr.bf16.mxu0 0
  %2121 = vmatmul.mubr.bf16.gmra.mrb[0].mxu0 %v1345
  %v2122 = vpop.f32.mrb[0].mxu0
  %v2123 = vadd.f32 %v1834, %v2122
  %v2124 = vpop.f32.mrb[0].mxu0
  %v2125 = vpop.f32.mrb[0].mxu0
  %v2126 = vadd.f32 %v1837, %v2125
  %v2127 = vpop.f32.mrb[0].mxu0
  %2128 = vmatprep.mubr.bf16.mxu0 0
  %2129 = vmatmul.mubr.bf16.gmra.mrb[0].mxu0 %v1348
  %v2130 = vpop.f32.mrb[0].mxu0
  %v2131 = vadd.f32 %v1842, %v2130
  %v2132 = vpop.f32.mrb[0].mxu0
  %v2133 = vpop.f32.mrb[0].mxu0
  %v2134 = vadd.f32 %v1845, %v2133
  %v2135 = vpop.f32.mrb[0].mxu0
  %2136 = vmatprep.mubr.bf16.mxu0 0
  %2137 = vmatmul.mubr.bf16.gmra.mrb[0].mxu0 %v1351
  %v2138 = vpop.f32.mrb[0].mxu0
  %v2139 = vadd.f32 %v1850, %v2138
  %v2140 = vpop.f32.mrb[0].mxu0
  %v2141 = vpop.f32.mrb[0].mxu0
  %v2142 = vadd.f32 %v1853, %v2141
  %v2143 = vpop.f32.mrb[0].mxu0
  %2144 = vmatprep.mubr.bf16.mxu0 0
  %2145 = vmatmul.mubr.bf16.gmra.mrb[0].mxu0 %v1354
  %v2146 = vpop.f32.mrb[0].mxu0
  %v2147 = vadd.f32 %v1858, %v2146
  %v2148 = vpop.f32.mrb[0].mxu0
  %v2149 = vpop.f32.mrb[0].mxu0
  %v2150 = vadd.f32 %v1861, %v2149
  %v2151 = vpop.f32.mrb[0].mxu0
  %2152 = vmatprep.mubr.bf16.mxu0 0
  %2153 = vmatmul.mubr.bf16.gmra.mrb[0].mxu0 %v1357
  %v2154 = vpop.f32.mrb[0].mxu0
  %v2155 = vadd.f32 %v1866, %v2154
  %v2156 = vpop.f32.mrb[0].mxu0
  %v2157 = vpop.f32.mrb[0].mxu0
  %v2158 = vadd.f32 %v1869, %v2157
  %v2159 = vpop.f32.mrb[0].mxu0
  %2160 = vmatprep.mubr.bf16.mxu0 0
  %2161 = vmatmul.mubr.bf16.gmra.mrb[0].mxu0 %v1360
  %v2162 = vpop.f32.mrb[0].mxu0
  %v2163 = vadd.f32 %v1874, %v2162
  %v2164 = vpop.f32.mrb[0].mxu0
  %v2165 = vpop.f32.mrb[0].mxu0
  %v2166 = vadd.f32 %v1877, %v2165
  %v2167 = vpop.f32.mrb[0].mxu0
  %2168 = vmatprep.mubr.bf16.mxu0 0
  %2169 = vmatmul.mubr.bf16.gmra.mrb[0].mxu0 %v1363
  %v2170 = vpop.f32.mrb[0].mxu0
  %v2171 = vadd.f32 %v1882, %v2170
  %v2172 = vpop.f32.mrb[0].mxu0
  %v2173 = vpop.f32.mrb[0].mxu0
  %v2174 = vadd.f32 %v1885, %v2173
  %v2175 = vpop.f32.mrb[0].mxu0
  %2176 = vmatprep.mubr.bf16.mxu0 0
  %2177 = vmatmul.mubr.bf16.gmra.mrb[0].mxu0 %v1366
  %v2178 = vpop.f32.mrb[0].mxu0
  %v2179 = vadd.f32 %v1890, %v2178
  %v2180 = vpop.f32.mrb[0].mxu0
  %v2181 = vpop.f32.mrb[0].mxu0
  %v2182 = vadd.f32 %v1893, %v2181
  %v2183 = vpop.f32.mrb[0].mxu0
  %2184 = vmatprep.mubr.bf16.mxu0 0
  %2185 = vmatmul.mubr.bf16.gmra.mrb[0].mxu0 %v1369
  %v2186 = vpop.f32.mrb[0].mxu0
  %v2187 = vadd.f32 %v1898, %v2186
  %v2188 = vpop.f32.mrb[0].mxu0
  %v2189 = vpop.f32.mrb[0].mxu0
  %v2190 = vadd.f32 %v1901, %v2189
  %v2191 = vpop.f32.mrb[0].mxu0
  %2192 = vmatprep.mubr.bf16.mxu0 0
  %2193 = vmatmul.mubr.bf16.gmra.mrb[0].mxu0 %v1372
  %v2194 = vpop.f32.mrb[0].mxu0
  %v2195 = vadd.f32 %v1906, %v2194
  %v2196 = vpop.f32.mrb[0].mxu0
  %v2197 = vpop.f32.mrb[0].mxu0
  %v2198 = vadd.f32 %v1909, %v2197
  %v2199 = vpop.f32.mrb[0].mxu0
  %2200 = vmatprep.mubr.bf16.mxu0 0
  %2201 = vmatmul.mubr.bf16.gmra.mrb[0].mxu0 %v1375
  %v2202 = vpop.f32.mrb[0].mxu0
  %v2203 = vadd.f32 %v1914, %v2202
  %v2204 = vpop.f32.mrb[0].mxu0
  %v2205 = vpop.f32.mrb[0].mxu0
  %v2206 = vadd.f32 %v1917, %v2205
  %v2207 = vpop.f32.mrb[0].mxu0
  %2208 = vmatprep.mubr.bf16.mxu0 0
  %2209 = vmatmul.mubr.bf16.gmra.mrb[0].mxu0 %v1378
  %v2210 = vpop.f32.mrb[0].mxu0
  %v2211 = vadd.f32 %v1922, %v2210
  %v2212 = vpop.f32.mrb[0].mxu0
  %v2213 = vpop.f32.mrb[0].mxu0
  %v2214 = vadd.f32 %v1925, %v2213
  %v2215 = vpop.f32.mrb[0].mxu0
  %2216 = vmatprep.mubr.bf16.mxu0 0
  %2217 = vmatmul.mubr.bf16.gmra.mrb[0].mxu0 %v1381
  %v2218 = vpop.f32.mrb[0].mxu0
  %v2219 = vadd.f32 %v1930, %v2218
  %v2220 = vpop.f32.mrb[0].mxu0
  %v2221 = vpop.f32.mrb[0].mxu0
  %v2222 = vadd.f32 %v1933, %v2221
  %v2223 = vpop.f32.mrb[0].mxu0
  %2224 = vmatprep.mubr.bf16.mxu0 0
  %2225 = vmatmul.mubr.bf16.gmra.mrb[0].mxu0 %v1384
  %v2226 = vpop.f32.mrb[0].mxu0
  %v2227 = vadd.f32 %v1938, %v2226
  %v2228 = vpop.f32.mrb[0].mxu0
  %v2229 = vpop.f32.mrb[0].mxu0
  %v2230 = vadd.f32 %v1941, %v2229
  %v2231 = vpop.f32.mrb[0].mxu0
  %2232 = vmatprep.mubr.bf16.mxu0 0
  %2233 = vmatmul.mubr.bf16.gmra.mrb[0].mxu0 %v1387
  %v2234 = vpop.f32.mrb[0].mxu0
  %v2235 = vadd.f32 %v1946, %v2234
  %v2236 = vpop.f32.mrb[0].mxu0
  %v2237 = vpop.f32.mrb[0].mxu0
  %v2238 = vadd.f32 %v1949, %v2237
  %v2239 = vpop.f32.mrb[0].mxu0
  %2240 = vmatprep.mubr.bf16.mxu0 0
  %2241 = vmatmul.mubr.bf16.gmra.mrb[0].mxu0 %v1390
  %v2242 = vpop.f32.mrb[0].mxu0
  %v2243 = vadd.f32 %v1954, %v2242
  %v2244 = vpop.f32.mrb[0].mxu0
  %v2245 = vpop.f32.mrb[0].mxu0
  %v2246 = vadd.f32 %v1957, %v2245
  %v2247 = vpop.f32.mrb[0].mxu0
  %2248 = vmatprep.mubr.bf16.mxu0 0
  %2249 = vmatmul.mubr.bf16.gmra.mrb[0].mxu0 %v1393
  %v2250 = vpop.f32.mrb[0].mxu0
  %v2251 = vadd.f32 %v1962, %v2250
  %v2252 = vpop.f32.mrb[0].mxu0
  %v2253 = vpop.f32.mrb[0].mxu0
  %v2254 = vadd.f32 %v1965, %v2253
  %v2255 = vpop.f32.mrb[0].mxu0
  %2256 = vmatprep.mubr.bf16.mxu0 0
  %2257 = vmatmul.mubr.bf16.gmra.mrb[0].mxu0 %v1396
  %v2258 = vpop.f32.mrb[0].mxu0
  %v2259 = vadd.f32 %v1970, %v2258
  %v2260 = vpop.f32.mrb[0].mxu0
  %v2261 = vpop.f32.mrb[0].mxu0
  %v2262 = vadd.f32 %v1973, %v2261
  %v2263 = vpop.f32.mrb[0].mxu0
  %2264 = vdwg.mxu0
  %v2265 = vadd.f32 %v2011, %v2014
  %v2266 = vadd.f32 %v2265, %v2019
  %v2267 = vadd.f32 %v2266, %v2022
  %v2268 = vadd.f32 %v2267, %v2027
  %v2269 = vadd.f32 %v2268, %v2030
  %v2270 = vadd.f32 %v2269, %v2035
  %v2271 = vadd.f32 %v2270, %v2038
  %v2272 = vadd.f32 %v2271, %v2043
  %v2273 = vadd.f32 %v2272, %v2046
  %v2274 = vadd.f32 %v2273, %v2051
  %v2275 = vadd.f32 %v2274, %v2054
  %v2276 = vadd.f32 %v2275, %v2059
  %v2277 = vadd.f32 %v2276, %v2062
  %v2278 = vadd.f32 %v2277, %v2067
  %v2279 = vadd.f32 %v2278, %v2070
  %v2280 = vadd.f32 %v2279, %v2075
  %v2281 = vadd.f32 %v2280, %v2078
  %v2282 = vadd.f32 %v2281, %v2083
  %v2283 = vadd.f32 %v2282, %v2086
  %v2284 = vadd.f32 %v2283, %v2091
  %v2285 = vadd.f32 %v2284, %v2094
  %v2286 = vadd.f32 %v2285, %v2099
  %v2287 = vadd.f32 %v2286, %v2102
  %v2288 = vadd.f32 %v2287, %v2107
  %v2289 = vadd.f32 %v2288, %v2110
  %v2290 = vadd.f32 %v2289, %v2115
  %v2291 = vadd.f32 %v2290, %v2118
  %v2292 = vadd.f32 %v2291, %v2123
  %v2293 = vadd.f32 %v2292, %v2126
  %v2294 = vadd.f32 %v2293, %v2131
  %v2295 = vadd.f32 %v2294, %v2134
  %v2296 = vadd.f32 %v2295, %v2139
  %v2297 = vadd.f32 %v2296, %v2142
  %v2298 = vadd.f32 %v2297, %v2147
  %v2299 = vadd.f32 %v2298, %v2150
  %v2300 = vadd.f32 %v2299, %v2155
  %v2301 = vadd.f32 %v2300, %v2158
  %v2302 = vadd.f32 %v2301, %v2163
  %v2303 = vadd.f32 %v2302, %v2166
  %v2304 = vadd.f32 %v2303, %v2171
  %v2305 = vadd.f32 %v2304, %v2174
  %v2306 = vadd.f32 %v2305, %v2179
  %v2307 = vadd.f32 %v2306, %v2182
  %v2308 = vadd.f32 %v2307, %v2187
  %v2309 = vadd.f32 %v2308, %v2190
  %v2310 = vadd.f32 %v2309, %v2195
  %v2311 = vadd.f32 %v2310, %v2198
  %v2312 = vadd.f32 %v2311, %v2203
  %v2313 = vadd.f32 %v2312, %v2206
  %v2314 = vadd.f32 %v2313, %v2211
  %v2315 = vadd.f32 %v2314, %v2214
  %v2316 = vadd.f32 %v2315, %v2219
  %v2317 = vadd.f32 %v2316, %v2222
  %v2318 = vadd.f32 %v2317, %v2227
  %v2319 = vadd.f32 %v2318, %v2230
  %v2320 = vadd.f32 %v2319, %v2235
  %v2321 = vadd.f32 %v2320, %v2238
  %v2322 = vadd.f32 %v2321, %v2243
  %v2323 = vadd.f32 %v2322, %v2246
  %v2324 = vadd.f32 %v2323, %v2251
  %v2325 = vadd.f32 %v2324, %v2254
  %v2326 = vadd.f32 %v2325, %v2259
  %v2327 = vadd.f32 %v2326, %v2262
  %v2328 = vrot.slane %v2327, 4
  %v2329 = vadd.f32 %v2327, %v2328
  %v2330 = vrot.slane %v2329, 2
  %v2331 = vadd.f32 %v2329, %v2330
  %v2332 = vrot.slane %v2331, 1
  %v2333 = vadd.f32 %v2331, %v2332
  %2335 = vrot.lane.b32.xlu0 %v2333, 96
  %v2336 = vpop.permute.xlu0 %2335
  %v2338 = vadd.f32 %v2333, %v2336
  %2339 = vrot.lane.b32.xlu0 %v2333, 64
  %v2340 = vpop.permute.xlu0 %2339
  %v2342 = vadd.f32 %v2338, %v2340
  %2343 = vrot.lane.b32.xlu0 %v2333, 32
  %v2344 = vpop.permute.xlu0 %2343
  %v2346 = vadd.f32 %v2342, %v2344
  %v2347 = vrcp.pop 2048.0
  %v2348 = vmul.f32 %v2346, %v2347
  %2350 = vrot.lane.b32.xlu0 %v2348, 32
  %v2351 = vpop.permute.xlu0 %2350
  %2353 = vrot.lane.b32.xlu0 %v2348, 64
  %v2354 = vpop.permute.xlu0 %2353
  %2356 = vrot.lane.b32.xlu0 %v2348, 96
  %v2357 = vpop.permute.xlu0 %2356
  %vm2359 = vcmask 261120
  %v2360 = vsel %vm2359, %v2348, %v2351
  %v2361 = vsel %vm1301, %v2360, %v2354
  %vm2362 = vcmask 785408
  %v2363 = vsel %vm2362, %v2361, %v2357
  %v2364 = vlaneseq
  %v2365 = vshrl.u32 %v2364, 7
  %v2366 = vsub.s32 0, %v2365
  %v2367 = vrot.slane %v2363, %v2366
  %v2368 = vsub.f32 %v2011, %v2367
  %v2369 = vsub.f32 %v2014, %v2367
  %v2370 = vsub.f32 %v2019, %v2367
  %v2371 = vsub.f32 %v2022, %v2367
  %v2372 = vsub.f32 %v2027, %v2367
  %v2373 = vsub.f32 %v2030, %v2367
  %v2374 = vsub.f32 %v2035, %v2367
  %v2375 = vsub.f32 %v2038, %v2367
  %v2376 = vsub.f32 %v2043, %v2367
  %v2377 = vsub.f32 %v2046, %v2367
  %v2378 = vsub.f32 %v2051, %v2367
  %v2379 = vsub.f32 %v2054, %v2367
  %v2380 = vsub.f32 %v2059, %v2367
  %v2381 = vsub.f32 %v2062, %v2367
  %v2382 = vsub.f32 %v2067, %v2367
  %v2383 = vsub.f32 %v2070, %v2367
  %v2384 = vsub.f32 %v2075, %v2367
  %v2385 = vsub.f32 %v2078, %v2367
  %v2386 = vsub.f32 %v2083, %v2367
  %v2387 = vsub.f32 %v2086, %v2367
  %v2388 = vsub.f32 %v2091, %v2367
  %v2389 = vsub.f32 %v2094, %v2367
  %v2390 = vsub.f32 %v2099, %v2367
  %v2391 = vsub.f32 %v2102, %v2367
  %v2392 = vsub.f32 %v2107, %v2367
  %v2393 = vsub.f32 %v2110, %v2367
  %v2394 = vsub.f32 %v2115, %v2367
  %v2395 = vsub.f32 %v2118, %v2367
  %v2396 = vsub.f32 %v2123, %v2367
  %v2397 = vsub.f32 %v2126, %v2367
  %v2398 = vsub.f32 %v2131, %v2367
  %v2399 = vsub.f32 %v2134, %v2367
  %v2400 = vsub.f32 %v2139, %v2367
  %v2401 = vsub.f32 %v2142, %v2367
  %v2402 = vsub.f32 %v2147, %v2367
  %v2403 = vsub.f32 %v2150, %v2367
  %v2404 = vsub.f32 %v2155, %v2367
  %v2405 = vsub.f32 %v2158, %v2367
  %v2406 = vsub.f32 %v2163, %v2367
  %v2407 = vsub.f32 %v2166, %v2367
  %v2408 = vsub.f32 %v2171, %v2367
  %v2409 = vsub.f32 %v2174, %v2367
  %v2410 = vsub.f32 %v2179, %v2367
  %v2411 = vsub.f32 %v2182, %v2367
  %v2412 = vsub.f32 %v2187, %v2367
  %v2413 = vsub.f32 %v2190, %v2367
  %v2414 = vsub.f32 %v2195, %v2367
  %v2415 = vsub.f32 %v2198, %v2367
  %v2416 = vsub.f32 %v2203, %v2367
  %v2417 = vsub.f32 %v2206, %v2367
  %v2418 = vsub.f32 %v2211, %v2367
  %v2419 = vsub.f32 %v2214, %v2367
  %v2420 = vsub.f32 %v2219, %v2367
  %v2421 = vsub.f32 %v2222, %v2367
  %v2422 = vsub.f32 %v2227, %v2367
  %v2423 = vsub.f32 %v2230, %v2367
  %v2424 = vsub.f32 %v2235, %v2367
  %v2425 = vsub.f32 %v2238, %v2367
  %v2426 = vsub.f32 %v2243, %v2367
  %v2427 = vsub.f32 %v2246, %v2367
  %v2428 = vsub.f32 %v2251, %v2367
  %v2429 = vsub.f32 %v2254, %v2367
  %v2430 = vsub.f32 %v2259, %v2367
  %v2431 = vsub.f32 %v2262, %v2367
  %v2432 = vmul.f32 %v2368, %v2368
  %v2433 = vmul.f32 %v2369, %v2369
  %v2434 = vmul.f32 %v2370, %v2370
  %v2435 = vmul.f32 %v2371, %v2371
  %v2436 = vmul.f32 %v2372, %v2372
  %v2437 = vmul.f32 %v2373, %v2373
  %v2438 = vmul.f32 %v2374, %v2374
  %v2439 = vmul.f32 %v2375, %v2375
  %v2440 = vmul.f32 %v2376, %v2376
  %v2441 = vmul.f32 %v2377, %v2377
  %v2442 = vmul.f32 %v2378, %v2378
  %v2443 = vmul.f32 %v2379, %v2379
  %v2444 = vmul.f32 %v2380, %v2380
  %v2445 = vmul.f32 %v2381, %v2381
  %v2446 = vmul.f32 %v2382, %v2382
  %v2447 = vmul.f32 %v2383, %v2383
  %v2448 = vmul.f32 %v2384, %v2384
  %v2449 = vmul.f32 %v2385, %v2385
  %v2450 = vmul.f32 %v2386, %v2386
  %v2451 = vmul.f32 %v2387, %v2387
  %v2452 = vmul.f32 %v2388, %v2388
  %v2453 = vmul.f32 %v2389, %v2389
  %v2454 = vmul.f32 %v2390, %v2390
  %v2455 = vmul.f32 %v2391, %v2391
  %v2456 = vmul.f32 %v2392, %v2392
  %v2457 = vmul.f32 %v2393, %v2393
  %v2458 = vmul.f32 %v2394, %v2394
  %v2459 = vmul.f32 %v2395, %v2395
  %v2460 = vmul.f32 %v2396, %v2396
  %v2461 = vmul.f32 %v2397, %v2397
  %v2462 = vmul.f32 %v2398, %v2398
  %v2463 = vmul.f32 %v2399, %v2399
  %v2464 = vmul.f32 %v2400, %v2400
  %v2465 = vmul.f32 %v2401, %v2401
  %v2466 = vmul.f32 %v2402, %v2402
  %v2467 = vmul.f32 %v2403, %v2403
  %v2468 = vmul.f32 %v2404, %v2404
  %v2469 = vmul.f32 %v2405, %v2405
  %v2470 = vmul.f32 %v2406, %v2406
  %v2471 = vmul.f32 %v2407, %v2407
  %v2472 = vmul.f32 %v2408, %v2408
  %v2473 = vmul.f32 %v2409, %v2409
  %v2474 = vmul.f32 %v2410, %v2410
  %v2475 = vmul.f32 %v2411, %v2411
  %v2476 = vmul.f32 %v2412, %v2412
  %v2477 = vmul.f32 %v2413, %v2413
  %v2478 = vmul.f32 %v2414, %v2414
  %v2479 = vmul.f32 %v2415, %v2415
  %v2480 = vmul.f32 %v2416, %v2416
  %v2481 = vmul.f32 %v2417, %v2417
  %v2482 = vmul.f32 %v2418, %v2418
  %v2483 = vmul.f32 %v2419, %v2419
  %v2484 = vmul.f32 %v2420, %v2420
  %v2485 = vmul.f32 %v2421, %v2421
  %v2486 = vmul.f32 %v2422, %v2422
  %v2487 = vmul.f32 %v2423, %v2423
  %v2488 = vmul.f32 %v2424, %v2424
  %v2489 = vmul.f32 %v2425, %v2425
  %v2490 = vmul.f32 %v2426, %v2426
  %v2491 = vmul.f32 %v2427, %v2427
  %v2492 = vmul.f32 %v2428, %v2428
  %v2493 = vmul.f32 %v2429, %v2429
  %v2494 = vmul.f32 %v2430, %v2430
  %v2495 = vmul.f32 %v2431, %v2431
  %v2496 = vadd.f32 %v2432, %v2433
  %v2497 = vadd.f32 %v2496, %v2434
  %v2498 = vadd.f32 %v2497, %v2435
  %v2499 = vadd.f32 %v2498, %v2436
  %v2500 = vadd.f32 %v2499, %v2437
  %v2501 = vadd.f32 %v2500, %v2438
  %v2502 = vadd.f32 %v2501, %v2439
  %v2503 = vadd.f32 %v2502, %v2440
  %v2504 = vadd.f32 %v2503, %v2441
  %v2505 = vadd.f32 %v2504, %v2442
  %v2506 = vadd.f32 %v2505, %v2443
  %v2507 = vadd.f32 %v2506, %v2444
  %v2508 = vadd.f32 %v2507, %v2445
  %v2509 = vadd.f32 %v2508, %v2446
  %v2510 = vadd.f32 %v2509, %v2447
  %v2511 = vadd.f32 %v2510, %v2448
  %v2512 = vadd.f32 %v2511, %v2449
  %v2513 = vadd.f32 %v2512, %v2450
  %v2514 = vadd.f32 %v2513, %v2451
  %v2515 = vadd.f32 %v2514, %v2452
  %v2516 = vadd.f32 %v2515, %v2453
  %v2517 = vadd.f32 %v2516, %v2454
  %v2518 = vadd.f32 %v2517, %v2455
  %v2519 = vadd.f32 %v2518, %v2456
  %v2520 = vadd.f32 %v2519, %v2457
  %v2521 = vadd.f32 %v2520, %v2458
  %v2522 = vadd.f32 %v2521, %v2459
  %v2523 = vadd.f32 %v2522, %v2460
  %v2524 = vadd.f32 %v2523, %v2461
  %v2525 = vadd.f32 %v2524, %v2462
  %v2526 = vadd.f32 %v2525, %v2463
  %v2527 = vadd.f32 %v2526, %v2464
  %v2528 = vadd.f32 %v2527, %v2465
  %v2529 = vadd.f32 %v2528, %v2466
  %v2530 = vadd.f32 %v2529, %v2467
  %v2531 = vadd.f32 %v2530, %v2468
  %v2532 = vadd.f32 %v2531, %v2469
  %v2533 = vadd.f32 %v2532, %v2470
  %v2534 = vadd.f32 %v2533, %v2471
  %v2535 = vadd.f32 %v2534, %v2472
  %v2536 = vadd.f32 %v2535, %v2473
  %v2537 = vadd.f32 %v2536, %v2474
  %v2538 = vadd.f32 %v2537, %v2475
  %v2539 = vadd.f32 %v2538, %v2476
  %v2540 = vadd.f32 %v2539, %v2477
  %v2541 = vadd.f32 %v2540, %v2478
  %v2542 = vadd.f32 %v2541, %v2479
  %v2543 = vadd.f32 %v2542, %v2480
  %v2544 = vadd.f32 %v2543, %v2481
  %v2545 = vadd.f32 %v2544, %v2482
  %v2546 = vadd.f32 %v2545, %v2483
  %v2547 = vadd.f32 %v2546, %v2484
  %v2548 = vadd.f32 %v2547, %v2485
  %v2549 = vadd.f32 %v2548, %v2486
  %v2550 = vadd.f32 %v2549, %v2487
  %v2551 = vadd.f32 %v2550, %v2488
  %v2552 = vadd.f32 %v2551, %v2489
  %v2553 = vadd.f32 %v2552, %v2490
  %v2554 = vadd.f32 %v2553, %v2491
  %v2555 = vadd.f32 %v2554, %v2492
  %v2556 = vadd.f32 %v2555, %v2493
  %v2557 = vadd.f32 %v2556, %v2494
  %v2558 = vadd.f32 %v2557, %v2495
  %v2559 = vrot.slane %v2558, 4
  %v2560 = vadd.f32 %v2558, %v2559
  %v2561 = vrot.slane %v2560, 2
  %v2562 = vadd.f32 %v2560, %v2561
  %v2563 = vrot.slane %v2562, 1
  %v2564 = vadd.f32 %v2562, %v2563
  %2566 = vrot.lane.b32.xlu0 %v2564, 96
  %v2567 = vpop.permute.xlu0 %2566
  %v2569 = vadd.f32 %v2564, %v2567
  %2570 = vrot.lane.b32.xlu0 %v2564, 64
  %v2571 = vpop.permute.xlu0 %2570
  %v2573 = vadd.f32 %v2569, %v2571
  %2574 = vrot.lane.b32.xlu0 %v2564, 32
  %v2575 = vpop.permute.xlu0 %2574
  %v2577 = vadd.f32 %v2573, %v2575
  %v2578 = vmul.f32 %v2577, %v2347
  %2580 = vrot.lane.b32.xlu0 %v2578, 32
  %v2581 = vpop.permute.xlu0 %2580
  %2583 = vrot.lane.b32.xlu0 %v2578, 64
  %v2584 = vpop.permute.xlu0 %2583
  %2586 = vrot.lane.b32.xlu0 %v2578, 96
  %v2587 = vpop.permute.xlu0 %2586
  %v2589 = vsel %vm2359, %v2578, %v2581
  %v2590 = vsel %vm1301, %v2589, %v2584
  %v2591 = vsel %vm2362, %v2590, %v2587
  %v2592 = vadd.f32 %v2591, 1e-05
  %v2593 = vrsqrt.pop %v2592
  %v2594 = vlaneseq
  %v2595 = vshrl.u32 %v2594, 7
  %v2596 = vsub.s32 0, %v2595
  %v2597 = vrot.slane %v2593, %v2596
  %v2598 = vmul.f32 %v2368, %v2597
  %v2599 = vmul.f32 %v2369, %v2597
  %v2600 = vmul.f32 %v2370, %v2597
  %v2601 = vmul.f32 %v2371, %v2597
  %v2602 = vmul.f32 %v2372, %v2597
  %v2603 = vmul.f32 %v2373, %v2597
  %v2604 = vmul.f32 %v2374, %v2597
  %v2605 = vmul.f32 %v2375, %v2597
  %v2606 = vmul.f32 %v2376, %v2597
  %v2607 = vmul.f32 %v2377, %v2597
  %v2608 = vmul.f32 %v2378, %v2597
  %v2609 = vmul.f32 %v2379, %v2597
  %v2610 = vmul.f32 %v2380, %v2597
  %v2611 = vmul.f32 %v2381, %v2597
  %v2612 = vmul.f32 %v2382, %v2597
  %v2613 = vmul.f32 %v2383, %v2597
  %v2614 = vmul.f32 %v2384, %v2597
  %v2615 = vmul.f32 %v2385, %v2597
  %v2616 = vmul.f32 %v2386, %v2597
  %v2617 = vmul.f32 %v2387, %v2597
  %v2618 = vmul.f32 %v2388, %v2597
  %v2619 = vmul.f32 %v2389, %v2597
  %v2620 = vmul.f32 %v2390, %v2597
  %v2621 = vmul.f32 %v2391, %v2597
  %v2622 = vmul.f32 %v2392, %v2597
  %v2623 = vmul.f32 %v2393, %v2597
  %v2624 = vmul.f32 %v2394, %v2597
  %v2625 = vmul.f32 %v2395, %v2597
  %v2626 = vmul.f32 %v2396, %v2597
  %v2627 = vmul.f32 %v2397, %v2597
  %v2628 = vmul.f32 %v2398, %v2597
  %v2629 = vmul.f32 %v2399, %v2597
  %v2630 = vmul.f32 %v2400, %v2597
  %v2631 = vmul.f32 %v2401, %v2597
  %v2632 = vmul.f32 %v2402, %v2597
  %v2633 = vmul.f32 %v2403, %v2597
  %v2634 = vmul.f32 %v2404, %v2597
  %v2635 = vmul.f32 %v2405, %v2597
  %v2636 = vmul.f32 %v2406, %v2597
  %v2637 = vmul.f32 %v2407, %v2597
  %v2638 = vmul.f32 %v2408, %v2597
  %v2639 = vmul.f32 %v2409, %v2597
  %v2640 = vmul.f32 %v2410, %v2597
  %v2641 = vmul.f32 %v2411, %v2597
  %v2642 = vmul.f32 %v2412, %v2597
  %v2643 = vmul.f32 %v2413, %v2597
  %v2644 = vmul.f32 %v2414, %v2597
  %v2645 = vmul.f32 %v2415, %v2597
  %v2646 = vmul.f32 %v2416, %v2597
  %v2647 = vmul.f32 %v2417, %v2597
  %v2648 = vmul.f32 %v2418, %v2597
  %v2649 = vmul.f32 %v2419, %v2597
  %v2650 = vmul.f32 %v2420, %v2597
  %v2651 = vmul.f32 %v2421, %v2597
  %v2652 = vmul.f32 %v2422, %v2597
  %v2653 = vmul.f32 %v2423, %v2597
  %v2654 = vmul.f32 %v2424, %v2597
  %v2655 = vmul.f32 %v2425, %v2597
  %v2656 = vmul.f32 %v2426, %v2597
  %v2657 = vmul.f32 %v2427, %v2597
  %v2658 = vmul.f32 %v2428, %v2597
  %v2659 = vmul.f32 %v2429, %v2597
  %v2660 = vmul.f32 %v2430, %v2597
  %v2661 = vmul.f32 %v2431, %v2597
  %v2662 = vld [vmem:[%s2] sm:$0x1]
  %v2664 = vlaneseq
  %v2665 = vshrl.u32 %v2664, 7
  %v2666 = vsub.s32 0, %v2665
  %v2667 = vrot.slane %v2662, %v2666
  %v2669 = vmul.f32 %v2598, %v2667
  %v2670 = vmul.f32 %v2599, %v2667
  %v2671 = vmul.f32 %v2600, %v2667
  %v2672 = vmul.f32 %v2601, %v2667
  %v2673 = vmul.f32 %v2602, %v2667
  %v2674 = vmul.f32 %v2603, %v2667
  %v2675 = vmul.f32 %v2604, %v2667
  %v2676 = vmul.f32 %v2605, %v2667
  %v2677 = vmul.f32 %v2606, %v2667
  %v2678 = vmul.f32 %v2607, %v2667
  %v2679 = vmul.f32 %v2608, %v2667
  %v2680 = vmul.f32 %v2609, %v2667
  %v2681 = vmul.f32 %v2610, %v2667
  %v2682 = vmul.f32 %v2611, %v2667
  %v2683 = vmul.f32 %v2612, %v2667
  %v2684 = vmul.f32 %v2613, %v2667
  %v2685 = vmul.f32 %v2614, %v2667
  %v2686 = vmul.f32 %v2615, %v2667
  %v2687 = vmul.f32 %v2616, %v2667
  %v2688 = vmul.f32 %v2617, %v2667
  %v2689 = vmul.f32 %v2618, %v2667
  %v2690 = vmul.f32 %v2619, %v2667
  %v2691 = vmul.f32 %v2620, %v2667
  %v2692 = vmul.f32 %v2621, %v2667
  %v2693 = vmul.f32 %v2622, %v2667
  %v2694 = vmul.f32 %v2623, %v2667
  %v2695 = vmul.f32 %v2624, %v2667
  %v2696 = vmul.f32 %v2625, %v2667
  %v2697 = vmul.f32 %v2626, %v2667
  %v2698 = vmul.f32 %v2627, %v2667
  %v2699 = vmul.f32 %v2628, %v2667
  %v2700 = vmul.f32 %v2629, %v2667
  %v2701 = vmul.f32 %v2630, %v2667
  %v2702 = vmul.f32 %v2631, %v2667
  %v2703 = vmul.f32 %v2632, %v2667
  %v2704 = vmul.f32 %v2633, %v2667
  %v2705 = vmul.f32 %v2634, %v2667
  %v2706 = vmul.f32 %v2635, %v2667
  %v2707 = vmul.f32 %v2636, %v2667
  %v2708 = vmul.f32 %v2637, %v2667
  %v2709 = vmul.f32 %v2638, %v2667
  %v2710 = vmul.f32 %v2639, %v2667
  %v2711 = vmul.f32 %v2640, %v2667
  %v2712 = vmul.f32 %v2641, %v2667
  %v2713 = vmul.f32 %v2642, %v2667
  %v2714 = vmul.f32 %v2643, %v2667
  %v2715 = vmul.f32 %v2644, %v2667
  %v2716 = vmul.f32 %v2645, %v2667
  %v2717 = vmul.f32 %v2646, %v2667
  %v2718 = vmul.f32 %v2647, %v2667
  %v2719 = vmul.f32 %v2648, %v2667
  %v2720 = vmul.f32 %v2649, %v2667
  %v2721 = vmul.f32 %v2650, %v2667
  %v2722 = vmul.f32 %v2651, %v2667
  %v2723 = vmul.f32 %v2652, %v2667
  %v2724 = vmul.f32 %v2653, %v2667
  %v2725 = vmul.f32 %v2654, %v2667
  %v2726 = vmul.f32 %v2655, %v2667
  %v2727 = vmul.f32 %v2656, %v2667
  %v2728 = vmul.f32 %v2657, %v2667
  %v2729 = vmul.f32 %v2658, %v2667
  %v2730 = vmul.f32 %v2659, %v2667
  %v2731 = vmul.f32 %v2660, %v2667
  %v2732 = vmul.f32 %v2661, %v2667
  %v2733 = vld [vmem:[%s3] sm:$0x1]
  %v2735 = vlaneseq
  %v2736 = vshrl.u32 %v2735, 7
  %v2737 = vsub.s32 0, %v2736
  %v2738 = vrot.slane %v2733, %v2737
  %v2740 = vadd.f32 %v2669, %v2738
  %v2741 = vadd.f32 %v2670, %v2738
  %v2742 = vadd.f32 %v2671, %v2738
  %v2743 = vadd.f32 %v2672, %v2738
  %v2744 = vadd.f32 %v2673, %v2738
  %v2745 = vadd.f32 %v2674, %v2738
  %v2746 = vadd.f32 %v2675, %v2738
  %v2747 = vadd.f32 %v2676, %v2738
  %v2748 = vadd.f32 %v2677, %v2738
  %v2749 = vadd.f32 %v2678, %v2738
  %v2750 = vadd.f32 %v2679, %v2738
  %v2751 = vadd.f32 %v2680, %v2738
  %v2752 = vadd.f32 %v2681, %v2738
  %v2753 = vadd.f32 %v2682, %v2738
  %v2754 = vadd.f32 %v2683, %v2738
  %v2755 = vadd.f32 %v2684, %v2738
  %v2756 = vadd.f32 %v2685, %v2738
  %v2757 = vadd.f32 %v2686, %v2738
  %v2758 = vadd.f32 %v2687, %v2738
  %v2759 = vadd.f32 %v2688, %v2738
  %v2760 = vadd.f32 %v2689, %v2738
  %v2761 = vadd.f32 %v2690, %v2738
  %v2762 = vadd.f32 %v2691, %v2738
  %v2763 = vadd.f32 %v2692, %v2738
  %v2764 = vadd.f32 %v2693, %v2738
  %v2765 = vadd.f32 %v2694, %v2738
  %v2766 = vadd.f32 %v2695, %v2738
  %v2767 = vadd.f32 %v2696, %v2738
  %v2768 = vadd.f32 %v2697, %v2738
  %v2769 = vadd.f32 %v2698, %v2738
  %v2770 = vadd.f32 %v2699, %v2738
  %v2771 = vadd.f32 %v2700, %v2738
  %v2772 = vadd.f32 %v2701, %v2738
  %v2773 = vadd.f32 %v2702, %v2738
  %v2774 = vadd.f32 %v2703, %v2738
  %v2775 = vadd.f32 %v2704, %v2738
  %v2776 = vadd.f32 %v2705, %v2738
  %v2777 = vadd.f32 %v2706, %v2738
  %v2778 = vadd.f32 %v2707, %v2738
  %v2779 = vadd.f32 %v2708, %v2738
  %v2780 = vadd.f32 %v2709, %v2738
  %v2781 = vadd.f32 %v2710, %v2738
  %v2782 = vadd.f32 %v2711, %v2738
  %v2783 = vadd.f32 %v2712, %v2738
  %v2784 = vadd.f32 %v2713, %v2738
  %v2785 = vadd.f32 %v2714, %v2738
  %v2786 = vadd.f32 %v2715, %v2738
  %v2787 = vadd.f32 %v2716, %v2738
  %v2788 = vadd.f32 %v2717, %v2738
  %v2789 = vadd.f32 %v2718, %v2738
  %v2790 = vadd.f32 %v2719, %v2738
  %v2791 = vadd.f32 %v2720, %v2738
  %v2792 = vadd.f32 %v2721, %v2738
  %v2793 = vadd.f32 %v2722, %v2738
  %v2794 = vadd.f32 %v2723, %v2738
  %v2795 = vadd.f32 %v2724, %v2738
  %v2796 = vadd.f32 %v2725, %v2738
  %v2797 = vadd.f32 %v2726, %v2738
  %v2798 = vadd.f32 %v2727, %v2738
  %v2799 = vadd.f32 %v2728, %v2738
  %v2800 = vadd.f32 %v2729, %v2738
  %v2801 = vadd.f32 %v2730, %v2738
  %v2802 = vadd.f32 %v2731, %v2738
  %v2803 = vadd.f32 %v2732, %v2738
  %v2804 = vmax.f32 %v2740, 0.0
  %v2805 = vmax.f32 %v2741, 0.0
  %v2806 = vmax.f32 %v2742, 0.0
  %v2807 = vmax.f32 %v2743, 0.0
  %v2808 = vmax.f32 %v2744, 0.0
  %v2809 = vmax.f32 %v2745, 0.0
  %v2810 = vmax.f32 %v2746, 0.0
  %v2811 = vmax.f32 %v2747, 0.0
  %v2812 = vmax.f32 %v2748, 0.0
  %v2813 = vmax.f32 %v2749, 0.0
  %v2814 = vmax.f32 %v2750, 0.0
  %v2815 = vmax.f32 %v2751, 0.0
  %v2816 = vmax.f32 %v2752, 0.0
  %v2817 = vmax.f32 %v2753, 0.0
  %v2818 = vmax.f32 %v2754, 0.0
  %v2819 = vmax.f32 %v2755, 0.0
  %v2820 = vmax.f32 %v2756, 0.0
  %v2821 = vmax.f32 %v2757, 0.0
  %v2822 = vmax.f32 %v2758, 0.0
  %v2823 = vmax.f32 %v2759, 0.0
  %v2824 = vmax.f32 %v2760, 0.0
  %v2825 = vmax.f32 %v2761, 0.0
  %v2826 = vmax.f32 %v2762, 0.0
  %v2827 = vmax.f32 %v2763, 0.0
  %v2828 = vmax.f32 %v2764, 0.0
  %v2829 = vmax.f32 %v2765, 0.0
  %v2830 = vmax.f32 %v2766, 0.0
  %v2831 = vmax.f32 %v2767, 0.0
  %v2832 = vmax.f32 %v2768, 0.0
  %v2833 = vmax.f32 %v2769, 0.0
  %v2834 = vmax.f32 %v2770, 0.0
  %v2835 = vmax.f32 %v2771, 0.0
  %v2836 = vmax.f32 %v2772, 0.0
  %v2837 = vmax.f32 %v2773, 0.0
  %v2838 = vmax.f32 %v2774, 0.0
  %v2839 = vmax.f32 %v2775, 0.0
  %v2840 = vmax.f32 %v2776, 0.0
  %v2841 = vmax.f32 %v2777, 0.0
  %v2842 = vmax.f32 %v2778, 0.0
  %v2843 = vmax.f32 %v2779, 0.0
  %v2844 = vmax.f32 %v2780, 0.0
  %v2845 = vmax.f32 %v2781, 0.0
  %v2846 = vmax.f32 %v2782, 0.0
  %v2847 = vmax.f32 %v2783, 0.0
  %v2848 = vmax.f32 %v2784, 0.0
  %v2849 = vmax.f32 %v2785, 0.0
  %v2850 = vmax.f32 %v2786, 0.0
  %v2851 = vmax.f32 %v2787, 0.0
  %v2852 = vmax.f32 %v2788, 0.0
  %v2853 = vmax.f32 %v2789, 0.0
  %v2854 = vmax.f32 %v2790, 0.0
  %v2855 = vmax.f32 %v2791, 0.0
  %v2856 = vmax.f32 %v2792, 0.0
  %v2857 = vmax.f32 %v2793, 0.0
  %v2858 = vmax.f32 %v2794, 0.0
  %v2859 = vmax.f32 %v2795, 0.0
  %v2860 = vmax.f32 %v2796, 0.0
  %v2861 = vmax.f32 %v2797, 0.0
  %v2862 = vmax.f32 %v2798, 0.0
  %v2863 = vmax.f32 %v2799, 0.0
  %v2864 = vmax.f32 %v2800, 0.0
  %v2865 = vmax.f32 %v2801, 0.0
  %v2866 = vmax.f32 %v2802, 0.0
  %v2867 = vmax.f32 %v2803, 0.0
  %v2868 = vpack.c.bf16 %v2805, %v2804
  %v2869 = vpack.c.bf16 %v2807, %v2806
  %v2870 = vpack.c.bf16 %v2809, %v2808
  %v2871 = vpack.c.bf16 %v2811, %v2810
  %v2872 = vpack.c.bf16 %v2813, %v2812
  %v2873 = vpack.c.bf16 %v2815, %v2814
  %v2874 = vpack.c.bf16 %v2817, %v2816
  %v2875 = vpack.c.bf16 %v2819, %v2818
  %v2876 = vpack.c.bf16 %v2821, %v2820
  %v2877 = vpack.c.bf16 %v2823, %v2822
  %v2878 = vpack.c.bf16 %v2825, %v2824
  %v2879 = vpack.c.bf16 %v2827, %v2826
  %v2880 = vpack.c.bf16 %v2829, %v2828
  %v2881 = vpack.c.bf16 %v2831, %v2830
  %v2882 = vpack.c.bf16 %v2833, %v2832
  %v2883 = vpack.c.bf16 %v2835, %v2834
  %v2884 = vpack.c.bf16 %v2837, %v2836
  %v2885 = vpack.c.bf16 %v2839, %v2838
  %v2886 = vpack.c.bf16 %v2841, %v2840
  %v2887 = vpack.c.bf16 %v2843, %v2842
  %v2888 = vpack.c.bf16 %v2845, %v2844
  %v2889 = vpack.c.bf16 %v2847, %v2846
  %v2890 = vpack.c.bf16 %v2849, %v2848
  %v2891 = vpack.c.bf16 %v2851, %v2850
  %v2892 = vpack.c.bf16 %v2853, %v2852
  %v2893 = vpack.c.bf16 %v2855, %v2854
  %v2894 = vpack.c.bf16 %v2857, %v2856
  %v2895 = vpack.c.bf16 %v2859, %v2858
  %v2896 = vpack.c.bf16 %v2861, %v2860
  %v2897 = vpack.c.bf16 %v2863, %v2862
  %v2898 = vpack.c.bf16 %v2865, %v2864
  %v2899 = vpack.c.bf16 %v2867, %v2866
  %v2900 = vld [vmem:[%s4] sm:$0xf]
  %v2901 = vld [vmem:[%s4 + $0x4] sm:$0xf]
  %v2902 = vld [vmem:[%s4 + $0x8] sm:$0xf]
  %v2903 = vld [vmem:[%s4 + $0xc] sm:$0xf]
  %v2904 = vld [vmem:[%s4 + $0x10] sm:$0xf]
  %v2905 = vld [vmem:[%s4 + $0x14] sm:$0xf]
  %v2906 = vld [vmem:[%s4 + $0x18] sm:$0xf]
  %v2907 = vld [vmem:[%s4 + $0x1c] sm:$0xf]
  %v2908 = vld [vmem:[%s4 + $0x20] sm:$0xf]
  %v2909 = vld [vmem:[%s4 + $0x24] sm:$0xf]
  %v2910 = vld [vmem:[%s4 + $0x28] sm:$0xf]
  %v2911 = vld [vmem:[%s4 + $0x2c] sm:$0xf]
  %v2912 = vld [vmem:[%s4 + $0x30] sm:$0xf]
  %v2913 = vld [vmem:[%s4 + $0x34] sm:$0xf]
  %v2914 = vld [vmem:[%s4 + $0x38] sm:$0xf]
  %v2915 = vld [vmem:[%s4 + $0x3c] sm:$0xf]
  %v2932 = vunpack.c.l.b16 %v2900
  %v2933 = vunpack.c.l.b16 %v2901
  %v2934 = vunpack.c.l.b16 %v2902
  %v2935 = vunpack.c.l.b16 %v2903
  %v2936 = vunpack.c.l.b16 %v2904
  %v2937 = vunpack.c.l.b16 %v2905
  %v2938 = vunpack.c.l.b16 %v2906
  %v2939 = vunpack.c.l.b16 %v2907
  %v2940 = vunpack.c.l.b16 %v2908
  %v2941 = vunpack.c.l.b16 %v2909
  %v2942 = vunpack.c.l.b16 %v2910
  %v2943 = vunpack.c.l.b16 %v2911
  %v2944 = vunpack.c.l.b16 %v2912
  %v2945 = vunpack.c.l.b16 %v2913
  %v2946 = vunpack.c.l.b16 %v2914
  %v2947 = vunpack.c.l.b16 %v2915
  %v2948 = vpack.c.b16 %v2933, %v2932
  %v2949 = vpack.c.b16 %v2935, %v2934
  %v2950 = vpack.c.b16 %v2937, %v2936
  %v2951 = vpack.c.b16 %v2939, %v2938
  %v2952 = vpack.c.b16 %v2941, %v2940
  %v2953 = vpack.c.b16 %v2943, %v2942
  %v2954 = vpack.c.b16 %v2945, %v2944
  %v2955 = vpack.c.b16 %v2947, %v2946
  %2964 = vmatprep.subr.bf16.mxu0 0
  %2965 = vmatpush1.bf16.msra.mxu0 %v2948
  %2966 = vmatprep.subr.bf16.mxu0 0
  %2967 = vmatpush1.bf16.msra.mxu0 %v2949
  %2968 = vmatprep.subr.bf16.mxu0 0
  %2969 = vmatpush1.bf16.msra.mxu0 %v2950
  %2970 = vmatprep.subr.bf16.mxu0 0
  %2971 = vmatpush1.bf16.msra.mxu0 %v2951
  %2972 = vmatprep.subr.bf16.mxu0 0
  %2973 = vmatpush1.bf16.msra.mxu0 %v2952
  %2974 = vmatprep.subr.bf16.mxu0 0
  %2975 = vmatpush1.bf16.msra.mxu0 %v2953
  %2976 = vmatprep.subr.bf16.mxu0 0
  %2977 = vmatpush1.bf16.msra.mxu0 %v2954
  %2978 = vmatprep.subr.bf16.mxu0 0
  %2979 = vmatpush1.bf16.msra.mxu0 %v2955
  %2980 = vmatprep.subr.bf16.mxu0 0
  %2981 = vmatpush1.bf16.msra.mxu0 0
  %2982 = vmatprep.subr.bf16.mxu0 0
  %2983 = vmatpush1.bf16.msra.mxu0 0
  %2984 = vmatprep.subr.bf16.mxu0 0
  %2985 = vmatpush1.bf16.msra.mxu0 0
  %2986 = vmatprep.subr.bf16.mxu0 0
  %2987 = vmatpush1.bf16.msra.mxu0 0
  %2988 = vmatprep.subr.bf16.mxu0 0
  %2989 = vmatpush1.bf16.msra.mxu0 0
  %2990 = vmatprep.subr.bf16.mxu0 0
  %2991 = vmatpush1.bf16.msra.mxu0 0
  %2992 = vmatprep.subr.bf16.mxu0 0
  %2993 = vmatpush1.bf16.msra.mxu0 0
  %2994 = vmatprep.subr.bf16.mxu0 0
  %2995 = vmatpush1.bf16.msra.mxu0 0
  %2996 = vmatprep.mubr.bf16.mxu0 0
  %2997 = vmatmul.mubr.bf16.gmra.mrb[0].mxu0 %v2868
  %v2998 = vpop.f32.mrb[0].mxu0
  %v2999 = vadd.f32 0.0, %v2998
  %v3000 = vpop.f32.mrb[0].mxu0
  %v3001 = vpop.f32.mrb[0].mxu0
  %v3002 = vadd.f32 0.0, %v3001
  %v3003 = vpop.f32.mrb[0].mxu0
  %3004 = vmatprep.mubr.bf16.mxu0 0
  %3005 = vmatmul.mubr.bf16.gmra.mrb[0].mxu0 %v2869
  %v3006 = vpop.f32.mrb[0].mxu0
  %v3007 = vadd.f32 0.0, %v3006
  %v3008 = vpop.f32.mrb[0].mxu0
  %v3009 = vpop.f32.mrb[0].mxu0
  %v3010 = vadd.f32 0.0, %v3009
  %v3011 = vpop.f32.mrb[0].mxu0
  %3012 = vmatprep.mubr.bf16.mxu0 0
  %3013 = vmatmul.mubr.bf16.gmra.mrb[0].mxu0 %v2870
  %v3014 = vpop.f32.mrb[0].mxu0
  %v3015 = vadd.f32 0.0, %v3014
  %v3016 = vpop.f32.mrb[0].mxu0
  %v3017 = vpop.f32.mrb[0].mxu0
  %v3018 = vadd.f32 0.0, %v3017
  %v3019 = vpop.f32.mrb[0].mxu0
  %3020 = vmatprep.mubr.bf16.mxu0 0
  %3021 = vmatmul.mubr.bf16.gmra.mrb[0].mxu0 %v2871
  %v3022 = vpop.f32.mrb[0].mxu0
  %v3023 = vadd.f32 0.0, %v3022
  %v3024 = vpop.f32.mrb[0].mxu0
  %v3025 = vpop.f32.mrb[0].mxu0
  %v3026 = vadd.f32 0.0, %v3025
  %v3027 = vpop.f32.mrb[0].mxu0
  %3028 = vmatprep.mubr.bf16.mxu0 0
  %3029 = vmatmul.mubr.bf16.gmra.mrb[0].mxu0 %v2872
  %v3030 = vpop.f32.mrb[0].mxu0
  %v3031 = vadd.f32 0.0, %v3030
  %v3032 = vpop.f32.mrb[0].mxu0
  %v3033 = vpop.f32.mrb[0].mxu0
  %v3034 = vadd.f32 0.0, %v3033
  %v3035 = vpop.f32.mrb[0].mxu0
  %3036 = vmatprep.mubr.bf16.mxu0 0
  %3037 = vmatmul.mubr.bf16.gmra.mrb[0].mxu0 %v2873
  %v3038 = vpop.f32.mrb[0].mxu0
  %v3039 = vadd.f32 0.0, %v3038
  %v3040 = vpop.f32.mrb[0].mxu0
  %v3041 = vpop.f32.mrb[0].mxu0
  %v3042 = vadd.f32 0.0, %v3041
  %v3043 = vpop.f32.mrb[0].mxu0
  %3044 = vmatprep.mubr.bf16.mxu0 0
  %3045 = vmatmul.mubr.bf16.gmra.mrb[0].mxu0 %v2874
  %v3046 = vpop.f32.mrb[0].mxu0
  %v3047 = vadd.f32 0.0, %v3046
  %v3048 = vpop.f32.mrb[0].mxu0
  %v3049 = vpop.f32.mrb[0].mxu0
  %v3050 = vadd.f32 0.0, %v3049
  %v3051 = vpop.f32.mrb[0].mxu0
  %3052 = vmatprep.mubr.bf16.mxu0 0
  %3053 = vmatmul.mubr.bf16.gmra.mrb[0].mxu0 %v2875
  %v3054 = vpop.f32.mrb[0].mxu0
  %v3055 = vadd.f32 0.0, %v3054
  %v3056 = vpop.f32.mrb[0].mxu0
  %v3057 = vpop.f32.mrb[0].mxu0
  %v3058 = vadd.f32 0.0, %v3057
  %v3059 = vpop.f32.mrb[0].mxu0
  %3060 = vmatprep.mubr.bf16.mxu0 0
  %3061 = vmatmul.mubr.bf16.gmra.mrb[0].mxu0 %v2876
  %v3062 = vpop.f32.mrb[0].mxu0
  %v3063 = vadd.f32 0.0, %v3062
  %v3064 = vpop.f32.mrb[0].mxu0
  %v3065 = vpop.f32.mrb[0].mxu0
  %v3066 = vadd.f32 0.0, %v3065
  %v3067 = vpop.f32.mrb[0].mxu0
  %3068 = vmatprep.mubr.bf16.mxu0 0
  %3069 = vmatmul.mubr.bf16.gmra.mrb[0].mxu0 %v2877
  %v3070 = vpop.f32.mrb[0].mxu0
  %v3071 = vadd.f32 0.0, %v3070
  %v3072 = vpop.f32.mrb[0].mxu0
  %v3073 = vpop.f32.mrb[0].mxu0
  %v3074 = vadd.f32 0.0, %v3073
  %v3075 = vpop.f32.mrb[0].mxu0
  %3076 = vmatprep.mubr.bf16.mxu0 0
  %3077 = vmatmul.mubr.bf16.gmra.mrb[0].mxu0 %v2878
  %v3078 = vpop.f32.mrb[0].mxu0
  %v3079 = vadd.f32 0.0, %v3078
  %v3080 = vpop.f32.mrb[0].mxu0
  %v3081 = vpop.f32.mrb[0].mxu0
  %v3082 = vadd.f32 0.0, %v3081
  %v3083 = vpop.f32.mrb[0].mxu0
  %3084 = vmatprep.mubr.bf16.mxu0 0
  %3085 = vmatmul.mubr.bf16.gmra.mrb[0].mxu0 %v2879
  %v3086 = vpop.f32.mrb[0].mxu0
  %v3087 = vadd.f32 0.0, %v3086
  %v3088 = vpop.f32.mrb[0].mxu0
  %v3089 = vpop.f32.mrb[0].mxu0
  %v3090 = vadd.f32 0.0, %v3089
  %v3091 = vpop.f32.mrb[0].mxu0
  %3092 = vmatprep.mubr.bf16.mxu0 0
  %3093 = vmatmul.mubr.bf16.gmra.mrb[0].mxu0 %v2880
  %v3094 = vpop.f32.mrb[0].mxu0
  %v3095 = vadd.f32 0.0, %v3094
  %v3096 = vpop.f32.mrb[0].mxu0
  %v3097 = vpop.f32.mrb[0].mxu0
  %v3098 = vadd.f32 0.0, %v3097
  %v3099 = vpop.f32.mrb[0].mxu0
  %3100 = vmatprep.mubr.bf16.mxu0 0
  %3101 = vmatmul.mubr.bf16.gmra.mrb[0].mxu0 %v2881
  %v3102 = vpop.f32.mrb[0].mxu0
  %v3103 = vadd.f32 0.0, %v3102
  %v3104 = vpop.f32.mrb[0].mxu0
  %v3105 = vpop.f32.mrb[0].mxu0
  %v3106 = vadd.f32 0.0, %v3105
  %v3107 = vpop.f32.mrb[0].mxu0
  %3108 = vmatprep.mubr.bf16.mxu0 0
  %3109 = vmatmul.mubr.bf16.gmra.mrb[0].mxu0 %v2882
  %v3110 = vpop.f32.mrb[0].mxu0
  %v3111 = vadd.f32 0.0, %v3110
  %v3112 = vpop.f32.mrb[0].mxu0
  %v3113 = vpop.f32.mrb[0].mxu0
  %v3114 = vadd.f32 0.0, %v3113
  %v3115 = vpop.f32.mrb[0].mxu0
  %3116 = vmatprep.mubr.bf16.mxu0 0
  %3117 = vmatmul.mubr.bf16.gmra.mrb[0].mxu0 %v2883
  %v3118 = vpop.f32.mrb[0].mxu0
  %v3119 = vadd.f32 0.0, %v3118
  %v3120 = vpop.f32.mrb[0].mxu0
  %v3121 = vpop.f32.mrb[0].mxu0
  %v3122 = vadd.f32 0.0, %v3121
  %v3123 = vpop.f32.mrb[0].mxu0
  %3124 = vmatprep.mubr.bf16.mxu0 0
  %3125 = vmatmul.mubr.bf16.gmra.mrb[0].mxu0 %v2884
  %v3126 = vpop.f32.mrb[0].mxu0
  %v3127 = vadd.f32 0.0, %v3126
  %v3128 = vpop.f32.mrb[0].mxu0
  %v3129 = vpop.f32.mrb[0].mxu0
  %v3130 = vadd.f32 0.0, %v3129
  %v3131 = vpop.f32.mrb[0].mxu0
  %3132 = vmatprep.mubr.bf16.mxu0 0
  %3133 = vmatmul.mubr.bf16.gmra.mrb[0].mxu0 %v2885
  %v3134 = vpop.f32.mrb[0].mxu0
  %v3135 = vadd.f32 0.0, %v3134
  %v3136 = vpop.f32.mrb[0].mxu0
  %v3137 = vpop.f32.mrb[0].mxu0
  %v3138 = vadd.f32 0.0, %v3137
  %v3139 = vpop.f32.mrb[0].mxu0
  %3140 = vmatprep.mubr.bf16.mxu0 0
  %3141 = vmatmul.mubr.bf16.gmra.mrb[0].mxu0 %v2886
  %v3142 = vpop.f32.mrb[0].mxu0
  %v3143 = vadd.f32 0.0, %v3142
  %v3144 = vpop.f32.mrb[0].mxu0
  %v3145 = vpop.f32.mrb[0].mxu0
  %v3146 = vadd.f32 0.0, %v3145
  %v3147 = vpop.f32.mrb[0].mxu0
  %3148 = vmatprep.mubr.bf16.mxu0 0
  %3149 = vmatmul.mubr.bf16.gmra.mrb[0].mxu0 %v2887
  %v3150 = vpop.f32.mrb[0].mxu0
  %v3151 = vadd.f32 0.0, %v3150
  %v3152 = vpop.f32.mrb[0].mxu0
  %v3153 = vpop.f32.mrb[0].mxu0
  %v3154 = vadd.f32 0.0, %v3153
  %v3155 = vpop.f32.mrb[0].mxu0
  %3156 = vmatprep.mubr.bf16.mxu0 0
  %3157 = vmatmul.mubr.bf16.gmra.mrb[0].mxu0 %v2888
  %v3158 = vpop.f32.mrb[0].mxu0
  %v3159 = vadd.f32 0.0, %v3158
  %v3160 = vpop.f32.mrb[0].mxu0
  %v3161 = vpop.f32.mrb[0].mxu0
  %v3162 = vadd.f32 0.0, %v3161
  %v3163 = vpop.f32.mrb[0].mxu0
  %3164 = vmatprep.mubr.bf16.mxu0 0
  %3165 = vmatmul.mubr.bf16.gmra.mrb[0].mxu0 %v2889
  %v3166 = vpop.f32.mrb[0].mxu0
  %v3167 = vadd.f32 0.0, %v3166
  %v3168 = vpop.f32.mrb[0].mxu0
  %v3169 = vpop.f32.mrb[0].mxu0
  %v3170 = vadd.f32 0.0, %v3169
  %v3171 = vpop.f32.mrb[0].mxu0
  %3172 = vmatprep.mubr.bf16.mxu0 0
  %3173 = vmatmul.mubr.bf16.gmra.mrb[0].mxu0 %v2890
  %v3174 = vpop.f32.mrb[0].mxu0
  %v3175 = vadd.f32 0.0, %v3174
  %v3176 = vpop.f32.mrb[0].mxu0
  %v3177 = vpop.f32.mrb[0].mxu0
  %v3178 = vadd.f32 0.0, %v3177
  %v3179 = vpop.f32.mrb[0].mxu0
  %3180 = vmatprep.mubr.bf16.mxu0 0
  %3181 = vmatmul.mubr.bf16.gmra.mrb[0].mxu0 %v2891
  %v3182 = vpop.f32.mrb[0].mxu0
  %v3183 = vadd.f32 0.0, %v3182
  %v3184 = vpop.f32.mrb[0].mxu0
  %v3185 = vpop.f32.mrb[0].mxu0
  %v3186 = vadd.f32 0.0, %v3185
  %v3187 = vpop.f32.mrb[0].mxu0
  %3188 = vmatprep.mubr.bf16.mxu0 0
  %3189 = vmatmul.mubr.bf16.gmra.mrb[0].mxu0 %v2892
  %v3190 = vpop.f32.mrb[0].mxu0
  %v3191 = vadd.f32 0.0, %v3190
  %v3192 = vpop.f32.mrb[0].mxu0
  %v3193 = vpop.f32.mrb[0].mxu0
  %v3194 = vadd.f32 0.0, %v3193
  %v3195 = vpop.f32.mrb[0].mxu0
  %3196 = vmatprep.mubr.bf16.mxu0 0
  %3197 = vmatmul.mubr.bf16.gmra.mrb[0].mxu0 %v2893
  %v3198 = vpop.f32.mrb[0].mxu0
  %v3199 = vadd.f32 0.0, %v3198
  %v3200 = vpop.f32.mrb[0].mxu0
  %v3201 = vpop.f32.mrb[0].mxu0
  %v3202 = vadd.f32 0.0, %v3201
  %v3203 = vpop.f32.mrb[0].mxu0
  %3204 = vmatprep.mubr.bf16.mxu0 0
  %3205 = vmatmul.mubr.bf16.gmra.mrb[0].mxu0 %v2894
  %v3206 = vpop.f32.mrb[0].mxu0
  %v3207 = vadd.f32 0.0, %v3206
  %v3208 = vpop.f32.mrb[0].mxu0
  %v3209 = vpop.f32.mrb[0].mxu0
  %v3210 = vadd.f32 0.0, %v3209
  %v3211 = vpop.f32.mrb[0].mxu0
  %3212 = vmatprep.mubr.bf16.mxu0 0
  %3213 = vmatmul.mubr.bf16.gmra.mrb[0].mxu0 %v2895
  %v3214 = vpop.f32.mrb[0].mxu0
  %v3215 = vadd.f32 0.0, %v3214
  %v3216 = vpop.f32.mrb[0].mxu0
  %v3217 = vpop.f32.mrb[0].mxu0
  %v3218 = vadd.f32 0.0, %v3217
  %v3219 = vpop.f32.mrb[0].mxu0
  %3220 = vmatprep.mubr.bf16.mxu0 0
  %3221 = vmatmul.mubr.bf16.gmra.mrb[0].mxu0 %v2896
  %v3222 = vpop.f32.mrb[0].mxu0
  %v3223 = vadd.f32 0.0, %v3222
  %v3224 = vpop.f32.mrb[0].mxu0
  %v3225 = vpop.f32.mrb[0].mxu0
  %v3226 = vadd.f32 0.0, %v3225
  %v3227 = vpop.f32.mrb[0].mxu0
  %3228 = vmatprep.mubr.bf16.mxu0 0
  %3229 = vmatmul.mubr.bf16.gmra.mrb[0].mxu0 %v2897
  %v3230 = vpop.f32.mrb[0].mxu0
  %v3231 = vadd.f32 0.0, %v3230
  %v3232 = vpop.f32.mrb[0].mxu0
  %v3233 = vpop.f32.mrb[0].mxu0
  %v3234 = vadd.f32 0.0, %v3233
  %v3235 = vpop.f32.mrb[0].mxu0
  %3236 = vmatprep.mubr.bf16.mxu0 0
  %3237 = vmatmul.mubr.bf16.gmra.mrb[0].mxu0 %v2898
  %v3238 = vpop.f32.mrb[0].mxu0
  %v3239 = vadd.f32 0.0, %v3238
  %v3240 = vpop.f32.mrb[0].mxu0
  %v3241 = vpop.f32.mrb[0].mxu0
  %v3242 = vadd.f32 0.0, %v3241
  %v3243 = vpop.f32.mrb[0].mxu0
  %3244 = vmatprep.mubr.bf16.mxu0 0
  %3245 = vmatmul.mubr.bf16.gmra.mrb[0].mxu0 %v2899
  %v3246 = vpop.f32.mrb[0].mxu0
  %v3247 = vadd.f32 0.0, %v3246
  %v3248 = vpop.f32.mrb[0].mxu0
  %v3249 = vpop.f32.mrb[0].mxu0
  %v3250 = vadd.f32 0.0, %v3249
  %v3251 = vpop.f32.mrb[0].mxu0
  %3252 = vdwg.mxu0
  %v3253 = vtanh.pop %v2999
  %v3254 = vtanh.pop %v3002
  %v3255 = vtanh.pop %v3007
  %v3256 = vtanh.pop %v3010
  %v3257 = vtanh.pop %v3015
  %v3258 = vtanh.pop %v3018
  %v3259 = vtanh.pop %v3023
  %v3260 = vtanh.pop %v3026
  %v3261 = vtanh.pop %v3031
  %v3262 = vtanh.pop %v3034
  %v3263 = vtanh.pop %v3039
  %v3264 = vtanh.pop %v3042
  %v3265 = vtanh.pop %v3047
  %v3266 = vtanh.pop %v3050
  %v3267 = vtanh.pop %v3055
  %v3268 = vtanh.pop %v3058
  %v3269 = vtanh.pop %v3063
  %v3270 = vtanh.pop %v3066
  %v3271 = vtanh.pop %v3071
  %v3272 = vtanh.pop %v3074
  %v3273 = vtanh.pop %v3079
  %v3274 = vtanh.pop %v3082
  %v3275 = vtanh.pop %v3087
  %v3276 = vtanh.pop %v3090
  %v3277 = vtanh.pop %v3095
  %v3278 = vtanh.pop %v3098
  %v3279 = vtanh.pop %v3103
  %v3280 = vtanh.pop %v3106
  %v3281 = vtanh.pop %v3111
  %v3282 = vtanh.pop %v3114
  %v3283 = vtanh.pop %v3119
  %v3284 = vtanh.pop %v3122
  %v3285 = vtanh.pop %v3127
  %v3286 = vtanh.pop %v3130
  %v3287 = vtanh.pop %v3135
  %v3288 = vtanh.pop %v3138
  %v3289 = vtanh.pop %v3143
  %v3290 = vtanh.pop %v3146
  %v3291 = vtanh.pop %v3151
  %v3292 = vtanh.pop %v3154
  %v3293 = vtanh.pop %v3159
  %v3294 = vtanh.pop %v3162
  %v3295 = vtanh.pop %v3167
  %v3296 = vtanh.pop %v3170
  %v3297 = vtanh.pop %v3175
  %v3298 = vtanh.pop %v3178
  %v3299 = vtanh.pop %v3183
  %v3300 = vtanh.pop %v3186
  %v3301 = vtanh.pop %v3191
  %v3302 = vtanh.pop %v3194
  %v3303 = vtanh.pop %v3199
  %v3304 = vtanh.pop %v3202
  %v3305 = vtanh.pop %v3207
  %v3306 = vtanh.pop %v3210
  %v3307 = vtanh.pop %v3215
  %v3308 = vtanh.pop %v3218
  %v3309 = vtanh.pop %v3223
  %v3310 = vtanh.pop %v3226
  %v3311 = vtanh.pop %v3231
  %v3312 = vtanh.pop %v3234
  %v3313 = vtanh.pop %v3239
  %v3314 = vtanh.pop %v3242
  %v3315 = vtanh.pop %v3247
  %v3316 = vtanh.pop %v3250
  %3317 = vst [vmem:[%s5] sm:$0xff] %v3253
  %3318 = vst [vmem:[%s5 + $0x8] sm:$0xff] %v3254
  %3319 = vst [vmem:[%s5 + $0x10] sm:$0xff] %v3255
  %3320 = vst [vmem:[%s5 + $0x18] sm:$0xff] %v3256
  %3321 = vst [vmem:[%s5 + $0x20] sm:$0xff] %v3257
  %3322 = vst [vmem:[%s5 + $0x28] sm:$0xff] %v3258
  %3323 = vst [vmem:[%s5 + $0x30] sm:$0xff] %v3259
  %3324 = vst [vmem:[%s5 + $0x38] sm:$0xff] %v3260
  %3325 = vst [vmem:[%s5 + $0x40] sm:$0xff] %v3261
  %3326 = vst [vmem:[%s5 + $0x48] sm:$0xff] %v3262
  %3327 = vst [vmem:[%s5 + $0x50] sm:$0xff] %v3263
  %3328 = vst [vmem:[%s5 + $0x58] sm:$0xff] %v3264
  %3329 = vst [vmem:[%s5 + $0x60] sm:$0xff] %v3265
  %3330 = vst [vmem:[%s5 + $0x68] sm:$0xff] %v3266
  %3331 = vst [vmem:[%s5 + $0x70] sm:$0xff] %v3267
  %3332 = vst [vmem:[%s5 + $0x78] sm:$0xff] %v3268
  %3333 = vst [vmem:[%s5 + $0x80] sm:$0xff] %v3269
  %3334 = vst [vmem:[%s5 + $0x88] sm:$0xff] %v3270
  %3335 = vst [vmem:[%s5 + $0x90] sm:$0xff] %v3271
  %3336 = vst [vmem:[%s5 + $0x98] sm:$0xff] %v3272
  %3337 = vst [vmem:[%s5 + $0xa0] sm:$0xff] %v3273
  %3338 = vst [vmem:[%s5 + $0xa8] sm:$0xff] %v3274
  %3339 = vst [vmem:[%s5 + $0xb0] sm:$0xff] %v3275
  %3340 = vst [vmem:[%s5 + $0xb8] sm:$0xff] %v3276
  %3341 = vst [vmem:[%s5 + $0xc0] sm:$0xff] %v3277
  %3342 = vst [vmem:[%s5 + $0xc8] sm:$0xff] %v3278
  %3343 = vst [vmem:[%s5 + $0xd0] sm:$0xff] %v3279
  %3344 = vst [vmem:[%s5 + $0xd8] sm:$0xff] %v3280
  %3345 = vst [vmem:[%s5 + $0xe0] sm:$0xff] %v3281
  %3346 = vst [vmem:[%s5 + $0xe8] sm:$0xff] %v3282
  %3347 = vst [vmem:[%s5 + $0xf0] sm:$0xff] %v3283
  %3348 = vst [vmem:[%s5 + $0xf8] sm:$0xff] %v3284
  %3349 = vst [vmem:[%s5 + $0x100] sm:$0xff] %v3285
  %3350 = vst [vmem:[%s5 + $0x108] sm:$0xff] %v3286
  %3351 = vst [vmem:[%s5 + $0x110] sm:$0xff] %v3287
  %3352 = vst [vmem:[%s5 + $0x118] sm:$0xff] %v3288
  %3353 = vst [vmem:[%s5 + $0x120] sm:$0xff] %v3289
  %3354 = vst [vmem:[%s5 + $0x128] sm:$0xff] %v3290
  %3355 = vst [vmem:[%s5 + $0x130] sm:$0xff] %v3291
  %3356 = vst [vmem:[%s5 + $0x138] sm:$0xff] %v3292
  %3357 = vst [vmem:[%s5 + $0x140] sm:$0xff] %v3293
  %3358 = vst [vmem:[%s5 + $0x148] sm:$0xff] %v3294
  %3359 = vst [vmem:[%s5 + $0x150] sm:$0xff] %v3295
  %3360 = vst [vmem:[%s5 + $0x158] sm:$0xff] %v3296
  %3361 = vst [vmem:[%s5 + $0x160] sm:$0xff] %v3297
  %3362 = vst [vmem:[%s5 + $0x168] sm:$0xff] %v3298
  %3363 = vst [vmem:[%s5 + $0x170] sm:$0xff] %v3299
  %3364 = vst [vmem:[%s5 + $0x178] sm:$0xff] %v3300
  %3365 = vst [vmem:[%s5 + $0x180] sm:$0xff] %v3301
  %3366 = vst [vmem:[%s5 + $0x188] sm:$0xff] %v3302
  %3367 = vst [vmem:[%s5 + $0x190] sm:$0xff] %v3303
  %3368 = vst [vmem:[%s5 + $0x198] sm:$0xff] %v3304
  %3369 = vst [vmem:[%s5 + $0x1a0] sm:$0xff] %v3305
  %3370 = vst [vmem:[%s5 + $0x1a8] sm:$0xff] %v3306
  %3371 = vst [vmem:[%s5 + $0x1b0] sm:$0xff] %v3307
  %3372 = vst [vmem:[%s5 + $0x1b8] sm:$0xff] %v3308
  %3373 = vst [vmem:[%s5 + $0x1c0] sm:$0xff] %v3309
  %3374 = vst [vmem:[%s5 + $0x1c8] sm:$0xff] %v3310
  %3375 = vst [vmem:[%s5 + $0x1d0] sm:$0xff] %v3311
  %3376 = vst [vmem:[%s5 + $0x1d8] sm:$0xff] %v3312
  %3377 = vst [vmem:[%s5 + $0x1e0] sm:$0xff] %v3313
  %3378 = vst [vmem:[%s5 + $0x1e8] sm:$0xff] %v3314
  %3379 = vst [vmem:[%s5 + $0x1f0] sm:$0xff] %v3315
  %3380 = vst [vmem:[%s5 + $0x1f8] sm:$0xff] %v3316
  // Predicated region
  $region22: #{generator_forward.7} parent=0 // pred_check
    _
  $region23: #{generator_forward.7} parent=0 // pred_check_branch
    %3382 = sbr.rel (0) target = $region25
  $region24: #{generator_forward.7} parent=0 // pred_region
    _
  $region25: #{generator_forward.7} parent=0 // pred_fallthru
    _
  // Predicated region
  $region26: #{generator_forward.7} parent=0 // pred_check
    _
  $region27: #{generator_forward.7} parent=0 // pred_check_branch
    %3384 = sbr.rel (0) target = $region29
  $region28: #{generator_forward.7} parent=0 // pred_region
    _
  $region29: #{generator_forward.7} parent=0 // pred_fallthru
    _

</llo_original>
